<compile_context>
chip_gen: v7x
topology: tpu7x:2x2x1
jax: 0.10.0
libtpu: 0.0.40
codegen_flags: <defaults>
</compile_context>

<pallas_src>
import functools

import jax
import jax.numpy as jnp
from jax.experimental import pallas as pl
from jax.experimental.pallas import tpu as pltpu

# ----------------------------- config (scaled-down OWLv2) -----------------------------
CFG = dict(
    image_size=32, patch_size=8, channels=3,
    v_hidden=32, v_heads=4, v_layers=2, v_mlp=64,
    t_hidden=32, t_heads=4, t_layers=2, t_mlp=64,
    vocab=64, max_len=8, proj=32,
)
NEG_INF = -1e9


def _parallel_params(n_axes=1):
    try:
        return pltpu.CompilerParams(dimension_semantics=("parallel",) * n_axes)
    except Exception:
        return None


# ----------------------------- in-kernel math helpers -----------------------------
def _ln_math(x, g, b, eps=1e-5):
    mu = jnp.mean(x, axis=-1, keepdims=True)
    xc = x - mu
    var = jnp.mean(xc * xc, axis=-1, keepdims=True)
    return xc * jax.lax.rsqrt(var + eps) * g + b


def _gelu(x):
    # tanh-approx GELU (EUP friendly).
    return 0.5 * x * (1.0 + jnp.tanh(0.7978845608028654 * (x + 0.044715 * x * x * x)))


def _sigmoid(x):
    return pl.reciprocal(1.0 + jnp.exp(-x), approx=True)


def _bf16(x):
    return x.astype(jnp.bfloat16)


def _full_spec(shape):
    zeros = (0,) * len(shape)
    return pl.BlockSpec(shape, lambda i, _z=zeros: _z)


# ----------------------------- fused vision embedding (patch + CLS + pos + pre-LN) --------
def _vision_embed_kernel(x_ref, w_ref, b_ref, pos_ref, g_ref, bb_ref, o_ref):
    # x_ref[0]: (S, Cin+1) — row 0 is the CLS indicator row, rows 1.. are patches.
    pe = jnp.dot(_bf16(x_ref[0]), w_ref[...],
                 preferred_element_type=jnp.float32) + b_ref[...]       # (S, H)
    o_ref[0] = _ln_math(pe + pos_ref[...], g_ref[...], bb_ref[...])


def pallas_vision_embed(x_aug, params):
    B, S, Cw = x_aug.shape
    H = params["v_pos"].shape[-1]
    return pl.pallas_call(
        _vision_embed_kernel,
        grid=(B,),
        in_specs=[pl.BlockSpec((1, S, Cw), lambda b: (b, 0, 0)),
                  _full_spec((Cw, H)), _full_spec((1, H)),
                  _full_spec((S, H)), _full_spec((1, H)), _full_spec((1, H))],
        out_specs=pl.BlockSpec((1, S, H), lambda b: (b, 0, 0)),
        out_shape=jax.ShapeDtypeStruct((B, S, H), jnp.float32),
        compiler_params=_parallel_params(1),
    )(x_aug, params["v_embed_w"], params["v_patch_b"], params["v_pos"],
      params["v_pre_g"], params["v_pre_b"])


# ----------------------------- fused text final-LN + projection -----------------------------
def _ln_linear_kernel(x_ref, g_ref, b_ref, w_ref, o_ref):
    h = _ln_math(x_ref[...], g_ref[...], b_ref[...])
    o_ref[...] = jnp.dot(_bf16(h), w_ref[...], preferred_element_type=jnp.float32)


def pallas_ln_linear(x, gamma, beta, w):
    M, D = x.shape
    N = w.shape[1]
    return pl.pallas_call(
        _ln_linear_kernel,
        grid=(1,),
        in_specs=[_full_spec((M, D)), _full_spec((1, D)), _full_spec((1, D)),
                  _full_spec((D, N))],
        out_specs=_full_spec((M, N)),
        out_shape=jax.ShapeDtypeStruct((M, N), jnp.float32),
    )(x, gamma, beta, w)


# ----------------------------- fused transformer encoder layer -----------------------------
def _encoder_layer_kernel(*refs, num_heads, has_bias):
    if has_bias:
        (x_ref, bias_ref, ln1g, ln1b, wqkv, bqkv, wo, bo,
         ln2g, ln2b, w1, b1, w2, b2, o_ref) = refs
    else:
        (x_ref, ln1g, ln1b, wqkv, bqkv, wo, bo,
         ln2g, ln2b, w1, b1, w2, b2, o_ref) = refs
        bias_ref = None

    x = x_ref[0]                                     # (S, H) f32
    S, H = x.shape
    Dh = H // num_heads

    # ---- LN1 + fused QKV (query scale pre-folded into wqkv/bqkv) ----
    h = _ln_math(x, ln1g[...], ln1b[...])
    qkv = jnp.dot(_bf16(h), wqkv[...], preferred_element_type=jnp.float32) + bqkv[...]

    bias = bias_ref[0] if has_bias else None         # (S, S) shared across heads
    wo_full = wo[...]                                # (H, H) bf16

    # ---- per-head attention; out-projection accumulated per head (no concat) ----
    attn_acc = None
    for hh in range(num_heads):
        lo = hh * Dh
        q_h = qkv[:, lo:lo + Dh]
        k_h = qkv[:, H + lo:H + lo + Dh]
        v_h = qkv[:, 2 * H + lo:2 * H + lo + Dh]
        s = jax.lax.dot_general(_bf16(q_h), _bf16(k_h),
                                (((1,), (1,)), ((), ())),
                                preferred_element_type=jnp.float32)      # (S, S)
        if bias is not None:
            s = s + bias
        s = s - jnp.max(s, axis=-1, keepdims=True)
        p = jnp.exp(s)
        p = p * pl.reciprocal(jnp.sum(p, axis=-1, keepdims=True), approx=True)
        o_h = jnp.dot(_bf16(p), _bf16(v_h), preferred_element_type=jnp.float32)  # (S, Dh)
        part = jnp.dot(_bf16(o_h), wo_full[lo:lo + Dh, :],
                       preferred_element_type=jnp.float32)               # (S, H)
        attn_acc = part if attn_acc is None else attn_acc + part

    x = x + attn_acc + bo[...]

    # ---- MLP ----
    h2 = _ln_math(x, ln2g[...], ln2b[...])
    m = jnp.dot(_bf16(h2), w1[...], preferred_element_type=jnp.float32) + b1[...]
    m = _gelu(m)
    m = jnp.dot(_bf16(m), w2[...], preferred_element_type=jnp.float32) + b2[...]

    o_ref[0] = x + m


_LAYER_WEIGHT_ORDER = ("ln1_g", "ln1_b", "wqkv", "bqkv", "wo", "bo",
                       "ln2_g", "ln2_b", "w1", "b1", "w2", "b2")


def pallas_encoder_layer(x, lp, num_heads, bias=None):
    B, S, H = x.shape
    has_bias = bias is not None

    in_specs = [pl.BlockSpec((1, S, H), lambda b: (b, 0, 0))]
    args = [x]
    if has_bias:
        in_specs.append(pl.BlockSpec((1, S, S), lambda b: (b, 0, 0)))
        args.append(bias)
    for name in _LAYER_WEIGHT_ORDER:
        w = lp[name]
        nd = len(w.shape)
        in_specs.append(pl.BlockSpec(w.shape, lambda b, _z=(0,) * nd: _z))
        args.append(w)

    return pl.pallas_call(
        functools.partial(_encoder_layer_kernel, num_heads=num_heads, has_bias=has_bias),
        grid=(B,),
        in_specs=in_specs,
        out_specs=pl.BlockSpec((1, S, H), lambda b: (b, 0, 0)),
        out_shape=jax.ShapeDtypeStruct((B, S, H), jnp.float32),
        compiler_params=_parallel_params(1),
    )(*args)


# ----------------------------- fused vision post (post-LN + merge + merge-LN) --------------
def _vision_post_kernel(x_ref, pg, pb, mg, mb, o_ref):
    x = _ln_math(x_ref[0], pg[...], pb[...])          # (S, H)
    merged = x * x[0:1, :]                            # multiply by (post-LN'd) CLS token
    o_ref[0] = _ln_math(merged, mg[...], mb[...])     # row 0 is discarded by the caller


def pallas_vision_post(h, post_g, post_b, merge_g, merge_b):
    B, S, H = h.shape
    wspec = pl.BlockSpec((1, H), lambda b: (0, 0))
    return pl.pallas_call(
        _vision_post_kernel,
        grid=(B,),
        in_specs=[pl.BlockSpec((1, S, H), lambda b: (b, 0, 0)),
                  wspec, wspec, wspec, wspec],
        out_specs=pl.BlockSpec((1, S, H), lambda b: (b, 0, 0)),
        out_shape=jax.ShapeDtypeStruct((B, S, H), jnp.float32),
        compiler_params=_parallel_params(1),
    )(h, post_g, post_b, merge_g, merge_b)


# ----------------------------- fused detection heads (gridded over batch) -----------------
def _heads_kernel(feat_ref, wa, ba, wb, bb, wc, bc, bbias_ref, qe_ref, qm_ref,
                  packed_ref, logits_ref, *, H):
    f = _bf16(feat_ref[0])                                                    # (P, H)
    yA = jnp.dot(f, wa[...], preferred_element_type=jnp.float32) + ba[...]    # (P, H+2+2H)

    img_cls = yA[:, :H]                       # class-head dense0
    shift = yA[:, H:H + 1]                    # logit shift
    scale_raw = yA[:, H + 1:H + 2]            # logit scale (pre-ELU)
    z = _gelu(yA[:, H + 2:])                  # [box stage0 | objectness stage0]

    z = jnp.dot(_bf16(z), wb[...], preferred_element_type=jnp.float32) + bb[...]
    z = _gelu(z)
    z = jnp.dot(_bf16(z), wc[...], preferred_element_type=jnp.float32) + bc[...]  # (P, 5)

    boxes = _sigmoid(z[:, :4] + bbias_ref[...])
    obj = z[:, 4:5]
    packed_ref[0] = jnp.concatenate([img_cls, boxes, obj], axis=-1)

    # ---- class logits ----
    ic = img_cls * pl.reciprocal(
        jnp.sqrt(jnp.sum(img_cls * img_cls, axis=-1, keepdims=True)) + 1e-6, approx=True)
    qe = qe_ref[0]                                                            # (Qn, D)
    qe = qe * pl.reciprocal(
        jnp.sqrt(jnp.sum(qe * qe, axis=-1, keepdims=True)) + 1e-6, approx=True)
    scl = jnp.where(scale_raw > 0, scale_raw, jnp.exp(scale_raw) - 1.0) + 1.0  # ELU + 1

    lg = jax.lax.dot_general(_bf16(ic), _bf16(qe),
                             (((1,), (1,)), ((), ())),
                             preferred_element_type=jnp.float32)               # (P, Qn)
    lg = (lg + shift) * scl
    logits_ref[0] = jnp.where(qm_ref[0] > 0, lg, NEG_INF)


def pallas_heads(feat, params, box_bias, query_embeds, query_mask, *, H):
    B, P, _ = feat.shape
    Qn, D = query_embeds.shape[1], query_embeds.shape[2]
    wa, ba = params["head_wA"], params["head_bA"]
    wb, bb = params["head_wB"], params["head_bB"]
    wc, bc = params["head_wC"], params["head_bC"]
    NA, NB, NC = wa.shape[1], wb.shape[1], wc.shape[1]

    packed, logits = pl.pallas_call(
        functools.partial(_heads_kernel, H=H),
        grid=(B,),
        in_specs=[pl.BlockSpec((1, P, H), lambda b: (b, 0, 0)),
                  _full_spec((H, NA)), _full_spec((1, NA)),
                  _full_spec((wb.shape[0], NB)), _full_spec((1, NB)),
                  _full_spec((NB, NC)), _full_spec((1, NC)),
                  _full_spec((P, 4)),
                  pl.BlockSpec((1, Qn, D), lambda b: (b, 0, 0)),
                  pl.BlockSpec((1, 1, Qn), lambda b: (b, 0, 0))],
        out_specs=[pl.BlockSpec((1, P, H + 5), lambda b: (b, 0, 0)),
                   pl.BlockSpec((1, P, Qn), lambda b: (b, 0, 0))],
        out_shape=[jax.ShapeDtypeStruct((B, P, H + 5), jnp.float32),
                   jax.ShapeDtypeStruct((B, P, Qn), jnp.float32)],
        compiler_params=_parallel_params(1),
    )(feat, wa, ba, wb, bb, wc, bc, box_bias, query_embeds, query_mask)
    return packed, logits


# ----------------------------- model glue -----------------------------
def _patchify(px, patch):
    # NCHW -> (B, num_patches, C*patch*patch)
    B, C, H, W = px.shape
    gh, gw = H // patch, W // patch
    x = px.reshape(B, C, gh, patch, gw, patch)
    x = x.transpose(0, 2, 4, 1, 3, 5)
    return x.reshape(B, gh * gw, C * patch * patch)


def _compute_box_bias(n):
    xs, ys = jnp.meshgrid(jnp.arange(1, n + 1, dtype=jnp.float32),
                          jnp.arange(1, n + 1, dtype=jnp.float32))
    coords = jnp.stack([xs, ys], axis=-1) / n
    coords = jnp.clip(coords.reshape(-1, 2), 0.0, 1.0)
    coord_bias = jnp.log(coords + 1e-4) - jnp.log1p(-coords + 1e-4)
    size = jnp.full_like(coords, 1.0 / n)
    size_bias = jnp.log(size + 1e-4) - jnp.log1p(-size + 1e-4)
    return jnp.concatenate([coord_bias, size_bias], axis=-1)  # (P, 4)


def owlv2_forward(params, pixel_values, query, attention_mask):
    C = CFG
    B = pixel_values.shape[0]
    patch = C["patch_size"]
    gh = C["image_size"] // patch
    P = gh * gh
    S = P + 1
    H = C["v_hidden"]

    # ---------- vision tower ----------
    patches = _patchify(pixel_values, patch)                              # (B, P, Cin)
    Cin = patches.shape[-1]
    # Augment with a CLS-indicator column: row 0 = [0...0, 1], rows 1.. = [patch, 0].
    patches = jnp.concatenate(
        [patches, jnp.zeros((B, P, 1), patches.dtype)], axis=-1)          # (B, P, Cin+1)
    cls_row = jnp.concatenate(
        [jnp.zeros((B, 1, Cin), patches.dtype),
         jnp.ones((B, 1, 1), patches.dtype)], axis=-1)                    # (B, 1, Cin+1)
    x_aug = jnp.concatenate([cls_row, patches], axis=1)                   # (B, S, Cin+1)

    h = pallas_vision_embed(x_aug, params)                                # (B, S, H)

    for lp in params["v_layers"]:
        h = pallas_encoder_layer(h, lp, C["v_heads"], bias=None)          # zero bias skipped

    merged = pallas_vision_post(h, params["v_post_g"], params["v_post_b"],
                                params["merge_ln_g"], params["merge_ln_b"])
    feat = merged[:, 1:, :]                                               # (B, P, H)

    # ---------- text tower ----------
    BQ, L = query.shape
    TH = C["t_hidden"]
    t = params["tok_emb"][query] + params["t_pos"][None]                  # (BQ, L, TH)
    causal = jnp.where(jnp.tril(jnp.ones((L, L), bool)), 0.0, NEG_INF)
    pad = jnp.where(attention_mask[:, None, :] > 0, 0.0, NEG_INF)         # (BQ, 1, L)
    tbias = causal[None] + pad                                            # (BQ, L, L), shared over heads
    for lp in params["t_layers"]:
        t = pallas_encoder_layer(t, lp, C["t_heads"], bias=tbias)

    eos_idx = jnp.argmax(query, axis=-1)
    pooled_raw = t[jnp.arange(BQ), eos_idx]                               # (BQ, TH)
    # final LN is row-wise, so pool-then-(LN+proj) == LN-then-pool-then-proj
    text_embeds = pallas_ln_linear(pooled_raw, params["t_fin_g"], params["t_fin_b"],
                                   params["text_proj_w"])                 # (BQ, proj)
    Qn = BQ // B
    query_embeds = text_embeds.reshape(B, Qn, C["proj"])
    query_mask = (query[:, 0] > 0).astype(jnp.float32).reshape(B, 1, Qn)

    # ---------- fused detection heads ----------
    box_bias = _compute_box_bias(gh)                                      # (P, 4), batch-invariant
    packed, logits = pallas_heads(feat, params, box_bias, query_embeds, query_mask, H=H)
    img_cls = packed[..., :H]                                             # (B, P, H)
    pred_boxes = packed[..., H:H + 4]                                     # (B, P, 4)
    objectness = packed[..., H + 4]                                       # (B, P)

    return dict(
        logits=logits,                                  # (B, P, num_queries)
        objectness_logits=objectness,                   # (B, P)
        pred_boxes=pred_boxes,                          # (B, P, 4)
        text_embeds=query_embeds,                       # (B, num_queries, proj)
        image_embeds=feat.reshape(B, gh, gh, H),        # feature map
        class_embeds=img_cls,                           # (B, P, H)
    )


# ----------------------------- deterministic parameter init -----------------------------
def make_params(seed=42):
    C = CFG
    keys = jax.random.split(jax.random.PRNGKey(seed), 256)
    cnt = [0]

    def W(shape, scale=0.02):
        k = keys[cnt[0]]; cnt[0] += 1
        return scale * jax.random.normal(k, shape, jnp.float32)

    def Z(shape): return jnp.zeros(shape, jnp.float32)
    def ONE(shape): return jnp.ones(shape, jnp.float32)

    def layer(Hd, Md):
        return dict(
            ln1_g=ONE((Hd,)), ln1_b=Z((Hd,)),
            q_w=W((Hd, Hd)), q_b=Z((Hd,)), k_w=W((Hd, Hd)), k_b=Z((Hd,)),
            v_w=W((Hd, Hd)), v_b=Z((Hd,)), o_w=W((Hd, Hd)), o_b=Z((Hd,)),
            ln2_g=ONE((Hd,)), ln2_b=Z((Hd,)),
            fc1_w=W((Hd, Md)), fc1_b=Z((Md,)), fc2_w=W((Md, Hd)), fc2_b=Z((Hd,)),
        )

    gh = C["image_size"] // C["patch_size"]
    P = gh * gh
    H, TH = C["v_hidden"], C["t_hidden"]
    return dict(
        v_patch_w=W((C["channels"] * C["patch_size"] ** 2, H)),
        v_class_emb=W((1, H)),
        v_pos=W((P + 1, H)),
        v_pre_g=ONE((H,)), v_pre_b=Z((H,)),
        v_layers=[layer(H, C["v_mlp"]) for _ in range(C["v_layers"])],
        v_post_g=ONE((H,)), v_post_b=Z((H,)),
        merge_ln_g=ONE((H,)), merge_ln_b=Z((H,)),
        tok_emb=W((C["vocab"], TH)),
        t_pos=W((C["max_len"], TH)),
        t_layers=[layer(TH, C["t_mlp"]) for _ in range(C["t_layers"])],
        t_fin_g=ONE((TH,)), t_fin_b=Z((TH,)),
        text_proj_w=W((TH, C["proj"])),
        ch_d0_w=W((H, H)), ch_d0_b=Z((H,)),
        ch_sh_w=W((H, 1)), ch_sh_b=Z((1,)),
        ch_sc_w=W((H, 1)), ch_sc_b=Z((1,)),
        bh0_w=W((H, H)), bh0_b=Z((H,)),
        bh1_w=W((H, H)), bh1_b=Z((H,)),
        bh2_w=W((H, 4)), bh2_b=Z((4,)),
        oh0_w=W((H, H)), oh0_b=Z((H,)),
        oh1_w=W((H, H)), oh1_b=Z((H,)),
        oh2_w=W((H, 1)), oh2_b=Z((1,)),
    )


def fuse_params(p):
    """Pack raw params into the fused layout consumed by the Pallas kernels."""
    C = CFG
    bf = jnp.bfloat16

    def row(v):
        return v.reshape(1, -1).astype(jnp.float32)

    def fuse_layer(lp, num_heads):
        Hd = lp["q_w"].shape[0]
        scale = (Hd // num_heads) ** -0.5                 # fold q-scale into weights
        wqkv = jnp.concatenate([lp["q_w"] * scale, lp["k_w"], lp["v_w"]], axis=1)
        bqkv = jnp.concatenate([lp["q_b"] * scale, lp["k_b"], lp["v_b"]])
        return dict(
            ln1_g=row(lp["ln1_g"]), ln1_b=row(lp["ln1_b"]),
            wqkv=wqkv.astype(bf), bqkv=row(bqkv),
            wo=lp["o_w"].astype(bf), bo=row(lp["o_b"]),
            ln2_g=row(lp["ln2_g"]), ln2_b=row(lp["ln2_b"]),
            w1=lp["fc1_w"].astype(bf), b1=row(lp["fc1_b"]),
            w2=lp["fc2_w"].astype(bf), b2=row(lp["fc2_b"]),
        )

    def bdiag(a, b):
        (m1, n1), (m2, n2) = a.shape, b.shape
        top = jnp.concatenate([a, jnp.zeros((m1, n2), a.dtype)], axis=1)
        bot = jnp.concatenate([jnp.zeros((m2, n1), b.dtype), b], axis=1)
        return jnp.concatenate([top, bot], axis=0)

    H = C["v_hidden"]
    # Patch-embed weights augmented with an extra row so the CLS-indicator column
    # produces (class_emb - patch_bias) and the kernel needs no in-kernel concat.
    v_patch_b = jnp.zeros((1, H), jnp.float32)
    v_embed_w = jnp.concatenate([p["v_patch_w"], p["v_class_emb"] - v_patch_b], axis=0)

    wA = jnp.concatenate([p["ch_d0_w"], p["ch_sh_w"], p["ch_sc_w"],
                          p["bh0_w"], p["oh0_w"]], axis=1)                 # (H, 3H+2)
    bA = jnp.concatenate([p["ch_d0_b"], p["ch_sh_b"], p["ch_sc_b"],
                          p["bh0_b"], p["oh0_b"]])
    wB = bdiag(p["bh1_w"], p["oh1_w"])                                     # (2H, 2H)
    bB = jnp.concatenate([p["bh1_b"], p["oh1_b"]])
    wC = bdiag(p["bh2_w"], p["oh2_w"])                                     # (2H, 5)
    bC = jnp.concatenate([p["bh2_b"], p["oh2_b"]])

    return dict(
        v_embed_w=v_embed_w.astype(bf),
        v_patch_b=v_patch_b,
        v_pos=p["v_pos"],
        v_pre_g=row(p["v_pre_g"]), v_pre_b=row(p["v_pre_b"]),
        v_layers=[fuse_layer(lp, C["v_heads"]) for lp in p["v_layers"]],
        v_post_g=row(p["v_post_g"]), v_post_b=row(p["v_post_b"]),
        merge_ln_g=row(p["merge_ln_g"]), merge_ln_b=row(p["merge_ln_b"]),
        tok_emb=p["tok_emb"], t_pos=p["t_pos"],
        t_layers=[fuse_layer(lp, C["t_heads"]) for lp in p["t_layers"]],
        t_fin_g=row(p["t_fin_g"]), t_fin_b=row(p["t_fin_b"]),
        text_proj_w=p["text_proj_w"].astype(bf),
        head_wA=wA.astype(bf), head_bA=row(bA),
        head_wB=wB.astype(bf), head_bB=row(bB),
        head_wC=wC.astype(bf), head_bC=row(bC),
    )


# TODO(synk): processor text/image preprocessing, image_guided_detection branch and
# post_process_object_detection (NMS/thresholding on host) are not kernel work and
# are omitted.

if __name__ == "__main__":
    B, Qn, L = 2, 2, CFG["max_len"]
    key = jax.random.PRNGKey(0)
    k1, k2 = jax.random.split(key)
    pixel_values = jax.random.normal(k1, (B, CFG["channels"], CFG["image_size"],
                                          CFG["image_size"]), jnp.float32)
    query = jax.random.randint(k2, (B * Qn, L), 1, CFG["vocab"]).astype(jnp.int32)
    attention_mask = jnp.ones((B * Qn, L), jnp.int32)
    # pad the tail of one text query to exercise the attention mask path
    query = query.at[1, 6:].set(0)
    attention_mask = attention_mask.at[1, 6:].set(0)

    params = fuse_params(make_params())
    fwd = jax.jit(owlv2_forward)
    out = fwd(params, pixel_values, query, attention_mask)
    jax.block_until_ready(out)

    assert out["logits"].shape == (B, 16, Qn)
    assert out["pred_boxes"].shape == (B, 16, 4)
    assert out["objectness_logits"].shape == (B, 16)
    print("KERNEL_OK")
</pallas_src>

<mosaic_0001>
module attributes {stable_mosaic.version = 11 : i64} {
  func.func @_vision_embed_kernel(%arg0: i32, %arg1: memref<1x17x193xf32, #tpu.memory_space<vmem>>, %arg2: memref<193x32xbf16, #tpu.memory_space<vmem>>, %arg3: memref<1x32xf32, #tpu.memory_space<vmem>>, %arg4: memref<17x32xf32, #tpu.memory_space<vmem>>, %arg5: memref<1x32xf32, #tpu.memory_space<vmem>>, %arg6: memref<1x32xf32, #tpu.memory_space<vmem>>, %arg7: memref<1x17x32xf32, #tpu.memory_space<vmem>>) attributes {dimension_semantics = [#tpu.dimension_semantics<parallel>], iteration_bounds = array<i64: 2>, scalar_prefetch = 0 : i64, scratch_operands = 0 : i64, tpu.core_type = #tpu.core_type<tc>, window_params = [{transform_indices = @transform_0, window_bounds = array<i64: 1, 17, 193>}, {pipeline_mode = #tpu.pipeline_mode<synchronous>, transform_indices = @transform_1, window_bounds = array<i64: 193, 32>}, {pipeline_mode = #tpu.pipeline_mode<synchronous>, transform_indices = @transform_2, window_bounds = array<i64: 1, 32>}, {pipeline_mode = #tpu.pipeline_mode<synchronous>, transform_indices = @transform_3, window_bounds = array<i64: 17, 32>}, {pipeline_mode = #tpu.pipeline_mode<synchronous>, transform_indices = @transform_4, window_bounds = array<i64: 1, 32>}, {pipeline_mode = #tpu.pipeline_mode<synchronous>, transform_indices = @transform_5, window_bounds = array<i64: 1, 32>}, {transform_indices = @transform_6, window_bounds = array<i64: 1, 17, 32>}]} {
    %c0 = arith.constant 0 : index
    %c0_0 = arith.constant 0 : index
    %c0_1 = arith.constant 0 : index
    %0 = vector.load %arg1[%c0, %c0_0, %c0_1] : memref<1x17x193xf32, #tpu.memory_space<vmem>>, vector<1x17x193xf32>
    %1 = vector.shape_cast %0 : vector<1x17x193xf32> to vector<17x193xf32>
    %2 = arith.truncf %1 : vector<17x193xf32> to vector<17x193xbf16>
    %c0_2 = arith.constant 0 : index
    %c0_3 = arith.constant 0 : index
    %3 = vector.load %arg2[%c0_2, %c0_3] : memref<193x32xbf16, #tpu.memory_space<vmem>>, vector<193x32xbf16>
    %cst = arith.constant dense<0.000000e+00> : vector<17x32xf32>
    %4 = tpu.matmul %2, %3, %cst {dimension_numbers = #tpu.dot_dimension_numbers<[1], [0], [0], [1], [0, 0, 1, 1], [], []>} : vector<17x193xbf16>, vector<193x32xbf16>, vector<17x32xf32> -> vector<17x32xf32>
    %c0_4 = arith.constant 0 : index
    %c0_5 = arith.constant 0 : index
    %5 = vector.load %arg3[%c0_4, %c0_5] : memref<1x32xf32, #tpu.memory_space<vmem>>, vector<1x32xf32>
    %6 = vector.broadcast %5 : vector<1x32xf32> to vector<17x32xf32>
    %7 = arith.addf %4, %6 : vector<17x32xf32>
    %c0_6 = arith.constant 0 : index
    %c0_7 = arith.constant 0 : index
    %8 = vector.load %arg4[%c0_6, %c0_7] : memref<17x32xf32, #tpu.memory_space<vmem>>, vector<17x32xf32>
    %9 = arith.addf %7, %8 : vector<17x32xf32>
    %c0_8 = arith.constant 0 : index
    %c0_9 = arith.constant 0 : index
    %10 = vector.load %arg5[%c0_8, %c0_9] : memref<1x32xf32, #tpu.memory_space<vmem>>, vector<1x32xf32>
    %c0_10 = arith.constant 0 : index
    %c0_11 = arith.constant 0 : index
    %11 = vector.load %arg6[%c0_10, %c0_11] : memref<1x32xf32, #tpu.memory_space<vmem>>, vector<1x32xf32>
    %cst_12 = arith.constant dense<0.000000e+00> : vector<17xf32>
    %12 = vector.multi_reduction <add>, %9, %cst_12 [1] : vector<17x32xf32> to vector<17xf32>
    %13 = vector.shape_cast %12 : vector<17xf32> to vector<17x1xf32>
    %cst_13 = arith.constant 3.200000e+01 : f32
    %14 = vector.broadcast %cst_13 : f32 to vector<17x1xf32>
    %15 = arith.divf %13, %14 : vector<17x1xf32>
    %16 = vector.broadcast %15 : vector<17x1xf32> to vector<17x32xf32>
    %17 = arith.subf %9, %16 : vector<17x32xf32>
    %18 = arith.mulf %17, %17 : vector<17x32xf32>
    %cst_14 = arith.constant dense<0.000000e+00> : vector<17xf32>
    %19 = vector.multi_reduction <add>, %18, %cst_14 [1] : vector<17x32xf32> to vector<17xf32>
    %20 = vector.shape_cast %19 : vector<17xf32> to vector<17x1xf32>
    %cst_15 = arith.constant 3.200000e+01 : f32
    %21 = vector.broadcast %cst_15 : f32 to vector<17x1xf32>
    %22 = arith.divf %20, %21 : vector<17x1xf32>
    %cst_16 = arith.constant 9.99999974E-6 : f32
    %23 = vector.broadcast %cst_16 : f32 to vector<17x1xf32>
    %24 = arith.addf %22, %23 : vector<17x1xf32>
    %25 = math.rsqrt %24 : vector<17x1xf32>
    %26 = vector.broadcast %25 : vector<17x1xf32> to vector<17x32xf32>
    %27 = arith.mulf %17, %26 : vector<17x32xf32>
    %28 = vector.broadcast %10 : vector<1x32xf32> to vector<17x32xf32>
    %29 = arith.mulf %27, %28 : vector<17x32xf32>
    %30 = vector.broadcast %11 : vector<1x32xf32> to vector<17x32xf32>
    %31 = arith.addf %29, %30 : vector<17x32xf32>
    %c0_17 = arith.constant 0 : index
    %c0_18 = arith.constant 0 : index
    %c0_19 = arith.constant 0 : index
    %32 = vector.load %arg7[%c0_17, %c0_18, %c0_19] : memref<1x17x32xf32, #tpu.memory_space<vmem>>, vector<1x17x32xf32>
    %33 = vector.shape_cast %32 : vector<1x17x32xf32> to vector<17x32xf32>
    %34 = vector.shape_cast %31 : vector<17x32xf32> to vector<1x17x32xf32>
    tpu.vector_store %arg7[%c0_17, %c0_18, %c0_19], %34 {strides = array<i32>} : memref<1x17x32xf32, #tpu.memory_space<vmem>>, vector<1x17x32xf32>,
    return
  }
  func.func @transform_0(%arg0: i32) -> (i32, i32, i32) {
    %c0_i32 = arith.constant 0 : i32
    %c0_i32_0 = arith.constant 0 : i32
    %c0_i32_1 = arith.constant 0 : i32
    return %arg0, %c0_i32, %c0_i32_0 : i32, i32, i32
  }
  func.func @transform_1(%arg0: i32) -> (i32, i32) {
    %c0_i32 = arith.constant 0 : i32
    %c0_i32_0 = arith.constant 0 : i32
    %c0_i32_1 = arith.constant 0 : i32
    return %c0_i32, %c0_i32_0 : i32, i32
  }
  func.func @transform_2(%arg0: i32) -> (i32, i32) {
    %c0_i32 = arith.constant 0 : i32
    %c0_i32_0 = arith.constant 0 : i32
    %c0_i32_1 = arith.constant 0 : i32
    return %c0_i32, %c0_i32_0 : i32, i32
  }
  func.func @transform_3(%arg0: i32) -> (i32, i32) {
    %c0_i32 = arith.constant 0 : i32
    %c0_i32_0 = arith.constant 0 : i32
    %c0_i32_1 = arith.constant 0 : i32
    return %c0_i32, %c0_i32_0 : i32, i32
  }
  func.func @transform_4(%arg0: i32) -> (i32, i32) {
    %c0_i32 = arith.constant 0 : i32
    %c0_i32_0 = arith.constant 0 : i32
    %c0_i32_1 = arith.constant 0 : i32
    return %c0_i32, %c0_i32_0 : i32, i32
  }
  func.func @transform_5(%arg0: i32) -> (i32, i32) {
    %c0_i32 = arith.constant 0 : i32
    %c0_i32_0 = arith.constant 0 : i32
    %c0_i32_1 = arith.constant 0 : i32
    return %c0_i32, %c0_i32_0 : i32, i32
  }
  func.func @transform_6(%arg0: i32) -> (i32, i32, i32) {
    %c0_i32 = arith.constant 0 : i32
    %c0_i32_0 = arith.constant 0 : i32
    %c0_i32_1 = arith.constant 0 : i32
    return %arg0, %c0_i32, %c0_i32_0 : i32, i32, i32
  }
}

module attributes {stable_mosaic.version = 11 : i64} {
  func.func @_encoder_layer_kernel(%arg0: i32, %arg1: memref<1x17x32xf32, #tpu.memory_space<vmem>>, %arg2: memref<1x32xf32, #tpu.memory_space<vmem>>, %arg3: memref<1x32xf32, #tpu.memory_space<vmem>>, %arg4: memref<32x96xbf16, #tpu.memory_space<vmem>>, %arg5: memref<1x96xf32, #tpu.memory_space<vmem>>, %arg6: memref<32x32xbf16, #tpu.memory_space<vmem>>, %arg7: memref<1x32xf32, #tpu.memory_space<vmem>>, %arg8: memref<1x32xf32, #tpu.memory_space<vmem>>, %arg9: memref<1x32xf32, #tpu.memory_space<vmem>>, %arg10: memref<32x64xbf16, #tpu.memory_space<vmem>>, %arg11: memref<1x64xf32, #tpu.memory_space<vmem>>, %arg12: memref<64x32xbf16, #tpu.memory_space<vmem>>, %arg13: memref<1x32xf32, #tpu.memory_space<vmem>>, %arg14: memref<1x17x32xf32, #tpu.memory_space<vmem>>) attributes {dimension_semantics = [#tpu.dimension_semantics<parallel>], iteration_bounds = array<i64: 2>, scalar_prefetch = 0 : i64, scratch_operands = 0 : i64, tpu.core_type = #tpu.core_type<tc>, window_params = [{transform_indices = @transform_0, window_bounds = array<i64: 1, 17, 32>}, {pipeline_mode = #tpu.pipeline_mode<synchronous>, transform_indices = @transform_1, window_bounds = array<i64: 1, 32>}, {pipeline_mode = #tpu.pipeline_mode<synchronous>, transform_indices = @transform_2, window_bounds = array<i64: 1, 32>}, {pipeline_mode = #tpu.pipeline_mode<synchronous>, transform_indices = @transform_3, window_bounds = array<i64: 32, 96>}, {pipeline_mode = #tpu.pipeline_mode<synchronous>, transform_indices = @transform_4, window_bounds = array<i64: 1, 96>}, {pipeline_mode = #tpu.pipeline_mode<synchronous>, transform_indices = @transform_5, window_bounds = array<i64: 32, 32>}, {pipeline_mode = #tpu.pipeline_mode<synchronous>, transform_indices = @transform_6, window_bounds = array<i64: 1, 32>}, {pipeline_mode = #tpu.pipeline_mode<synchronous>, transform_indices = @transform_7, window_bounds = array<i64: 1, 32>}, {pipeline_mode = #tpu.pipeline_mode<synchronous>, transform_indices = @transform_8, window_bounds = array<i64: 1, 32>}, {pipeline_mode = #tpu.pipeline_mode<synchronous>, transform_indices = @transform_9, window_bounds = array<i64: 32, 64>}, {pipeline_mode = #tpu.pipeline_mode<synchronous>, transform_indices = @transform_10, window_bounds = array<i64: 1, 64>}, {pipeline_mode = #tpu.pipeline_mode<synchronous>, transform_indices = @transform_11, window_bounds = array<i64: 64, 32>}, {pipeline_mode = #tpu.pipeline_mode<synchronous>, transform_indices = @transform_12, window_bounds = array<i64: 1, 32>}, {transform_indices = @transform_13, window_bounds = array<i64: 1, 17, 32>}]} {
    %c0 = arith.constant 0 : index
    %c0_0 = arith.constant 0 : index
    %c0_1 = arith.constant 0 : index
    %0 = vector.load %arg1[%c0, %c0_0, %c0_1] : memref<1x17x32xf32, #tpu.memory_space<vmem>>, vector<1x17x32xf32>
    %1 = vector.shape_cast %0 : vector<1x17x32xf32> to vector<17x32xf32>
    %c0_2 = arith.constant 0 : index
    %c0_3 = arith.constant 0 : index
    %2 = vector.load %arg2[%c0_2, %c0_3] : memref<1x32xf32, #tpu.memory_space<vmem>>, vector<1x32xf32>
    %c0_4 = arith.constant 0 : index
    %c0_5 = arith.constant 0 : index
    %3 = vector.load %arg3[%c0_4, %c0_5] : memref<1x32xf32, #tpu.memory_space<vmem>>, vector<1x32xf32>
    %cst = arith.constant dense<0.000000e+00> : vector<17xf32>
    %4 = vector.multi_reduction <add>, %1, %cst [1] : vector<17x32xf32> to vector<17xf32>
    %5 = vector.shape_cast %4 : vector<17xf32> to vector<17x1xf32>
    %cst_6 = arith.constant 3.200000e+01 : f32
    %6 = vector.broadcast %cst_6 : f32 to vector<17x1xf32>
    %7 = arith.divf %5, %6 : vector<17x1xf32>
    %8 = vector.broadcast %7 : vector<17x1xf32> to vector<17x32xf32>
    %9 = arith.subf %1, %8 : vector<17x32xf32>
    %10 = arith.mulf %9, %9 : vector<17x32xf32>
    %cst_7 = arith.constant dense<0.000000e+00> : vector<17xf32>
    %11 = vector.multi_reduction <add>, %10, %cst_7 [1] : vector<17x32xf32> to vector<17xf32>
    %12 = vector.shape_cast %11 : vector<17xf32> to vector<17x1xf32>
    %cst_8 = arith.constant 3.200000e+01 : f32
    %13 = vector.broadcast %cst_8 : f32 to vector<17x1xf32>
    %14 = arith.divf %12, %13 : vector<17x1xf32>
    %cst_9 = arith.constant 9.99999974E-6 : f32
    %15 = vector.broadcast %cst_9 : f32 to vector<17x1xf32>
    %16 = arith.addf %14, %15 : vector<17x1xf32>
    %17 = math.rsqrt %16 : vector<17x1xf32>
    %18 = vector.broadcast %17 : vector<17x1xf32> to vector<17x32xf32>
    %19 = arith.mulf %9, %18 : vector<17x32xf32>
    %20 = vector.broadcast %2 : vector<1x32xf32> to vector<17x32xf32>
    %21 = arith.mulf %19, %20 : vector<17x32xf32>
    %22 = vector.broadcast %3 : vector<1x32xf32> to vector<17x32xf32>
    %23 = arith.addf %21, %22 : vector<17x32xf32>
    %24 = arith.truncf %23 : vector<17x32xf32> to vector<17x32xbf16>
    %c0_10 = arith.constant 0 : index
    %c0_11 = arith.constant 0 : index
    %25 = vector.load %arg4[%c0_10, %c0_11] : memref<32x96xbf16, #tpu.memory_space<vmem>>, vector<32x96xbf16>
    %cst_12 = arith.constant dense<0.000000e+00> : vector<17x96xf32>
    %26 = tpu.matmul %24, %25, %cst_12 {dimension_numbers = #tpu.dot_dimension_numbers<[1], [0], [0], [1], [0, 0, 1, 1], [], []>} : vector<17x32xbf16>, vector<32x96xbf16>, vector<17x96xf32> -> vector<17x96xf32>
    %c0_13 = arith.constant 0 : index
    %c0_14 = arith.constant 0 : index
    %27 = vector.load %arg5[%c0_13, %c0_14] : memref<1x96xf32, #tpu.memory_space<vmem>>, vector<1x96xf32>
    %28 = vector.broadcast %27 : vector<1x96xf32> to vector<17x96xf32>
    %29 = arith.addf %26, %28 : vector<17x96xf32>
    %c0_15 = arith.constant 0 : index
    %c0_16 = arith.constant 0 : index
    %30 = vector.load %arg6[%c0_15, %c0_16] : memref<32x32xbf16, #tpu.memory_space<vmem>>, vector<32x32xbf16>
    %31 = vector.extract_strided_slice %29 {offsets = [0, 0], sizes = [17, 8], strides = [1, 1]} : vector<17x96xf32> to vector<17x8xf32>
    %32 = vector.extract_strided_slice %29 {offsets = [0, 32], sizes = [17, 8], strides = [1, 1]} : vector<17x96xf32> to vector<17x8xf32>
    %33 = vector.extract_strided_slice %29 {offsets = [0, 64], sizes = [17, 8], strides = [1, 1]} : vector<17x96xf32> to vector<17x8xf32>
    %34 = arith.truncf %31 : vector<17x8xf32> to vector<17x8xbf16>
    %35 = arith.truncf %32 : vector<17x8xf32> to vector<17x8xbf16>
    %cst_17 = arith.constant dense<0.000000e+00> : vector<17x17xf32>
    %36 = tpu.matmul %34, %35, %cst_17 {dimension_numbers = #tpu.dot_dimension_numbers<[1], [1], [0], [0], [0, 0, 1, 0], [], []>} : vector<17x8xbf16>, vector<17x8xbf16>, vector<17x17xf32> -> vector<17x17xf32>
    %cst_18 = arith.constant dense<0xFF800000> : vector<17xf32>
    %37 = vector.multi_reduction <maximumf>, %36, %cst_18 [1] : vector<17x17xf32> to vector<17xf32>
    %38 = vector.shape_cast %37 : vector<17xf32> to vector<17x1xf32>
    %39 = vector.broadcast %38 : vector<17x1xf32> to vector<17x17xf32>
    %40 = arith.subf %36, %39 : vector<17x17xf32>
    %41 = math.exp %40 : vector<17x17xf32>
    %cst_19 = arith.constant dense<0.000000e+00> : vector<17xf32>
    %42 = vector.multi_reduction <add>, %41, %cst_19 [1] : vector<17x17xf32> to vector<17xf32>
    %43 = vector.shape_cast %42 : vector<17xf32> to vector<17x1xf32>
    %44 = tpu.reciprocal %43 {approx = true} : vector<17x1xf32> -> vector<17x1xf32>
    %45 = vector.broadcast %44 : vector<17x1xf32> to vector<17x17xf32>
    %46 = arith.mulf %41, %45 : vector<17x17xf32>
    %47 = arith.truncf %46 : vector<17x17xf32> to vector<17x17xbf16>
    %48 = arith.truncf %33 : vector<17x8xf32> to vector<17x8xbf16>
    %cst_20 = arith.constant dense<0.000000e+00> : vector<17x8xf32>
    %49 = tpu.matmul %47, %48, %cst_20 {dimension_numbers = #tpu.dot_dimension_numbers<[1], [0], [0], [1], [0, 0, 1, 1], [], []>} : vector<17x17xbf16>, vector<17x8xbf16>, vector<17x8xf32> -> vector<17x8xf32>
    %50 = arith.truncf %49 : vector<17x8xf32> to vector<17x8xbf16>
    %51 = vector.extract_strided_slice %30 {offsets = [0, 0], sizes = [8, 32], strides = [1, 1]} : vector<32x32xbf16> to vector<8x32xbf16>
    %cst_21 = arith.constant dense<0.000000e+00> : vector<17x32xf32>
    %52 = tpu.matmul %50, %51, %cst_21 {dimension_numbers = #tpu.dot_dimension_numbers<[1], [0], [0], [1], [0, 0, 1, 1], [], []>} : vector<17x8xbf16>, vector<8x32xbf16>, vector<17x32xf32> -> vector<17x32xf32>
    %53 = vector.extract_strided_slice %29 {offsets = [0, 8], sizes = [17, 8], strides = [1, 1]} : vector<17x96xf32> to vector<17x8xf32>
    %54 = vector.extract_strided_slice %29 {offsets = [0, 40], sizes = [17, 8], strides = [1, 1]} : vector<17x96xf32> to vector<17x8xf32>
    %55 = vector.extract_strided_slice %29 {offsets = [0, 72], sizes = [17, 8], strides = [1, 1]} : vector<17x96xf32> to vector<17x8xf32>
    %56 = arith.truncf %53 : vector<17x8xf32> to vector<17x8xbf16>
    %57 = arith.truncf %54 : vector<17x8xf32> to vector<17x8xbf16>
    %cst_22 = arith.constant dense<0.000000e+00> : vector<17x17xf32>
    %58 = tpu.matmul %56, %57, %cst_22 {dimension_numbers = #tpu.dot_dimension_numbers<[1], [1], [0], [0], [0, 0, 1, 0], [], []>} : vector<17x8xbf16>, vector<17x8xbf16>, vector<17x17xf32> -> vector<17x17xf32>
    %cst_23 = arith.constant dense<0xFF800000> : vector<17xf32>
    %59 = vector.multi_reduction <maximumf>, %58, %cst_23 [1] : vector<17x17xf32> to vector<17xf32>
    %60 = vector.shape_cast %59 : vector<17xf32> to vector<17x1xf32>
    %61 = vector.broadcast %60 : vector<17x1xf32> to vector<17x17xf32>
    %62 = arith.subf %58, %61 : vector<17x17xf32>
    %63 = math.exp %62 : vector<17x17xf32>
    %cst_24 = arith.constant dense<0.000000e+00> : vector<17xf32>
    %64 = vector.multi_reduction <add>, %63, %cst_24 [1] : vector<17x17xf32> to vector<17xf32>
    %65 = vector.shape_cast %64 : vector<17xf32> to vector<17x1xf32>
    %66 = tpu.reciprocal %65 {approx = true} : vector<17x1xf32> -> vector<17x1xf32>
    %67 = vector.broadcast %66 : vector<17x1xf32> to vector<17x17xf32>
    %68 = arith.mulf %63, %67 : vector<17x17xf32>
    %69 = arith.truncf %68 : vector<17x17xf32> to vector<17x17xbf16>
    %70 = arith.truncf %55 : vector<17x8xf32> to vector<17x8xbf16>
    %cst_25 = arith.constant dense<0.000000e+00> : vector<17x8xf32>
    %71 = tpu.matmul %69, %70, %cst_25 {dimension_numbers = #tpu.dot_dimension_numbers<[1], [0], [0], [1], [0, 0, 1, 1], [], []>} : vector<17x17xbf16>, vector<17x8xbf16>, vector<17x8xf32> -> vector<17x8xf32>
    %72 = arith.truncf %71 : vector<17x8xf32> to vector<17x8xbf16>
    %73 = vector.extract_strided_slice %30 {offsets = [8, 0], sizes = [8, 32], strides = [1, 1]} : vector<32x32xbf16> to vector<8x32xbf16>
    %cst_26 = arith.constant dense<0.000000e+00> : vector<17x32xf32>
    %74 = tpu.matmul %72, %73, %cst_26 {dimension_numbers = #tpu.dot_dimension_numbers<[1], [0], [0], [1], [0, 0, 1, 1], [], []>} : vector<17x8xbf16>, vector<8x32xbf16>, vector<17x32xf32> -> vector<17x32xf32>
    %75 = arith.addf %52, %74 : vector<17x32xf32>
    %76 = vector.extract_strided_slice %29 {offsets = [0, 16], sizes = [17, 8], strides = [1, 1]} : vector<17x96xf32> to vector<17x8xf32>
    %77 = vector.extract_strided_slice %29 {offsets = [0, 48], sizes = [17, 8], strides = [1, 1]} : vector<17x96xf32> to vector<17x8xf32>
    %78 = vector.extract_strided_slice %29 {offsets = [0, 80], sizes = [17, 8], strides = [1, 1]} : vector<17x96xf32> to vector<17x8xf32>
    %79 = arith.truncf %76 : vector<17x8xf32> to vector<17x8xbf16>
    %80 = arith.truncf %77 : vector<17x8xf32> to vector<17x8xbf16>
    %cst_27 = arith.constant dense<0.000000e+00> : vector<17x17xf32>
    %81 = tpu.matmul %79, %80, %cst_27 {dimension_numbers = #tpu.dot_dimension_numbers<[1], [1], [0], [0], [0, 0, 1, 0], [], []>} : vector<17x8xbf16>, vector<17x8xbf16>, vector<17x17xf32> -> vector<17x17xf32>
    %cst_28 = arith.constant dense<0xFF800000> : vector<17xf32>
    %82 = vector.multi_reduction <maximumf>, %81, %cst_28 [1] : vector<17x17xf32> to vector<17xf32>
    %83 = vector.shape_cast %82 : vector<17xf32> to vector<17x1xf32>
    %84 = vector.broadcast %83 : vector<17x1xf32> to vector<17x17xf32>
    %85 = arith.subf %81, %84 : vector<17x17xf32>
    %86 = math.exp %85 : vector<17x17xf32>
    %cst_29 = arith.constant dense<0.000000e+00> : vector<17xf32>
    %87 = vector.multi_reduction <add>, %86, %cst_29 [1] : vector<17x17xf32> to vector<17xf32>
    %88 = vector.shape_cast %87 : vector<17xf32> to vector<17x1xf32>
    %89 = tpu.reciprocal %88 {approx = true} : vector<17x1xf32> -> vector<17x1xf32>
    %90 = vector.broadcast %89 : vector<17x1xf32> to vector<17x17xf32>
    %91 = arith.mulf %86, %90 : vector<17x17xf32>
    %92 = arith.truncf %91 : vector<17x17xf32> to vector<17x17xbf16>
    %93 = arith.truncf %78 : vector<17x8xf32> to vector<17x8xbf16>
    %cst_30 = arith.constant dense<0.000000e+00> : vector<17x8xf32>
    %94 = tpu.matmul %92, %93, %cst_30 {dimension_numbers = #tpu.dot_dimension_numbers<[1], [0], [0], [1], [0, 0, 1, 1], [], []>} : vector<17x17xbf16>, vector<17x8xbf16>, vector<17x8xf32> -> vector<17x8xf32>
    %95 = arith.truncf %94 : vector<17x8xf32> to vector<17x8xbf16>
    %96 = vector.extract_strided_slice %30 {offsets = [16, 0], sizes = [8, 32], strides = [1, 1]} : vector<32x32xbf16> to vector<8x32xbf16>
    %cst_31 = arith.constant dense<0.000000e+00> : vector<17x32xf32>
    %97 = tpu.matmul %95, %96, %cst_31 {dimension_numbers = #tpu.dot_dimension_numbers<[1], [0], [0], [1], [0, 0, 1, 1], [], []>} : vector<17x8xbf16>, vector<8x32xbf16>, vector<17x32xf32> -> vector<17x32xf32>
    %98 = arith.addf %75, %97 : vector<17x32xf32>
    %99 = vector.extract_strided_slice %29 {offsets = [0, 24], sizes = [17, 8], strides = [1, 1]} : vector<17x96xf32> to vector<17x8xf32>
    %100 = vector.extract_strided_slice %29 {offsets = [0, 56], sizes = [17, 8], strides = [1, 1]} : vector<17x96xf32> to vector<17x8xf32>
    %101 = vector.extract_strided_slice %29 {offsets = [0, 88], sizes = [17, 8], strides = [1, 1]} : vector<17x96xf32> to vector<17x8xf32>
    %102 = arith.truncf %99 : vector<17x8xf32> to vector<17x8xbf16>
    %103 = arith.truncf %100 : vector<17x8xf32> to vector<17x8xbf16>
    %cst_32 = arith.constant dense<0.000000e+00> : vector<17x17xf32>
    %104 = tpu.matmul %102, %103, %cst_32 {dimension_numbers = #tpu.dot_dimension_numbers<[1], [1], [0], [0], [0, 0, 1, 0], [], []>} : vector<17x8xbf16>, vector<17x8xbf16>, vector<17x17xf32> -> vector<17x17xf32>
    %cst_33 = arith.constant dense<0xFF800000> : vector<17xf32>
    %105 = vector.multi_reduction <maximumf>, %104, %cst_33 [1] : vector<17x17xf32> to vector<17xf32>
    %106 = vector.shape_cast %105 : vector<17xf32> to vector<17x1xf32>
    %107 = vector.broadcast %106 : vector<17x1xf32> to vector<17x17xf32>
    %108 = arith.subf %104, %107 : vector<17x17xf32>
    %109 = math.exp %108 : vector<17x17xf32>
    %cst_34 = arith.constant dense<0.000000e+00> : vector<17xf32>
    %110 = vector.multi_reduction <add>, %109, %cst_34 [1] : vector<17x17xf32> to vector<17xf32>
    %111 = vector.shape_cast %110 : vector<17xf32> to vector<17x1xf32>
    %112 = tpu.reciprocal %111 {approx = true} : vector<17x1xf32> -> vector<17x1xf32>
    %113 = vector.broadcast %112 : vector<17x1xf32> to vector<17x17xf32>
    %114 = arith.mulf %109, %113 : vector<17x17xf32>
    %115 = arith.truncf %114 : vector<17x17xf32> to vector<17x17xbf16>
    %116 = arith.truncf %101 : vector<17x8xf32> to vector<17x8xbf16>
    %cst_35 = arith.constant dense<0.000000e+00> : vector<17x8xf32>
    %117 = tpu.matmul %115, %116, %cst_35 {dimension_numbers = #tpu.dot_dimension_numbers<[1], [0], [0], [1], [0, 0, 1, 1], [], []>} : vector<17x17xbf16>, vector<17x8xbf16>, vector<17x8xf32> -> vector<17x8xf32>
    %118 = arith.truncf %117 : vector<17x8xf32> to vector<17x8xbf16>
    %119 = vector.extract_strided_slice %30 {offsets = [24, 0], sizes = [8, 32], strides = [1, 1]} : vector<32x32xbf16> to vector<8x32xbf16>
    %cst_36 = arith.constant dense<0.000000e+00> : vector<17x32xf32>
    %120 = tpu.matmul %118, %119, %cst_36 {dimension_numbers = #tpu.dot_dimension_numbers<[1], [0], [0], [1], [0, 0, 1, 1], [], []>} : vector<17x8xbf16>, vector<8x32xbf16>, vector<17x32xf32> -> vector<17x32xf32>
    %121 = arith.addf %98, %120 : vector<17x32xf32>
    %122 = arith.addf %1, %121 : vector<17x32xf32>
    %c0_37 = arith.constant 0 : index
    %c0_38 = arith.constant 0 : index
    %123 = vector.load %arg7[%c0_37, %c0_38] : memref<1x32xf32, #tpu.memory_space<vmem>>, vector<1x32xf32>
    %124 = vector.broadcast %123 : vector<1x32xf32> to vector<17x32xf32>
    %125 = arith.addf %122, %124 : vector<17x32xf32>
    %c0_39 = arith.constant 0 : index
    %c0_40 = arith.constant 0 : index
    %126 = vector.load %arg8[%c0_39, %c0_40] : memref<1x32xf32, #tpu.memory_space<vmem>>, vector<1x32xf32>
    %c0_41 = arith.constant 0 : index
    %c0_42 = arith.constant 0 : index
    %127 = vector.load %arg9[%c0_41, %c0_42] : memref<1x32xf32, #tpu.memory_space<vmem>>, vector<1x32xf32>
    %cst_43 = arith.constant dense<0.000000e+00> : vector<17xf32>
    %128 = vector.multi_reduction <add>, %125, %cst_43 [1] : vector<17x32xf32> to vector<17xf32>
    %129 = vector.shape_cast %128 : vector<17xf32> to vector<17x1xf32>
    %cst_44 = arith.constant 3.200000e+01 : f32
    %130 = vector.broadcast %cst_44 : f32 to vector<17x1xf32>
    %131 = arith.divf %129, %130 : vector<17x1xf32>
    %132 = vector.broadcast %131 : vector<17x1xf32> to vector<17x32xf32>
    %133 = arith.subf %125, %132 : vector<17x32xf32>
    %134 = arith.mulf %133, %133 : vector<17x32xf32>
    %cst_45 = arith.constant dense<0.000000e+00> : vector<17xf32>
    %135 = vector.multi_reduction <add>, %134, %cst_45 [1] : vector<17x32xf32> to vector<17xf32>
    %136 = vector.shape_cast %135 : vector<17xf32> to vector<17x1xf32>
    %cst_46 = arith.constant 3.200000e+01 : f32
    %137 = vector.broadcast %cst_46 : f32 to vector<17x1xf32>
    %138 = arith.divf %136, %137 : vector<17x1xf32>
    %cst_47 = arith.constant 9.99999974E-6 : f32
    %139 = vector.broadcast %cst_47 : f32 to vector<17x1xf32>
    %140 = arith.addf %138, %139 : vector<17x1xf32>
    %141 = math.rsqrt %140 : vector<17x1xf32>
    %142 = vector.broadcast %141 : vector<17x1xf32> to vector<17x32xf32>
    %143 = arith.mulf %133, %142 : vector<17x32xf32>
    %144 = vector.broadcast %126 : vector<1x32xf32> to vector<17x32xf32>
    %145 = arith.mulf %143, %144 : vector<17x32xf32>
    %146 = vector.broadcast %127 : vector<1x32xf32> to vector<17x32xf32>
    %147 = arith.addf %145, %146 : vector<17x32xf32>
    %148 = arith.truncf %147 : vector<17x32xf32> to vector<17x32xbf16>
    %c0_48 = arith.constant 0 : index
    %c0_49 = arith.constant 0 : index
    %149 = vector.load %arg10[%c0_48, %c0_49] : memref<32x64xbf16, #tpu.memory_space<vmem>>, vector<32x64xbf16>
    %cst_50 = arith.constant dense<0.000000e+00> : vector<17x64xf32>
    %150 = tpu.matmul %148, %149, %cst_50 {dimension_numbers = #tpu.dot_dimension_numbers<[1], [0], [0], [1], [0, 0, 1, 1], [], []>} : vector<17x32xbf16>, vector<32x64xbf16>, vector<17x64xf32> -> vector<17x64xf32>
    %c0_51 = arith.constant 0 : index
    %c0_52 = arith.constant 0 : index
    %151 = vector.load %arg11[%c0_51, %c0_52] : memref<1x64xf32, #tpu.memory_space<vmem>>, vector<1x64xf32>
    %152 = vector.broadcast %151 : vector<1x64xf32> to vector<17x64xf32>
    %153 = arith.addf %150, %152 : vector<17x64xf32>
    %cst_53 = arith.constant 5.000000e-01 : f32
    %154 = vector.broadcast %cst_53 : f32 to vector<17x64xf32>
    %155 = arith.mulf %154, %153 : vector<17x64xf32>
    %cst_54 = arith.constant 4.471500e-02 : f32
    %156 = vector.broadcast %cst_54 : f32 to vector<17x64xf32>
    %157 = arith.mulf %156, %153 : vector<17x64xf32>
    %158 = arith.mulf %157, %153 : vector<17x64xf32>
    %159 = arith.mulf %158, %153 : vector<17x64xf32>
    %160 = arith.addf %153, %159 : vector<17x64xf32>
    %cst_55 = arith.constant 0.797884583 : f32
    %161 = vector.broadcast %cst_55 : f32 to vector<17x64xf32>
    %162 = arith.mulf %161, %160 : vector<17x64xf32>
    %163 = math.tanh %162 : vector<17x64xf32>
    %cst_56 = arith.constant 1.000000e+00 : f32
    %164 = vector.broadcast %cst_56 : f32 to vector<17x64xf32>
    %165 = arith.addf %164, %163 : vector<17x64xf32>
    %166 = arith.mulf %155, %165 : vector<17x64xf32>
    %167 = arith.truncf %166 : vector<17x64xf32> to vector<17x64xbf16>
    %c0_57 = arith.constant 0 : index
    %c0_58 = arith.constant 0 : index
    %168 = vector.load %arg12[%c0_57, %c0_58] : memref<64x32xbf16, #tpu.memory_space<vmem>>, vector<64x32xbf16>
    %cst_59 = arith.constant dense<0.000000e+00> : vector<17x32xf32>
    %169 = tpu.matmul %167, %168, %cst_59 {dimension_numbers = #tpu.dot_dimension_numbers<[1], [0], [0], [1], [0, 0, 1, 1], [], []>} : vector<17x64xbf16>, vector<64x32xbf16>, vector<17x32xf32> -> vector<17x32xf32>
    %c0_60 = arith.constant 0 : index
    %c0_61 = arith.constant 0 : index
    %170 = vector.load %arg13[%c0_60, %c0_61] : memref<1x32xf32, #tpu.memory_space<vmem>>, vector<1x32xf32>
    %171 = vector.broadcast %170 : vector<1x32xf32> to vector<17x32xf32>
    %172 = arith.addf %169, %171 : vector<17x32xf32>
    %173 = arith.addf %125, %172 : vector<17x32xf32>
    %c0_62 = arith.constant 0 : index
    %c0_63 = arith.constant 0 : index
    %c0_64 = arith.constant 0 : index
    %174 = vector.load %arg14[%c0_62, %c0_63, %c0_64] : memref<1x17x32xf32, #tpu.memory_space<vmem>>, vector<1x17x32xf32>
    %175 = vector.shape_cast %174 : vector<1x17x32xf32> to vector<17x32xf32>
    %176 = vector.shape_cast %173 : vector<17x32xf32> to vector<1x17x32xf32>
    tpu.vector_store %arg14[%c0_62, %c0_63, %c0_64], %176 {strides = array<i32>} : memref<1x17x32xf32, #tpu.memory_space<vmem>>, vector<1x17x32xf32>,
    return
  }
  func.func @transform_0(%arg0: i32) -> (i32, i32, i32) {
    %c0_i32 = arith.constant 0 : i32
    %c0_i32_0 = arith.constant 0 : i32
    %c0_i32_1 = arith.constant 0 : i32
    return %arg0, %c0_i32, %c0_i32_0 : i32, i32, i32
  }
  func.func @transform_1(%arg0: i32) -> (i32, i32) {
    %c0_i32 = arith.constant 0 : i32
    %c0_i32_0 = arith.constant 0 : i32
    %c0_i32_1 = arith.constant 0 : i32
    return %c0_i32, %c0_i32_0 : i32, i32
  }
  func.func @transform_2(%arg0: i32) -> (i32, i32) {
    %c0_i32 = arith.constant 0 : i32
    %c0_i32_0 = arith.constant 0 : i32
    %c0_i32_1 = arith.constant 0 : i32
    return %c0_i32, %c0_i32_0 : i32, i32
  }
  func.func @transform_3(%arg0: i32) -> (i32, i32) {
    %c0_i32 = arith.constant 0 : i32
    %c0_i32_0 = arith.constant 0 : i32
    %c0_i32_1 = arith.constant 0 : i32
    return %c0_i32, %c0_i32_0 : i32, i32
  }
  func.func @transform_4(%arg0: i32) -> (i32, i32) {
    %c0_i32 = arith.constant 0 : i32
    %c0_i32_0 = arith.constant 0 : i32
    %c0_i32_1 = arith.constant 0 : i32
    return %c0_i32, %c0_i32_0 : i32, i32
  }
  func.func @transform_5(%arg0: i32) -> (i32, i32) {
    %c0_i32 = arith.constant 0 : i32
    %c0_i32_0 = arith.constant 0 : i32
    %c0_i32_1 = arith.constant 0 : i32
    return %c0_i32, %c0_i32_0 : i32, i32
  }
  func.func @transform_6(%arg0: i32) -> (i32, i32) {
    %c0_i32 = arith.constant 0 : i32
    %c0_i32_0 = arith.constant 0 : i32
    %c0_i32_1 = arith.constant 0 : i32
    return %c0_i32, %c0_i32_0 : i32, i32
  }
  func.func @transform_7(%arg0: i32) -> (i32, i32) {
    %c0_i32 = arith.constant 0 : i32
    %c0_i32_0 = arith.constant 0 : i32
    %c0_i32_1 = arith.constant 0 : i32
    return %c0_i32, %c0_i32_0 : i32, i32
  }
  func.func @transform_8(%arg0: i32) -> (i32, i32) {
    %c0_i32 = arith.constant 0 : i32
    %c0_i32_0 = arith.constant 0 : i32
    %c0_i32_1 = arith.constant 0 : i32
    return %c0_i32, %c0_i32_0 : i32, i32
  }
  func.func @transform_9(%arg0: i32) -> (i32, i32) {
    %c0_i32 = arith.constant 0 : i32
    %c0_i32_0 = arith.constant 0 : i32
    %c0_i32_1 = arith.constant 0 : i32
    return %c0_i32, %c0_i32_0 : i32, i32
  }
  func.func @transform_10(%arg0: i32) -> (i32, i32) {
    %c0_i32 = arith.constant 0 : i32
    %c0_i32_0 = arith.constant 0 : i32
    %c0_i32_1 = arith.constant 0 : i32
    return %c0_i32, %c0_i32_0 : i32, i32
  }
  func.func @transform_11(%arg0: i32) -> (i32, i32) {
    %c0_i32 = arith.constant 0 : i32
    %c0_i32_0 = arith.constant 0 : i32
    %c0_i32_1 = arith.constant 0 : i32
    return %c0_i32, %c0_i32_0 : i32, i32
  }
  func.func @transform_12(%arg0: i32) -> (i32, i32) {
    %c0_i32 = arith.constant 0 : i32
    %c0_i32_0 = arith.constant 0 : i32
    %c0_i32_1 = arith.constant 0 : i32
    return %c0_i32, %c0_i32_0 : i32, i32
  }
  func.func @transform_13(%arg0: i32) -> (i32, i32, i32) {
    %c0_i32 = arith.constant 0 : i32
    %c0_i32_0 = arith.constant 0 : i32
    %c0_i32_1 = arith.constant 0 : i32
    return %arg0, %c0_i32, %c0_i32_0 : i32, i32, i32
  }
}

module attributes {stable_mosaic.version = 11 : i64} {
  func.func @_vision_post_kernel(%arg0: i32, %arg1: memref<1x17x32xf32, #tpu.memory_space<vmem>>, %arg2: memref<1x32xf32, #tpu.memory_space<vmem>>, %arg3: memref<1x32xf32, #tpu.memory_space<vmem>>, %arg4: memref<1x32xf32, #tpu.memory_space<vmem>>, %arg5: memref<1x32xf32, #tpu.memory_space<vmem>>, %arg6: memref<1x17x32xf32, #tpu.memory_space<vmem>>) attributes {dimension_semantics = [#tpu.dimension_semantics<parallel>], iteration_bounds = array<i64: 2>, scalar_prefetch = 0 : i64, scratch_operands = 0 : i64, tpu.core_type = #tpu.core_type<tc>, window_params = [{transform_indices = @transform_0, window_bounds = array<i64: 1, 17, 32>}, {pipeline_mode = #tpu.pipeline_mode<synchronous>, transform_indices = @transform_1, window_bounds = array<i64: 1, 32>}, {pipeline_mode = #tpu.pipeline_mode<synchronous>, transform_indices = @transform_2, window_bounds = array<i64: 1, 32>}, {pipeline_mode = #tpu.pipeline_mode<synchronous>, transform_indices = @transform_3, window_bounds = array<i64: 1, 32>}, {pipeline_mode = #tpu.pipeline_mode<synchronous>, transform_indices = @transform_4, window_bounds = array<i64: 1, 32>}, {transform_indices = @transform_5, window_bounds = array<i64: 1, 17, 32>}]} {
    %c0 = arith.constant 0 : index
    %c0_0 = arith.constant 0 : index
    %c0_1 = arith.constant 0 : index
    %0 = vector.load %arg1[%c0, %c0_0, %c0_1] : memref<1x17x32xf32, #tpu.memory_space<vmem>>, vector<1x17x32xf32>
    %1 = vector.shape_cast %0 : vector<1x17x32xf32> to vector<17x32xf32>
    %c0_2 = arith.constant 0 : index
    %c0_3 = arith.constant 0 : index
    %2 = vector.load %arg2[%c0_2, %c0_3] : memref<1x32xf32, #tpu.memory_space<vmem>>, vector<1x32xf32>
    %c0_4 = arith.constant 0 : index
    %c0_5 = arith.constant 0 : index
    %3 = vector.load %arg3[%c0_4, %c0_5] : memref<1x32xf32, #tpu.memory_space<vmem>>, vector<1x32xf32>
    %cst = arith.constant dense<0.000000e+00> : vector<17xf32>
    %4 = vector.multi_reduction <add>, %1, %cst [1] : vector<17x32xf32> to vector<17xf32>
    %5 = vector.shape_cast %4 : vector<17xf32> to vector<17x1xf32>
    %cst_6 = arith.constant 3.200000e+01 : f32
    %6 = vector.broadcast %cst_6 : f32 to vector<17x1xf32>
    %7 = arith.divf %5, %6 : vector<17x1xf32>
    %8 = vector.broadcast %7 : vector<17x1xf32> to vector<17x32xf32>
    %9 = arith.subf %1, %8 : vector<17x32xf32>
    %10 = arith.mulf %9, %9 : vector<17x32xf32>
    %cst_7 = arith.constant dense<0.000000e+00> : vector<17xf32>
    %11 = vector.multi_reduction <add>, %10, %cst_7 [1] : vector<17x32xf32> to vector<17xf32>
    %12 = vector.shape_cast %11 : vector<17xf32> to vector<17x1xf32>
    %cst_8 = arith.constant 3.200000e+01 : f32
    %13 = vector.broadcast %cst_8 : f32 to vector<17x1xf32>
    %14 = arith.divf %12, %13 : vector<17x1xf32>
    %cst_9 = arith.constant 9.99999974E-6 : f32
    %15 = vector.broadcast %cst_9 : f32 to vector<17x1xf32>
    %16 = arith.addf %14, %15 : vector<17x1xf32>
    %17 = math.rsqrt %16 : vector<17x1xf32>
    %18 = vector.broadcast %17 : vector<17x1xf32> to vector<17x32xf32>
    %19 = arith.mulf %9, %18 : vector<17x32xf32>
    %20 = vector.broadcast %2 : vector<1x32xf32> to vector<17x32xf32>
    %21 = arith.mulf %19, %20 : vector<17x32xf32>
    %22 = vector.broadcast %3 : vector<1x32xf32> to vector<17x32xf32>
    %23 = arith.addf %21, %22 : vector<17x32xf32>
    %24 = vector.extract_strided_slice %23 {offsets = [0, 0], sizes = [1, 32], strides = [1, 1]} : vector<17x32xf32> to vector<1x32xf32>
    %25 = vector.broadcast %24 : vector<1x32xf32> to vector<17x32xf32>
    %26 = arith.mulf %23, %25 : vector<17x32xf32>
    %c0_10 = arith.constant 0 : index
    %c0_11 = arith.constant 0 : index
    %27 = vector.load %arg4[%c0_10, %c0_11] : memref<1x32xf32, #tpu.memory_space<vmem>>, vector<1x32xf32>
    %c0_12 = arith.constant 0 : index
    %c0_13 = arith.constant 0 : index
    %28 = vector.load %arg5[%c0_12, %c0_13] : memref<1x32xf32, #tpu.memory_space<vmem>>, vector<1x32xf32>
    %cst_14 = arith.constant dense<0.000000e+00> : vector<17xf32>
    %29 = vector.multi_reduction <add>, %26, %cst_14 [1] : vector<17x32xf32> to vector<17xf32>
    %30 = vector.shape_cast %29 : vector<17xf32> to vector<17x1xf32>
    %cst_15 = arith.constant 3.200000e+01 : f32
    %31 = vector.broadcast %cst_15 : f32 to vector<17x1xf32>
    %32 = arith.divf %30, %31 : vector<17x1xf32>
    %33 = vector.broadcast %32 : vector<17x1xf32> to vector<17x32xf32>
    %34 = arith.subf %26, %33 : vector<17x32xf32>
    %35 = arith.mulf %34, %34 : vector<17x32xf32>
    %cst_16 = arith.constant dense<0.000000e+00> : vector<17xf32>
    %36 = vector.multi_reduction <add>, %35, %cst_16 [1] : vector<17x32xf32> to vector<17xf32>
    %37 = vector.shape_cast %36 : vector<17xf32> to vector<17x1xf32>
    %cst_17 = arith.constant 3.200000e+01 : f32
    %38 = vector.broadcast %cst_17 : f32 to vector<17x1xf32>
    %39 = arith.divf %37, %38 : vector<17x1xf32>
    %cst_18 = arith.constant 9.99999974E-6 : f32
    %40 = vector.broadcast %cst_18 : f32 to vector<17x1xf32>
    %41 = arith.addf %39, %40 : vector<17x1xf32>
    %42 = math.rsqrt %41 : vector<17x1xf32>
    %43 = vector.broadcast %42 : vector<17x1xf32> to vector<17x32xf32>
    %44 = arith.mulf %34, %43 : vector<17x32xf32>
    %45 = vector.broadcast %27 : vector<1x32xf32> to vector<17x32xf32>
    %46 = arith.mulf %44, %45 : vector<17x32xf32>
    %47 = vector.broadcast %28 : vector<1x32xf32> to vector<17x32xf32>
    %48 = arith.addf %46, %47 : vector<17x32xf32>
    %c0_19 = arith.constant 0 : index
    %c0_20 = arith.constant 0 : index
    %c0_21 = arith.constant 0 : index
    %49 = vector.load %arg6[%c0_19, %c0_20, %c0_21] : memref<1x17x32xf32, #tpu.memory_space<vmem>>, vector<1x17x32xf32>
    %50 = vector.shape_cast %49 : vector<1x17x32xf32> to vector<17x32xf32>
    %51 = vector.shape_cast %48 : vector<17x32xf32> to vector<1x17x32xf32>
    tpu.vector_store %arg6[%c0_19, %c0_20, %c0_21], %51 {strides = array<i32>} : memref<1x17x32xf32, #tpu.memory_space<vmem>>, vector<1x17x32xf32>,
    return
  }
  func.func @transform_0(%arg0: i32) -> (i32, i32, i32) {
    %c0_i32 = arith.constant 0 : i32
    %c0_i32_0 = arith.constant 0 : i32
    %c0_i32_1 = arith.constant 0 : i32
    return %arg0, %c0_i32, %c0_i32_0 : i32, i32, i32
  }
  func.func @transform_1(%arg0: i32) -> (i32, i32) {
    %c0_i32 = arith.constant 0 : i32
    %c0_i32_0 = arith.constant 0 : i32
    %c0_i32_1 = arith.constant 0 : i32
    return %c0_i32, %c0_i32_0 : i32, i32
  }
  func.func @transform_2(%arg0: i32) -> (i32, i32) {
    %c0_i32 = arith.constant 0 : i32
    %c0_i32_0 = arith.constant 0 : i32
    %c0_i32_1 = arith.constant 0 : i32
    return %c0_i32, %c0_i32_0 : i32, i32
  }
  func.func @transform_3(%arg0: i32) -> (i32, i32) {
    %c0_i32 = arith.constant 0 : i32
    %c0_i32_0 = arith.constant 0 : i32
    %c0_i32_1 = arith.constant 0 : i32
    return %c0_i32, %c0_i32_0 : i32, i32
  }
  func.func @transform_4(%arg0: i32) -> (i32, i32) {
    %c0_i32 = arith.constant 0 : i32
    %c0_i32_0 = arith.constant 0 : i32
    %c0_i32_1 = arith.constant 0 : i32
    return %c0_i32, %c0_i32_0 : i32, i32
  }
  func.func @transform_5(%arg0: i32) -> (i32, i32, i32) {
    %c0_i32 = arith.constant 0 : i32
    %c0_i32_0 = arith.constant 0 : i32
    %c0_i32_1 = arith.constant 0 : i32
    return %arg0, %c0_i32, %c0_i32_0 : i32, i32, i32
  }
}

module attributes {stable_mosaic.version = 11 : i64} {
  func.func @_ln_linear_kernel(%arg0: i32, %arg1: memref<4x32xf32, #tpu.memory_space<vmem>>, %arg2: memref<1x32xf32, #tpu.memory_space<vmem>>, %arg3: memref<1x32xf32, #tpu.memory_space<vmem>>, %arg4: memref<32x32xbf16, #tpu.memory_space<vmem>>, %arg5: memref<4x32xf32, #tpu.memory_space<vmem>>) attributes {dimension_semantics = [#tpu.dimension_semantics<arbitrary>], iteration_bounds = array<i64: 1>, scalar_prefetch = 0 : i64, scratch_operands = 0 : i64, tpu.core_type = #tpu.core_type<tc>, window_params = [{pipeline_mode = #tpu.pipeline_mode<synchronous>, transform_indices = @transform_0, window_bounds = array<i64: 4, 32>}, {pipeline_mode = #tpu.pipeline_mode<synchronous>, transform_indices = @transform_1, window_bounds = array<i64: 1, 32>}, {pipeline_mode = #tpu.pipeline_mode<synchronous>, transform_indices = @transform_2, window_bounds = array<i64: 1, 32>}, {pipeline_mode = #tpu.pipeline_mode<synchronous>, transform_indices = @transform_3, window_bounds = array<i64: 32, 32>}, {pipeline_mode = #tpu.pipeline_mode<synchronous>, transform_indices = @transform_4, window_bounds = array<i64: 4, 32>}]} {
    %c0 = arith.constant 0 : index
    %c0_0 = arith.constant 0 : index
    %0 = vector.load %arg1[%c0, %c0_0] : memref<4x32xf32, #tpu.memory_space<vmem>>, vector<4x32xf32>
    %c0_1 = arith.constant 0 : index
    %c0_2 = arith.constant 0 : index
    %1 = vector.load %arg2[%c0_1, %c0_2] : memref<1x32xf32, #tpu.memory_space<vmem>>, vector<1x32xf32>
    %c0_3 = arith.constant 0 : index
    %c0_4 = arith.constant 0 : index
    %2 = vector.load %arg3[%c0_3, %c0_4] : memref<1x32xf32, #tpu.memory_space<vmem>>, vector<1x32xf32>
    %cst = arith.constant dense<0.000000e+00> : vector<4xf32>
    %3 = vector.multi_reduction <add>, %0, %cst [1] : vector<4x32xf32> to vector<4xf32>
    %4 = vector.shape_cast %3 : vector<4xf32> to vector<4x1xf32>
    %cst_5 = arith.constant 3.200000e+01 : f32
    %5 = vector.broadcast %cst_5 : f32 to vector<4x1xf32>
    %6 = arith.divf %4, %5 : vector<4x1xf32>
    %7 = vector.broadcast %6 : vector<4x1xf32> to vector<4x32xf32>
    %8 = arith.subf %0, %7 : vector<4x32xf32>
    %9 = arith.mulf %8, %8 : vector<4x32xf32>
    %cst_6 = arith.constant dense<0.000000e+00> : vector<4xf32>
    %10 = vector.multi_reduction <add>, %9, %cst_6 [1] : vector<4x32xf32> to vector<4xf32>
    %11 = vector.shape_cast %10 : vector<4xf32> to vector<4x1xf32>
    %cst_7 = arith.constant 3.200000e+01 : f32
    %12 = vector.broadcast %cst_7 : f32 to vector<4x1xf32>
    %13 = arith.divf %11, %12 : vector<4x1xf32>
    %cst_8 = arith.constant 9.99999974E-6 : f32
    %14 = vector.broadcast %cst_8 : f32 to vector<4x1xf32>
    %15 = arith.addf %13, %14 : vector<4x1xf32>
    %16 = math.rsqrt %15 : vector<4x1xf32>
    %17 = vector.broadcast %16 : vector<4x1xf32> to vector<4x32xf32>
    %18 = arith.mulf %8, %17 : vector<4x32xf32>
    %19 = vector.broadcast %1 : vector<1x32xf32> to vector<4x32xf32>
    %20 = arith.mulf %18, %19 : vector<4x32xf32>
    %21 = vector.broadcast %2 : vector<1x32xf32> to vector<4x32xf32>
    %22 = arith.addf %20, %21 : vector<4x32xf32>
    %23 = arith.truncf %22 : vector<4x32xf32> to vector<4x32xbf16>
    %c0_9 = arith.constant 0 : index
    %c0_10 = arith.constant 0 : index
    %24 = vector.load %arg4[%c0_9, %c0_10] : memref<32x32xbf16, #tpu.memory_space<vmem>>, vector<32x32xbf16>
    %cst_11 = arith.constant dense<0.000000e+00> : vector<4x32xf32>
    %25 = tpu.matmul %23, %24, %cst_11 {dimension_numbers = #tpu.dot_dimension_numbers<[1], [0], [0], [1], [0, 0, 1, 1], [], []>} : vector<4x32xbf16>, vector<32x32xbf16>, vector<4x32xf32> -> vector<4x32xf32>
    %c0_12 = arith.constant 0 : index
    %c0_13 = arith.constant 0 : index
    %26 = vector.load %arg5[%c0_12, %c0_13] : memref<4x32xf32, #tpu.memory_space<vmem>>, vector<4x32xf32>
    tpu.vector_store %arg5[%c0_12, %c0_13], %25 {strides = array<i32>} : memref<4x32xf32, #tpu.memory_space<vmem>>, vector<4x32xf32>,
    return
  }
  func.func @transform_0(%arg0: i32) -> (i32, i32) {
    %c0_i32 = arith.constant 0 : i32
    %c0_i32_0 = arith.constant 0 : i32
    %c0_i32_1 = arith.constant 0 : i32
    return %c0_i32, %c0_i32_0 : i32, i32
  }
  func.func @transform_1(%arg0: i32) -> (i32, i32) {
    %c0_i32 = arith.constant 0 : i32
    %c0_i32_0 = arith.constant 0 : i32
    %c0_i32_1 = arith.constant 0 : i32
    return %c0_i32, %c0_i32_0 : i32, i32
  }
  func.func @transform_2(%arg0: i32) -> (i32, i32) {
    %c0_i32 = arith.constant 0 : i32
    %c0_i32_0 = arith.constant 0 : i32
    %c0_i32_1 = arith.constant 0 : i32
    return %c0_i32, %c0_i32_0 : i32, i32
  }
  func.func @transform_3(%arg0: i32) -> (i32, i32) {
    %c0_i32 = arith.constant 0 : i32
    %c0_i32_0 = arith.constant 0 : i32
    %c0_i32_1 = arith.constant 0 : i32
    return %c0_i32, %c0_i32_0 : i32, i32
  }
  func.func @transform_4(%arg0: i32) -> (i32, i32) {
    %c0_i32 = arith.constant 0 : i32
    %c0_i32_0 = arith.constant 0 : i32
    %c0_i32_1 = arith.constant 0 : i32
    return %c0_i32, %c0_i32_0 : i32, i32
  }
}

module attributes {stable_mosaic.version = 11 : i64} {
  func.func @_encoder_layer_kernel(%arg0: i32, %arg1: memref<1x8x32xf32, #tpu.memory_space<vmem>>, %arg2: memref<1x8x8xf32, #tpu.memory_space<vmem>>, %arg3: memref<1x32xf32, #tpu.memory_space<vmem>>, %arg4: memref<1x32xf32, #tpu.memory_space<vmem>>, %arg5: memref<32x96xbf16, #tpu.memory_space<vmem>>, %arg6: memref<1x96xf32, #tpu.memory_space<vmem>>, %arg7: memref<32x32xbf16, #tpu.memory_space<vmem>>, %arg8: memref<1x32xf32, #tpu.memory_space<vmem>>, %arg9: memref<1x32xf32, #tpu.memory_space<vmem>>, %arg10: memref<1x32xf32, #tpu.memory_space<vmem>>, %arg11: memref<32x64xbf16, #tpu.memory_space<vmem>>, %arg12: memref<1x64xf32, #tpu.memory_space<vmem>>, %arg13: memref<64x32xbf16, #tpu.memory_space<vmem>>, %arg14: memref<1x32xf32, #tpu.memory_space<vmem>>, %arg15: memref<1x8x32xf32, #tpu.memory_space<vmem>>) attributes {dimension_semantics = [#tpu.dimension_semantics<parallel>], iteration_bounds = array<i64: 4>, scalar_prefetch = 0 : i64, scratch_operands = 0 : i64, tpu.core_type = #tpu.core_type<tc>, window_params = [{transform_indices = @transform_0, window_bounds = array<i64: 1, 8, 32>}, {transform_indices = @transform_1, window_bounds = array<i64: 1, 8, 8>}, {pipeline_mode = #tpu.pipeline_mode<synchronous>, transform_indices = @transform_2, window_bounds = array<i64: 1, 32>}, {pipeline_mode = #tpu.pipeline_mode<synchronous>, transform_indices = @transform_3, window_bounds = array<i64: 1, 32>}, {pipeline_mode = #tpu.pipeline_mode<synchronous>, transform_indices = @transform_4, window_bounds = array<i64: 32, 96>}, {pipeline_mode = #tpu.pipeline_mode<synchronous>, transform_indices = @transform_5, window_bounds = array<i64: 1, 96>}, {pipeline_mode = #tpu.pipeline_mode<synchronous>, transform_indices = @transform_6, window_bounds = array<i64: 32, 32>}, {pipeline_mode = #tpu.pipeline_mode<synchronous>, transform_indices = @transform_7, window_bounds = array<i64: 1, 32>}, {pipeline_mode = #tpu.pipeline_mode<synchronous>, transform_indices = @transform_8, window_bounds = array<i64: 1, 32>}, {pipeline_mode = #tpu.pipeline_mode<synchronous>, transform_indices = @transform_9, window_bounds = array<i64: 1, 32>}, {pipeline_mode = #tpu.pipeline_mode<synchronous>, transform_indices = @transform_10, window_bounds = array<i64: 32, 64>}, {pipeline_mode = #tpu.pipeline_mode<synchronous>, transform_indices = @transform_11, window_bounds = array<i64: 1, 64>}, {pipeline_mode = #tpu.pipeline_mode<synchronous>, transform_indices = @transform_12, window_bounds = array<i64: 64, 32>}, {pipeline_mode = #tpu.pipeline_mode<synchronous>, transform_indices = @transform_13, window_bounds = array<i64: 1, 32>}, {transform_indices = @transform_14, window_bounds = array<i64: 1, 8, 32>}]} {
    %c0 = arith.constant 0 : index
    %c0_0 = arith.constant 0 : index
    %c0_1 = arith.constant 0 : index
    %0 = vector.load %arg1[%c0, %c0_0, %c0_1] : memref<1x8x32xf32, #tpu.memory_space<vmem>>, vector<1x8x32xf32>
    %1 = vector.shape_cast %0 : vector<1x8x32xf32> to vector<8x32xf32>
    %c0_2 = arith.constant 0 : index
    %c0_3 = arith.constant 0 : index
    %2 = vector.load %arg3[%c0_2, %c0_3] : memref<1x32xf32, #tpu.memory_space<vmem>>, vector<1x32xf32>
    %c0_4 = arith.constant 0 : index
    %c0_5 = arith.constant 0 : index
    %3 = vector.load %arg4[%c0_4, %c0_5] : memref<1x32xf32, #tpu.memory_space<vmem>>, vector<1x32xf32>
    %cst = arith.constant dense<0.000000e+00> : vector<8xf32>
    %4 = vector.multi_reduction <add>, %1, %cst [1] : vector<8x32xf32> to vector<8xf32>
    %5 = vector.shape_cast %4 : vector<8xf32> to vector<8x1xf32>
    %cst_6 = arith.constant 3.200000e+01 : f32
    %6 = vector.broadcast %cst_6 : f32 to vector<8x1xf32>
    %7 = arith.divf %5, %6 : vector<8x1xf32>
    %8 = vector.broadcast %7 : vector<8x1xf32> to vector<8x32xf32>
    %9 = arith.subf %1, %8 : vector<8x32xf32>
    %10 = arith.mulf %9, %9 : vector<8x32xf32>
    %cst_7 = arith.constant dense<0.000000e+00> : vector<8xf32>
    %11 = vector.multi_reduction <add>, %10, %cst_7 [1] : vector<8x32xf32> to vector<8xf32>
    %12 = vector.shape_cast %11 : vector<8xf32> to vector<8x1xf32>
    %cst_8 = arith.constant 3.200000e+01 : f32
    %13 = vector.broadcast %cst_8 : f32 to vector<8x1xf32>
    %14 = arith.divf %12, %13 : vector<8x1xf32>
    %cst_9 = arith.constant 9.99999974E-6 : f32
    %15 = vector.broadcast %cst_9 : f32 to vector<8x1xf32>
    %16 = arith.addf %14, %15 : vector<8x1xf32>
    %17 = math.rsqrt %16 : vector<8x1xf32>
    %18 = vector.broadcast %17 : vector<8x1xf32> to vector<8x32xf32>
    %19 = arith.mulf %9, %18 : vector<8x32xf32>
    %20 = vector.broadcast %2 : vector<1x32xf32> to vector<8x32xf32>
    %21 = arith.mulf %19, %20 : vector<8x32xf32>
    %22 = vector.broadcast %3 : vector<1x32xf32> to vector<8x32xf32>
    %23 = arith.addf %21, %22 : vector<8x32xf32>
    %24 = arith.truncf %23 : vector<8x32xf32> to vector<8x32xbf16>
    %c0_10 = arith.constant 0 : index
    %c0_11 = arith.constant 0 : index
    %25 = vector.load %arg5[%c0_10, %c0_11] : memref<32x96xbf16, #tpu.memory_space<vmem>>, vector<32x96xbf16>
    %cst_12 = arith.constant dense<0.000000e+00> : vector<8x96xf32>
    %26 = tpu.matmul %24, %25, %cst_12 {dimension_numbers = #tpu.dot_dimension_numbers<[1], [0], [0], [1], [0, 0, 1, 1], [], []>} : vector<8x32xbf16>, vector<32x96xbf16>, vector<8x96xf32> -> vector<8x96xf32>
    %c0_13 = arith.constant 0 : index
    %c0_14 = arith.constant 0 : index
    %27 = vector.load %arg6[%c0_13, %c0_14] : memref<1x96xf32, #tpu.memory_space<vmem>>, vector<1x96xf32>
    %28 = vector.broadcast %27 : vector<1x96xf32> to vector<8x96xf32>
    %29 = arith.addf %26, %28 : vector<8x96xf32>
    %c0_15 = arith.constant 0 : index
    %c0_16 = arith.constant 0 : index
    %c0_17 = arith.constant 0 : index
    %30 = vector.load %arg2[%c0_15, %c0_16, %c0_17] : memref<1x8x8xf32, #tpu.memory_space<vmem>>, vector<1x8x8xf32>
    %31 = vector.shape_cast %30 : vector<1x8x8xf32> to vector<8x8xf32>
    %c0_18 = arith.constant 0 : index
    %c0_19 = arith.constant 0 : index
    %32 = vector.load %arg7[%c0_18, %c0_19] : memref<32x32xbf16, #tpu.memory_space<vmem>>, vector<32x32xbf16>
    %33 = vector.extract_strided_slice %29 {offsets = [0, 0], sizes = [8, 8], strides = [1, 1]} : vector<8x96xf32> to vector<8x8xf32>
    %34 = vector.extract_strided_slice %29 {offsets = [0, 32], sizes = [8, 8], strides = [1, 1]} : vector<8x96xf32> to vector<8x8xf32>
    %35 = vector.extract_strided_slice %29 {offsets = [0, 64], sizes = [8, 8], strides = [1, 1]} : vector<8x96xf32> to vector<8x8xf32>
    %36 = arith.truncf %33 : vector<8x8xf32> to vector<8x8xbf16>
    %37 = arith.truncf %34 : vector<8x8xf32> to vector<8x8xbf16>
    %cst_20 = arith.constant dense<0.000000e+00> : vector<8x8xf32>
    %38 = tpu.matmul %36, %37, %cst_20 {dimension_numbers = #tpu.dot_dimension_numbers<[1], [1], [0], [0], [0, 0, 1, 0], [], []>} : vector<8x8xbf16>, vector<8x8xbf16>, vector<8x8xf32> -> vector<8x8xf32>
    %39 = arith.addf %38, %31 : vector<8x8xf32>
    %cst_21 = arith.constant dense<0xFF800000> : vector<8xf32>
    %40 = vector.multi_reduction <maximumf>, %39, %cst_21 [1] : vector<8x8xf32> to vector<8xf32>
    %41 = vector.shape_cast %40 : vector<8xf32> to vector<8x1xf32>
    %42 = vector.broadcast %41 : vector<8x1xf32> to vector<8x8xf32>
    %43 = arith.subf %39, %42 : vector<8x8xf32>
    %44 = math.exp %43 : vector<8x8xf32>
    %cst_22 = arith.constant dense<0.000000e+00> : vector<8xf32>
    %45 = vector.multi_reduction <add>, %44, %cst_22 [1] : vector<8x8xf32> to vector<8xf32>
    %46 = vector.shape_cast %45 : vector<8xf32> to vector<8x1xf32>
    %47 = tpu.reciprocal %46 {approx = true} : vector<8x1xf32> -> vector<8x1xf32>
    %48 = vector.broadcast %47 : vector<8x1xf32> to vector<8x8xf32>
    %49 = arith.mulf %44, %48 : vector<8x8xf32>
    %50 = arith.truncf %49 : vector<8x8xf32> to vector<8x8xbf16>
    %51 = arith.truncf %35 : vector<8x8xf32> to vector<8x8xbf16>
    %cst_23 = arith.constant dense<0.000000e+00> : vector<8x8xf32>
    %52 = tpu.matmul %50, %51, %cst_23 {dimension_numbers = #tpu.dot_dimension_numbers<[1], [0], [0], [1], [0, 0, 1, 1], [], []>} : vector<8x8xbf16>, vector<8x8xbf16>, vector<8x8xf32> -> vector<8x8xf32>
    %53 = arith.truncf %52 : vector<8x8xf32> to vector<8x8xbf16>
    %54 = vector.extract_strided_slice %32 {offsets = [0, 0], sizes = [8, 32], strides = [1, 1]} : vector<32x32xbf16> to vector<8x32xbf16>
    %cst_24 = arith.constant dense<0.000000e+00> : vector<8x32xf32>
    %55 = tpu.matmul %53, %54, %cst_24 {dimension_numbers = #tpu.dot_dimension_numbers<[1], [0], [0], [1], [0, 0, 1, 1], [], []>} : vector<8x8xbf16>, vector<8x32xbf16>, vector<8x32xf32> -> vector<8x32xf32>
    %56 = vector.extract_strided_slice %29 {offsets = [0, 8], sizes = [8, 8], strides = [1, 1]} : vector<8x96xf32> to vector<8x8xf32>
    %57 = vector.extract_strided_slice %29 {offsets = [0, 40], sizes = [8, 8], strides = [1, 1]} : vector<8x96xf32> to vector<8x8xf32>
    %58 = vector.extract_strided_slice %29 {offsets = [0, 72], sizes = [8, 8], strides = [1, 1]} : vector<8x96xf32> to vector<8x8xf32>
    %59 = arith.truncf %56 : vector<8x8xf32> to vector<8x8xbf16>
    %60 = arith.truncf %57 : vector<8x8xf32> to vector<8x8xbf16>
    %cst_25 = arith.constant dense<0.000000e+00> : vector<8x8xf32>
    %61 = tpu.matmul %59, %60, %cst_25 {dimension_numbers = #tpu.dot_dimension_numbers<[1], [1], [0], [0], [0, 0, 1, 0], [], []>} : vector<8x8xbf16>, vector<8x8xbf16>, vector<8x8xf32> -> vector<8x8xf32>
    %62 = arith.addf %61, %31 : vector<8x8xf32>
    %cst_26 = arith.constant dense<0xFF800000> : vector<8xf32>
    %63 = vector.multi_reduction <maximumf>, %62, %cst_26 [1] : vector<8x8xf32> to vector<8xf32>
    %64 = vector.shape_cast %63 : vector<8xf32> to vector<8x1xf32>
    %65 = vector.broadcast %64 : vector<8x1xf32> to vector<8x8xf32>
    %66 = arith.subf %62, %65 : vector<8x8xf32>
    %67 = math.exp %66 : vector<8x8xf32>
    %cst_27 = arith.constant dense<0.000000e+00> : vector<8xf32>
    %68 = vector.multi_reduction <add>, %67, %cst_27 [1] : vector<8x8xf32> to vector<8xf32>
    %69 = vector.shape_cast %68 : vector<8xf32> to vector<8x1xf32>
    %70 = tpu.reciprocal %69 {approx = true} : vector<8x1xf32> -> vector<8x1xf32>
    %71 = vector.broadcast %70 : vector<8x1xf32> to vector<8x8xf32>
    %72 = arith.mulf %67, %71 : vector<8x8xf32>
    %73 = arith.truncf %72 : vector<8x8xf32> to vector<8x8xbf16>
    %74 = arith.truncf %58 : vector<8x8xf32> to vector<8x8xbf16>
    %cst_28 = arith.constant dense<0.000000e+00> : vector<8x8xf32>
    %75 = tpu.matmul %73, %74, %cst_28 {dimension_numbers = #tpu.dot_dimension_numbers<[1], [0], [0], [1], [0, 0, 1, 1], [], []>} : vector<8x8xbf16>, vector<8x8xbf16>, vector<8x8xf32> -> vector<8x8xf32>
    %76 = arith.truncf %75 : vector<8x8xf32> to vector<8x8xbf16>
    %77 = vector.extract_strided_slice %32 {offsets = [8, 0], sizes = [8, 32], strides = [1, 1]} : vector<32x32xbf16> to vector<8x32xbf16>
    %cst_29 = arith.constant dense<0.000000e+00> : vector<8x32xf32>
    %78 = tpu.matmul %76, %77, %cst_29 {dimension_numbers = #tpu.dot_dimension_numbers<[1], [0], [0], [1], [0, 0, 1, 1], [], []>} : vector<8x8xbf16>, vector<8x32xbf16>, vector<8x32xf32> -> vector<8x32xf32>
    %79 = arith.addf %55, %78 : vector<8x32xf32>
    %80 = vector.extract_strided_slice %29 {offsets = [0, 16], sizes = [8, 8], strides = [1, 1]} : vector<8x96xf32> to vector<8x8xf32>
    %81 = vector.extract_strided_slice %29 {offsets = [0, 48], sizes = [8, 8], strides = [1, 1]} : vector<8x96xf32> to vector<8x8xf32>
    %82 = vector.extract_strided_slice %29 {offsets = [0, 80], sizes = [8, 8], strides = [1, 1]} : vector<8x96xf32> to vector<8x8xf32>
    %83 = arith.truncf %80 : vector<8x8xf32> to vector<8x8xbf16>
    %84 = arith.truncf %81 : vector<8x8xf32> to vector<8x8xbf16>
    %cst_30 = arith.constant dense<0.000000e+00> : vector<8x8xf32>
    %85 = tpu.matmul %83, %84, %cst_30 {dimension_numbers = #tpu.dot_dimension_numbers<[1], [1], [0], [0], [0, 0, 1, 0], [], []>} : vector<8x8xbf16>, vector<8x8xbf16>, vector<8x8xf32> -> vector<8x8xf32>
    %86 = arith.addf %85, %31 : vector<8x8xf32>
    %cst_31 = arith.constant dense<0xFF800000> : vector<8xf32>
    %87 = vector.multi_reduction <maximumf>, %86, %cst_31 [1] : vector<8x8xf32> to vector<8xf32>
    %88 = vector.shape_cast %87 : vector<8xf32> to vector<8x1xf32>
    %89 = vector.broadcast %88 : vector<8x1xf32> to vector<8x8xf32>
    %90 = arith.subf %86, %89 : vector<8x8xf32>
    %91 = math.exp %90 : vector<8x8xf32>
    %cst_32 = arith.constant dense<0.000000e+00> : vector<8xf32>
    %92 = vector.multi_reduction <add>, %91, %cst_32 [1] : vector<8x8xf32> to vector<8xf32>
    %93 = vector.shape_cast %92 : vector<8xf32> to vector<8x1xf32>
    %94 = tpu.reciprocal %93 {approx = true} : vector<8x1xf32> -> vector<8x1xf32>
    %95 = vector.broadcast %94 : vector<8x1xf32> to vector<8x8xf32>
    %96 = arith.mulf %91, %95 : vector<8x8xf32>
    %97 = arith.truncf %96 : vector<8x8xf32> to vector<8x8xbf16>
    %98 = arith.truncf %82 : vector<8x8xf32> to vector<8x8xbf16>
    %cst_33 = arith.constant dense<0.000000e+00> : vector<8x8xf32>
    %99 = tpu.matmul %97, %98, %cst_33 {dimension_numbers = #tpu.dot_dimension_numbers<[1], [0], [0], [1], [0, 0, 1, 1], [], []>} : vector<8x8xbf16>, vector<8x8xbf16>, vector<8x8xf32> -> vector<8x8xf32>
    %100 = arith.truncf %99 : vector<8x8xf32> to vector<8x8xbf16>
    %101 = vector.extract_strided_slice %32 {offsets = [16, 0], sizes = [8, 32], strides = [1, 1]} : vector<32x32xbf16> to vector<8x32xbf16>
    %cst_34 = arith.constant dense<0.000000e+00> : vector<8x32xf32>
    %102 = tpu.matmul %100, %101, %cst_34 {dimension_numbers = #tpu.dot_dimension_numbers<[1], [0], [0], [1], [0, 0, 1, 1], [], []>} : vector<8x8xbf16>, vector<8x32xbf16>, vector<8x32xf32> -> vector<8x32xf32>
    %103 = arith.addf %79, %102 : vector<8x32xf32>
    %104 = vector.extract_strided_slice %29 {offsets = [0, 24], sizes = [8, 8], strides = [1, 1]} : vector<8x96xf32> to vector<8x8xf32>
    %105 = vector.extract_strided_slice %29 {offsets = [0, 56], sizes = [8, 8], strides = [1, 1]} : vector<8x96xf32> to vector<8x8xf32>
    %106 = vector.extract_strided_slice %29 {offsets = [0, 88], sizes = [8, 8], strides = [1, 1]} : vector<8x96xf32> to vector<8x8xf32>
    %107 = arith.truncf %104 : vector<8x8xf32> to vector<8x8xbf16>
    %108 = arith.truncf %105 : vector<8x8xf32> to vector<8x8xbf16>
    %cst_35 = arith.constant dense<0.000000e+00> : vector<8x8xf32>
    %109 = tpu.matmul %107, %108, %cst_35 {dimension_numbers = #tpu.dot_dimension_numbers<[1], [1], [0], [0], [0, 0, 1, 0], [], []>} : vector<8x8xbf16>, vector<8x8xbf16>, vector<8x8xf32> -> vector<8x8xf32>
    %110 = arith.addf %109, %31 : vector<8x8xf32>
    %cst_36 = arith.constant dense<0xFF800000> : vector<8xf32>
    %111 = vector.multi_reduction <maximumf>, %110, %cst_36 [1] : vector<8x8xf32> to vector<8xf32>
    %112 = vector.shape_cast %111 : vector<8xf32> to vector<8x1xf32>
    %113 = vector.broadcast %112 : vector<8x1xf32> to vector<8x8xf32>
    %114 = arith.subf %110, %113 : vector<8x8xf32>
    %115 = math.exp %114 : vector<8x8xf32>
    %cst_37 = arith.constant dense<0.000000e+00> : vector<8xf32>
    %116 = vector.multi_reduction <add>, %115, %cst_37 [1] : vector<8x8xf32> to vector<8xf32>
    %117 = vector.shape_cast %116 : vector<8xf32> to vector<8x1xf32>
    %118 = tpu.reciprocal %117 {approx = true} : vector<8x1xf32> -> vector<8x1xf32>
    %119 = vector.broadcast %118 : vector<8x1xf32> to vector<8x8xf32>
    %120 = arith.mulf %115, %119 : vector<8x8xf32>
    %121 = arith.truncf %120 : vector<8x8xf32> to vector<8x8xbf16>
    %122 = arith.truncf %106 : vector<8x8xf32> to vector<8x8xbf16>
    %cst_38 = arith.constant dense<0.000000e+00> : vector<8x8xf32>
    %123 = tpu.matmul %121, %122, %cst_38 {dimension_numbers = #tpu.dot_dimension_numbers<[1], [0], [0], [1], [0, 0, 1, 1], [], []>} : vector<8x8xbf16>, vector<8x8xbf16>, vector<8x8xf32> -> vector<8x8xf32>
    %124 = arith.truncf %123 : vector<8x8xf32> to vector<8x8xbf16>
    %125 = vector.extract_strided_slice %32 {offsets = [24, 0], sizes = [8, 32], strides = [1, 1]} : vector<32x32xbf16> to vector<8x32xbf16>
    %cst_39 = arith.constant dense<0.000000e+00> : vector<8x32xf32>
    %126 = tpu.matmul %124, %125, %cst_39 {dimension_numbers = #tpu.dot_dimension_numbers<[1], [0], [0], [1], [0, 0, 1, 1], [], []>} : vector<8x8xbf16>, vector<8x32xbf16>, vector<8x32xf32> -> vector<8x32xf32>
    %127 = arith.addf %103, %126 : vector<8x32xf32>
    %128 = arith.addf %1, %127 : vector<8x32xf32>
    %c0_40 = arith.constant 0 : index
    %c0_41 = arith.constant 0 : index
    %129 = vector.load %arg8[%c0_40, %c0_41] : memref<1x32xf32, #tpu.memory_space<vmem>>, vector<1x32xf32>
    %130 = vector.broadcast %129 : vector<1x32xf32> to vector<8x32xf32>
    %131 = arith.addf %128, %130 : vector<8x32xf32>
    %c0_42 = arith.constant 0 : index
    %c0_43 = arith.constant 0 : index
    %132 = vector.load %arg9[%c0_42, %c0_43] : memref<1x32xf32, #tpu.memory_space<vmem>>, vector<1x32xf32>
    %c0_44 = arith.constant 0 : index
    %c0_45 = arith.constant 0 : index
    %133 = vector.load %arg10[%c0_44, %c0_45] : memref<1x32xf32, #tpu.memory_space<vmem>>, vector<1x32xf32>
    %cst_46 = arith.constant dense<0.000000e+00> : vector<8xf32>
    %134 = vector.multi_reduction <add>, %131, %cst_46 [1] : vector<8x32xf32> to vector<8xf32>
    %135 = vector.shape_cast %134 : vector<8xf32> to vector<8x1xf32>
    %cst_47 = arith.constant 3.200000e+01 : f32
    %136 = vector.broadcast %cst_47 : f32 to vector<8x1xf32>
    %137 = arith.divf %135, %136 : vector<8x1xf32>
    %138 = vector.broadcast %137 : vector<8x1xf32> to vector<8x32xf32>
    %139 = arith.subf %131, %138 : vector<8x32xf32>
    %140 = arith.mulf %139, %139 : vector<8x32xf32>
    %cst_48 = arith.constant dense<0.000000e+00> : vector<8xf32>
    %141 = vector.multi_reduction <add>, %140, %cst_48 [1] : vector<8x32xf32> to vector<8xf32>
    %142 = vector.shape_cast %141 : vector<8xf32> to vector<8x1xf32>
    %cst_49 = arith.constant 3.200000e+01 : f32
    %143 = vector.broadcast %cst_49 : f32 to vector<8x1xf32>
    %144 = arith.divf %142, %143 : vector<8x1xf32>
    %cst_50 = arith.constant 9.99999974E-6 : f32
    %145 = vector.broadcast %cst_50 : f32 to vector<8x1xf32>
    %146 = arith.addf %144, %145 : vector<8x1xf32>
    %147 = math.rsqrt %146 : vector<8x1xf32>
    %148 = vector.broadcast %147 : vector<8x1xf32> to vector<8x32xf32>
    %149 = arith.mulf %139, %148 : vector<8x32xf32>
    %150 = vector.broadcast %132 : vector<1x32xf32> to vector<8x32xf32>
    %151 = arith.mulf %149, %150 : vector<8x32xf32>
    %152 = vector.broadcast %133 : vector<1x32xf32> to vector<8x32xf32>
    %153 = arith.addf %151, %152 : vector<8x32xf32>
    %154 = arith.truncf %153 : vector<8x32xf32> to vector<8x32xbf16>
    %c0_51 = arith.constant 0 : index
    %c0_52 = arith.constant 0 : index
    %155 = vector.load %arg11[%c0_51, %c0_52] : memref<32x64xbf16, #tpu.memory_space<vmem>>, vector<32x64xbf16>
    %cst_53 = arith.constant dense<0.000000e+00> : vector<8x64xf32>
    %156 = tpu.matmul %154, %155, %cst_53 {dimension_numbers = #tpu.dot_dimension_numbers<[1], [0], [0], [1], [0, 0, 1, 1], [], []>} : vector<8x32xbf16>, vector<32x64xbf16>, vector<8x64xf32> -> vector<8x64xf32>
    %c0_54 = arith.constant 0 : index
    %c0_55 = arith.constant 0 : index
    %157 = vector.load %arg12[%c0_54, %c0_55] : memref<1x64xf32, #tpu.memory_space<vmem>>, vector<1x64xf32>
    %158 = vector.broadcast %157 : vector<1x64xf32> to vector<8x64xf32>
    %159 = arith.addf %156, %158 : vector<8x64xf32>
    %cst_56 = arith.constant 5.000000e-01 : f32
    %160 = vector.broadcast %cst_56 : f32 to vector<8x64xf32>
    %161 = arith.mulf %160, %159 : vector<8x64xf32>
    %cst_57 = arith.constant 4.471500e-02 : f32
    %162 = vector.broadcast %cst_57 : f32 to vector<8x64xf32>
    %163 = arith.mulf %162, %159 : vector<8x64xf32>
    %164 = arith.mulf %163, %159 : vector<8x64xf32>
    %165 = arith.mulf %164, %159 : vector<8x64xf32>
    %166 = arith.addf %159, %165 : vector<8x64xf32>
    %cst_58 = arith.constant 0.797884583 : f32
    %167 = vector.broadcast %cst_58 : f32 to vector<8x64xf32>
    %168 = arith.mulf %167, %166 : vector<8x64xf32>
    %169 = math.tanh %168 : vector<8x64xf32>
    %cst_59 = arith.constant 1.000000e+00 : f32
    %170 = vector.broadcast %cst_59 : f32 to vector<8x64xf32>
    %171 = arith.addf %170, %169 : vector<8x64xf32>
    %172 = arith.mulf %161, %171 : vector<8x64xf32>
    %173 = arith.truncf %172 : vector<8x64xf32> to vector<8x64xbf16>
    %c0_60 = arith.constant 0 : index
    %c0_61 = arith.constant 0 : index
    %174 = vector.load %arg13[%c0_60, %c0_61] : memref<64x32xbf16, #tpu.memory_space<vmem>>, vector<64x32xbf16>
    %cst_62 = arith.constant dense<0.000000e+00> : vector<8x32xf32>
    %175 = tpu.matmul %173, %174, %cst_62 {dimension_numbers = #tpu.dot_dimension_numbers<[1], [0], [0], [1], [0, 0, 1, 1], [], []>} : vector<8x64xbf16>, vector<64x32xbf16>, vector<8x32xf32> -> vector<8x32xf32>
    %c0_63 = arith.constant 0 : index
    %c0_64 = arith.constant 0 : index
    %176 = vector.load %arg14[%c0_63, %c0_64] : memref<1x32xf32, #tpu.memory_space<vmem>>, vector<1x32xf32>
    %177 = vector.broadcast %176 : vector<1x32xf32> to vector<8x32xf32>
    %178 = arith.addf %175, %177 : vector<8x32xf32>
    %179 = arith.addf %131, %178 : vector<8x32xf32>
    %c0_65 = arith.constant 0 : index
    %c0_66 = arith.constant 0 : index
    %c0_67 = arith.constant 0 : index
    %180 = vector.load %arg15[%c0_65, %c0_66, %c0_67] : memref<1x8x32xf32, #tpu.memory_space<vmem>>, vector<1x8x32xf32>
    %181 = vector.shape_cast %180 : vector<1x8x32xf32> to vector<8x32xf32>
    %182 = vector.shape_cast %179 : vector<8x32xf32> to vector<1x8x32xf32>
    tpu.vector_store %arg15[%c0_65, %c0_66, %c0_67], %182 {strides = array<i32>} : memref<1x8x32xf32, #tpu.memory_space<vmem>>, vector<1x8x32xf32>,
    return
  }
  func.func @transform_0(%arg0: i32) -> (i32, i32, i32) {
    %c0_i32 = arith.constant 0 : i32
    %c0_i32_0 = arith.constant 0 : i32
    %c0_i32_1 = arith.constant 0 : i32
    return %arg0, %c0_i32, %c0_i32_0 : i32, i32, i32
  }
  func.func @transform_1(%arg0: i32) -> (i32, i32, i32) {
    %c0_i32 = arith.constant 0 : i32
    %c0_i32_0 = arith.constant 0 : i32
    %c0_i32_1 = arith.constant 0 : i32
    return %arg0, %c0_i32, %c0_i32_0 : i32, i32, i32
  }
  func.func @transform_2(%arg0: i32) -> (i32, i32) {
    %c0_i32 = arith.constant 0 : i32
    %c0_i32_0 = arith.constant 0 : i32
    %c0_i32_1 = arith.constant 0 : i32
    return %c0_i32, %c0_i32_0 : i32, i32
  }
  func.func @transform_3(%arg0: i32) -> (i32, i32) {
    %c0_i32 = arith.constant 0 : i32
    %c0_i32_0 = arith.constant 0 : i32
    %c0_i32_1 = arith.constant 0 : i32
    return %c0_i32, %c0_i32_0 : i32, i32
  }
  func.func @transform_4(%arg0: i32) -> (i32, i32) {
    %c0_i32 = arith.constant 0 : i32
    %c0_i32_0 = arith.constant 0 : i32
    %c0_i32_1 = arith.constant 0 : i32
    return %c0_i32, %c0_i32_0 : i32, i32
  }
  func.func @transform_5(%arg0: i32) -> (i32, i32) {
    %c0_i32 = arith.constant 0 : i32
    %c0_i32_0 = arith.constant 0 : i32
    %c0_i32_1 = arith.constant 0 : i32
    return %c0_i32, %c0_i32_0 : i32, i32
  }
  func.func @transform_6(%arg0: i32) -> (i32, i32) {
    %c0_i32 = arith.constant 0 : i32
    %c0_i32_0 = arith.constant 0 : i32
    %c0_i32_1 = arith.constant 0 : i32
    return %c0_i32, %c0_i32_0 : i32, i32
  }
  func.func @transform_7(%arg0: i32) -> (i32, i32) {
    %c0_i32 = arith.constant 0 : i32
    %c0_i32_0 = arith.constant 0 : i32
    %c0_i32_1 = arith.constant 0 : i32
    return %c0_i32, %c0_i32_0 : i32, i32
  }
  func.func @transform_8(%arg0: i32) -> (i32, i32) {
    %c0_i32 = arith.constant 0 : i32
    %c0_i32_0 = arith.constant 0 : i32
    %c0_i32_1 = arith.constant 0 : i32
    return %c0_i32, %c0_i32_0 : i32, i32
  }
  func.func @transform_9(%arg0: i32) -> (i32, i32) {
    %c0_i32 = arith.constant 0 : i32
    %c0_i32_0 = arith.constant 0 : i32
    %c0_i32_1 = arith.constant 0 : i32
    return %c0_i32, %c0_i32_0 : i32, i32
  }
  func.func @transform_10(%arg0: i32) -> (i32, i32) {
    %c0_i32 = arith.constant 0 : i32
    %c0_i32_0 = arith.constant 0 : i32
    %c0_i32_1 = arith.constant 0 : i32
    return %c0_i32, %c0_i32_0 : i32, i32
  }
  func.func @transform_11(%arg0: i32) -> (i32, i32) {
    %c0_i32 = arith.constant 0 : i32
    %c0_i32_0 = arith.constant 0 : i32
    %c0_i32_1 = arith.constant 0 : i32
    return %c0_i32, %c0_i32_0 : i32, i32
  }
  func.func @transform_12(%arg0: i32) -> (i32, i32) {
    %c0_i32 = arith.constant 0 : i32
    %c0_i32_0 = arith.constant 0 : i32
    %c0_i32_1 = arith.constant 0 : i32
    return %c0_i32, %c0_i32_0 : i32, i32
  }
  func.func @transform_13(%arg0: i32) -> (i32, i32) {
    %c0_i32 = arith.constant 0 : i32
    %c0_i32_0 = arith.constant 0 : i32
    %c0_i32_1 = arith.constant 0 : i32
    return %c0_i32, %c0_i32_0 : i32, i32
  }
  func.func @transform_14(%arg0: i32) -> (i32, i32, i32) {
    %c0_i32 = arith.constant 0 : i32
    %c0_i32_0 = arith.constant 0 : i32
    %c0_i32_1 = arith.constant 0 : i32
    return %arg0, %c0_i32, %c0_i32_0 : i32, i32, i32
  }
}

module attributes {stable_mosaic.version = 11 : i64} {
  func.func @_heads_kernel(%arg0: i32, %arg1: memref<1x16x32xf32, #tpu.memory_space<vmem>>, %arg2: memref<32x98xbf16, #tpu.memory_space<vmem>>, %arg3: memref<1x98xf32, #tpu.memory_space<vmem>>, %arg4: memref<64x64xbf16, #tpu.memory_space<vmem>>, %arg5: memref<1x64xf32, #tpu.memory_space<vmem>>, %arg6: memref<64x5xbf16, #tpu.memory_space<vmem>>, %arg7: memref<1x5xf32, #tpu.memory_space<vmem>>, %arg8: memref<16x4xf32, #tpu.memory_space<vmem>>, %arg9: memref<1x2x32xf32, #tpu.memory_space<vmem>>, %arg10: memref<1x1x2xf32, #tpu.memory_space<vmem>>, %arg11: memref<1x16x37xf32, #tpu.memory_space<vmem>>, %arg12: memref<1x16x2xf32, #tpu.memory_space<vmem>>) attributes {dimension_semantics = [#tpu.dimension_semantics<parallel>], iteration_bounds = array<i64: 2>, scalar_prefetch = 0 : i64, scratch_operands = 0 : i64, tpu.core_type = #tpu.core_type<tc>, window_params = [{transform_indices = @transform_0, window_bounds = array<i64: 1, 16, 32>}, {pipeline_mode = #tpu.pipeline_mode<synchronous>, transform_indices = @transform_1, window_bounds = array<i64: 32, 98>}, {pipeline_mode = #tpu.pipeline_mode<synchronous>, transform_indices = @transform_2, window_bounds = array<i64: 1, 98>}, {pipeline_mode = #tpu.pipeline_mode<synchronous>, transform_indices = @transform_3, window_bounds = array<i64: 64, 64>}, {pipeline_mode = #tpu.pipeline_mode<synchronous>, transform_indices = @transform_4, window_bounds = array<i64: 1, 64>}, {pipeline_mode = #tpu.pipeline_mode<synchronous>, transform_indices = @transform_5, window_bounds = array<i64: 64, 5>}, {pipeline_mode = #tpu.pipeline_mode<synchronous>, transform_indices = @transform_6, window_bounds = array<i64: 1, 5>}, {pipeline_mode = #tpu.pipeline_mode<synchronous>, transform_indices = @transform_7, window_bounds = array<i64: 16, 4>}, {transform_indices = @transform_8, window_bounds = array<i64: 1, 2, 32>}, {transform_indices = @transform_9, window_bounds = array<i64: 1, 1, 2>}, {transform_indices = @transform_10, window_bounds = array<i64: 1, 16, 37>}, {transform_indices = @transform_11, window_bounds = array<i64: 1, 16, 2>}]} {
    %c0 = arith.constant 0 : index
    %c0_0 = arith.constant 0 : index
    %c0_1 = arith.constant 0 : index
    %0 = vector.load %arg1[%c0, %c0_0, %c0_1] : memref<1x16x32xf32, #tpu.memory_space<vmem>>, vector<1x16x32xf32>
    %1 = vector.shape_cast %0 : vector<1x16x32xf32> to vector<16x32xf32>
    %2 = arith.truncf %1 : vector<16x32xf32> to vector<16x32xbf16>
    %c0_2 = arith.constant 0 : index
    %c0_3 = arith.constant 0 : index
    %3 = vector.load %arg2[%c0_2, %c0_3] : memref<32x98xbf16, #tpu.memory_space<vmem>>, vector<32x98xbf16>
    %cst = arith.constant dense<0.000000e+00> : vector<16x98xf32>
    %4 = tpu.matmul %2, %3, %cst {dimension_numbers = #tpu.dot_dimension_numbers<[1], [0], [0], [1], [0, 0, 1, 1], [], []>} : vector<16x32xbf16>, vector<32x98xbf16>, vector<16x98xf32> -> vector<16x98xf32>
    %c0_4 = arith.constant 0 : index
    %c0_5 = arith.constant 0 : index
    %5 = vector.load %arg3[%c0_4, %c0_5] : memref<1x98xf32, #tpu.memory_space<vmem>>, vector<1x98xf32>
    %6 = vector.broadcast %5 : vector<1x98xf32> to vector<16x98xf32>
    %7 = arith.addf %4, %6 : vector<16x98xf32>
    %8 = vector.extract_strided_slice %7 {offsets = [0, 0], sizes = [16, 32], strides = [1, 1]} : vector<16x98xf32> to vector<16x32xf32>
    %9 = vector.extract_strided_slice %7 {offsets = [0, 32], sizes = [16, 1], strides = [1, 1]} : vector<16x98xf32> to vector<16x1xf32>
    %10 = vector.extract_strided_slice %7 {offsets = [0, 33], sizes = [16, 1], strides = [1, 1]} : vector<16x98xf32> to vector<16x1xf32>
    %11 = vector.extract_strided_slice %7 {offsets = [0, 34], sizes = [16, 64], strides = [1, 1]} : vector<16x98xf32> to vector<16x64xf32>
    %cst_6 = arith.constant 5.000000e-01 : f32
    %12 = vector.broadcast %cst_6 : f32 to vector<16x64xf32>
    %13 = arith.mulf %12, %11 : vector<16x64xf32>
    %cst_7 = arith.constant 4.471500e-02 : f32
    %14 = vector.broadcast %cst_7 : f32 to vector<16x64xf32>
    %15 = arith.mulf %14, %11 : vector<16x64xf32>
    %16 = arith.mulf %15, %11 : vector<16x64xf32>
    %17 = arith.mulf %16, %11 : vector<16x64xf32>
    %18 = arith.addf %11, %17 : vector<16x64xf32>
    %cst_8 = arith.constant 0.797884583 : f32
    %19 = vector.broadcast %cst_8 : f32 to vector<16x64xf32>
    %20 = arith.mulf %19, %18 : vector<16x64xf32>
    %21 = math.tanh %20 : vector<16x64xf32>
    %cst_9 = arith.constant 1.000000e+00 : f32
    %22 = vector.broadcast %cst_9 : f32 to vector<16x64xf32>
    %23 = arith.addf %22, %21 : vector<16x64xf32>
    %24 = arith.mulf %13, %23 : vector<16x64xf32>
    %25 = arith.truncf %24 : vector<16x64xf32> to vector<16x64xbf16>
    %c0_10 = arith.constant 0 : index
    %c0_11 = arith.constant 0 : index
    %26 = vector.load %arg4[%c0_10, %c0_11] : memref<64x64xbf16, #tpu.memory_space<vmem>>, vector<64x64xbf16>
    %cst_12 = arith.constant dense<0.000000e+00> : vector<16x64xf32>
    %27 = tpu.matmul %25, %26, %cst_12 {dimension_numbers = #tpu.dot_dimension_numbers<[1], [0], [0], [1], [0, 0, 1, 1], [], []>} : vector<16x64xbf16>, vector<64x64xbf16>, vector<16x64xf32> -> vector<16x64xf32>
    %c0_13 = arith.constant 0 : index
    %c0_14 = arith.constant 0 : index
    %28 = vector.load %arg5[%c0_13, %c0_14] : memref<1x64xf32, #tpu.memory_space<vmem>>, vector<1x64xf32>
    %29 = vector.broadcast %28 : vector<1x64xf32> to vector<16x64xf32>
    %30 = arith.addf %27, %29 : vector<16x64xf32>
    %cst_15 = arith.constant 5.000000e-01 : f32
    %31 = vector.broadcast %cst_15 : f32 to vector<16x64xf32>
    %32 = arith.mulf %31, %30 : vector<16x64xf32>
    %cst_16 = arith.constant 4.471500e-02 : f32
    %33 = vector.broadcast %cst_16 : f32 to vector<16x64xf32>
    %34 = arith.mulf %33, %30 : vector<16x64xf32>
    %35 = arith.mulf %34, %30 : vector<16x64xf32>
    %36 = arith.mulf %35, %30 : vector<16x64xf32>
    %37 = arith.addf %30, %36 : vector<16x64xf32>
    %cst_17 = arith.constant 0.797884583 : f32
    %38 = vector.broadcast %cst_17 : f32 to vector<16x64xf32>
    %39 = arith.mulf %38, %37 : vector<16x64xf32>
    %40 = math.tanh %39 : vector<16x64xf32>
    %cst_18 = arith.constant 1.000000e+00 : f32
    %41 = vector.broadcast %cst_18 : f32 to vector<16x64xf32>
    %42 = arith.addf %41, %40 : vector<16x64xf32>
    %43 = arith.mulf %32, %42 : vector<16x64xf32>
    %44 = arith.truncf %43 : vector<16x64xf32> to vector<16x64xbf16>
    %c0_19 = arith.constant 0 : index
    %c0_20 = arith.constant 0 : index
    %45 = vector.load %arg6[%c0_19, %c0_20] : memref<64x5xbf16, #tpu.memory_space<vmem>>, vector<64x5xbf16>
    %cst_21 = arith.constant dense<0.000000e+00> : vector<16x5xf32>
    %46 = tpu.matmul %44, %45, %cst_21 {dimension_numbers = #tpu.dot_dimension_numbers<[1], [0], [0], [1], [0, 0, 1, 1], [], []>} : vector<16x64xbf16>, vector<64x5xbf16>, vector<16x5xf32> -> vector<16x5xf32>
    %c0_22 = arith.constant 0 : index
    %c0_23 = arith.constant 0 : index
    %47 = vector.load %arg7[%c0_22, %c0_23] : memref<1x5xf32, #tpu.memory_space<vmem>>, vector<1x5xf32>
    %48 = vector.broadcast %47 : vector<1x5xf32> to vector<16x5xf32>
    %49 = arith.addf %46, %48 : vector<16x5xf32>
    %50 = vector.extract_strided_slice %49 {offsets = [0, 0], sizes = [16, 4], strides = [1, 1]} : vector<16x5xf32> to vector<16x4xf32>
    %c0_24 = arith.constant 0 : index
    %c0_25 = arith.constant 0 : index
    %51 = vector.load %arg8[%c0_24, %c0_25] : memref<16x4xf32, #tpu.memory_space<vmem>>, vector<16x4xf32>
    %52 = arith.addf %50, %51 : vector<16x4xf32>
    %cst_26 = arith.constant 0.000000e+00 : f32
    %53 = vector.broadcast %cst_26 : f32 to vector<16x4xf32>
    %54 = arith.subf %53, %52 : vector<16x4xf32>
    %55 = math.exp %54 : vector<16x4xf32>
    %cst_27 = arith.constant 1.000000e+00 : f32
    %56 = vector.broadcast %cst_27 : f32 to vector<16x4xf32>
    %57 = arith.addf %56, %55 : vector<16x4xf32>
    %58 = tpu.reciprocal %57 {approx = true} : vector<16x4xf32> -> vector<16x4xf32>
    %59 = vector.extract_strided_slice %49 {offsets = [0, 4], sizes = [16, 1], strides = [1, 1]} : vector<16x5xf32> to vector<16x1xf32>
    %60 = tpu.concatenate %8, %58, %59 in 1 : vector<16x32xf32>, vector<16x4xf32>, vector<16x1xf32> -> vector<16x37xf32>
    %c0_28 = arith.constant 0 : index
    %c0_29 = arith.constant 0 : index
    %c0_30 = arith.constant 0 : index
    %61 = vector.load %arg11[%c0_28, %c0_29, %c0_30] : memref<1x16x37xf32, #tpu.memory_space<vmem>>, vector<1x16x37xf32>
    %62 = vector.shape_cast %61 : vector<1x16x37xf32> to vector<16x37xf32>
    %63 = vector.shape_cast %60 : vector<16x37xf32> to vector<1x16x37xf32>
    tpu.vector_store %arg11[%c0_28, %c0_29, %c0_30], %63 {strides = array<i32>} : memref<1x16x37xf32, #tpu.memory_space<vmem>>, vector<1x16x37xf32>,
    %64 = arith.mulf %8, %8 : vector<16x32xf32>
    %cst_31 = arith.constant dense<0.000000e+00> : vector<16xf32>
    %65 = vector.multi_reduction <add>, %64, %cst_31 [1] : vector<16x32xf32> to vector<16xf32>
    %66 = vector.shape_cast %65 : vector<16xf32> to vector<16x1xf32>
    %67 = math.sqrt %66 : vector<16x1xf32>
    %cst_32 = arith.constant 9.99999997E-7 : f32
    %68 = vector.broadcast %cst_32 : f32 to vector<16x1xf32>
    %69 = arith.addf %67, %68 : vector<16x1xf32>
    %70 = tpu.reciprocal %69 {approx = true} : vector<16x1xf32> -> vector<16x1xf32>
    %71 = vector.broadcast %70 : vector<16x1xf32> to vector<16x32xf32>
    %72 = arith.mulf %8, %71 : vector<16x32xf32>
    %c0_33 = arith.constant 0 : index
    %c0_34 = arith.constant 0 : index
    %c0_35 = arith.constant 0 : index
    %73 = vector.load %arg9[%c0_33, %c0_34, %c0_35] : memref<1x2x32xf32, #tpu.memory_space<vmem>>, vector<1x2x32xf32>
    %74 = vector.shape_cast %73 : vector<1x2x32xf32> to vector<2x32xf32>
    %75 = arith.mulf %74, %74 : vector<2x32xf32>
    %cst_36 = arith.constant dense<0.000000e+00> : vector<2xf32>
    %76 = vector.multi_reduction <add>, %75, %cst_36 [1] : vector<2x32xf32> to vector<2xf32>
    %77 = vector.shape_cast %76 : vector<2xf32> to vector<2x1xf32>
    %78 = math.sqrt %77 : vector<2x1xf32>
    %cst_37 = arith.constant 9.99999997E-7 : f32
    %79 = vector.broadcast %cst_37 : f32 to vector<2x1xf32>
    %80 = arith.addf %78, %79 : vector<2x1xf32>
    %81 = tpu.reciprocal %80 {approx = true} : vector<2x1xf32> -> vector<2x1xf32>
    %82 = vector.broadcast %81 : vector<2x1xf32> to vector<2x32xf32>
    %83 = arith.mulf %74, %82 : vector<2x32xf32>
    %cst_38 = arith.constant 0.000000e+00 : f32
    %84 = vector.broadcast %cst_38 : f32 to vector<16x1xf32>
    %85 = arith.cmpf ogt, %10, %84 : vector<16x1xf32>
    %86 = math.exp %10 : vector<16x1xf32>
    %cst_39 = arith.constant 1.000000e+00 : f32
    %87 = vector.broadcast %cst_39 : f32 to vector<16x1xf32>
    %88 = arith.subf %86, %87 : vector<16x1xf32>
    %89 = arith.select %85, %10, %88 : vector<16x1xi1>, vector<16x1xf32>
    %cst_40 = arith.constant 1.000000e+00 : f32
    %90 = vector.broadcast %cst_40 : f32 to vector<16x1xf32>
    %91 = arith.addf %89, %90 : vector<16x1xf32>
    %92 = arith.truncf %72 : vector<16x32xf32> to vector<16x32xbf16>
    %93 = arith.truncf %83 : vector<2x32xf32> to vector<2x32xbf16>
    %cst_41 = arith.constant dense<0.000000e+00> : vector<16x2xf32>
    %94 = tpu.matmul %92, %93, %cst_41 {dimension_numbers = #tpu.dot_dimension_numbers<[1], [1], [0], [0], [0, 0, 1, 0], [], []>} : vector<16x32xbf16>, vector<2x32xbf16>, vector<16x2xf32> -> vector<16x2xf32>
    %95 = vector.broadcast %9 : vector<16x1xf32> to vector<16x2xf32>
    %96 = arith.addf %94, %95 : vector<16x2xf32>
    %97 = vector.broadcast %91 : vector<16x1xf32> to vector<16x2xf32>
    %98 = arith.mulf %96, %97 : vector<16x2xf32>
    %c0_42 = arith.constant 0 : index
    %c0_43 = arith.constant 0 : index
    %c0_44 = arith.constant 0 : index
    %99 = vector.load %arg10[%c0_42, %c0_43, %c0_44] : memref<1x1x2xf32, #tpu.memory_space<vmem>>, vector<1x1x2xf32>
    %100 = vector.shape_cast %99 : vector<1x1x2xf32> to vector<1x2xf32>
    %cst_45 = arith.constant 0.000000e+00 : f32
    %101 = vector.broadcast %cst_45 : f32 to vector<1x2xf32>
    %102 = arith.cmpf ogt, %100, %101 : vector<1x2xf32>
    %cst_46 = arith.constant -1.000000e+09 : f32
    %103 = vector.shape_cast %102 : vector<1x2xi1> to vector<1x2xi1>
    %104 = vector.broadcast %103 : vector<1x2xi1> to vector<16x2xi1>
    %105 = vector.broadcast %cst_46 : f32 to vector<16x2xf32>
    %106 = arith.select %104, %98, %105 : vector<16x2xi1>, vector<16x2xf32>
    %c0_47 = arith.constant 0 : index
    %c0_48 = arith.constant 0 : index
    %c0_49 = arith.constant 0 : index
    %107 = vector.load %arg12[%c0_47, %c0_48, %c0_49] : memref<1x16x2xf32, #tpu.memory_space<vmem>>, vector<1x16x2xf32>
    %108 = vector.shape_cast %107 : vector<1x16x2xf32> to vector<16x2xf32>
    %109 = vector.shape_cast %106 : vector<16x2xf32> to vector<1x16x2xf32>
    tpu.vector_store %arg12[%c0_47, %c0_48, %c0_49], %109 {strides = array<i32>} : memref<1x16x2xf32, #tpu.memory_space<vmem>>, vector<1x16x2xf32>,
    return
  }
  func.func @transform_0(%arg0: i32) -> (i32, i32, i32) {
    %c0_i32 = arith.constant 0 : i32
    %c0_i32_0 = arith.constant 0 : i32
    %c0_i32_1 = arith.constant 0 : i32
    return %arg0, %c0_i32, %c0_i32_0 : i32, i32, i32
  }
  func.func @transform_1(%arg0: i32) -> (i32, i32) {
    %c0_i32 = arith.constant 0 : i32
    %c0_i32_0 = arith.constant 0 : i32
    %c0_i32_1 = arith.constant 0 : i32
    return %c0_i32, %c0_i32_0 : i32, i32
  }
  func.func @transform_2(%arg0: i32) -> (i32, i32) {
    %c0_i32 = arith.constant 0 : i32
    %c0_i32_0 = arith.constant 0 : i32
    %c0_i32_1 = arith.constant 0 : i32
    return %c0_i32, %c0_i32_0 : i32, i32
  }
  func.func @transform_3(%arg0: i32) -> (i32, i32) {
    %c0_i32 = arith.constant 0 : i32
    %c0_i32_0 = arith.constant 0 : i32
    %c0_i32_1 = arith.constant 0 : i32
    return %c0_i32, %c0_i32_0 : i32, i32
  }
  func.func @transform_4(%arg0: i32) -> (i32, i32) {
    %c0_i32 = arith.constant 0 : i32
    %c0_i32_0 = arith.constant 0 : i32
    %c0_i32_1 = arith.constant 0 : i32
    return %c0_i32, %c0_i32_0 : i32, i32
  }
  func.func @transform_5(%arg0: i32) -> (i32, i32) {
    %c0_i32 = arith.constant 0 : i32
    %c0_i32_0 = arith.constant 0 : i32
    %c0_i32_1 = arith.constant 0 : i32
    return %c0_i32, %c0_i32_0 : i32, i32
  }
  func.func @transform_6(%arg0: i32) -> (i32, i32) {
    %c0_i32 = arith.constant 0 : i32
    %c0_i32_0 = arith.constant 0 : i32
    %c0_i32_1 = arith.constant 0 : i32
    return %c0_i32, %c0_i32_0 : i32, i32
  }
  func.func @transform_7(%arg0: i32) -> (i32, i32) {
    %c0_i32 = arith.constant 0 : i32
    %c0_i32_0 = arith.constant 0 : i32
    %c0_i32_1 = arith.constant 0 : i32
    return %c0_i32, %c0_i32_0 : i32, i32
  }
  func.func @transform_8(%arg0: i32) -> (i32, i32, i32) {
    %c0_i32 = arith.constant 0 : i32
    %c0_i32_0 = arith.constant 0 : i32
    %c0_i32_1 = arith.constant 0 : i32
    return %arg0, %c0_i32, %c0_i32_0 : i32, i32, i32
  }
  func.func @transform_9(%arg0: i32) -> (i32, i32, i32) {
    %c0_i32 = arith.constant 0 : i32
    %c0_i32_0 = arith.constant 0 : i32
    %c0_i32_1 = arith.constant 0 : i32
    return %arg0, %c0_i32, %c0_i32_0 : i32, i32, i32
  }
  func.func @transform_10(%arg0: i32) -> (i32, i32, i32) {
    %c0_i32 = arith.constant 0 : i32
    %c0_i32_0 = arith.constant 0 : i32
    %c0_i32_1 = arith.constant 0 : i32
    return %arg0, %c0_i32, %c0_i32_0 : i32, i32, i32
  }
  func.func @transform_11(%arg0: i32) -> (i32, i32, i32) {
    %c0_i32 = arith.constant 0 : i32
    %c0_i32_0 = arith.constant 0 : i32
    %c0_i32_1 = arith.constant 0 : i32
    return %arg0, %c0_i32, %c0_i32_0 : i32, i32, i32
  }
}

</mosaic_0001>

<llo_original>
// kernel: owlv2_forward.11
$region0: #{owlv2_forward.11}
  #allocation0 [shape = 'u32[]', space=smem, size = 0x4, offset = 0x4, fixed_abs, tag = 'smem constant byte address 0x4 - core index']
  #allocation1 [shape = 'u32[144,128]{1,0:T(1,128)}', space=vmem, size = 0x12000, scoped, tag = 'internal scratch']
  %s0 = inlined_call_operand.vmem [shape: f32[2,17,32], index: 0, kind: input, shape index: {}]
  %s1 = inlined_call_operand.vmem [shape: f32[1,32], index: 1, kind: input, shape index: {}]
  %s2 = inlined_call_operand.vmem [shape: f32[1,32], index: 2, kind: input, shape index: {}]
  %s3 = inlined_call_operand.vmem [shape: f32[1,32], index: 3, kind: input, shape index: {}]
  %s4 = inlined_call_operand.vmem [shape: f32[1,32], index: 4, kind: input, shape index: {}]
  %s5 = inlined_call_operand.vmem [shape: f32[2,17,32], index: 5, kind: output, shape index: {}]
  %s6 = sld [smem:[#allocation0]]
  $region53: #{owlv2_forward.11} parent=0
    _
  %s8 = ssub.s32 1, %s6
  %s9 = scalar_select 0, %s8, %s6
  loop: start=0, step=1, limit=4
  $region2: #{owlv2_forward.11} parent=0 // loop_pre_header
    _
  $region3: #{owlv2_forward.11} parent=0 // loop_header
    %s11 = sphi 0, %s15
    %p12 = scmp.ge.s32.totalorder %s11, 4
    %s21 = sphi 0, %s23
    %s24 = sphi 0, %s21
    %s25 = sphi 0, %s24
    %s41 = sphi 0, %s25
    %s45 = sphi 0, %s45
    %s47 = sphi 0, %s45
    %s48 = sphi 0, %s47
    %s62 = sphi 0, %s48
    %s66 = sphi 0, %s66
    %s68 = sphi 0, %s66
    %s69 = sphi 0, %s68
    %s83 = sphi 0, %s69
    %s87 = sphi 0, %s87
    %s89 = sphi 0, %s87
    %s90 = sphi 0, %s89
    %s104 = sphi 0, %s90
    %s108 = sphi 0, %s108
    %s110 = sphi 0, %s108
    %s111 = sphi 0, %s110
    %s125 = sphi 0, %s111
    %s131 = sphi 0, %s133
    %s134 = sphi 0, %s131
    %s135 = sphi 0, %s134
    %s151 = sphi 0, %s135
  $region4: #{owlv2_forward.11} parent=0 // loop_header_branch
    %14 = sbr.rel (%p12) target = $region8
  $region5: #{owlv2_forward.11} parent=0 // loop_body
    %s16 = ssub.s32 %s11, 1
    %s17 = ssub.s32 %s11, 2
    %s18 = sadd.s32 %s11, 1
    %s19 = ssub.s32 %s11, %s18
    %p20 = scmp.eq.s32.totalorder %s19, 0
    %s22 = sadd.s32 %s21, 1
    %s23 = scalar_select %p20, %s21, %s22
    %p26 = pneg %p20
    %p27 = scmp.eq.s32.totalorder %s11, 1
    %p28 = por %p26, %p27
    %p29 = scmp.ne.s32.totalorder %s21, %s24
    %p30 = scmp.eq.s32.totalorder %s11, 0
    %p31 = por %p29, %p30
    %p32 = scmp.ne.s32.totalorder %s21, %s24
    %p33 = scmp.eq.s32.totalorder %s16, 1
    %p34 = por %p32, %p33
    %p35 = scmp.ne.s32.totalorder %s24, %s25
    %p36 = scmp.eq.s32.totalorder %s16, 0
    %p37 = por %p35, %p36
    %p38 = scmp.ne.s32.totalorder %s24, %s25
    %p39 = scmp.eq.s32.totalorder %s17, 1
    %p40 = por %p38, %p39
    %p42 = scmp.ne.s32.totalorder %s25, %s41
    %p43 = scmp.eq.s32.totalorder %s17, 0
    %p44 = por %p42, %p43
    %s46 = sadd.s32 %s45, 1
    %p49 = scmp.eq.s32.totalorder %s11, 1
    %p50 = scmp.ne.s32.totalorder %s45, %s47
    %p51 = scmp.eq.s32.totalorder %s11, 0
    %p52 = por %p50, %p51
    %p53 = scmp.ne.s32.totalorder %s45, %s47
    %p54 = scmp.eq.s32.totalorder %s16, 1
    %p55 = por %p53, %p54
    %p56 = scmp.ne.s32.totalorder %s47, %s48
    %p57 = scmp.eq.s32.totalorder %s16, 0
    %p58 = por %p56, %p57
    %p59 = scmp.ne.s32.totalorder %s47, %s48
    %p60 = scmp.eq.s32.totalorder %s17, 1
    %p61 = por %p59, %p60
    %p63 = scmp.ne.s32.totalorder %s48, %s62
    %p64 = scmp.eq.s32.totalorder %s17, 0
    %p65 = por %p63, %p64
    %s67 = sadd.s32 %s66, 1
    %p70 = scmp.eq.s32.totalorder %s11, 1
    %p71 = scmp.ne.s32.totalorder %s66, %s68
    %p72 = scmp.eq.s32.totalorder %s11, 0
    %p73 = por %p71, %p72
    %p74 = scmp.ne.s32.totalorder %s66, %s68
    %p75 = scmp.eq.s32.totalorder %s16, 1
    %p76 = por %p74, %p75
    %p77 = scmp.ne.s32.totalorder %s68, %s69
    %p78 = scmp.eq.s32.totalorder %s16, 0
    %p79 = por %p77, %p78
    %p80 = scmp.ne.s32.totalorder %s68, %s69
    %p81 = scmp.eq.s32.totalorder %s17, 1
    %p82 = por %p80, %p81
    %p84 = scmp.ne.s32.totalorder %s69, %s83
    %p85 = scmp.eq.s32.totalorder %s17, 0
    %p86 = por %p84, %p85
    %s88 = sadd.s32 %s87, 1
    %p91 = scmp.eq.s32.totalorder %s11, 1
    %p92 = scmp.ne.s32.totalorder %s87, %s89
    %p93 = scmp.eq.s32.totalorder %s11, 0
    %p94 = por %p92, %p93
    %p95 = scmp.ne.s32.totalorder %s87, %s89
    %p96 = scmp.eq.s32.totalorder %s16, 1
    %p97 = por %p95, %p96
    %p98 = scmp.ne.s32.totalorder %s89, %s90
    %p99 = scmp.eq.s32.totalorder %s16, 0
    %p100 = por %p98, %p99
    %p101 = scmp.ne.s32.totalorder %s89, %s90
    %p102 = scmp.eq.s32.totalorder %s17, 1
    %p103 = por %p101, %p102
    %p105 = scmp.ne.s32.totalorder %s90, %s104
    %p106 = scmp.eq.s32.totalorder %s17, 0
    %p107 = por %p105, %p106
    %s109 = sadd.s32 %s108, 1
    %p112 = scmp.eq.s32.totalorder %s11, 1
    %p113 = scmp.ne.s32.totalorder %s108, %s110
    %p114 = scmp.eq.s32.totalorder %s11, 0
    %p115 = por %p113, %p114
    %p116 = scmp.ne.s32.totalorder %s108, %s110
    %p117 = scmp.eq.s32.totalorder %s16, 1
    %p118 = por %p116, %p117
    %p119 = scmp.ne.s32.totalorder %s110, %s111
    %p120 = scmp.eq.s32.totalorder %s16, 0
    %p121 = por %p119, %p120
    %p122 = scmp.ne.s32.totalorder %s110, %s111
    %p123 = scmp.eq.s32.totalorder %s17, 1
    %p124 = por %p122, %p123
    %p126 = scmp.ne.s32.totalorder %s111, %s125
    %p127 = scmp.eq.s32.totalorder %s17, 0
    %p128 = por %p126, %p127
    %s129 = ssub.s32 %s11, %s18
    %p130 = scmp.eq.s32.totalorder %s129, 0
    %s132 = sadd.s32 %s131, 1
    %s133 = scalar_select %p130, %s131, %s132
    %p136 = pneg %p130
    %p137 = scmp.eq.s32.totalorder %s11, 1
    %p138 = por %p136, %p137
    %p139 = scmp.ne.s32.totalorder %s131, %s134
    %p140 = scmp.eq.s32.totalorder %s11, 0
    %p141 = por %p139, %p140
    %p142 = scmp.ne.s32.totalorder %s131, %s134
    %p143 = scmp.eq.s32.totalorder %s16, 1
    %p144 = por %p142, %p143
    %p145 = scmp.ne.s32.totalorder %s134, %s135
    %p146 = scmp.eq.s32.totalorder %s16, 0
    %p147 = por %p145, %p146
    %p148 = scmp.ne.s32.totalorder %s134, %s135
    %p149 = scmp.eq.s32.totalorder %s17, 1
    %p150 = por %p148, %p149
    %p152 = scmp.ne.s32.totalorder %s135, %s151
    %p153 = scmp.eq.s32.totalorder %s17, 0
    %p154 = por %p152, %p153
    %p155 = scmp.le.s32.totalorder 1, %s11
    %p156 = scmp.lt.s32.totalorder %s11, 3
    %p157 = pnand %p155, %p156
    %p158 = pneg %p157
    // Predicated region
    $region9: #{owlv2_forward.11} parent=5 // pred_check
      _
    $region10: #{owlv2_forward.11} parent=5 // pred_check_branch
      %160 = sbr.rel (%p157) target = $region12
    $region11: #{owlv2_forward.11} parent=5 // pred_region
      %s161 = ssub.s32 %s11, 1
      // Predicated region
      $region13: #{owlv2_forward.11} parent=11 // pred_check
        %p162 = pneg %p58
      $region14: #{owlv2_forward.11} parent=11 // pred_check_branch
        %164 = sbr.rel (%p162) target = $region16
      $region15: #{owlv2_forward.11} parent=11 // pred_region
        _
      $region16: #{owlv2_forward.11} parent=11 // pred_fallthru
        _
      // Predicated region
      $region17: #{owlv2_forward.11} parent=11 // pred_check
        %p165 = pneg %p79
      $region18: #{owlv2_forward.11} parent=11 // pred_check_branch
        %167 = sbr.rel (%p165) target = $region20
      $region19: #{owlv2_forward.11} parent=11 // pred_region
        _
      $region20: #{owlv2_forward.11} parent=11 // pred_fallthru
        _
      // Predicated region
      $region21: #{owlv2_forward.11} parent=11 // pred_check
        %p168 = pneg %p100
      $region22: #{owlv2_forward.11} parent=11 // pred_check_branch
        %170 = sbr.rel (%p168) target = $region24
      $region23: #{owlv2_forward.11} parent=11 // pred_region
        _
      $region24: #{owlv2_forward.11} parent=11 // pred_fallthru
        _
      // Predicated region
      $region25: #{owlv2_forward.11} parent=11 // pred_check
        %p171 = pneg %p121
      $region26: #{owlv2_forward.11} parent=11 // pred_check_branch
        %173 = sbr.rel (%p171) target = $region28
      $region27: #{owlv2_forward.11} parent=11 // pred_region
        _
      $region28: #{owlv2_forward.11} parent=11 // pred_fallthru
        _
    $region12: #{owlv2_forward.11} parent=5 // pred_fallthru
      _
    %p174 = scmp.lt.s32.totalorder %s11, 2
    // Predicated region
    $region29: #{owlv2_forward.11} parent=5 // pred_check
      %p175 = pneg %p174
    $region30: #{owlv2_forward.11} parent=5 // pred_check_branch
      %177 = sbr.rel (%p175) target = $region32
    $region31: #{owlv2_forward.11} parent=5 // pred_region
      // Predicated region
      $region33: #{owlv2_forward.11} parent=31 // pred_check
        %p178 = pneg %p31
      $region34: #{owlv2_forward.11} parent=31 // pred_check_branch
        %180 = sbr.rel (%p178) target = $region36
      $region35: #{owlv2_forward.11} parent=31 // pred_region
        %p181 = scmp.lt.s32.totalorder %s11, 1
        %s182 = scalar_select %p181, %s11, 1
        %s183 = smul.addr %s182, 3
        %s184 = smul.addr %s183, 8
        %s185 = scalar_lea.vmem %s0, %s184
      $region36: #{owlv2_forward.11} parent=31 // pred_fallthru
        _
    $region32: #{owlv2_forward.11} parent=5 // pred_fallthru
      _
    %p186 = scmp.le.s32.totalorder 1, %s11
    %p187 = scmp.lt.s32.totalorder %s11, 3
    %p188 = pnand %p186, %p187
    %p189 = pneg %p188
    // Predicated region
    $region37: #{owlv2_forward.11} parent=5 // pred_check
      _
    $region38: #{owlv2_forward.11} parent=5 // pred_check_branch
      %191 = sbr.rel (%p188) target = $region40
    $region39: #{owlv2_forward.11} parent=5 // pred_region
      %s192 = ssub.s32 %s11, 1
      %p193 = scmp.lt.s32.totalorder %s16, 1
      %s194 = scalar_select %p193, %s16, 1
      %s195 = smul.addr %s194, 3
      %s196 = smul.addr %s195, 8
      %s197 = scalar_lea.vmem %s0, %s196
      %p198 = pneg %p37
      %p199 = pneg %p34
      %p200 = pneg %p58
      %p201 = pneg %p55
      %p202 = pneg %p79
      %p203 = pneg %p76
      %p204 = pneg %p100
      %p205 = pneg %p97
      %p206 = pneg %p121
      %p207 = pneg %p118
      %p208 = pneg %p147
      %p209 = pneg %p144
      %p210 = scmp.lt.s32.totalorder %s16, 1
      %s211 = scalar_select %p210, %s16, 1
      %s212 = smul.addr %s211, 3
      %s213 = smul.addr %s212, 8
      %s214 = scalar_lea.vmem %s5, %s213
      %p215 = scmp.lt.s32.totalorder %s16, 1
      %s216 = scalar_select %p215, %s16, 1
      %s217 = smul.addr %s216, 3
      %s218 = smul.addr %s217, 8
      %s219 = scalar_lea.vmem %s0, %s218
      %p220 = scmp.lt.s32.totalorder %s16, 1
      %s221 = scalar_select %p220, %s16, 1
      %s222 = smul.addr %s221, 3
      %s223 = smul.addr %s222, 8
      %s224 = scalar_lea.vmem %s5, %s223
      %v225 = vld [vmem:[%s219] sm:$0xff]
      %v226 = vld [vmem:[%s219 + $0x8] sm:$0xff]
      %v227 = vld [vmem:[%s219 + $0x10] sm:$0x1]
      %v228 = vld [vmem:[%s1] sm:$0x1]
      %v229 = vld [vmem:[%s2] sm:$0x1]
      %vm230 = vcmask 261120
      %v231 = vsel %vm230, %v225, 0.0
      %232 = vadd.xlane.f32.xlu0 %v231
      %v233 = vpop.xlane.xlu0 %232
      %v234 = vsel %vm230, %v226, 0.0
      %235 = vadd.xlane.f32.xlu0 %v234
      %v236 = vpop.xlane.xlu0 %235
      %vm237 = vcmask 253952
      %v238 = vsel %vm237, %v227, 0.0
      %239 = vadd.xlane.f32.xlu0 %v238
      %v240 = vpop.xlane.xlu0 %239
      %v241 = vrcp.pop 32.0
      %v242 = vmul.f32 %v233, %v241
      %v243 = vmul.f32 %v236, %v241
      %v244 = vmul.f32 %v240, %v241
      %v245 = vsub.f32 %v225, %v242
      %v246 = vsub.f32 %v226, %v243
      %v247 = vsub.f32 %v227, %v244
      %v248 = vmul.f32 %v245, %v245
      %v249 = vmul.f32 %v246, %v246
      %v250 = vmul.f32 %v247, %v247
      %v251 = vsel %vm230, %v248, 0.0
      %252 = vadd.xlane.f32.xlu0 %v251
      %v253 = vpop.xlane.xlu0 %252
      %v254 = vsel %vm230, %v249, 0.0
      %255 = vadd.xlane.f32.xlu0 %v254
      %v256 = vpop.xlane.xlu0 %255
      %v257 = vsel %vm237, %v250, 0.0
      %258 = vadd.xlane.f32.xlu0 %v257
      %v259 = vpop.xlane.xlu0 %258
      %v260 = vmul.f32 %v253, %v241
      %v261 = vmul.f32 %v256, %v241
      %v262 = vmul.f32 %v259, %v241
      %v263 = vadd.f32 %v260, 1e-05
      %v264 = vadd.f32 %v261, 1e-05
      %v265 = vadd.f32 %v262, 1e-05
      %v266 = vrsqrt.pop %v263
      %v267 = vrsqrt.pop %v264
      %v268 = vrsqrt.pop %v265
      %v269 = vmul.f32 %v245, %v266
      %v270 = vmul.f32 %v246, %v267
      %v271 = vmul.f32 %v247, %v268
      %v273 = vlaneseq
      %v274 = vshrl.u32 %v273, 7
      %v275 = vsub.s32 0, %v274
      %v276 = vrot.slane %v228, %v275
      %v278 = vmul.f32 %v269, %v276
      %v279 = vmul.f32 %v270, %v276
      %v280 = vmul.f32 %v271, %v276
      %v282 = vlaneseq
      %v283 = vshrl.u32 %v282, 7
      %v284 = vsub.s32 0, %v283
      %v285 = vrot.slane %v229, %v284
      %v287 = vadd.f32 %v278, %v285
      %v288 = vadd.f32 %v279, %v285
      %v289 = vadd.f32 %v280, %v285
      %v290 = vlaneseq
      %v291 = vshrl.u32 %v290, 7
      %v292 = vsub.s32 0, %v291
      %v293 = vrot.slane %v287, %v292
      %v294 = vmul.f32 %v287, %v293
      %v295 = vmul.f32 %v288, %v293
      %v296 = vmul.f32 %v289, %v293
      %v297 = vld [vmem:[%s3] sm:$0x1]
      %v298 = vld [vmem:[%s4] sm:$0x1]
      %v299 = vsel %vm230, %v294, 0.0
      %300 = vadd.xlane.f32.xlu0 %v299
      %v301 = vpop.xlane.xlu0 %300
      %v302 = vsel %vm230, %v295, 0.0
      %303 = vadd.xlane.f32.xlu0 %v302
      %v304 = vpop.xlane.xlu0 %303
      %v305 = vsel %vm237, %v296, 0.0
      %306 = vadd.xlane.f32.xlu0 %v305
      %v307 = vpop.xlane.xlu0 %306
      %v308 = vmul.f32 %v301, %v241
      %v309 = vmul.f32 %v304, %v241
      %v310 = vmul.f32 %v307, %v241
      %v311 = vsub.f32 %v294, %v308
      %v312 = vsub.f32 %v295, %v309
      %v313 = vsub.f32 %v296, %v310
      %v314 = vmul.f32 %v311, %v311
      %v315 = vmul.f32 %v312, %v312
      %v316 = vmul.f32 %v313, %v313
      %v317 = vsel %vm230, %v314, 0.0
      %318 = vadd.xlane.f32.xlu0 %v317
      %v319 = vpop.xlane.xlu0 %318
      %v320 = vsel %vm230, %v315, 0.0
      %321 = vadd.xlane.f32.xlu0 %v320
      %v322 = vpop.xlane.xlu0 %321
      %v323 = vsel %vm237, %v316, 0.0
      %324 = vadd.xlane.f32.xlu0 %v323
      %v325 = vpop.xlane.xlu0 %324
      %v326 = vmul.f32 %v319, %v241
      %v327 = vmul.f32 %v322, %v241
      %v328 = vmul.f32 %v325, %v241
      %v329 = vadd.f32 %v326, 1e-05
      %v330 = vadd.f32 %v327, 1e-05
      %v331 = vadd.f32 %v328, 1e-05
      %v332 = vrsqrt.pop %v329
      %v333 = vrsqrt.pop %v330
      %v334 = vrsqrt.pop %v331
      %v335 = vmul.f32 %v311, %v332
      %v336 = vmul.f32 %v312, %v333
      %v337 = vmul.f32 %v313, %v334
      %v339 = vlaneseq
      %v340 = vshrl.u32 %v339, 7
      %v341 = vsub.s32 0, %v340
      %v342 = vrot.slane %v297, %v341
      %v344 = vmul.f32 %v335, %v342
      %v345 = vmul.f32 %v336, %v342
      %v346 = vmul.f32 %v337, %v342
      %v348 = vlaneseq
      %v349 = vshrl.u32 %v348, 7
      %v350 = vsub.s32 0, %v349
      %v351 = vrot.slane %v298, %v350
      %v353 = vadd.f32 %v344, %v351
      %v354 = vadd.f32 %v345, %v351
      %v355 = vadd.f32 %v346, %v351
      %356 = vst.msk [vmem:[%s224] sm:$0xff] %vm230, %v353
      %357 = vst.msk [vmem:[%s224 + $0x8] sm:$0xff] %vm230, %v354
      %358 = vst.msk [vmem:[%s224 + $0x10] sm:$0x1] %vm237, %v355
      %p359 = scmp.lt.s32.totalorder %s16, 1
      %s360 = scalar_select %p359, %s16, 1
      %s361 = smul.addr %s360, 3
      %s362 = smul.addr %s361, 8
      %s363 = scalar_lea.vmem %s5, %s362
      // Predicated region
      $region41: #{owlv2_forward.11} parent=39 // pred_check
        %p364 = pneg %p144
      $region42: #{owlv2_forward.11} parent=39 // pred_check_branch
        %366 = sbr.rel (%p364) target = $region44
      $region43: #{owlv2_forward.11} parent=39 // pred_region
        _
      $region44: #{owlv2_forward.11} parent=39 // pred_fallthru
        _
    $region40: #{owlv2_forward.11} parent=5 // pred_fallthru
      _
    %p367 = scmp.le.s32.totalorder 2, %s11
    // Predicated region
    $region45: #{owlv2_forward.11} parent=5 // pred_check
      %p368 = pneg %p367
    $region46: #{owlv2_forward.11} parent=5 // pred_check_branch
      %370 = sbr.rel (%p368) target = $region48
    $region47: #{owlv2_forward.11} parent=5 // pred_region
      %s371 = ssub.s32 %s11, 2
      // Predicated region
      $region49: #{owlv2_forward.11} parent=47 // pred_check
        %p372 = pneg %p150
      $region50: #{owlv2_forward.11} parent=47 // pred_check_branch
        %374 = sbr.rel (%p372) target = $region52
      $region51: #{owlv2_forward.11} parent=47 // pred_region
        %p375 = scmp.lt.s32.totalorder %s17, 1
        %s376 = scalar_select %p375, %s17, 1
        %s377 = smul.addr %s376, 3
        %s378 = smul.addr %s377, 8
        %s379 = scalar_lea.vmem %s5, %s378
      $region52: #{owlv2_forward.11} parent=47 // pred_fallthru
        _
    $region48: #{owlv2_forward.11} parent=5 // pred_fallthru
      _
  $region6: #{owlv2_forward.11} parent=0 // loop_footer
    %s15 = sadd.s32 1, %s11
  $region7: #{owlv2_forward.11} parent=0 // loop_footer_branch
    %10 = sbr.rel target = $region3
  $region8: #{owlv2_forward.11} parent=0 // loop_exit
    _

// kernel: owlv2_forward.8
$region0: #{owlv2_forward.8}
  #allocation0 [shape = 'u32[]', space=smem, size = 0x4, offset = 0x4, fixed_abs, tag = 'smem constant byte address 0x4 - core index']
  #allocation1 [shape = 'u32[144,128]{1,0:T(1,128)}', space=vmem, size = 0x12000, scoped, tag = 'internal scratch']
  %s0 = inlined_call_operand.vmem [shape: f32[2,17,193], index: 0, kind: input, shape index: {}]
  %s1 = inlined_call_operand.vmem [shape: bf16[193,32], index: 1, kind: input, shape index: {}]
  %s2 = inlined_call_operand.vmem [shape: f32[1,32], index: 2, kind: input, shape index: {}]
  %s3 = inlined_call_operand.vmem [shape: f32[17,32], index: 3, kind: input, shape index: {}]
  %s4 = inlined_call_operand.vmem [shape: f32[1,32], index: 4, kind: input, shape index: {}]
  %s5 = inlined_call_operand.vmem [shape: f32[1,32], index: 5, kind: input, shape index: {}]
  %s6 = inlined_call_operand.vmem [shape: f32[2,17,32], index: 6, kind: output, shape index: {}]
  %s7 = sld [smem:[#allocation0]]
  $region57: #{owlv2_forward.8} parent=0
    _
  %s9 = ssub.s32 1, %s7
  %s10 = scalar_select 0, %s9, %s7
  loop: start=0, step=1, limit=4
  $region2: #{owlv2_forward.8} parent=0 // loop_pre_header
    _
  $region3: #{owlv2_forward.8} parent=0 // loop_header
    %s12 = sphi 0, %s16
    %p13 = scmp.ge.s32.totalorder %s12, 4
    %s22 = sphi 0, %s24
    %s25 = sphi 0, %s22
    %s26 = sphi 0, %s25
    %s42 = sphi 0, %s26
    %s46 = sphi 0, %s46
    %s48 = sphi 0, %s46
    %s49 = sphi 0, %s48
    %s63 = sphi 0, %s49
    %s67 = sphi 0, %s67
    %s69 = sphi 0, %s67
    %s70 = sphi 0, %s69
    %s84 = sphi 0, %s70
    %s88 = sphi 0, %s88
    %s90 = sphi 0, %s88
    %s91 = sphi 0, %s90
    %s105 = sphi 0, %s91
    %s109 = sphi 0, %s109
    %s111 = sphi 0, %s109
    %s112 = sphi 0, %s111
    %s126 = sphi 0, %s112
    %s130 = sphi 0, %s130
    %s132 = sphi 0, %s130
    %s133 = sphi 0, %s132
    %s147 = sphi 0, %s133
    %s153 = sphi 0, %s155
    %s156 = sphi 0, %s153
    %s157 = sphi 0, %s156
    %s173 = sphi 0, %s157
  $region4: #{owlv2_forward.8} parent=0 // loop_header_branch
    %15 = sbr.rel (%p13) target = $region8
  $region5: #{owlv2_forward.8} parent=0 // loop_body
    %s17 = ssub.s32 %s12, 1
    %s18 = ssub.s32 %s12, 2
    %s19 = sadd.s32 %s12, 1
    %s20 = ssub.s32 %s12, %s19
    %p21 = scmp.eq.s32.totalorder %s20, 0
    %s23 = sadd.s32 %s22, 1
    %s24 = scalar_select %p21, %s22, %s23
    %p27 = pneg %p21
    %p28 = scmp.eq.s32.totalorder %s12, 1
    %p29 = por %p27, %p28
    %p30 = scmp.ne.s32.totalorder %s22, %s25
    %p31 = scmp.eq.s32.totalorder %s12, 0
    %p32 = por %p30, %p31
    %p33 = scmp.ne.s32.totalorder %s22, %s25
    %p34 = scmp.eq.s32.totalorder %s17, 1
    %p35 = por %p33, %p34
    %p36 = scmp.ne.s32.totalorder %s25, %s26
    %p37 = scmp.eq.s32.totalorder %s17, 0
    %p38 = por %p36, %p37
    %p39 = scmp.ne.s32.totalorder %s25, %s26
    %p40 = scmp.eq.s32.totalorder %s18, 1
    %p41 = por %p39, %p40
    %p43 = scmp.ne.s32.totalorder %s26, %s42
    %p44 = scmp.eq.s32.totalorder %s18, 0
    %p45 = por %p43, %p44
    %s47 = sadd.s32 %s46, 1
    %p50 = scmp.eq.s32.totalorder %s12, 1
    %p51 = scmp.ne.s32.totalorder %s46, %s48
    %p52 = scmp.eq.s32.totalorder %s12, 0
    %p53 = por %p51, %p52
    %p54 = scmp.ne.s32.totalorder %s46, %s48
    %p55 = scmp.eq.s32.totalorder %s17, 1
    %p56 = por %p54, %p55
    %p57 = scmp.ne.s32.totalorder %s48, %s49
    %p58 = scmp.eq.s32.totalorder %s17, 0
    %p59 = por %p57, %p58
    %p60 = scmp.ne.s32.totalorder %s48, %s49
    %p61 = scmp.eq.s32.totalorder %s18, 1
    %p62 = por %p60, %p61
    %p64 = scmp.ne.s32.totalorder %s49, %s63
    %p65 = scmp.eq.s32.totalorder %s18, 0
    %p66 = por %p64, %p65
    %s68 = sadd.s32 %s67, 1
    %p71 = scmp.eq.s32.totalorder %s12, 1
    %p72 = scmp.ne.s32.totalorder %s67, %s69
    %p73 = scmp.eq.s32.totalorder %s12, 0
    %p74 = por %p72, %p73
    %p75 = scmp.ne.s32.totalorder %s67, %s69
    %p76 = scmp.eq.s32.totalorder %s17, 1
    %p77 = por %p75, %p76
    %p78 = scmp.ne.s32.totalorder %s69, %s70
    %p79 = scmp.eq.s32.totalorder %s17, 0
    %p80 = por %p78, %p79
    %p81 = scmp.ne.s32.totalorder %s69, %s70
    %p82 = scmp.eq.s32.totalorder %s18, 1
    %p83 = por %p81, %p82
    %p85 = scmp.ne.s32.totalorder %s70, %s84
    %p86 = scmp.eq.s32.totalorder %s18, 0
    %p87 = por %p85, %p86
    %s89 = sadd.s32 %s88, 1
    %p92 = scmp.eq.s32.totalorder %s12, 1
    %p93 = scmp.ne.s32.totalorder %s88, %s90
    %p94 = scmp.eq.s32.totalorder %s12, 0
    %p95 = por %p93, %p94
    %p96 = scmp.ne.s32.totalorder %s88, %s90
    %p97 = scmp.eq.s32.totalorder %s17, 1
    %p98 = por %p96, %p97
    %p99 = scmp.ne.s32.totalorder %s90, %s91
    %p100 = scmp.eq.s32.totalorder %s17, 0
    %p101 = por %p99, %p100
    %p102 = scmp.ne.s32.totalorder %s90, %s91
    %p103 = scmp.eq.s32.totalorder %s18, 1
    %p104 = por %p102, %p103
    %p106 = scmp.ne.s32.totalorder %s91, %s105
    %p107 = scmp.eq.s32.totalorder %s18, 0
    %p108 = por %p106, %p107
    %s110 = sadd.s32 %s109, 1
    %p113 = scmp.eq.s32.totalorder %s12, 1
    %p114 = scmp.ne.s32.totalorder %s109, %s111
    %p115 = scmp.eq.s32.totalorder %s12, 0
    %p116 = por %p114, %p115
    %p117 = scmp.ne.s32.totalorder %s109, %s111
    %p118 = scmp.eq.s32.totalorder %s17, 1
    %p119 = por %p117, %p118
    %p120 = scmp.ne.s32.totalorder %s111, %s112
    %p121 = scmp.eq.s32.totalorder %s17, 0
    %p122 = por %p120, %p121
    %p123 = scmp.ne.s32.totalorder %s111, %s112
    %p124 = scmp.eq.s32.totalorder %s18, 1
    %p125 = por %p123, %p124
    %p127 = scmp.ne.s32.totalorder %s112, %s126
    %p128 = scmp.eq.s32.totalorder %s18, 0
    %p129 = por %p127, %p128
    %s131 = sadd.s32 %s130, 1
    %p134 = scmp.eq.s32.totalorder %s12, 1
    %p135 = scmp.ne.s32.totalorder %s130, %s132
    %p136 = scmp.eq.s32.totalorder %s12, 0
    %p137 = por %p135, %p136
    %p138 = scmp.ne.s32.totalorder %s130, %s132
    %p139 = scmp.eq.s32.totalorder %s17, 1
    %p140 = por %p138, %p139
    %p141 = scmp.ne.s32.totalorder %s132, %s133
    %p142 = scmp.eq.s32.totalorder %s17, 0
    %p143 = por %p141, %p142
    %p144 = scmp.ne.s32.totalorder %s132, %s133
    %p145 = scmp.eq.s32.totalorder %s18, 1
    %p146 = por %p144, %p145
    %p148 = scmp.ne.s32.totalorder %s133, %s147
    %p149 = scmp.eq.s32.totalorder %s18, 0
    %p150 = por %p148, %p149
    %s151 = ssub.s32 %s12, %s19
    %p152 = scmp.eq.s32.totalorder %s151, 0
    %s154 = sadd.s32 %s153, 1
    %s155 = scalar_select %p152, %s153, %s154
    %p158 = pneg %p152
    %p159 = scmp.eq.s32.totalorder %s12, 1
    %p160 = por %p158, %p159
    %p161 = scmp.ne.s32.totalorder %s153, %s156
    %p162 = scmp.eq.s32.totalorder %s12, 0
    %p163 = por %p161, %p162
    %p164 = scmp.ne.s32.totalorder %s153, %s156
    %p165 = scmp.eq.s32.totalorder %s17, 1
    %p166 = por %p164, %p165
    %p167 = scmp.ne.s32.totalorder %s156, %s157
    %p168 = scmp.eq.s32.totalorder %s17, 0
    %p169 = por %p167, %p168
    %p170 = scmp.ne.s32.totalorder %s156, %s157
    %p171 = scmp.eq.s32.totalorder %s18, 1
    %p172 = por %p170, %p171
    %p174 = scmp.ne.s32.totalorder %s157, %s173
    %p175 = scmp.eq.s32.totalorder %s18, 0
    %p176 = por %p174, %p175
    %p177 = scmp.le.s32.totalorder 1, %s12
    %p178 = scmp.lt.s32.totalorder %s12, 3
    %p179 = pnand %p177, %p178
    %p180 = pneg %p179
    // Predicated region
    $region9: #{owlv2_forward.8} parent=5 // pred_check
      _
    $region10: #{owlv2_forward.8} parent=5 // pred_check_branch
      %182 = sbr.rel (%p179) target = $region12
    $region11: #{owlv2_forward.8} parent=5 // pred_region
      %s183 = ssub.s32 %s12, 1
      // Predicated region
      $region13: #{owlv2_forward.8} parent=11 // pred_check
        %p184 = pneg %p59
      $region14: #{owlv2_forward.8} parent=11 // pred_check_branch
        %186 = sbr.rel (%p184) target = $region16
      $region15: #{owlv2_forward.8} parent=11 // pred_region
        _
      $region16: #{owlv2_forward.8} parent=11 // pred_fallthru
        _
      // Predicated region
      $region17: #{owlv2_forward.8} parent=11 // pred_check
        %p187 = pneg %p80
      $region18: #{owlv2_forward.8} parent=11 // pred_check_branch
        %189 = sbr.rel (%p187) target = $region20
      $region19: #{owlv2_forward.8} parent=11 // pred_region
        _
      $region20: #{owlv2_forward.8} parent=11 // pred_fallthru
        _
      // Predicated region
      $region21: #{owlv2_forward.8} parent=11 // pred_check
        %p190 = pneg %p101
      $region22: #{owlv2_forward.8} parent=11 // pred_check_branch
        %192 = sbr.rel (%p190) target = $region24
      $region23: #{owlv2_forward.8} parent=11 // pred_region
        _
      $region24: #{owlv2_forward.8} parent=11 // pred_fallthru
        _
      // Predicated region
      $region25: #{owlv2_forward.8} parent=11 // pred_check
        %p193 = pneg %p122
      $region26: #{owlv2_forward.8} parent=11 // pred_check_branch
        %195 = sbr.rel (%p193) target = $region28
      $region27: #{owlv2_forward.8} parent=11 // pred_region
        _
      $region28: #{owlv2_forward.8} parent=11 // pred_fallthru
        _
      // Predicated region
      $region29: #{owlv2_forward.8} parent=11 // pred_check
        %p196 = pneg %p143
      $region30: #{owlv2_forward.8} parent=11 // pred_check_branch
        %198 = sbr.rel (%p196) target = $region32
      $region31: #{owlv2_forward.8} parent=11 // pred_region
        _
      $region32: #{owlv2_forward.8} parent=11 // pred_fallthru
        _
    $region12: #{owlv2_forward.8} parent=5 // pred_fallthru
      _
    %p199 = scmp.lt.s32.totalorder %s12, 2
    // Predicated region
    $region33: #{owlv2_forward.8} parent=5 // pred_check
      %p200 = pneg %p199
    $region34: #{owlv2_forward.8} parent=5 // pred_check_branch
      %202 = sbr.rel (%p200) target = $region36
    $region35: #{owlv2_forward.8} parent=5 // pred_region
      // Predicated region
      $region37: #{owlv2_forward.8} parent=35 // pred_check
        %p203 = pneg %p32
      $region38: #{owlv2_forward.8} parent=35 // pred_check_branch
        %205 = sbr.rel (%p203) target = $region40
      $region39: #{owlv2_forward.8} parent=35 // pred_region
        %p206 = scmp.lt.s32.totalorder %s12, 1
        %s207 = scalar_select %p206, %s12, 1
        %s208 = smul.addr %s207, 6
        %s209 = smul.addr %s208, 8
        %s210 = scalar_lea.vmem %s0, %s209
      $region40: #{owlv2_forward.8} parent=35 // pred_fallthru
        _
    $region36: #{owlv2_forward.8} parent=5 // pred_fallthru
      _
    %p211 = scmp.le.s32.totalorder 1, %s12
    %p212 = scmp.lt.s32.totalorder %s12, 3
    %p213 = pnand %p211, %p212
    %p214 = pneg %p213
    // Predicated region
    $region41: #{owlv2_forward.8} parent=5 // pred_check
      _
    $region42: #{owlv2_forward.8} parent=5 // pred_check_branch
      %216 = sbr.rel (%p213) target = $region44
    $region43: #{owlv2_forward.8} parent=5 // pred_region
      %s217 = ssub.s32 %s12, 1
      %p218 = scmp.lt.s32.totalorder %s17, 1
      %s219 = scalar_select %p218, %s17, 1
      %s220 = smul.addr %s219, 6
      %s221 = smul.addr %s220, 8
      %s222 = scalar_lea.vmem %s0, %s221
      %p223 = pneg %p38
      %p224 = pneg %p35
      %p225 = pneg %p59
      %p226 = pneg %p56
      %p227 = pneg %p80
      %p228 = pneg %p77
      %p229 = pneg %p101
      %p230 = pneg %p98
      %p231 = pneg %p122
      %p232 = pneg %p119
      %p233 = pneg %p143
      %p234 = pneg %p140
      %p235 = pneg %p169
      %p236 = pneg %p166
      %p237 = scmp.lt.s32.totalorder %s17, 1
      %s238 = scalar_select %p237, %s17, 1
      %s239 = smul.addr %s238, 3
      %s240 = smul.addr %s239, 8
      %s241 = scalar_lea.vmem %s6, %s240
      %p242 = scmp.lt.s32.totalorder %s17, 1
      %s243 = scalar_select %p242, %s17, 1
      %s244 = smul.addr %s243, 6
      %s245 = smul.addr %s244, 8
      %s246 = scalar_lea.vmem %s0, %s245
      %p247 = scmp.lt.s32.totalorder %s17, 1
      %s248 = scalar_select %p247, %s17, 1
      %s249 = smul.addr %s248, 3
      %s250 = smul.addr %s249, 8
      %s251 = scalar_lea.vmem %s6, %s250
      %v253 = vld [vmem:[%s246] sm:$0xff]
      %v254 = vld [vmem:[%s246 + $0x8] sm:$0xff]
      %v255 = vld [vmem:[%s246 + $0x10] sm:$0xff]
      %v256 = vld [vmem:[%s246 + $0x18] sm:$0xff]
      %v257 = vld [vmem:[%s246 + $0x20] sm:$0x1]
      %v258 = vld [vmem:[%s246 + $0x28] sm:$0x1]
      %v259 = vpack.c.bf16 %v255, %v253
      %v260 = vpack.c.bf16 %v256, %v254
      %v261 = vpack.c.bf16 %v257, %v257
      %v262 = vpack.c.bf16 %v258, %v258
      %v263 = vld [vmem:[%s1] sm:$0xf]
      %v264 = vld [vmem:[%s1 + $0x4] sm:$0xf]
      %v265 = vld [vmem:[%s1 + $0x8] sm:$0xf]
      %v266 = vld [vmem:[%s1 + $0xc] sm:$0xf]
      %v267 = vld [vmem:[%s1 + $0x10] sm:$0xf]
      %v268 = vld [vmem:[%s1 + $0x14] sm:$0xf]
      %v269 = vld [vmem:[%s1 + $0x18] sm:$0xf]
      %v270 = vld [vmem:[%s1 + $0x1c] sm:$0xf]
      %v271 = vld [vmem:[%s1 + $0x20] sm:$0xf]
      %v272 = vld [vmem:[%s1 + $0x24] sm:$0xf]
      %v273 = vld [vmem:[%s1 + $0x28] sm:$0xf]
      %v274 = vld [vmem:[%s1 + $0x2c] sm:$0xf]
      %v275 = vld [vmem:[%s1 + $0x30] sm:$0xf]
      %v276 = vld [vmem:[%s1 + $0x34] sm:$0xf]
      %v277 = vld [vmem:[%s1 + $0x38] sm:$0xf]
      %v278 = vld [vmem:[%s1 + $0x3c] sm:$0xf]
      %v279 = vld [vmem:[%s1 + $0x40] sm:$0xf]
      %v280 = vld [vmem:[%s1 + $0x44] sm:$0xf]
      %v281 = vld [vmem:[%s1 + $0x48] sm:$0xf]
      %v282 = vld [vmem:[%s1 + $0x4c] sm:$0xf]
      %v283 = vld [vmem:[%s1 + $0x50] sm:$0xf]
      %v284 = vld [vmem:[%s1 + $0x54] sm:$0xf]
      %v285 = vld [vmem:[%s1 + $0x58] sm:$0xf]
      %v286 = vld [vmem:[%s1 + $0x5c] sm:$0xf]
      %v287 = vld [vmem:[%s1 + $0x60] sm:$0x1]
      %v288 = vld [vmem:[%s2] sm:$0x1]
      %v290 = vlaneseq
      %v291 = vshrl.u32 %v290, 7
      %v292 = vsub.s32 0, %v291
      %v293 = vrot.slane %v288, %v292
      %v320 = vunpack.c.l.b16 %v263
      %v321 = vunpack.c.l.b16 %v264
      %v322 = vunpack.c.l.b16 %v265
      %v323 = vunpack.c.l.b16 %v266
      %v324 = vunpack.c.l.b16 %v267
      %v325 = vunpack.c.l.b16 %v268
      %v326 = vunpack.c.l.b16 %v269
      %v327 = vunpack.c.l.b16 %v270
      %v328 = vunpack.c.l.b16 %v271
      %v329 = vunpack.c.l.b16 %v272
      %v330 = vunpack.c.l.b16 %v273
      %v331 = vunpack.c.l.b16 %v274
      %v332 = vunpack.c.l.b16 %v275
      %v333 = vunpack.c.l.b16 %v276
      %v334 = vunpack.c.l.b16 %v277
      %v335 = vunpack.c.l.b16 %v278
      %v336 = vunpack.c.l.b16 %v279
      %v337 = vunpack.c.l.b16 %v280
      %v338 = vunpack.c.l.b16 %v281
      %v339 = vunpack.c.l.b16 %v282
      %v340 = vunpack.c.l.b16 %v283
      %v341 = vunpack.c.l.b16 %v284
      %v342 = vunpack.c.l.b16 %v285
      %v343 = vunpack.c.l.b16 %v286
      %v344 = vunpack.c.l.b16 %v287
      %v345 = vpack.c.b16 %v321, %v320
      %v346 = vpack.c.b16 %v323, %v322
      %v347 = vpack.c.b16 %v325, %v324
      %v348 = vpack.c.b16 %v327, %v326
      %v349 = vpack.c.b16 %v329, %v328
      %v350 = vpack.c.b16 %v331, %v330
      %v351 = vpack.c.b16 %v333, %v332
      %v352 = vpack.c.b16 %v335, %v334
      %v353 = vpack.c.b16 %v337, %v336
      %v354 = vpack.c.b16 %v339, %v338
      %v355 = vpack.c.b16 %v341, %v340
      %v356 = vpack.c.b16 %v343, %v342
      %v357 = vpack.c.b16 %v344, %v344
      %vm370 = vcmask 531456
      %v372 = vsel %vm370, %v260, 0
      %v375 = vsel %vm370, %v262, 0
      %vm377 = vcmask 1040384
      %v378 = vsel 0, 4294967295, 65535
      %v379 = vsel %vm377, %v378, 0
      %v381 = vand.u32 %v357, %v379
      %383 = vmatprep.subr.bf16.mxu0 0
      %384 = vmatpush1.bf16.msra.mxu0 %v345
      %385 = vmatprep.subr.bf16.mxu0 0
      %386 = vmatpush1.bf16.msra.mxu0 %v346
      %387 = vmatprep.subr.bf16.mxu0 0
      %388 = vmatpush1.bf16.msra.mxu0 %v347
      %389 = vmatprep.subr.bf16.mxu0 0
      %390 = vmatpush1.bf16.msra.mxu0 %v348
      %391 = vmatprep.subr.bf16.mxu0 0
      %392 = vmatpush1.bf16.msra.mxu0 %v349
      %393 = vmatprep.subr.bf16.mxu0 0
      %394 = vmatpush1.bf16.msra.mxu0 %v350
      %395 = vmatprep.subr.bf16.mxu0 0
      %396 = vmatpush1.bf16.msra.mxu0 %v351
      %397 = vmatprep.subr.bf16.mxu0 0
      %398 = vmatpush1.bf16.msra.mxu0 %v352
      %399 = vmatprep.subr.bf16.mxu0 0
      %400 = vmatpush1.bf16.msra.mxu0 %v353
      %401 = vmatprep.subr.bf16.mxu0 0
      %402 = vmatpush1.bf16.msra.mxu0 %v354
      %403 = vmatprep.subr.bf16.mxu0 0
      %404 = vmatpush1.bf16.msra.mxu0 %v355
      %405 = vmatprep.subr.bf16.mxu0 0
      %406 = vmatpush1.bf16.msra.mxu0 %v356
      %407 = vmatprep.subr.bf16.mxu0 0
      %408 = vmatpush1.bf16.msra.mxu0 %v381
      %409 = vmatprep.subr.bf16.mxu0 0
      %410 = vmatpush1.bf16.msra.mxu0 0
      %411 = vmatprep.subr.bf16.mxu0 0
      %412 = vmatpush1.bf16.msra.mxu0 0
      %413 = vmatprep.subr.bf16.mxu0 0
      %414 = vmatpush1.bf16.msra.mxu0 0
      %415 = vmatprep.mubr.bf16.mxu0 %v372
      %416 = vmatmul.mubr.bf16.gmra.mrb[0].mxu0 %v259
      %v417 = vpop.f32.mrb[0].mxu0
      %v418 = vadd.f32 %v293, %v417
      %v419 = vpop.f32.mrb[0].mxu0
      %v420 = vpop.f32.mrb[0].mxu0
      %v421 = vadd.f32 %v293, %v420
      %v422 = vpop.f32.mrb[0].mxu0
      %423 = vmatprep.mubr.bf16.mxu0 %v375
      %424 = vmatmul.mubr.bf16.gmra.mrb[0].mxu0 %v261
      %v425 = vpop.f32.mrb[0].mxu0
      %v426 = vadd.f32 %v293, %v425
      %v427 = vpop.f32.mrb[0].mxu0
      %v428 = vpop.f32.mrb[0].mxu0
      %v429 = vpop.f32.mrb[0].mxu0
      %430 = vdwg.mxu0
      %v431 = vld [vmem:[%s3] sm:$0xff]
      %v432 = vld [vmem:[%s3 + $0x8] sm:$0xff]
      %v433 = vld [vmem:[%s3 + $0x10] sm:$0x1]
      %v434 = vadd.f32 %v418, %v431
      %v435 = vadd.f32 %v421, %v432
      %v436 = vadd.f32 %v426, %v433
      %v437 = vld [vmem:[%s4] sm:$0x1]
      %v438 = vld [vmem:[%s5] sm:$0x1]
      %vm439 = vcmask 261120
      %v440 = vsel %vm439, %v434, 0.0
      %441 = vadd.xlane.f32.xlu0 %v440
      %v442 = vpop.xlane.xlu0 %441
      %v443 = vsel %vm439, %v435, 0.0
      %444 = vadd.xlane.f32.xlu0 %v443
      %v445 = vpop.xlane.xlu0 %444
      %vm446 = vcmask 253952
      %v447 = vsel %vm446, %v436, 0.0
      %448 = vadd.xlane.f32.xlu0 %v447
      %v449 = vpop.xlane.xlu0 %448
      %v450 = vrcp.pop 32.0
      %v451 = vmul.f32 %v442, %v450
      %v452 = vmul.f32 %v445, %v450
      %v453 = vmul.f32 %v449, %v450
      %v454 = vsub.f32 %v434, %v451
      %v455 = vsub.f32 %v435, %v452
      %v456 = vsub.f32 %v436, %v453
      %v457 = vmul.f32 %v454, %v454
      %v458 = vmul.f32 %v455, %v455
      %v459 = vmul.f32 %v456, %v456
      %v460 = vsel %vm439, %v457, 0.0
      %461 = vadd.xlane.f32.xlu0 %v460
      %v462 = vpop.xlane.xlu0 %461
      %v463 = vsel %vm439, %v458, 0.0
      %464 = vadd.xlane.f32.xlu0 %v463
      %v465 = vpop.xlane.xlu0 %464
      %v466 = vsel %vm446, %v459, 0.0
      %467 = vadd.xlane.f32.xlu0 %v466
      %v468 = vpop.xlane.xlu0 %467
      %v469 = vmul.f32 %v462, %v450
      %v470 = vmul.f32 %v465, %v450
      %v471 = vmul.f32 %v468, %v450
      %v472 = vadd.f32 %v469, 1e-05
      %v473 = vadd.f32 %v470, 1e-05
      %v474 = vadd.f32 %v471, 1e-05
      %v475 = vrsqrt.pop %v472
      %v476 = vrsqrt.pop %v473
      %v477 = vrsqrt.pop %v474
      %v478 = vmul.f32 %v454, %v475
      %v479 = vmul.f32 %v455, %v476
      %v480 = vmul.f32 %v456, %v477
      %v482 = vlaneseq
      %v483 = vshrl.u32 %v482, 7
      %v484 = vsub.s32 0, %v483
      %v485 = vrot.slane %v437, %v484
      %v487 = vmul.f32 %v478, %v485
      %v488 = vmul.f32 %v479, %v485
      %v489 = vmul.f32 %v480, %v485
      %v491 = vlaneseq
      %v492 = vshrl.u32 %v491, 7
      %v493 = vsub.s32 0, %v492
      %v494 = vrot.slane %v438, %v493
      %v496 = vadd.f32 %v487, %v494
      %v497 = vadd.f32 %v488, %v494
      %v498 = vadd.f32 %v489, %v494
      %499 = vst.msk [vmem:[%s251] sm:$0xff] %vm439, %v496
      %500 = vst.msk [vmem:[%s251 + $0x8] sm:$0xff] %vm439, %v497
      %501 = vst.msk [vmem:[%s251 + $0x10] sm:$0x1] %vm446, %v498
      %p502 = scmp.lt.s32.totalorder %s17, 1
      %s503 = scalar_select %p502, %s17, 1
      %s504 = smul.addr %s503, 3
      %s505 = smul.addr %s504, 8
      %s506 = scalar_lea.vmem %s6, %s505
      // Predicated region
      $region45: #{owlv2_forward.8} parent=43 // pred_check
        %p507 = pneg %p166
      $region46: #{owlv2_forward.8} parent=43 // pred_check_branch
        %509 = sbr.rel (%p507) target = $region48
      $region47: #{owlv2_forward.8} parent=43 // pred_region
        _
      $region48: #{owlv2_forward.8} parent=43 // pred_fallthru
        _
    $region44: #{owlv2_forward.8} parent=5 // pred_fallthru
      _
    %p510 = scmp.le.s32.totalorder 2, %s12
    // Predicated region
    $region49: #{owlv2_forward.8} parent=5 // pred_check
      %p511 = pneg %p510
    $region50: #{owlv2_forward.8} parent=5 // pred_check_branch
      %513 = sbr.rel (%p511) target = $region52
    $region51: #{owlv2_forward.8} parent=5 // pred_region
      %s514 = ssub.s32 %s12, 2
      // Predicated region
      $region53: #{owlv2_forward.8} parent=51 // pred_check
        %p515 = pneg %p172
      $region54: #{owlv2_forward.8} parent=51 // pred_check_branch
        %517 = sbr.rel (%p515) target = $region56
      $region55: #{owlv2_forward.8} parent=51 // pred_region
        %p518 = scmp.lt.s32.totalorder %s18, 1
        %s519 = scalar_select %p518, %s18, 1
        %s520 = smul.addr %s519, 3
        %s521 = smul.addr %s520, 8
        %s522 = scalar_lea.vmem %s6, %s521
      $region56: #{owlv2_forward.8} parent=51 // pred_fallthru
        _
    $region52: #{owlv2_forward.8} parent=5 // pred_fallthru
      _
  $region6: #{owlv2_forward.8} parent=0 // loop_footer
    %s16 = sadd.s32 1, %s12
  $region7: #{owlv2_forward.8} parent=0 // loop_footer_branch
    %11 = sbr.rel target = $region3
  $region8: #{owlv2_forward.8} parent=0 // loop_exit
    _

// kernel: owlv2_forward.9
$region0: #{owlv2_forward.9}
  #allocation0 [shape = 'u32[]', space=smem, size = 0x4, offset = 0x4, fixed_abs, tag = 'smem constant byte address 0x4 - core index']
  #allocation1 [shape = 'u32[144,128]{1,0:T(1,128)}', space=vmem, size = 0x12000, scoped, tag = 'internal scratch']
  %s0 = inlined_call_operand.vmem [shape: f32[2,17,32], index: 0, kind: input, shape index: {}]
  %s1 = inlined_call_operand.vmem [shape: f32[1,32], index: 1, kind: input, shape index: {}]
  %s2 = inlined_call_operand.vmem [shape: f32[1,32], index: 2, kind: input, shape index: {}]
  %s3 = inlined_call_operand.vmem [shape: bf16[32,96], index: 3, kind: input, shape index: {}]
  %s4 = inlined_call_operand.vmem [shape: f32[1,96], index: 4, kind: input, shape index: {}]
  %s5 = inlined_call_operand.vmem [shape: bf16[32,32], index: 5, kind: input, shape index: {}]
  %s6 = inlined_call_operand.vmem [shape: f32[1,32], index: 6, kind: input, shape index: {}]
  %s7 = inlined_call_operand.vmem [shape: f32[1,32], index: 7, kind: input, shape index: {}]
  %s8 = inlined_call_operand.vmem [shape: f32[1,32], index: 8, kind: input, shape index: {}]
  %s9 = inlined_call_operand.vmem [shape: bf16[32,64], index: 9, kind: input, shape index: {}]
  %s10 = inlined_call_operand.vmem [shape: f32[1,64], index: 10, kind: input, shape index: {}]
  %s11 = inlined_call_operand.vmem [shape: bf16[64,32], index: 11, kind: input, shape index: {}]
  %s12 = inlined_call_operand.vmem [shape: f32[1,32], index: 12, kind: input, shape index: {}]
  %s13 = inlined_call_operand.vmem [shape: f32[2,17,32], index: 13, kind: output, shape index: {}]
  %s14 = sld [smem:[#allocation0]]
  $region85: #{owlv2_forward.9} parent=0
    _
  %s16 = ssub.s32 1, %s14
  %s17 = scalar_select 0, %s16, %s14
  loop: start=0, step=1, limit=4
  $region2: #{owlv2_forward.9} parent=0 // loop_pre_header
    _
  $region3: #{owlv2_forward.9} parent=0 // loop_header
    %s19 = sphi 0, %s23
    %p20 = scmp.ge.s32.totalorder %s19, 4
    %s29 = sphi 0, %s31
    %s32 = sphi 0, %s29
    %s33 = sphi 0, %s32
    %s49 = sphi 0, %s33
    %s53 = sphi 0, %s53
    %s55 = sphi 0, %s53
    %s56 = sphi 0, %s55
    %s70 = sphi 0, %s56
    %s74 = sphi 0, %s74
    %s76 = sphi 0, %s74
    %s77 = sphi 0, %s76
    %s91 = sphi 0, %s77
    %s95 = sphi 0, %s95
    %s97 = sphi 0, %s95
    %s98 = sphi 0, %s97
    %s112 = sphi 0, %s98
    %s116 = sphi 0, %s116
    %s118 = sphi 0, %s116
    %s119 = sphi 0, %s118
    %s133 = sphi 0, %s119
    %s137 = sphi 0, %s137
    %s139 = sphi 0, %s137
    %s140 = sphi 0, %s139
    %s154 = sphi 0, %s140
    %s158 = sphi 0, %s158
    %s160 = sphi 0, %s158
    %s161 = sphi 0, %s160
    %s175 = sphi 0, %s161
    %s179 = sphi 0, %s179
    %s181 = sphi 0, %s179
    %s182 = sphi 0, %s181
    %s196 = sphi 0, %s182
    %s200 = sphi 0, %s200
    %s202 = sphi 0, %s200
    %s203 = sphi 0, %s202
    %s217 = sphi 0, %s203
    %s221 = sphi 0, %s221
    %s223 = sphi 0, %s221
    %s224 = sphi 0, %s223
    %s238 = sphi 0, %s224
    %s242 = sphi 0, %s242
    %s244 = sphi 0, %s242
    %s245 = sphi 0, %s244
    %s259 = sphi 0, %s245
    %s263 = sphi 0, %s263
    %s265 = sphi 0, %s263
    %s266 = sphi 0, %s265
    %s280 = sphi 0, %s266
    %s284 = sphi 0, %s284
    %s286 = sphi 0, %s284
    %s287 = sphi 0, %s286
    %s301 = sphi 0, %s287
    %s307 = sphi 0, %s309
    %s310 = sphi 0, %s307
    %s311 = sphi 0, %s310
    %s327 = sphi 0, %s311
  $region4: #{owlv2_forward.9} parent=0 // loop_header_branch
    %22 = sbr.rel (%p20) target = $region8
  $region5: #{owlv2_forward.9} parent=0 // loop_body
    %s24 = ssub.s32 %s19, 1
    %s25 = ssub.s32 %s19, 2
    %s26 = sadd.s32 %s19, 1
    %s27 = ssub.s32 %s19, %s26
    %p28 = scmp.eq.s32.totalorder %s27, 0
    %s30 = sadd.s32 %s29, 1
    %s31 = scalar_select %p28, %s29, %s30
    %p34 = pneg %p28
    %p35 = scmp.eq.s32.totalorder %s19, 1
    %p36 = por %p34, %p35
    %p37 = scmp.ne.s32.totalorder %s29, %s32
    %p38 = scmp.eq.s32.totalorder %s19, 0
    %p39 = por %p37, %p38
    %p40 = scmp.ne.s32.totalorder %s29, %s32
    %p41 = scmp.eq.s32.totalorder %s24, 1
    %p42 = por %p40, %p41
    %p43 = scmp.ne.s32.totalorder %s32, %s33
    %p44 = scmp.eq.s32.totalorder %s24, 0
    %p45 = por %p43, %p44
    %p46 = scmp.ne.s32.totalorder %s32, %s33
    %p47 = scmp.eq.s32.totalorder %s25, 1
    %p48 = por %p46, %p47
    %p50 = scmp.ne.s32.totalorder %s33, %s49
    %p51 = scmp.eq.s32.totalorder %s25, 0
    %p52 = por %p50, %p51
    %s54 = sadd.s32 %s53, 1
    %p57 = scmp.eq.s32.totalorder %s19, 1
    %p58 = scmp.ne.s32.totalorder %s53, %s55
    %p59 = scmp.eq.s32.totalorder %s19, 0
    %p60 = por %p58, %p59
    %p61 = scmp.ne.s32.totalorder %s53, %s55
    %p62 = scmp.eq.s32.totalorder %s24, 1
    %p63 = por %p61, %p62
    %p64 = scmp.ne.s32.totalorder %s55, %s56
    %p65 = scmp.eq.s32.totalorder %s24, 0
    %p66 = por %p64, %p65
    %p67 = scmp.ne.s32.totalorder %s55, %s56
    %p68 = scmp.eq.s32.totalorder %s25, 1
    %p69 = por %p67, %p68
    %p71 = scmp.ne.s32.totalorder %s56, %s70
    %p72 = scmp.eq.s32.totalorder %s25, 0
    %p73 = por %p71, %p72
    %s75 = sadd.s32 %s74, 1
    %p78 = scmp.eq.s32.totalorder %s19, 1
    %p79 = scmp.ne.s32.totalorder %s74, %s76
    %p80 = scmp.eq.s32.totalorder %s19, 0
    %p81 = por %p79, %p80
    %p82 = scmp.ne.s32.totalorder %s74, %s76
    %p83 = scmp.eq.s32.totalorder %s24, 1
    %p84 = por %p82, %p83
    %p85 = scmp.ne.s32.totalorder %s76, %s77
    %p86 = scmp.eq.s32.totalorder %s24, 0
    %p87 = por %p85, %p86
    %p88 = scmp.ne.s32.totalorder %s76, %s77
    %p89 = scmp.eq.s32.totalorder %s25, 1
    %p90 = por %p88, %p89
    %p92 = scmp.ne.s32.totalorder %s77, %s91
    %p93 = scmp.eq.s32.totalorder %s25, 0
    %p94 = por %p92, %p93
    %s96 = sadd.s32 %s95, 1
    %p99 = scmp.eq.s32.totalorder %s19, 1
    %p100 = scmp.ne.s32.totalorder %s95, %s97
    %p101 = scmp.eq.s32.totalorder %s19, 0
    %p102 = por %p100, %p101
    %p103 = scmp.ne.s32.totalorder %s95, %s97
    %p104 = scmp.eq.s32.totalorder %s24, 1
    %p105 = por %p103, %p104
    %p106 = scmp.ne.s32.totalorder %s97, %s98
    %p107 = scmp.eq.s32.totalorder %s24, 0
    %p108 = por %p106, %p107
    %p109 = scmp.ne.s32.totalorder %s97, %s98
    %p110 = scmp.eq.s32.totalorder %s25, 1
    %p111 = por %p109, %p110
    %p113 = scmp.ne.s32.totalorder %s98, %s112
    %p114 = scmp.eq.s32.totalorder %s25, 0
    %p115 = por %p113, %p114
    %s117 = sadd.s32 %s116, 1
    %p120 = scmp.eq.s32.totalorder %s19, 1
    %p121 = scmp.ne.s32.totalorder %s116, %s118
    %p122 = scmp.eq.s32.totalorder %s19, 0
    %p123 = por %p121, %p122
    %p124 = scmp.ne.s32.totalorder %s116, %s118
    %p125 = scmp.eq.s32.totalorder %s24, 1
    %p126 = por %p124, %p125
    %p127 = scmp.ne.s32.totalorder %s118, %s119
    %p128 = scmp.eq.s32.totalorder %s24, 0
    %p129 = por %p127, %p128
    %p130 = scmp.ne.s32.totalorder %s118, %s119
    %p131 = scmp.eq.s32.totalorder %s25, 1
    %p132 = por %p130, %p131
    %p134 = scmp.ne.s32.totalorder %s119, %s133
    %p135 = scmp.eq.s32.totalorder %s25, 0
    %p136 = por %p134, %p135
    %s138 = sadd.s32 %s137, 1
    %p141 = scmp.eq.s32.totalorder %s19, 1
    %p142 = scmp.ne.s32.totalorder %s137, %s139
    %p143 = scmp.eq.s32.totalorder %s19, 0
    %p144 = por %p142, %p143
    %p145 = scmp.ne.s32.totalorder %s137, %s139
    %p146 = scmp.eq.s32.totalorder %s24, 1
    %p147 = por %p145, %p146
    %p148 = scmp.ne.s32.totalorder %s139, %s140
    %p149 = scmp.eq.s32.totalorder %s24, 0
    %p150 = por %p148, %p149
    %p151 = scmp.ne.s32.totalorder %s139, %s140
    %p152 = scmp.eq.s32.totalorder %s25, 1
    %p153 = por %p151, %p152
    %p155 = scmp.ne.s32.totalorder %s140, %s154
    %p156 = scmp.eq.s32.totalorder %s25, 0
    %p157 = por %p155, %p156
    %s159 = sadd.s32 %s158, 1
    %p162 = scmp.eq.s32.totalorder %s19, 1
    %p163 = scmp.ne.s32.totalorder %s158, %s160
    %p164 = scmp.eq.s32.totalorder %s19, 0
    %p165 = por %p163, %p164
    %p166 = scmp.ne.s32.totalorder %s158, %s160
    %p167 = scmp.eq.s32.totalorder %s24, 1
    %p168 = por %p166, %p167
    %p169 = scmp.ne.s32.totalorder %s160, %s161
    %p170 = scmp.eq.s32.totalorder %s24, 0
    %p171 = por %p169, %p170
    %p172 = scmp.ne.s32.totalorder %s160, %s161
    %p173 = scmp.eq.s32.totalorder %s25, 1
    %p174 = por %p172, %p173
    %p176 = scmp.ne.s32.totalorder %s161, %s175
    %p177 = scmp.eq.s32.totalorder %s25, 0
    %p178 = por %p176, %p177
    %s180 = sadd.s32 %s179, 1
    %p183 = scmp.eq.s32.totalorder %s19, 1
    %p184 = scmp.ne.s32.totalorder %s179, %s181
    %p185 = scmp.eq.s32.totalorder %s19, 0
    %p186 = por %p184, %p185
    %p187 = scmp.ne.s32.totalorder %s179, %s181
    %p188 = scmp.eq.s32.totalorder %s24, 1
    %p189 = por %p187, %p188
    %p190 = scmp.ne.s32.totalorder %s181, %s182
    %p191 = scmp.eq.s32.totalorder %s24, 0
    %p192 = por %p190, %p191
    %p193 = scmp.ne.s32.totalorder %s181, %s182
    %p194 = scmp.eq.s32.totalorder %s25, 1
    %p195 = por %p193, %p194
    %p197 = scmp.ne.s32.totalorder %s182, %s196
    %p198 = scmp.eq.s32.totalorder %s25, 0
    %p199 = por %p197, %p198
    %s201 = sadd.s32 %s200, 1
    %p204 = scmp.eq.s32.totalorder %s19, 1
    %p205 = scmp.ne.s32.totalorder %s200, %s202
    %p206 = scmp.eq.s32.totalorder %s19, 0
    %p207 = por %p205, %p206
    %p208 = scmp.ne.s32.totalorder %s200, %s202
    %p209 = scmp.eq.s32.totalorder %s24, 1
    %p210 = por %p208, %p209
    %p211 = scmp.ne.s32.totalorder %s202, %s203
    %p212 = scmp.eq.s32.totalorder %s24, 0
    %p213 = por %p211, %p212
    %p214 = scmp.ne.s32.totalorder %s202, %s203
    %p215 = scmp.eq.s32.totalorder %s25, 1
    %p216 = por %p214, %p215
    %p218 = scmp.ne.s32.totalorder %s203, %s217
    %p219 = scmp.eq.s32.totalorder %s25, 0
    %p220 = por %p218, %p219
    %s222 = sadd.s32 %s221, 1
    %p225 = scmp.eq.s32.totalorder %s19, 1
    %p226 = scmp.ne.s32.totalorder %s221, %s223
    %p227 = scmp.eq.s32.totalorder %s19, 0
    %p228 = por %p226, %p227
    %p229 = scmp.ne.s32.totalorder %s221, %s223
    %p230 = scmp.eq.s32.totalorder %s24, 1
    %p231 = por %p229, %p230
    %p232 = scmp.ne.s32.totalorder %s223, %s224
    %p233 = scmp.eq.s32.totalorder %s24, 0
    %p234 = por %p232, %p233
    %p235 = scmp.ne.s32.totalorder %s223, %s224
    %p236 = scmp.eq.s32.totalorder %s25, 1
    %p237 = por %p235, %p236
    %p239 = scmp.ne.s32.totalorder %s224, %s238
    %p240 = scmp.eq.s32.totalorder %s25, 0
    %p241 = por %p239, %p240
    %s243 = sadd.s32 %s242, 1
    %p246 = scmp.eq.s32.totalorder %s19, 1
    %p247 = scmp.ne.s32.totalorder %s242, %s244
    %p248 = scmp.eq.s32.totalorder %s19, 0
    %p249 = por %p247, %p248
    %p250 = scmp.ne.s32.totalorder %s242, %s244
    %p251 = scmp.eq.s32.totalorder %s24, 1
    %p252 = por %p250, %p251
    %p253 = scmp.ne.s32.totalorder %s244, %s245
    %p254 = scmp.eq.s32.totalorder %s24, 0
    %p255 = por %p253, %p254
    %p256 = scmp.ne.s32.totalorder %s244, %s245
    %p257 = scmp.eq.s32.totalorder %s25, 1
    %p258 = por %p256, %p257
    %p260 = scmp.ne.s32.totalorder %s245, %s259
    %p261 = scmp.eq.s32.totalorder %s25, 0
    %p262 = por %p260, %p261
    %s264 = sadd.s32 %s263, 1
    %p267 = scmp.eq.s32.totalorder %s19, 1
    %p268 = scmp.ne.s32.totalorder %s263, %s265
    %p269 = scmp.eq.s32.totalorder %s19, 0
    %p270 = por %p268, %p269
    %p271 = scmp.ne.s32.totalorder %s263, %s265
    %p272 = scmp.eq.s32.totalorder %s24, 1
    %p273 = por %p271, %p272
    %p274 = scmp.ne.s32.totalorder %s265, %s266
    %p275 = scmp.eq.s32.totalorder %s24, 0
    %p276 = por %p274, %p275
    %p277 = scmp.ne.s32.totalorder %s265, %s266
    %p278 = scmp.eq.s32.totalorder %s25, 1
    %p279 = por %p277, %p278
    %p281 = scmp.ne.s32.totalorder %s266, %s280
    %p282 = scmp.eq.s32.totalorder %s25, 0
    %p283 = por %p281, %p282
    %s285 = sadd.s32 %s284, 1
    %p288 = scmp.eq.s32.totalorder %s19, 1
    %p289 = scmp.ne.s32.totalorder %s284, %s286
    %p290 = scmp.eq.s32.totalorder %s19, 0
    %p291 = por %p289, %p290
    %p292 = scmp.ne.s32.totalorder %s284, %s286
    %p293 = scmp.eq.s32.totalorder %s24, 1
    %p294 = por %p292, %p293
    %p295 = scmp.ne.s32.totalorder %s286, %s287
    %p296 = scmp.eq.s32.totalorder %s24, 0
    %p297 = por %p295, %p296
    %p298 = scmp.ne.s32.totalorder %s286, %s287
    %p299 = scmp.eq.s32.totalorder %s25, 1
    %p300 = por %p298, %p299
    %p302 = scmp.ne.s32.totalorder %s287, %s301
    %p303 = scmp.eq.s32.totalorder %s25, 0
    %p304 = por %p302, %p303
    %s305 = ssub.s32 %s19, %s26
    %p306 = scmp.eq.s32.totalorder %s305, 0
    %s308 = sadd.s32 %s307, 1
    %s309 = scalar_select %p306, %s307, %s308
    %p312 = pneg %p306
    %p313 = scmp.eq.s32.totalorder %s19, 1
    %p314 = por %p312, %p313
    %p315 = scmp.ne.s32.totalorder %s307, %s310
    %p316 = scmp.eq.s32.totalorder %s19, 0
    %p317 = por %p315, %p316
    %p318 = scmp.ne.s32.totalorder %s307, %s310
    %p319 = scmp.eq.s32.totalorder %s24, 1
    %p320 = por %p318, %p319
    %p321 = scmp.ne.s32.totalorder %s310, %s311
    %p322 = scmp.eq.s32.totalorder %s24, 0
    %p323 = por %p321, %p322
    %p324 = scmp.ne.s32.totalorder %s310, %s311
    %p325 = scmp.eq.s32.totalorder %s25, 1
    %p326 = por %p324, %p325
    %p328 = scmp.ne.s32.totalorder %s311, %s327
    %p329 = scmp.eq.s32.totalorder %s25, 0
    %p330 = por %p328, %p329
    %p331 = scmp.le.s32.totalorder 1, %s19
    %p332 = scmp.lt.s32.totalorder %s19, 3
    %p333 = pnand %p331, %p332
    %p334 = pneg %p333
    // Predicated region
    $region9: #{owlv2_forward.9} parent=5 // pred_check
      _
    $region10: #{owlv2_forward.9} parent=5 // pred_check_branch
      %336 = sbr.rel (%p333) target = $region12
    $region11: #{owlv2_forward.9} parent=5 // pred_region
      %s337 = ssub.s32 %s19, 1
      // Predicated region
      $region13: #{owlv2_forward.9} parent=11 // pred_check
        %p338 = pneg %p66
      $region14: #{owlv2_forward.9} parent=11 // pred_check_branch
        %340 = sbr.rel (%p338) target = $region16
      $region15: #{owlv2_forward.9} parent=11 // pred_region
        _
      $region16: #{owlv2_forward.9} parent=11 // pred_fallthru
        _
      // Predicated region
      $region17: #{owlv2_forward.9} parent=11 // pred_check
        %p341 = pneg %p87
      $region18: #{owlv2_forward.9} parent=11 // pred_check_branch
        %343 = sbr.rel (%p341) target = $region20
      $region19: #{owlv2_forward.9} parent=11 // pred_region
        _
      $region20: #{owlv2_forward.9} parent=11 // pred_fallthru
        _
      // Predicated region
      $region21: #{owlv2_forward.9} parent=11 // pred_check
        %p344 = pneg %p108
      $region22: #{owlv2_forward.9} parent=11 // pred_check_branch
        %346 = sbr.rel (%p344) target = $region24
      $region23: #{owlv2_forward.9} parent=11 // pred_region
        _
      $region24: #{owlv2_forward.9} parent=11 // pred_fallthru
        _
      // Predicated region
      $region25: #{owlv2_forward.9} parent=11 // pred_check
        %p347 = pneg %p129
      $region26: #{owlv2_forward.9} parent=11 // pred_check_branch
        %349 = sbr.rel (%p347) target = $region28
      $region27: #{owlv2_forward.9} parent=11 // pred_region
        _
      $region28: #{owlv2_forward.9} parent=11 // pred_fallthru
        _
      // Predicated region
      $region29: #{owlv2_forward.9} parent=11 // pred_check
        %p350 = pneg %p150
      $region30: #{owlv2_forward.9} parent=11 // pred_check_branch
        %352 = sbr.rel (%p350) target = $region32
      $region31: #{owlv2_forward.9} parent=11 // pred_region
        _
      $region32: #{owlv2_forward.9} parent=11 // pred_fallthru
        _
      // Predicated region
      $region33: #{owlv2_forward.9} parent=11 // pred_check
        %p353 = pneg %p171
      $region34: #{owlv2_forward.9} parent=11 // pred_check_branch
        %355 = sbr.rel (%p353) target = $region36
      $region35: #{owlv2_forward.9} parent=11 // pred_region
        _
      $region36: #{owlv2_forward.9} parent=11 // pred_fallthru
        _
      // Predicated region
      $region37: #{owlv2_forward.9} parent=11 // pred_check
        %p356 = pneg %p192
      $region38: #{owlv2_forward.9} parent=11 // pred_check_branch
        %358 = sbr.rel (%p356) target = $region40
      $region39: #{owlv2_forward.9} parent=11 // pred_region
        _
      $region40: #{owlv2_forward.9} parent=11 // pred_fallthru
        _
      // Predicated region
      $region41: #{owlv2_forward.9} parent=11 // pred_check
        %p359 = pneg %p213
      $region42: #{owlv2_forward.9} parent=11 // pred_check_branch
        %361 = sbr.rel (%p359) target = $region44
      $region43: #{owlv2_forward.9} parent=11 // pred_region
        _
      $region44: #{owlv2_forward.9} parent=11 // pred_fallthru
        _
      // Predicated region
      $region45: #{owlv2_forward.9} parent=11 // pred_check
        %p362 = pneg %p234
      $region46: #{owlv2_forward.9} parent=11 // pred_check_branch
        %364 = sbr.rel (%p362) target = $region48
      $region47: #{owlv2_forward.9} parent=11 // pred_region
        _
      $region48: #{owlv2_forward.9} parent=11 // pred_fallthru
        _
      // Predicated region
      $region49: #{owlv2_forward.9} parent=11 // pred_check
        %p365 = pneg %p255
      $region50: #{owlv2_forward.9} parent=11 // pred_check_branch
        %367 = sbr.rel (%p365) target = $region52
      $region51: #{owlv2_forward.9} parent=11 // pred_region
        _
      $region52: #{owlv2_forward.9} parent=11 // pred_fallthru
        _
      // Predicated region
      $region53: #{owlv2_forward.9} parent=11 // pred_check
        %p368 = pneg %p276
      $region54: #{owlv2_forward.9} parent=11 // pred_check_branch
        %370 = sbr.rel (%p368) target = $region56
      $region55: #{owlv2_forward.9} parent=11 // pred_region
        _
      $region56: #{owlv2_forward.9} parent=11 // pred_fallthru
        _
      // Predicated region
      $region57: #{owlv2_forward.9} parent=11 // pred_check
        %p371 = pneg %p297
      $region58: #{owlv2_forward.9} parent=11 // pred_check_branch
        %373 = sbr.rel (%p371) target = $region60
      $region59: #{owlv2_forward.9} parent=11 // pred_region
        _
      $region60: #{owlv2_forward.9} parent=11 // pred_fallthru
        _
    $region12: #{owlv2_forward.9} parent=5 // pred_fallthru
      _
    %p374 = scmp.lt.s32.totalorder %s19, 2
    // Predicated region
    $region61: #{owlv2_forward.9} parent=5 // pred_check
      %p375 = pneg %p374
    $region62: #{owlv2_forward.9} parent=5 // pred_check_branch
      %377 = sbr.rel (%p375) target = $region64
    $region63: #{owlv2_forward.9} parent=5 // pred_region
      // Predicated region
      $region65: #{owlv2_forward.9} parent=63 // pred_check
        %p378 = pneg %p39
      $region66: #{owlv2_forward.9} parent=63 // pred_check_branch
        %380 = sbr.rel (%p378) target = $region68
      $region67: #{owlv2_forward.9} parent=63 // pred_region
        %p381 = scmp.lt.s32.totalorder %s19, 1
        %s382 = scalar_select %p381, %s19, 1
        %s383 = smul.addr %s382, 3
        %s384 = smul.addr %s383, 8
        %s385 = scalar_lea.vmem %s0, %s384
      $region68: #{owlv2_forward.9} parent=63 // pred_fallthru
        _
    $region64: #{owlv2_forward.9} parent=5 // pred_fallthru
      _
    %p386 = scmp.le.s32.totalorder 1, %s19
    %p387 = scmp.lt.s32.totalorder %s19, 3
    %p388 = pnand %p386, %p387
    %p389 = pneg %p388
    // Predicated region
    $region69: #{owlv2_forward.9} parent=5 // pred_check
      _
    $region70: #{owlv2_forward.9} parent=5 // pred_check_branch
      %391 = sbr.rel (%p388) target = $region72
    $region71: #{owlv2_forward.9} parent=5 // pred_region
      %s392 = ssub.s32 %s19, 1
      %p393 = scmp.lt.s32.totalorder %s24, 1
      %s394 = scalar_select %p393, %s24, 1
      %s395 = smul.addr %s394, 3
      %s396 = smul.addr %s395, 8
      %s397 = scalar_lea.vmem %s0, %s396
      %p398 = pneg %p45
      %p399 = pneg %p42
      %p400 = pneg %p66
      %p401 = pneg %p63
      %p402 = pneg %p87
      %p403 = pneg %p84
      %p404 = pneg %p108
      %p405 = pneg %p105
      %p406 = pneg %p129
      %p407 = pneg %p126
      %p408 = pneg %p150
      %p409 = pneg %p147
      %p410 = pneg %p171
      %p411 = pneg %p168
      %p412 = pneg %p192
      %p413 = pneg %p189
      %p414 = pneg %p213
      %p415 = pneg %p210
      %p416 = pneg %p234
      %p417 = pneg %p231
      %p418 = pneg %p255
      %p419 = pneg %p252
      %p420 = pneg %p276
      %p421 = pneg %p273
      %p422 = pneg %p297
      %p423 = pneg %p294
      %p424 = pneg %p323
      %p425 = pneg %p320
      %p426 = scmp.lt.s32.totalorder %s24, 1
      %s427 = scalar_select %p426, %s24, 1
      %s428 = smul.addr %s427, 3
      %s429 = smul.addr %s428, 8
      %s430 = scalar_lea.vmem %s13, %s429
      %p431 = scmp.lt.s32.totalorder %s24, 1
      %s432 = scalar_select %p431, %s24, 1
      %s433 = smul.addr %s432, 3
      %s434 = smul.addr %s433, 8
      %s435 = scalar_lea.vmem %s0, %s434
      %p436 = scmp.lt.s32.totalorder %s24, 1
      %s437 = scalar_select %p436, %s24, 1
      %s438 = smul.addr %s437, 3
      %s439 = smul.addr %s438, 8
      %s440 = scalar_lea.vmem %s13, %s439
      %v442 = vld [vmem:[%s435] sm:$0xff]
      %v443 = vld [vmem:[%s435 + $0x8] sm:$0xff]
      %v444 = vld [vmem:[%s435 + $0x10] sm:$0x1]
      %v445 = vld [vmem:[%s1] sm:$0x1]
      %v446 = vld [vmem:[%s2] sm:$0x1]
      %vm447 = vcmask 261120
      %v448 = vsel %vm447, %v442, 0.0
      %449 = vadd.xlane.f32.xlu0 %v448
      %v450 = vpop.xlane.xlu0 %449
      %v451 = vsel %vm447, %v443, 0.0
      %452 = vadd.xlane.f32.xlu0 %v451
      %v453 = vpop.xlane.xlu0 %452
      %vm454 = vcmask 253952
      %v455 = vsel %vm454, %v444, 0.0
      %456 = vadd.xlane.f32.xlu0 %v455
      %v457 = vpop.xlane.xlu0 %456
      %v458 = vrcp.pop 32.0
      %v459 = vmul.f32 %v450, %v458
      %v460 = vmul.f32 %v453, %v458
      %v461 = vmul.f32 %v457, %v458
      %v462 = vsub.f32 %v442, %v459
      %v463 = vsub.f32 %v443, %v460
      %v464 = vsub.f32 %v444, %v461
      %v465 = vmul.f32 %v462, %v462
      %v466 = vmul.f32 %v463, %v463
      %v467 = vmul.f32 %v464, %v464
      %v468 = vsel %vm447, %v465, 0.0
      %469 = vadd.xlane.f32.xlu0 %v468
      %v470 = vpop.xlane.xlu0 %469
      %v471 = vsel %vm447, %v466, 0.0
      %472 = vadd.xlane.f32.xlu0 %v471
      %v473 = vpop.xlane.xlu0 %472
      %v474 = vsel %vm454, %v467, 0.0
      %475 = vadd.xlane.f32.xlu0 %v474
      %v476 = vpop.xlane.xlu0 %475
      %v477 = vmul.f32 %v470, %v458
      %v478 = vmul.f32 %v473, %v458
      %v479 = vmul.f32 %v476, %v458
      %v480 = vadd.f32 %v477, 1e-05
      %v481 = vadd.f32 %v478, 1e-05
      %v482 = vadd.f32 %v479, 1e-05
      %v483 = vrsqrt.pop %v480
      %v484 = vrsqrt.pop %v481
      %v485 = vrsqrt.pop %v482
      %v486 = vmul.f32 %v462, %v483
      %v487 = vmul.f32 %v463, %v484
      %v488 = vmul.f32 %v464, %v485
      %v490 = vlaneseq
      %v491 = vshrl.u32 %v490, 7
      %v492 = vsub.s32 0, %v491
      %v493 = vrot.slane %v445, %v492
      %v495 = vmul.f32 %v486, %v493
      %v496 = vmul.f32 %v487, %v493
      %v497 = vmul.f32 %v488, %v493
      %v499 = vlaneseq
      %v500 = vshrl.u32 %v499, 7
      %v501 = vsub.s32 0, %v500
      %v502 = vrot.slane %v446, %v501
      %v504 = vadd.f32 %v495, %v502
      %v505 = vadd.f32 %v496, %v502
      %v506 = vadd.f32 %v497, %v502
      %v507 = vpack.c.bf16 %v505, %v504
      %v508 = vpack.c.bf16 %v506, %v506
      %v509 = vld [vmem:[%s3] sm:$0xf]
      %v510 = vld [vmem:[%s3 + $0x4] sm:$0xf]
      %v511 = vld [vmem:[%s3 + $0x8] sm:$0xf]
      %v512 = vld [vmem:[%s3 + $0xc] sm:$0xf]
      %v513 = vld [vmem:[%s4] sm:$0x1]
      %v515 = vlaneseq
      %v516 = vshrl.u32 %v515, 7
      %v517 = vsub.s32 0, %v516
      %v518 = vrot.slane %v513, %v517
      %v524 = vunpack.c.l.b16 %v509
      %v525 = vunpack.c.l.b16 %v510
      %v526 = vunpack.c.l.b16 %v511
      %v527 = vunpack.c.l.b16 %v512
      %v528 = vpack.c.b16 %v525, %v524
      %v529 = vpack.c.b16 %v527, %v526
      %v533 = vsel %vm447, %v507, 0
      %v536 = vsel %vm447, %v508, 0
      %538 = vmatprep.subr.bf16.mxu0 0
      %539 = vmatpush1.bf16.msra.mxu0 %v528
      %540 = vmatprep.subr.bf16.mxu0 0
      %541 = vmatpush1.bf16.msra.mxu0 %v529
      %542 = vmatprep.subr.bf16.mxu0 0
      %543 = vmatpush1.bf16.msra.mxu0 0
      %544 = vmatprep.subr.bf16.mxu0 0
      %545 = vmatpush1.bf16.msra.mxu0 0
      %546 = vmatprep.subr.bf16.mxu0 0
      %547 = vmatpush1.bf16.msra.mxu0 0
      %548 = vmatprep.subr.bf16.mxu0 0
      %549 = vmatpush1.bf16.msra.mxu0 0
      %550 = vmatprep.subr.bf16.mxu0 0
      %551 = vmatpush1.bf16.msra.mxu0 0
      %552 = vmatprep.subr.bf16.mxu0 0
      %553 = vmatpush1.bf16.msra.mxu0 0
      %554 = vmatprep.subr.bf16.mxu0 0
      %555 = vmatpush1.bf16.msra.mxu0 0
      %556 = vmatprep.subr.bf16.mxu0 0
      %557 = vmatpush1.bf16.msra.mxu0 0
      %558 = vmatprep.subr.bf16.mxu0 0
      %559 = vmatpush1.bf16.msra.mxu0 0
      %560 = vmatprep.subr.bf16.mxu0 0
      %561 = vmatpush1.bf16.msra.mxu0 0
      %562 = vmatprep.subr.bf16.mxu0 0
      %563 = vmatpush1.bf16.msra.mxu0 0
      %564 = vmatprep.subr.bf16.mxu0 0
      %565 = vmatpush1.bf16.msra.mxu0 0
      %566 = vmatprep.subr.bf16.mxu0 0
      %567 = vmatpush1.bf16.msra.mxu0 0
      %568 = vmatprep.subr.bf16.mxu0 0
      %569 = vmatpush1.bf16.msra.mxu0 0
      %570 = vmatprep.mubr.bf16.mxu0 0
      %571 = vmatmul.mubr.bf16.gmra.mrb[0].mxu0 %v533
      %v572 = vpop.f32.mrb[0].mxu0
      %v573 = vadd.f32 %v518, %v572
      %v574 = vpop.f32.mrb[0].mxu0
      %v575 = vpop.f32.mrb[0].mxu0
      %v576 = vadd.f32 %v518, %v575
      %v577 = vpop.f32.mrb[0].mxu0
      %578 = vmatprep.mubr.bf16.mxu0 0
      %579 = vmatmul.mubr.bf16.gmra.mrb[0].mxu0 %v536
      %v580 = vpop.f32.mrb[0].mxu0
      %v581 = vadd.f32 %v518, %v580
      %v582 = vpop.f32.mrb[0].mxu0
      %v583 = vpop.f32.mrb[0].mxu0
      %v584 = vpop.f32.mrb[0].mxu0
      %585 = vdwg.mxu0
      %v586 = vld [vmem:[%s5] sm:$0xf]
      %v587 = vld [vmem:[%s5 + $0x4] sm:$0xf]
      %v588 = vld [vmem:[%s5 + $0x8] sm:$0xf]
      %v589 = vld [vmem:[%s5 + $0xc] sm:$0xf]
      %v590 = vpack.c.bf16 %v576, %v573
      %v591 = vpack.c.bf16 %v581, %v581
      %594 = vrot.lane.b32.xlu0 %v590, 96
      %v595 = vpop.permute.xlu0 %594
      %596 = vrot.lane.b32.xlu0 %v591, 96
      %v597 = vpop.permute.xlu0 %596
      %vm598 = vcmask 64512
      %v600 = vsel %vm598, %v590, 0
      %v603 = vsel %vm598, %v591, 0
      %v606 = vsel %vm598, %v595, 0
      %v609 = vsel %vm598, %v597, 0
      %611 = vmatprep.subr.bf16.mxu0 0
      %612 = vmatpush1.bf16.xpose.msra.mxu0 %v606
      %613 = vmatprep.subr.bf16.mxu0 0
      %614 = vmatpush1.bf16.xpose.msra.mxu0 %v609
      %615 = vmatprep.subr.bf16.mxu0 0
      %616 = vmatpush1.bf16.xpose.msra.mxu0 0
      %617 = vmatprep.subr.bf16.mxu0 0
      %618 = vmatpush1.bf16.xpose.msra.mxu0 0
      %619 = vmatprep.subr.bf16.mxu0 0
      %620 = vmatpush1.bf16.xpose.msra.mxu0 0
      %621 = vmatprep.subr.bf16.mxu0 0
      %622 = vmatpush1.bf16.xpose.msra.mxu0 0
      %623 = vmatprep.subr.bf16.mxu0 0
      %624 = vmatpush1.bf16.xpose.msra.mxu0 0
      %625 = vmatprep.subr.bf16.mxu0 0
      %626 = vmatpush1.bf16.xpose.msra.mxu0 0
      %627 = vmatprep.subr.bf16.mxu0 0
      %628 = vmatpush1.bf16.xpose.msra.mxu0 0
      %629 = vmatprep.subr.bf16.mxu0 0
      %630 = vmatpush1.bf16.xpose.msra.mxu0 0
      %631 = vmatprep.subr.bf16.mxu0 0
      %632 = vmatpush1.bf16.xpose.msra.mxu0 0
      %633 = vmatprep.subr.bf16.mxu0 0
      %634 = vmatpush1.bf16.xpose.msra.mxu0 0
      %635 = vmatprep.subr.bf16.mxu0 0
      %636 = vmatpush1.bf16.xpose.msra.mxu0 0
      %637 = vmatprep.subr.bf16.mxu0 0
      %638 = vmatpush1.bf16.xpose.msra.mxu0 0
      %639 = vmatprep.subr.bf16.mxu0 0
      %640 = vmatpush1.bf16.xpose.msra.mxu0 0
      %641 = vmatprep.subr.bf16.mxu0 0
      %642 = vmatpush1.bf16.xpose.msra.mxu0 0
      %643 = vmatprep.mubr.bf16.mxu0 0
      %644 = vmatmul.mubr.bf16.gmra.mrb[0].mxu0 %v600
      %v645 = vpop.f32.mrb[0].mxu0
      %v646 = vadd.f32 0.0, %v645
      %v647 = vpop.f32.mrb[0].mxu0
      %v648 = vpop.f32.mrb[0].mxu0
      %v649 = vadd.f32 0.0, %v648
      %v650 = vpop.f32.mrb[0].mxu0
      %651 = vmatprep.mubr.bf16.mxu0 0
      %652 = vmatmul.mubr.bf16.gmra.mrb[0].mxu0 %v603
      %v653 = vpop.f32.mrb[0].mxu0
      %v654 = vadd.f32 0.0, %v653
      %v655 = vpop.f32.mrb[0].mxu0
      %v656 = vpop.f32.mrb[0].mxu0
      %v657 = vpop.f32.mrb[0].mxu0
      %658 = vdwg.mxu0
      %vm659 = vcmask 138240
      %v660 = vsel %vm659, %v646, -inf
      %661 = vmax.xlane.f32.xlu0 %v660
      %v662 = vpop.xlane.xlu0 %661
      %v663 = vsel %vm659, %v649, -inf
      %664 = vmax.xlane.f32.xlu0 %v663
      %v665 = vpop.xlane.xlu0 %664
      %vm666 = vcmask 131072
      %v667 = vsel %vm666, %v654, -inf
      %668 = vmax.xlane.f32.xlu0 %v667
      %v669 = vpop.xlane.xlu0 %668
      %v670 = vsub.f32 %v646, %v662
      %v671 = vsub.f32 %v649, %v665
      %v672 = vsub.f32 %v654, %v669
      %v673 = vmul.f32 %v670, 1.442695
      %v674 = vpow.pop %v673
      %v675 = vmul.f32 %v671, 1.442695
      %v676 = vpow.pop %v675
      %v677 = vmul.f32 %v672, 1.442695
      %v678 = vpow.pop %v677
      %v679 = vsel %vm659, %v674, 0.0
      %680 = vadd.xlane.f32.xlu0 %v679
      %v681 = vpop.xlane.xlu0 %680
      %v682 = vsel %vm659, %v676, 0.0
      %683 = vadd.xlane.f32.xlu0 %v682
      %v684 = vpop.xlane.xlu0 %683
      %v685 = vsel %vm666, %v678, 0.0
      %686 = vadd.xlane.f32.xlu0 %v685
      %v687 = vpop.xlane.xlu0 %686
      %v688 = vrcp.pop %v681
      %v689 = vrcp.pop %v684
      %v690 = vrcp.pop %v687
      %v691 = vmul.f32 %v674, %v688
      %v692 = vmul.f32 %v676, %v689
      %v693 = vmul.f32 %v678, %v690
      %v694 = vpack.c.bf16 %v692, %v691
      %v695 = vpack.c.bf16 %v693, %v693
      %696 = vrot.lane.b32.xlu0 %v590, 64
      %v697 = vpop.permute.xlu0 %696
      %698 = vrot.lane.b32.xlu0 %v591, 64
      %v699 = vpop.permute.xlu0 %698
      %v702 = vsel %vm659, %v694, 0
      %v705 = vsel %vm659, %v695, 0
      %vm707 = vcmask 1040384
      %v708 = vsel 0, 4294967295, 65535
      %v709 = vsel %vm707, %v708, 0
      %v711 = vand.u32 %v699, %v709
      %713 = vmatprep.subr.bf16.mxu0 0
      %714 = vmatpush1.bf16.msra.mxu0 %v697
      %715 = vmatprep.subr.bf16.mxu0 0
      %716 = vmatpush1.bf16.msra.mxu0 %v711
      %717 = vmatprep.subr.bf16.mxu0 0
      %718 = vmatpush1.bf16.msra.mxu0 0
      %719 = vmatprep.subr.bf16.mxu0 0
      %720 = vmatpush1.bf16.msra.mxu0 0
      %721 = vmatprep.subr.bf16.mxu0 0
      %722 = vmatpush1.bf16.msra.mxu0 0
      %723 = vmatprep.subr.bf16.mxu0 0
      %724 = vmatpush1.bf16.msra.mxu0 0
      %725 = vmatprep.subr.bf16.mxu0 0
      %726 = vmatpush1.bf16.msra.mxu0 0
      %727 = vmatprep.subr.bf16.mxu0 0
      %728 = vmatpush1.bf16.msra.mxu0 0
      %729 = vmatprep.subr.bf16.mxu0 0
      %730 = vmatpush1.bf16.msra.mxu0 0
      %731 = vmatprep.subr.bf16.mxu0 0
      %732 = vmatpush1.bf16.msra.mxu0 0
      %733 = vmatprep.subr.bf16.mxu0 0
      %734 = vmatpush1.bf16.msra.mxu0 0
      %735 = vmatprep.subr.bf16.mxu0 0
      %736 = vmatpush1.bf16.msra.mxu0 0
      %737 = vmatprep.subr.bf16.mxu0 0
      %738 = vmatpush1.bf16.msra.mxu0 0
      %739 = vmatprep.subr.bf16.mxu0 0
      %740 = vmatpush1.bf16.msra.mxu0 0
      %741 = vmatprep.subr.bf16.mxu0 0
      %742 = vmatpush1.bf16.msra.mxu0 0
      %743 = vmatprep.subr.bf16.mxu0 0
      %744 = vmatpush1.bf16.msra.mxu0 0
      %745 = vmatprep.mubr.bf16.mxu0 0
      %746 = vmatmul.mubr.bf16.gmra.mrb[0].mxu0 %v702
      %v747 = vpop.f32.mrb[0].mxu0
      %v748 = vadd.f32 0.0, %v747
      %v749 = vpop.f32.mrb[0].mxu0
      %v750 = vpop.f32.mrb[0].mxu0
      %v751 = vadd.f32 0.0, %v750
      %v752 = vpop.f32.mrb[0].mxu0
      %753 = vmatprep.mubr.bf16.mxu0 0
      %754 = vmatmul.mubr.bf16.gmra.mrb[0].mxu0 %v705
      %v755 = vpop.f32.mrb[0].mxu0
      %v756 = vadd.f32 0.0, %v755
      %v757 = vpop.f32.mrb[0].mxu0
      %v758 = vpop.f32.mrb[0].mxu0
      %v759 = vpop.f32.mrb[0].mxu0
      %760 = vdwg.mxu0
      %v761 = vpack.c.bf16 %v751, %v748
      %v762 = vpack.c.bf16 %v756, %v756
      %763 = vrot.lane.b32.xlu0 %v590, 120
      %v764 = vpop.permute.xlu0 %763
      %765 = vrot.lane.b32.xlu0 %v591, 120
      %v766 = vpop.permute.xlu0 %765
      %767 = vrot.lane.b32.xlu0 %v590, 88
      %v768 = vpop.permute.xlu0 %767
      %769 = vrot.lane.b32.xlu0 %v591, 88
      %v770 = vpop.permute.xlu0 %769
      %v772 = vsel %vm598, %v764, 0
      %v775 = vsel %vm598, %v766, 0
      %v778 = vsel %vm598, %v768, 0
      %v781 = vsel %vm598, %v770, 0
      %783 = vmatprep.subr.bf16.mxu0 0
      %784 = vmatpush1.bf16.xpose.msra.mxu0 %v778
      %785 = vmatprep.subr.bf16.mxu0 0
      %786 = vmatpush1.bf16.xpose.msra.mxu0 %v781
      %787 = vmatprep.subr.bf16.mxu0 0
      %788 = vmatpush1.bf16.xpose.msra.mxu0 0
      %789 = vmatprep.subr.bf16.mxu0 0
      %790 = vmatpush1.bf16.xpose.msra.mxu0 0
      %791 = vmatprep.subr.bf16.mxu0 0
      %792 = vmatpush1.bf16.xpose.msra.mxu0 0
      %793 = vmatprep.subr.bf16.mxu0 0
      %794 = vmatpush1.bf16.xpose.msra.mxu0 0
      %795 = vmatprep.subr.bf16.mxu0 0
      %796 = vmatpush1.bf16.xpose.msra.mxu0 0
      %797 = vmatprep.subr.bf16.mxu0 0
      %798 = vmatpush1.bf16.xpose.msra.mxu0 0
      %799 = vmatprep.subr.bf16.mxu0 0
      %800 = vmatpush1.bf16.xpose.msra.mxu0 0
      %801 = vmatprep.subr.bf16.mxu0 0
      %802 = vmatpush1.bf16.xpose.msra.mxu0 0
      %803 = vmatprep.subr.bf16.mxu0 0
      %804 = vmatpush1.bf16.xpose.msra.mxu0 0
      %805 = vmatprep.subr.bf16.mxu0 0
      %806 = vmatpush1.bf16.xpose.msra.mxu0 0
      %807 = vmatprep.subr.bf16.mxu0 0
      %808 = vmatpush1.bf16.xpose.msra.mxu0 0
      %809 = vmatprep.subr.bf16.mxu0 0
      %810 = vmatpush1.bf16.xpose.msra.mxu0 0
      %811 = vmatprep.subr.bf16.mxu0 0
      %812 = vmatpush1.bf16.xpose.msra.mxu0 0
      %813 = vmatprep.subr.bf16.mxu0 0
      %814 = vmatpush1.bf16.xpose.msra.mxu0 0
      %815 = vmatprep.mubr.bf16.mxu0 0
      %816 = vmatmul.mubr.bf16.gmra.mrb[0].mxu0 %v772
      %v817 = vpop.f32.mrb[0].mxu0
      %v818 = vadd.f32 0.0, %v817
      %v819 = vpop.f32.mrb[0].mxu0
      %v820 = vpop.f32.mrb[0].mxu0
      %v821 = vadd.f32 0.0, %v820
      %v822 = vpop.f32.mrb[0].mxu0
      %823 = vmatprep.mubr.bf16.mxu0 0
      %824 = vmatmul.mubr.bf16.gmra.mrb[0].mxu0 %v775
      %v825 = vpop.f32.mrb[0].mxu0
      %v826 = vadd.f32 0.0, %v825
      %v827 = vpop.f32.mrb[0].mxu0
      %v828 = vpop.f32.mrb[0].mxu0
      %v829 = vpop.f32.mrb[0].mxu0
      %830 = vdwg.mxu0
      %v831 = vsel %vm659, %v818, -inf
      %832 = vmax.xlane.f32.xlu0 %v831
      %v833 = vpop.xlane.xlu0 %832
      %v834 = vsel %vm659, %v821, -inf
      %835 = vmax.xlane.f32.xlu0 %v834
      %v836 = vpop.xlane.xlu0 %835
      %v837 = vsel %vm666, %v826, -inf
      %838 = vmax.xlane.f32.xlu0 %v837
      %v839 = vpop.xlane.xlu0 %838
      %v840 = vsub.f32 %v818, %v833
      %v841 = vsub.f32 %v821, %v836
      %v842 = vsub.f32 %v826, %v839
      %v843 = vmul.f32 %v840, 1.442695
      %v844 = vpow.pop %v843
      %v845 = vmul.f32 %v841, 1.442695
      %v846 = vpow.pop %v845
      %v847 = vmul.f32 %v842, 1.442695
      %v848 = vpow.pop %v847
      %v849 = vsel %vm659, %v844, 0.0
      %850 = vadd.xlane.f32.xlu0 %v849
      %v851 = vpop.xlane.xlu0 %850
      %v852 = vsel %vm659, %v846, 0.0
      %853 = vadd.xlane.f32.xlu0 %v852
      %v854 = vpop.xlane.xlu0 %853
      %v855 = vsel %vm666, %v848, 0.0
      %856 = vadd.xlane.f32.xlu0 %v855
      %v857 = vpop.xlane.xlu0 %856
      %v858 = vrcp.pop %v851
      %v859 = vrcp.pop %v854
      %v860 = vrcp.pop %v857
      %v861 = vmul.f32 %v844, %v858
      %v862 = vmul.f32 %v846, %v859
      %v863 = vmul.f32 %v848, %v860
      %v864 = vpack.c.bf16 %v862, %v861
      %v865 = vpack.c.bf16 %v863, %v863
      %866 = vrot.lane.b32.xlu0 %v590, 56
      %v867 = vpop.permute.xlu0 %866
      %868 = vrot.lane.b32.xlu0 %v591, 56
      %v869 = vpop.permute.xlu0 %868
      %v872 = vsel %vm659, %v864, 0
      %v875 = vsel %vm659, %v865, 0
      %v878 = vand.u32 %v869, %v709
      %880 = vmatprep.subr.bf16.mxu0 0
      %881 = vmatpush1.bf16.msra.mxu0 %v867
      %882 = vmatprep.subr.bf16.mxu0 0
      %883 = vmatpush1.bf16.msra.mxu0 %v878
      %884 = vmatprep.subr.bf16.mxu0 0
      %885 = vmatpush1.bf16.msra.mxu0 0
      %886 = vmatprep.subr.bf16.mxu0 0
      %887 = vmatpush1.bf16.msra.mxu0 0
      %888 = vmatprep.subr.bf16.mxu0 0
      %889 = vmatpush1.bf16.msra.mxu0 0
      %890 = vmatprep.subr.bf16.mxu0 0
      %891 = vmatpush1.bf16.msra.mxu0 0
      %892 = vmatprep.subr.bf16.mxu0 0
      %893 = vmatpush1.bf16.msra.mxu0 0
      %894 = vmatprep.subr.bf16.mxu0 0
      %895 = vmatpush1.bf16.msra.mxu0 0
      %896 = vmatprep.subr.bf16.mxu0 0
      %897 = vmatpush1.bf16.msra.mxu0 0
      %898 = vmatprep.subr.bf16.mxu0 0
      %899 = vmatpush1.bf16.msra.mxu0 0
      %900 = vmatprep.subr.bf16.mxu0 0
      %901 = vmatpush1.bf16.msra.mxu0 0
      %902 = vmatprep.subr.bf16.mxu0 0
      %903 = vmatpush1.bf16.msra.mxu0 0
      %904 = vmatprep.subr.bf16.mxu0 0
      %905 = vmatpush1.bf16.msra.mxu0 0
      %906 = vmatprep.subr.bf16.mxu0 0
      %907 = vmatpush1.bf16.msra.mxu0 0
      %908 = vmatprep.subr.bf16.mxu0 0
      %909 = vmatpush1.bf16.msra.mxu0 0
      %910 = vmatprep.subr.bf16.mxu0 0
      %911 = vmatpush1.bf16.msra.mxu0 0
      %912 = vmatprep.mubr.bf16.mxu0 0
      %913 = vmatmul.mubr.bf16.gmra.mrb[0].mxu0 %v872
      %v914 = vpop.f32.mrb[0].mxu0
      %v915 = vadd.f32 0.0, %v914
      %v916 = vpop.f32.mrb[0].mxu0
      %v917 = vpop.f32.mrb[0].mxu0
      %v918 = vadd.f32 0.0, %v917
      %v919 = vpop.f32.mrb[0].mxu0
      %920 = vmatprep.mubr.bf16.mxu0 0
      %921 = vmatmul.mubr.bf16.gmra.mrb[0].mxu0 %v875
      %v922 = vpop.f32.mrb[0].mxu0
      %v923 = vadd.f32 0.0, %v922
      %v924 = vpop.f32.mrb[0].mxu0
      %v925 = vpop.f32.mrb[0].mxu0
      %v926 = vpop.f32.mrb[0].mxu0
      %927 = vdwg.mxu0
      %v928 = vpack.c.bf16 %v918, %v915
      %v929 = vpack.c.bf16 %v923, %v923
      %v931 = vsel %vm598, %v928, 0
      %v934 = vsel %vm598, %v929, 0
      %vm936 = vcmask 1043456
      %v938 = vsel %vm936, %v587, 0
      %940 = vmatprep.subr.bf16.mxu0 0
      %941 = vmatpush1.bf16.msra.mxu0 %v938
      %942 = vmatprep.subr.bf16.mxu0 0
      %943 = vmatpush1.bf16.msra.mxu0 0
      %944 = vmatprep.subr.bf16.mxu0 0
      %945 = vmatpush1.bf16.msra.mxu0 0
      %946 = vmatprep.subr.bf16.mxu0 0
      %947 = vmatpush1.bf16.msra.mxu0 0
      %948 = vmatprep.subr.bf16.mxu0 0
      %949 = vmatpush1.bf16.msra.mxu0 0
      %950 = vmatprep.subr.bf16.mxu0 0
      %951 = vmatpush1.bf16.msra.mxu0 0
      %952 = vmatprep.subr.bf16.mxu0 0
      %953 = vmatpush1.bf16.msra.mxu0 0
      %954 = vmatprep.subr.bf16.mxu0 0
      %955 = vmatpush1.bf16.msra.mxu0 0
      %956 = vmatprep.subr.bf16.mxu0 0
      %957 = vmatpush1.bf16.msra.mxu0 0
      %958 = vmatprep.subr.bf16.mxu0 0
      %959 = vmatpush1.bf16.msra.mxu0 0
      %960 = vmatprep.subr.bf16.mxu0 0
      %961 = vmatpush1.bf16.msra.mxu0 0
      %962 = vmatprep.subr.bf16.mxu0 0
      %963 = vmatpush1.bf16.msra.mxu0 0
      %964 = vmatprep.subr.bf16.mxu0 0
      %965 = vmatpush1.bf16.msra.mxu0 0
      %966 = vmatprep.subr.bf16.mxu0 0
      %967 = vmatpush1.bf16.msra.mxu0 0
      %968 = vmatprep.subr.bf16.mxu0 0
      %969 = vmatpush1.bf16.msra.mxu0 0
      %970 = vmatprep.subr.bf16.mxu0 0
      %971 = vmatpush1.bf16.msra.mxu0 0
      %972 = vmatprep.mubr.bf16.mxu0 0
      %973 = vmatmul.mubr.bf16.gmra.mrb[0].mxu0 %v931
      %v974 = vpop.f32.mrb[0].mxu0
      %v975 = vadd.f32 0.0, %v974
      %v976 = vpop.f32.mrb[0].mxu0
      %v977 = vpop.f32.mrb[0].mxu0
      %v978 = vadd.f32 0.0, %v977
      %v979 = vpop.f32.mrb[0].mxu0
      %980 = vmatprep.mubr.bf16.mxu0 0
      %981 = vmatmul.mubr.bf16.gmra.mrb[0].mxu0 %v934
      %v982 = vpop.f32.mrb[0].mxu0
      %v983 = vadd.f32 0.0, %v982
      %v984 = vpop.f32.mrb[0].mxu0
      %v985 = vpop.f32.mrb[0].mxu0
      %v986 = vpop.f32.mrb[0].mxu0
      %987 = vdwg.mxu0
      %v989 = vsel %vm598, %v761, 0
      %v992 = vsel %vm598, %v762, 0
      %v995 = vsel %vm936, %v586, 0
      %997 = vmatprep.subr.bf16.mxu0 0
      %998 = vmatpush1.bf16.msra.mxu0 %v995
      %999 = vmatprep.subr.bf16.mxu0 0
      %1000 = vmatpush1.bf16.msra.mxu0 0
      %1001 = vmatprep.subr.bf16.mxu0 0
      %1002 = vmatpush1.bf16.msra.mxu0 0
      %1003 = vmatprep.subr.bf16.mxu0 0
      %1004 = vmatpush1.bf16.msra.mxu0 0
      %1005 = vmatprep.subr.bf16.mxu0 0
      %1006 = vmatpush1.bf16.msra.mxu0 0
      %1007 = vmatprep.subr.bf16.mxu0 0
      %1008 = vmatpush1.bf16.msra.mxu0 0
      %1009 = vmatprep.subr.bf16.mxu0 0
      %1010 = vmatpush1.bf16.msra.mxu0 0
      %1011 = vmatprep.subr.bf16.mxu0 0
      %1012 = vmatpush1.bf16.msra.mxu0 0
      %1013 = vmatprep.subr.bf16.mxu0 0
      %1014 = vmatpush1.bf16.msra.mxu0 0
      %1015 = vmatprep.subr.bf16.mxu0 0
      %1016 = vmatpush1.bf16.msra.mxu0 0
      %1017 = vmatprep.subr.bf16.mxu0 0
      %1018 = vmatpush1.bf16.msra.mxu0 0
      %1019 = vmatprep.subr.bf16.mxu0 0
      %1020 = vmatpush1.bf16.msra.mxu0 0
      %1021 = vmatprep.subr.bf16.mxu0 0
      %1022 = vmatpush1.bf16.msra.mxu0 0
      %1023 = vmatprep.subr.bf16.mxu0 0
      %1024 = vmatpush1.bf16.msra.mxu0 0
      %1025 = vmatprep.subr.bf16.mxu0 0
      %1026 = vmatpush1.bf16.msra.mxu0 0
      %1027 = vmatprep.subr.bf16.mxu0 0
      %1028 = vmatpush1.bf16.msra.mxu0 0
      %1029 = vmatprep.mubr.bf16.mxu0 0
      %1030 = vmatmul.mubr.bf16.gmra.mrb[0].mxu0 %v989
      %v1031 = vpop.f32.mrb[0].mxu0
      %v1032 = vadd.f32 %v975, %v1031
      %v1033 = vpop.f32.mrb[0].mxu0
      %v1034 = vpop.f32.mrb[0].mxu0
      %v1035 = vadd.f32 %v978, %v1034
      %v1036 = vpop.f32.mrb[0].mxu0
      %1037 = vmatprep.mubr.bf16.mxu0 0
      %1038 = vmatmul.mubr.bf16.gmra.mrb[0].mxu0 %v992
      %v1039 = vpop.f32.mrb[0].mxu0
      %v1040 = vadd.f32 %v983, %v1039
      %v1041 = vpop.f32.mrb[0].mxu0
      %v1042 = vpop.f32.mrb[0].mxu0
      %v1043 = vpop.f32.mrb[0].mxu0
      %1044 = vdwg.mxu0
      %1045 = vrot.lane.b32.xlu0 %v590, 112
      %v1046 = vpop.permute.xlu0 %1045
      %1047 = vrot.lane.b32.xlu0 %v591, 112
      %v1048 = vpop.permute.xlu0 %1047
      %1049 = vrot.lane.b32.xlu0 %v590, 80
      %v1050 = vpop.permute.xlu0 %1049
      %1051 = vrot.lane.b32.xlu0 %v591, 80
      %v1052 = vpop.permute.xlu0 %1051
      %v1054 = vsel %vm598, %v1046, 0
      %v1057 = vsel %vm598, %v1048, 0
      %v1060 = vsel %vm598, %v1050, 0
      %v1063 = vsel %vm598, %v1052, 0
      %1065 = vmatprep.subr.bf16.mxu0 0
      %1066 = vmatpush1.bf16.xpose.msra.mxu0 %v1060
      %1067 = vmatprep.subr.bf16.mxu0 0
      %1068 = vmatpush1.bf16.xpose.msra.mxu0 %v1063
      %1069 = vmatprep.subr.bf16.mxu0 0
      %1070 = vmatpush1.bf16.xpose.msra.mxu0 0
      %1071 = vmatprep.subr.bf16.mxu0 0
      %1072 = vmatpush1.bf16.xpose.msra.mxu0 0
      %1073 = vmatprep.subr.bf16.mxu0 0
      %1074 = vmatpush1.bf16.xpose.msra.mxu0 0
      %1075 = vmatprep.subr.bf16.mxu0 0
      %1076 = vmatpush1.bf16.xpose.msra.mxu0 0
      %1077 = vmatprep.subr.bf16.mxu0 0
      %1078 = vmatpush1.bf16.xpose.msra.mxu0 0
      %1079 = vmatprep.subr.bf16.mxu0 0
      %1080 = vmatpush1.bf16.xpose.msra.mxu0 0
      %1081 = vmatprep.subr.bf16.mxu0 0
      %1082 = vmatpush1.bf16.xpose.msra.mxu0 0
      %1083 = vmatprep.subr.bf16.mxu0 0
      %1084 = vmatpush1.bf16.xpose.msra.mxu0 0
      %1085 = vmatprep.subr.bf16.mxu0 0
      %1086 = vmatpush1.bf16.xpose.msra.mxu0 0
      %1087 = vmatprep.subr.bf16.mxu0 0
      %1088 = vmatpush1.bf16.xpose.msra.mxu0 0
      %1089 = vmatprep.subr.bf16.mxu0 0
      %1090 = vmatpush1.bf16.xpose.msra.mxu0 0
      %1091 = vmatprep.subr.bf16.mxu0 0
      %1092 = vmatpush1.bf16.xpose.msra.mxu0 0
      %1093 = vmatprep.subr.bf16.mxu0 0
      %1094 = vmatpush1.bf16.xpose.msra.mxu0 0
      %1095 = vmatprep.subr.bf16.mxu0 0
      %1096 = vmatpush1.bf16.xpose.msra.mxu0 0
      %1097 = vmatprep.mubr.bf16.mxu0 0
      %1098 = vmatmul.mubr.bf16.gmra.mrb[0].mxu0 %v1054
      %v1099 = vpop.f32.mrb[0].mxu0
      %v1100 = vadd.f32 0.0, %v1099
      %v1101 = vpop.f32.mrb[0].mxu0
      %v1102 = vpop.f32.mrb[0].mxu0
      %v1103 = vadd.f32 0.0, %v1102
      %v1104 = vpop.f32.mrb[0].mxu0
      %1105 = vmatprep.mubr.bf16.mxu0 0
      %1106 = vmatmul.mubr.bf16.gmra.mrb[0].mxu0 %v1057
      %v1107 = vpop.f32.mrb[0].mxu0
      %v1108 = vadd.f32 0.0, %v1107
      %v1109 = vpop.f32.mrb[0].mxu0
      %v1110 = vpop.f32.mrb[0].mxu0
      %v1111 = vpop.f32.mrb[0].mxu0
      %1112 = vdwg.mxu0
      %v1113 = vsel %vm659, %v1100, -inf
      %1114 = vmax.xlane.f32.xlu0 %v1113
      %v1115 = vpop.xlane.xlu0 %1114
      %v1116 = vsel %vm659, %v1103, -inf
      %1117 = vmax.xlane.f32.xlu0 %v1116
      %v1118 = vpop.xlane.xlu0 %1117
      %v1119 = vsel %vm666, %v1108, -inf
      %1120 = vmax.xlane.f32.xlu0 %v1119
      %v1121 = vpop.xlane.xlu0 %1120
      %v1122 = vsub.f32 %v1100, %v1115
      %v1123 = vsub.f32 %v1103, %v1118
      %v1124 = vsub.f32 %v1108, %v1121
      %v1125 = vmul.f32 %v1122, 1.442695
      %v1126 = vpow.pop %v1125
      %v1127 = vmul.f32 %v1123, 1.442695
      %v1128 = vpow.pop %v1127
      %v1129 = vmul.f32 %v1124, 1.442695
      %v1130 = vpow.pop %v1129
      %v1131 = vsel %vm659, %v1126, 0.0
      %1132 = vadd.xlane.f32.xlu0 %v1131
      %v1133 = vpop.xlane.xlu0 %1132
      %v1134 = vsel %vm659, %v1128, 0.0
      %1135 = vadd.xlane.f32.xlu0 %v1134
      %v1136 = vpop.xlane.xlu0 %1135
      %v1137 = vsel %vm666, %v1130, 0.0
      %1138 = vadd.xlane.f32.xlu0 %v1137
      %v1139 = vpop.xlane.xlu0 %1138
      %v1140 = vrcp.pop %v1133
      %v1141 = vrcp.pop %v1136
      %v1142 = vrcp.pop %v1139
      %v1143 = vmul.f32 %v1126, %v1140
      %v1144 = vmul.f32 %v1128, %v1141
      %v1145 = vmul.f32 %v1130, %v1142
      %v1146 = vpack.c.bf16 %v1144, %v1143
      %v1147 = vpack.c.bf16 %v1145, %v1145
      %1148 = vrot.lane.b32.xlu0 %v590, 48
      %v1149 = vpop.permute.xlu0 %1148
      %1150 = vrot.lane.b32.xlu0 %v591, 48
      %v1151 = vpop.permute.xlu0 %1150
      %v1154 = vsel %vm659, %v1146, 0
      %v1157 = vsel %vm659, %v1147, 0
      %v1160 = vand.u32 %v1151, %v709
      %1162 = vmatprep.subr.bf16.mxu0 0
      %1163 = vmatpush1.bf16.msra.mxu0 %v1149
      %1164 = vmatprep.subr.bf16.mxu0 0
      %1165 = vmatpush1.bf16.msra.mxu0 %v1160
      %1166 = vmatprep.subr.bf16.mxu0 0
      %1167 = vmatpush1.bf16.msra.mxu0 0
      %1168 = vmatprep.subr.bf16.mxu0 0
      %1169 = vmatpush1.bf16.msra.mxu0 0
      %1170 = vmatprep.subr.bf16.mxu0 0
      %1171 = vmatpush1.bf16.msra.mxu0 0
      %1172 = vmatprep.subr.bf16.mxu0 0
      %1173 = vmatpush1.bf16.msra.mxu0 0
      %1174 = vmatprep.subr.bf16.mxu0 0
      %1175 = vmatpush1.bf16.msra.mxu0 0
      %1176 = vmatprep.subr.bf16.mxu0 0
      %1177 = vmatpush1.bf16.msra.mxu0 0
      %1178 = vmatprep.subr.bf16.mxu0 0
      %1179 = vmatpush1.bf16.msra.mxu0 0
      %1180 = vmatprep.subr.bf16.mxu0 0
      %1181 = vmatpush1.bf16.msra.mxu0 0
      %1182 = vmatprep.subr.bf16.mxu0 0
      %1183 = vmatpush1.bf16.msra.mxu0 0
      %1184 = vmatprep.subr.bf16.mxu0 0
      %1185 = vmatpush1.bf16.msra.mxu0 0
      %1186 = vmatprep.subr.bf16.mxu0 0
      %1187 = vmatpush1.bf16.msra.mxu0 0
      %1188 = vmatprep.subr.bf16.mxu0 0
      %1189 = vmatpush1.bf16.msra.mxu0 0
      %1190 = vmatprep.subr.bf16.mxu0 0
      %1191 = vmatpush1.bf16.msra.mxu0 0
      %1192 = vmatprep.subr.bf16.mxu0 0
      %1193 = vmatpush1.bf16.msra.mxu0 0
      %1194 = vmatprep.mubr.bf16.mxu0 0
      %1195 = vmatmul.mubr.bf16.gmra.mrb[0].mxu0 %v1154
      %v1196 = vpop.f32.mrb[0].mxu0
      %v1197 = vadd.f32 0.0, %v1196
      %v1198 = vpop.f32.mrb[0].mxu0
      %v1199 = vpop.f32.mrb[0].mxu0
      %v1200 = vadd.f32 0.0, %v1199
      %v1201 = vpop.f32.mrb[0].mxu0
      %1202 = vmatprep.mubr.bf16.mxu0 0
      %1203 = vmatmul.mubr.bf16.gmra.mrb[0].mxu0 %v1157
      %v1204 = vpop.f32.mrb[0].mxu0
      %v1205 = vadd.f32 0.0, %v1204
      %v1206 = vpop.f32.mrb[0].mxu0
      %v1207 = vpop.f32.mrb[0].mxu0
      %v1208 = vpop.f32.mrb[0].mxu0
      %1209 = vdwg.mxu0
      %v1210 = vpack.c.bf16 %v1200, %v1197
      %v1211 = vpack.c.bf16 %v1205, %v1205
      %v1213 = vsel %vm598, %v1210, 0
      %v1216 = vsel %vm598, %v1211, 0
      %v1219 = vsel %vm936, %v588, 0
      %1221 = vmatprep.subr.bf16.mxu0 0
      %1222 = vmatpush1.bf16.msra.mxu0 %v1219
      %1223 = vmatprep.subr.bf16.mxu0 0
      %1224 = vmatpush1.bf16.msra.mxu0 0
      %1225 = vmatprep.subr.bf16.mxu0 0
      %1226 = vmatpush1.bf16.msra.mxu0 0
      %1227 = vmatprep.subr.bf16.mxu0 0
      %1228 = vmatpush1.bf16.msra.mxu0 0
      %1229 = vmatprep.subr.bf16.mxu0 0
      %1230 = vmatpush1.bf16.msra.mxu0 0
      %1231 = vmatprep.subr.bf16.mxu0 0
      %1232 = vmatpush1.bf16.msra.mxu0 0
      %1233 = vmatprep.subr.bf16.mxu0 0
      %1234 = vmatpush1.bf16.msra.mxu0 0
      %1235 = vmatprep.subr.bf16.mxu0 0
      %1236 = vmatpush1.bf16.msra.mxu0 0
      %1237 = vmatprep.subr.bf16.mxu0 0
      %1238 = vmatpush1.bf16.msra.mxu0 0
      %1239 = vmatprep.subr.bf16.mxu0 0
      %1240 = vmatpush1.bf16.msra.mxu0 0
      %1241 = vmatprep.subr.bf16.mxu0 0
      %1242 = vmatpush1.bf16.msra.mxu0 0
      %1243 = vmatprep.subr.bf16.mxu0 0
      %1244 = vmatpush1.bf16.msra.mxu0 0
      %1245 = vmatprep.subr.bf16.mxu0 0
      %1246 = vmatpush1.bf16.msra.mxu0 0
      %1247 = vmatprep.subr.bf16.mxu0 0
      %1248 = vmatpush1.bf16.msra.mxu0 0
      %1249 = vmatprep.subr.bf16.mxu0 0
      %1250 = vmatpush1.bf16.msra.mxu0 0
      %1251 = vmatprep.subr.bf16.mxu0 0
      %1252 = vmatpush1.bf16.msra.mxu0 0
      %1253 = vmatprep.mubr.bf16.mxu0 0
      %1254 = vmatmul.mubr.bf16.gmra.mrb[0].mxu0 %v1213
      %v1255 = vpop.f32.mrb[0].mxu0
      %v1256 = vadd.f32 0.0, %v1255
      %v1257 = vpop.f32.mrb[0].mxu0
      %v1258 = vpop.f32.mrb[0].mxu0
      %v1259 = vadd.f32 0.0, %v1258
      %v1260 = vpop.f32.mrb[0].mxu0
      %1261 = vmatprep.mubr.bf16.mxu0 0
      %1262 = vmatmul.mubr.bf16.gmra.mrb[0].mxu0 %v1216
      %v1263 = vpop.f32.mrb[0].mxu0
      %v1264 = vadd.f32 0.0, %v1263
      %v1265 = vpop.f32.mrb[0].mxu0
      %v1266 = vpop.f32.mrb[0].mxu0
      %v1267 = vpop.f32.mrb[0].mxu0
      %1268 = vdwg.mxu0
      %v1269 = vadd.f32 %v1032, %v1256
      %v1270 = vadd.f32 %v1035, %v1259
      %v1271 = vadd.f32 %v1040, %v1264
      %1272 = vrot.lane.b32.xlu0 %v590, 104
      %v1273 = vpop.permute.xlu0 %1272
      %1274 = vrot.lane.b32.xlu0 %v591, 104
      %v1275 = vpop.permute.xlu0 %1274
      %1276 = vrot.lane.b32.xlu0 %v590, 72
      %v1277 = vpop.permute.xlu0 %1276
      %1278 = vrot.lane.b32.xlu0 %v591, 72
      %v1279 = vpop.permute.xlu0 %1278
      %v1281 = vsel %vm598, %v1273, 0
      %v1284 = vsel %vm598, %v1275, 0
      %v1287 = vsel %vm598, %v1277, 0
      %v1290 = vsel %vm598, %v1279, 0
      %1292 = vmatprep.subr.bf16.mxu0 0
      %1293 = vmatpush1.bf16.xpose.msra.mxu0 %v1287
      %1294 = vmatprep.subr.bf16.mxu0 0
      %1295 = vmatpush1.bf16.xpose.msra.mxu0 %v1290
      %1296 = vmatprep.subr.bf16.mxu0 0
      %1297 = vmatpush1.bf16.xpose.msra.mxu0 0
      %1298 = vmatprep.subr.bf16.mxu0 0
      %1299 = vmatpush1.bf16.xpose.msra.mxu0 0
      %1300 = vmatprep.subr.bf16.mxu0 0
      %1301 = vmatpush1.bf16.xpose.msra.mxu0 0
      %1302 = vmatprep.subr.bf16.mxu0 0
      %1303 = vmatpush1.bf16.xpose.msra.mxu0 0
      %1304 = vmatprep.subr.bf16.mxu0 0
      %1305 = vmatpush1.bf16.xpose.msra.mxu0 0
      %1306 = vmatprep.subr.bf16.mxu0 0
      %1307 = vmatpush1.bf16.xpose.msra.mxu0 0
      %1308 = vmatprep.subr.bf16.mxu0 0
      %1309 = vmatpush1.bf16.xpose.msra.mxu0 0
      %1310 = vmatprep.subr.bf16.mxu0 0
      %1311 = vmatpush1.bf16.xpose.msra.mxu0 0
      %1312 = vmatprep.subr.bf16.mxu0 0
      %1313 = vmatpush1.bf16.xpose.msra.mxu0 0
      %1314 = vmatprep.subr.bf16.mxu0 0
      %1315 = vmatpush1.bf16.xpose.msra.mxu0 0
      %1316 = vmatprep.subr.bf16.mxu0 0
      %1317 = vmatpush1.bf16.xpose.msra.mxu0 0
      %1318 = vmatprep.subr.bf16.mxu0 0
      %1319 = vmatpush1.bf16.xpose.msra.mxu0 0
      %1320 = vmatprep.subr.bf16.mxu0 0
      %1321 = vmatpush1.bf16.xpose.msra.mxu0 0
      %1322 = vmatprep.subr.bf16.mxu0 0
      %1323 = vmatpush1.bf16.xpose.msra.mxu0 0
      %1324 = vmatprep.mubr.bf16.mxu0 0
      %1325 = vmatmul.mubr.bf16.gmra.mrb[0].mxu0 %v1281
      %v1326 = vpop.f32.mrb[0].mxu0
      %v1327 = vadd.f32 0.0, %v1326
      %v1328 = vpop.f32.mrb[0].mxu0
      %v1329 = vpop.f32.mrb[0].mxu0
      %v1330 = vadd.f32 0.0, %v1329
      %v1331 = vpop.f32.mrb[0].mxu0
      %1332 = vmatprep.mubr.bf16.mxu0 0
      %1333 = vmatmul.mubr.bf16.gmra.mrb[0].mxu0 %v1284
      %v1334 = vpop.f32.mrb[0].mxu0
      %v1335 = vadd.f32 0.0, %v1334
      %v1336 = vpop.f32.mrb[0].mxu0
      %v1337 = vpop.f32.mrb[0].mxu0
      %v1338 = vpop.f32.mrb[0].mxu0
      %1339 = vdwg.mxu0
      %v1340 = vsel %vm659, %v1327, -inf
      %1341 = vmax.xlane.f32.xlu0 %v1340
      %v1342 = vpop.xlane.xlu0 %1341
      %v1343 = vsel %vm659, %v1330, -inf
      %1344 = vmax.xlane.f32.xlu0 %v1343
      %v1345 = vpop.xlane.xlu0 %1344
      %v1346 = vsel %vm666, %v1335, -inf
      %1347 = vmax.xlane.f32.xlu0 %v1346
      %v1348 = vpop.xlane.xlu0 %1347
      %v1349 = vsub.f32 %v1327, %v1342
      %v1350 = vsub.f32 %v1330, %v1345
      %v1351 = vsub.f32 %v1335, %v1348
      %v1352 = vmul.f32 %v1349, 1.442695
      %v1353 = vpow.pop %v1352
      %v1354 = vmul.f32 %v1350, 1.442695
      %v1355 = vpow.pop %v1354
      %v1356 = vmul.f32 %v1351, 1.442695
      %v1357 = vpow.pop %v1356
      %v1358 = vsel %vm659, %v1353, 0.0
      %1359 = vadd.xlane.f32.xlu0 %v1358
      %v1360 = vpop.xlane.xlu0 %1359
      %v1361 = vsel %vm659, %v1355, 0.0
      %1362 = vadd.xlane.f32.xlu0 %v1361
      %v1363 = vpop.xlane.xlu0 %1362
      %v1364 = vsel %vm666, %v1357, 0.0
      %1365 = vadd.xlane.f32.xlu0 %v1364
      %v1366 = vpop.xlane.xlu0 %1365
      %v1367 = vrcp.pop %v1360
      %v1368 = vrcp.pop %v1363
      %v1369 = vrcp.pop %v1366
      %v1370 = vmul.f32 %v1353, %v1367
      %v1371 = vmul.f32 %v1355, %v1368
      %v1372 = vmul.f32 %v1357, %v1369
      %v1373 = vpack.c.bf16 %v1371, %v1370
      %v1374 = vpack.c.bf16 %v1372, %v1372
      %1375 = vrot.lane.b32.xlu0 %v590, 40
      %v1376 = vpop.permute.xlu0 %1375
      %1377 = vrot.lane.b32.xlu0 %v591, 40
      %v1378 = vpop.permute.xlu0 %1377
      %v1381 = vsel %vm659, %v1373, 0
      %v1384 = vsel %vm659, %v1374, 0
      %v1387 = vand.u32 %v1378, %v709
      %1389 = vmatprep.subr.bf16.mxu0 0
      %1390 = vmatpush1.bf16.msra.mxu0 %v1376
      %1391 = vmatprep.subr.bf16.mxu0 0
      %1392 = vmatpush1.bf16.msra.mxu0 %v1387
      %1393 = vmatprep.subr.bf16.mxu0 0
      %1394 = vmatpush1.bf16.msra.mxu0 0
      %1395 = vmatprep.subr.bf16.mxu0 0
      %1396 = vmatpush1.bf16.msra.mxu0 0
      %1397 = vmatprep.subr.bf16.mxu0 0
      %1398 = vmatpush1.bf16.msra.mxu0 0
      %1399 = vmatprep.subr.bf16.mxu0 0
      %1400 = vmatpush1.bf16.msra.mxu0 0
      %1401 = vmatprep.subr.bf16.mxu0 0
      %1402 = vmatpush1.bf16.msra.mxu0 0
      %1403 = vmatprep.subr.bf16.mxu0 0
      %1404 = vmatpush1.bf16.msra.mxu0 0
      %1405 = vmatprep.subr.bf16.mxu0 0
      %1406 = vmatpush1.bf16.msra.mxu0 0
      %1407 = vmatprep.subr.bf16.mxu0 0
      %1408 = vmatpush1.bf16.msra.mxu0 0
      %1409 = vmatprep.subr.bf16.mxu0 0
      %1410 = vmatpush1.bf16.msra.mxu0 0
      %1411 = vmatprep.subr.bf16.mxu0 0
      %1412 = vmatpush1.bf16.msra.mxu0 0
      %1413 = vmatprep.subr.bf16.mxu0 0
      %1414 = vmatpush1.bf16.msra.mxu0 0
      %1415 = vmatprep.subr.bf16.mxu0 0
      %1416 = vmatpush1.bf16.msra.mxu0 0
      %1417 = vmatprep.subr.bf16.mxu0 0
      %1418 = vmatpush1.bf16.msra.mxu0 0
      %1419 = vmatprep.subr.bf16.mxu0 0
      %1420 = vmatpush1.bf16.msra.mxu0 0
      %1421 = vmatprep.mubr.bf16.mxu0 0
      %1422 = vmatmul.mubr.bf16.gmra.mrb[0].mxu0 %v1381
      %v1423 = vpop.f32.mrb[0].mxu0
      %v1424 = vadd.f32 0.0, %v1423
      %v1425 = vpop.f32.mrb[0].mxu0
      %v1426 = vpop.f32.mrb[0].mxu0
      %v1427 = vadd.f32 0.0, %v1426
      %v1428 = vpop.f32.mrb[0].mxu0
      %1429 = vmatprep.mubr.bf16.mxu0 0
      %1430 = vmatmul.mubr.bf16.gmra.mrb[0].mxu0 %v1384
      %v1431 = vpop.f32.mrb[0].mxu0
      %v1432 = vadd.f32 0.0, %v1431
      %v1433 = vpop.f32.mrb[0].mxu0
      %v1434 = vpop.f32.mrb[0].mxu0
      %v1435 = vpop.f32.mrb[0].mxu0
      %1436 = vdwg.mxu0
      %v1437 = vpack.c.bf16 %v1427, %v1424
      %v1438 = vpack.c.bf16 %v1432, %v1432
      %v1440 = vsel %vm598, %v1437, 0
      %v1443 = vsel %vm598, %v1438, 0
      %v1446 = vsel %vm936, %v589, 0
      %1448 = vmatprep.subr.bf16.mxu0 0
      %1449 = vmatpush1.bf16.msra.mxu0 %v1446
      %1450 = vmatprep.subr.bf16.mxu0 0
      %1451 = vmatpush1.bf16.msra.mxu0 0
      %1452 = vmatprep.subr.bf16.mxu0 0
      %1453 = vmatpush1.bf16.msra.mxu0 0
      %1454 = vmatprep.subr.bf16.mxu0 0
      %1455 = vmatpush1.bf16.msra.mxu0 0
      %1456 = vmatprep.subr.bf16.mxu0 0
      %1457 = vmatpush1.bf16.msra.mxu0 0
      %1458 = vmatprep.subr.bf16.mxu0 0
      %1459 = vmatpush1.bf16.msra.mxu0 0
      %1460 = vmatprep.subr.bf16.mxu0 0
      %1461 = vmatpush1.bf16.msra.mxu0 0
      %1462 = vmatprep.subr.bf16.mxu0 0
      %1463 = vmatpush1.bf16.msra.mxu0 0
      %1464 = vmatprep.subr.bf16.mxu0 0
      %1465 = vmatpush1.bf16.msra.mxu0 0
      %1466 = vmatprep.subr.bf16.mxu0 0
      %1467 = vmatpush1.bf16.msra.mxu0 0
      %1468 = vmatprep.subr.bf16.mxu0 0
      %1469 = vmatpush1.bf16.msra.mxu0 0
      %1470 = vmatprep.subr.bf16.mxu0 0
      %1471 = vmatpush1.bf16.msra.mxu0 0
      %1472 = vmatprep.subr.bf16.mxu0 0
      %1473 = vmatpush1.bf16.msra.mxu0 0
      %1474 = vmatprep.subr.bf16.mxu0 0
      %1475 = vmatpush1.bf16.msra.mxu0 0
      %1476 = vmatprep.subr.bf16.mxu0 0
      %1477 = vmatpush1.bf16.msra.mxu0 0
      %1478 = vmatprep.subr.bf16.mxu0 0
      %1479 = vmatpush1.bf16.msra.mxu0 0
      %1480 = vmatprep.mubr.bf16.mxu0 0
      %1481 = vmatmul.mubr.bf16.gmra.mrb[0].mxu0 %v1440
      %v1482 = vpop.f32.mrb[0].mxu0
      %v1483 = vadd.f32 0.0, %v1482
      %v1484 = vpop.f32.mrb[0].mxu0
      %v1485 = vpop.f32.mrb[0].mxu0
      %v1486 = vadd.f32 0.0, %v1485
      %v1487 = vpop.f32.mrb[0].mxu0
      %1488 = vmatprep.mubr.bf16.mxu0 0
      %1489 = vmatmul.mubr.bf16.gmra.mrb[0].mxu0 %v1443
      %v1490 = vpop.f32.mrb[0].mxu0
      %v1491 = vadd.f32 0.0, %v1490
      %v1492 = vpop.f32.mrb[0].mxu0
      %v1493 = vpop.f32.mrb[0].mxu0
      %v1494 = vpop.f32.mrb[0].mxu0
      %1495 = vdwg.mxu0
      %v1496 = vadd.f32 %v1269, %v1483
      %v1497 = vadd.f32 %v1270, %v1486
      %v1498 = vadd.f32 %v1271, %v1491
      %v1499 = vadd.f32 %v442, %v1496
      %v1500 = vadd.f32 %v443, %v1497
      %v1501 = vadd.f32 %v444, %v1498
      %v1502 = vld [vmem:[%s6] sm:$0x1]
      %v1504 = vlaneseq
      %v1505 = vshrl.u32 %v1504, 7
      %v1506 = vsub.s32 0, %v1505
      %v1507 = vrot.slane %v1502, %v1506
      %v1509 = vadd.f32 %v1499, %v1507
      %v1510 = vadd.f32 %v1500, %v1507
      %v1511 = vadd.f32 %v1501, %v1507
      %v1512 = vld [vmem:[%s7] sm:$0x1]
      %v1513 = vld [vmem:[%s8] sm:$0x1]
      %v1514 = vsel %vm447, %v1509, 0.0
      %1515 = vadd.xlane.f32.xlu0 %v1514
      %v1516 = vpop.xlane.xlu0 %1515
      %v1517 = vsel %vm447, %v1510, 0.0
      %1518 = vadd.xlane.f32.xlu0 %v1517
      %v1519 = vpop.xlane.xlu0 %1518
      %v1520 = vsel %vm454, %v1511, 0.0
      %1521 = vadd.xlane.f32.xlu0 %v1520
      %v1522 = vpop.xlane.xlu0 %1521
      %v1523 = vmul.f32 %v1516, %v458
      %v1524 = vmul.f32 %v1519, %v458
      %v1525 = vmul.f32 %v1522, %v458
      %v1526 = vsub.f32 %v1509, %v1523
      %v1527 = vsub.f32 %v1510, %v1524
      %v1528 = vsub.f32 %v1511, %v1525
      %v1529 = vmul.f32 %v1526, %v1526
      %v1530 = vmul.f32 %v1527, %v1527
      %v1531 = vmul.f32 %v1528, %v1528
      %v1532 = vsel %vm447, %v1529, 0.0
      %1533 = vadd.xlane.f32.xlu0 %v1532
      %v1534 = vpop.xlane.xlu0 %1533
      %v1535 = vsel %vm447, %v1530, 0.0
      %1536 = vadd.xlane.f32.xlu0 %v1535
      %v1537 = vpop.xlane.xlu0 %1536
      %v1538 = vsel %vm454, %v1531, 0.0
      %1539 = vadd.xlane.f32.xlu0 %v1538
      %v1540 = vpop.xlane.xlu0 %1539
      %v1541 = vmul.f32 %v1534, %v458
      %v1542 = vmul.f32 %v1537, %v458
      %v1543 = vmul.f32 %v1540, %v458
      %v1544 = vadd.f32 %v1541, 1e-05
      %v1545 = vadd.f32 %v1542, 1e-05
      %v1546 = vadd.f32 %v1543, 1e-05
      %v1547 = vrsqrt.pop %v1544
      %v1548 = vrsqrt.pop %v1545
      %v1549 = vrsqrt.pop %v1546
      %v1550 = vmul.f32 %v1526, %v1547
      %v1551 = vmul.f32 %v1527, %v1548
      %v1552 = vmul.f32 %v1528, %v1549
      %v1554 = vlaneseq
      %v1555 = vshrl.u32 %v1554, 7
      %v1556 = vsub.s32 0, %v1555
      %v1557 = vrot.slane %v1512, %v1556
      %v1559 = vmul.f32 %v1550, %v1557
      %v1560 = vmul.f32 %v1551, %v1557
      %v1561 = vmul.f32 %v1552, %v1557
      %v1563 = vlaneseq
      %v1564 = vshrl.u32 %v1563, 7
      %v1565 = vsub.s32 0, %v1564
      %v1566 = vrot.slane %v1513, %v1565
      %v1568 = vadd.f32 %v1559, %v1566
      %v1569 = vadd.f32 %v1560, %v1566
      %v1570 = vadd.f32 %v1561, %v1566
      %v1571 = vpack.c.bf16 %v1569, %v1568
      %v1572 = vpack.c.bf16 %v1570, %v1570
      %v1573 = vld [vmem:[%s9] sm:$0xf]
      %v1574 = vld [vmem:[%s9 + $0x4] sm:$0xf]
      %v1575 = vld [vmem:[%s9 + $0x8] sm:$0xf]
      %v1576 = vld [vmem:[%s9 + $0xc] sm:$0xf]
      %v1577 = vld [vmem:[%s10] sm:$0x1]
      %v1579 = vlaneseq
      %v1580 = vshrl.u32 %v1579, 7
      %v1581 = vsub.s32 0, %v1580
      %v1582 = vrot.slane %v1577, %v1581
      %v1588 = vunpack.c.l.b16 %v1573
      %v1589 = vunpack.c.l.b16 %v1574
      %v1590 = vunpack.c.l.b16 %v1575
      %v1591 = vunpack.c.l.b16 %v1576
      %v1592 = vpack.c.b16 %v1589, %v1588
      %v1593 = vpack.c.b16 %v1591, %v1590
      %v1597 = vsel %vm447, %v1571, 0
      %v1600 = vsel %vm447, %v1572, 0
      %1602 = vmatprep.subr.bf16.mxu0 0
      %1603 = vmatpush1.bf16.msra.mxu0 %v1592
      %1604 = vmatprep.subr.bf16.mxu0 0
      %1605 = vmatpush1.bf16.msra.mxu0 %v1593
      %1606 = vmatprep.subr.bf16.mxu0 0
      %1607 = vmatpush1.bf16.msra.mxu0 0
      %1608 = vmatprep.subr.bf16.mxu0 0
      %1609 = vmatpush1.bf16.msra.mxu0 0
      %1610 = vmatprep.subr.bf16.mxu0 0
      %1611 = vmatpush1.bf16.msra.mxu0 0
      %1612 = vmatprep.subr.bf16.mxu0 0
      %1613 = vmatpush1.bf16.msra.mxu0 0
      %1614 = vmatprep.subr.bf16.mxu0 0
      %1615 = vmatpush1.bf16.msra.mxu0 0
      %1616 = vmatprep.subr.bf16.mxu0 0
      %1617 = vmatpush1.bf16.msra.mxu0 0
      %1618 = vmatprep.subr.bf16.mxu0 0
      %1619 = vmatpush1.bf16.msra.mxu0 0
      %1620 = vmatprep.subr.bf16.mxu0 0
      %1621 = vmatpush1.bf16.msra.mxu0 0
      %1622 = vmatprep.subr.bf16.mxu0 0
      %1623 = vmatpush1.bf16.msra.mxu0 0
      %1624 = vmatprep.subr.bf16.mxu0 0
      %1625 = vmatpush1.bf16.msra.mxu0 0
      %1626 = vmatprep.subr.bf16.mxu0 0
      %1627 = vmatpush1.bf16.msra.mxu0 0
      %1628 = vmatprep.subr.bf16.mxu0 0
      %1629 = vmatpush1.bf16.msra.mxu0 0
      %1630 = vmatprep.subr.bf16.mxu0 0
      %1631 = vmatpush1.bf16.msra.mxu0 0
      %1632 = vmatprep.subr.bf16.mxu0 0
      %1633 = vmatpush1.bf16.msra.mxu0 0
      %1634 = vmatprep.mubr.bf16.mxu0 0
      %1635 = vmatmul.mubr.bf16.gmra.mrb[0].mxu0 %v1597
      %v1636 = vpop.f32.mrb[0].mxu0
      %v1637 = vadd.f32 %v1582, %v1636
      %v1638 = vpop.f32.mrb[0].mxu0
      %v1639 = vpop.f32.mrb[0].mxu0
      %v1640 = vadd.f32 %v1582, %v1639
      %v1641 = vpop.f32.mrb[0].mxu0
      %1642 = vmatprep.mubr.bf16.mxu0 0
      %1643 = vmatmul.mubr.bf16.gmra.mrb[0].mxu0 %v1600
      %v1644 = vpop.f32.mrb[0].mxu0
      %v1645 = vadd.f32 %v1582, %v1644
      %v1646 = vpop.f32.mrb[0].mxu0
      %v1647 = vpop.f32.mrb[0].mxu0
      %v1648 = vpop.f32.mrb[0].mxu0
      %1649 = vdwg.mxu0
      %v1650 = vmul.f32 %v1637, 0.5
      %v1651 = vmul.f32 %v1640, 0.5
      %v1652 = vmul.f32 %v1645, 0.5
      %v1653 = vmul.f32 %v1637, 0.044715
      %v1654 = vmul.f32 %v1640, 0.044715
      %v1655 = vmul.f32 %v1645, 0.044715
      %v1656 = vmul.f32 %v1653, %v1637
      %v1657 = vmul.f32 %v1654, %v1640
      %v1658 = vmul.f32 %v1655, %v1645
      %v1659 = vmul.f32 %v1656, %v1637
      %v1660 = vmul.f32 %v1657, %v1640
      %v1661 = vmul.f32 %v1658, %v1645
      %v1662 = vadd.f32 %v1637, %v1659
      %v1663 = vadd.f32 %v1640, %v1660
      %v1664 = vadd.f32 %v1645, %v1661
      %v1665 = vmul.f32 %v1662, 0.7978846
      %v1666 = vmul.f32 %v1663, 0.7978846
      %v1667 = vmul.f32 %v1664, 0.7978846
      %v1668 = vtanh.pop %v1665
      %v1669 = vtanh.pop %v1666
      %v1670 = vtanh.pop %v1667
      %v1671 = vadd.f32 %v1668, 1.0
      %v1672 = vadd.f32 %v1669, 1.0
      %v1673 = vadd.f32 %v1670, 1.0
      %v1674 = vmul.f32 %v1650, %v1671
      %v1675 = vmul.f32 %v1651, %v1672
      %v1676 = vmul.f32 %v1652, %v1673
      %v1677 = vpack.c.bf16 %v1675, %v1674
      %v1678 = vpack.c.bf16 %v1676, %v1676
      %v1679 = vld [vmem:[%s11] sm:$0xf]
      %v1680 = vld [vmem:[%s11 + $0x4] sm:$0xf]
      %v1681 = vld [vmem:[%s11 + $0x8] sm:$0xf]
      %v1682 = vld [vmem:[%s11 + $0xc] sm:$0xf]
      %v1683 = vld [vmem:[%s11 + $0x10] sm:$0xf]
      %v1684 = vld [vmem:[%s11 + $0x14] sm:$0xf]
      %v1685 = vld [vmem:[%s11 + $0x18] sm:$0xf]
      %v1686 = vld [vmem:[%s11 + $0x1c] sm:$0xf]
      %v1687 = vld [vmem:[%s12] sm:$0x1]
      %v1689 = vlaneseq
      %v1690 = vshrl.u32 %v1689, 7
      %v1691 = vsub.s32 0, %v1690
      %v1692 = vrot.slane %v1687, %v1691
      %v1702 = vunpack.c.l.b16 %v1679
      %v1703 = vunpack.c.l.b16 %v1680
      %v1704 = vunpack.c.l.b16 %v1681
      %v1705 = vunpack.c.l.b16 %v1682
      %v1706 = vunpack.c.l.b16 %v1683
      %v1707 = vunpack.c.l.b16 %v1684
      %v1708 = vunpack.c.l.b16 %v1685
      %v1709 = vunpack.c.l.b16 %v1686
      %v1710 = vpack.c.b16 %v1703, %v1702
      %v1711 = vpack.c.b16 %v1705, %v1704
      %v1712 = vpack.c.b16 %v1707, %v1706
      %v1713 = vpack.c.b16 %v1709, %v1708
      %vm1718 = vcmask 523264
      %v1720 = vsel %vm1718, %v1677, 0
      %v1723 = vsel %vm1718, %v1678, 0
      %1725 = vmatprep.subr.bf16.mxu0 0
      %1726 = vmatpush1.bf16.msra.mxu0 %v1710
      %1727 = vmatprep.subr.bf16.mxu0 0
      %1728 = vmatpush1.bf16.msra.mxu0 %v1711
      %1729 = vmatprep.subr.bf16.mxu0 0
      %1730 = vmatpush1.bf16.msra.mxu0 %v1712
      %1731 = vmatprep.subr.bf16.mxu0 0
      %1732 = vmatpush1.bf16.msra.mxu0 %v1713
      %1733 = vmatprep.subr.bf16.mxu0 0
      %1734 = vmatpush1.bf16.msra.mxu0 0
      %1735 = vmatprep.subr.bf16.mxu0 0
      %1736 = vmatpush1.bf16.msra.mxu0 0
      %1737 = vmatprep.subr.bf16.mxu0 0
      %1738 = vmatpush1.bf16.msra.mxu0 0
      %1739 = vmatprep.subr.bf16.mxu0 0
      %1740 = vmatpush1.bf16.msra.mxu0 0
      %1741 = vmatprep.subr.bf16.mxu0 0
      %1742 = vmatpush1.bf16.msra.mxu0 0
      %1743 = vmatprep.subr.bf16.mxu0 0
      %1744 = vmatpush1.bf16.msra.mxu0 0
      %1745 = vmatprep.subr.bf16.mxu0 0
      %1746 = vmatpush1.bf16.msra.mxu0 0
      %1747 = vmatprep.subr.bf16.mxu0 0
      %1748 = vmatpush1.bf16.msra.mxu0 0
      %1749 = vmatprep.subr.bf16.mxu0 0
      %1750 = vmatpush1.bf16.msra.mxu0 0
      %1751 = vmatprep.subr.bf16.mxu0 0
      %1752 = vmatpush1.bf16.msra.mxu0 0
      %1753 = vmatprep.subr.bf16.mxu0 0
      %1754 = vmatpush1.bf16.msra.mxu0 0
      %1755 = vmatprep.subr.bf16.mxu0 0
      %1756 = vmatpush1.bf16.msra.mxu0 0
      %1757 = vmatprep.mubr.bf16.mxu0 0
      %1758 = vmatmul.mubr.bf16.gmra.mrb[0].mxu0 %v1720
      %v1759 = vpop.f32.mrb[0].mxu0
      %v1760 = vadd.f32 %v1692, %v1759
      %v1761 = vpop.f32.mrb[0].mxu0
      %v1762 = vpop.f32.mrb[0].mxu0
      %v1763 = vadd.f32 %v1692, %v1762
      %v1764 = vpop.f32.mrb[0].mxu0
      %1765 = vmatprep.mubr.bf16.mxu0 0
      %1766 = vmatmul.mubr.bf16.gmra.mrb[0].mxu0 %v1723
      %v1767 = vpop.f32.mrb[0].mxu0
      %v1768 = vadd.f32 %v1692, %v1767
      %v1769 = vpop.f32.mrb[0].mxu0
      %v1770 = vpop.f32.mrb[0].mxu0
      %v1771 = vpop.f32.mrb[0].mxu0
      %1772 = vdwg.mxu0
      %v1773 = vadd.f32 %v1509, %v1760
      %v1774 = vadd.f32 %v1510, %v1763
      %v1775 = vadd.f32 %v1511, %v1768
      %1776 = vst.msk [vmem:[%s440] sm:$0xff] %vm447, %v1773
      %1777 = vst.msk [vmem:[%s440 + $0x8] sm:$0xff] %vm447, %v1774
      %1778 = vst.msk [vmem:[%s440 + $0x10] sm:$0x1] %vm454, %v1775
      %p1779 = scmp.lt.s32.totalorder %s24, 1
      %s1780 = scalar_select %p1779, %s24, 1
      %s1781 = smul.addr %s1780, 3
      %s1782 = smul.addr %s1781, 8
      %s1783 = scalar_lea.vmem %s13, %s1782
      // Predicated region
      $region73: #{owlv2_forward.9} parent=71 // pred_check
        %p1784 = pneg %p320
      $region74: #{owlv2_forward.9} parent=71 // pred_check_branch
        %1786 = sbr.rel (%p1784) target = $region76
      $region75: #{owlv2_forward.9} parent=71 // pred_region
        _
      $region76: #{owlv2_forward.9} parent=71 // pred_fallthru
        _
    $region72: #{owlv2_forward.9} parent=5 // pred_fallthru
      _
    %p1787 = scmp.le.s32.totalorder 2, %s19
    // Predicated region
    $region77: #{owlv2_forward.9} parent=5 // pred_check
      %p1788 = pneg %p1787
    $region78: #{owlv2_forward.9} parent=5 // pred_check_branch
      %1790 = sbr.rel (%p1788) target = $region80
    $region79: #{owlv2_forward.9} parent=5 // pred_region
      %s1791 = ssub.s32 %s19, 2
      // Predicated region
      $region81: #{owlv2_forward.9} parent=79 // pred_check
        %p1792 = pneg %p326
      $region82: #{owlv2_forward.9} parent=79 // pred_check_branch
        %1794 = sbr.rel (%p1792) target = $region84
      $region83: #{owlv2_forward.9} parent=79 // pred_region
        %p1795 = scmp.lt.s32.totalorder %s25, 1
        %s1796 = scalar_select %p1795, %s25, 1
        %s1797 = smul.addr %s1796, 3
        %s1798 = smul.addr %s1797, 8
        %s1799 = scalar_lea.vmem %s13, %s1798
      $region84: #{owlv2_forward.9} parent=79 // pred_fallthru
        _
    $region80: #{owlv2_forward.9} parent=5 // pred_fallthru
      _
  $region6: #{owlv2_forward.9} parent=0 // loop_footer
    %s23 = sadd.s32 1, %s19
  $region7: #{owlv2_forward.9} parent=0 // loop_footer_branch
    %18 = sbr.rel target = $region3
  $region8: #{owlv2_forward.9} parent=0 // loop_exit
    _

// kernel: owlv2_forward.14
$region0: #{owlv2_forward.14}
  #allocation0 [shape = 'u32[]', space=smem, size = 0x4, offset = 0x4, fixed_abs, tag = 'smem constant byte address 0x4 - core index']
  #allocation1 [shape = 'u32[144,128]{1,0:T(1,128)}', space=vmem, size = 0x12000, scoped, tag = 'internal scratch']
  %s0 = inlined_call_operand.vmem [shape: f32[4,32], index: 0, kind: input, shape index: {}]
  %s1 = inlined_call_operand.vmem [shape: f32[1,32], index: 1, kind: input, shape index: {}]
  %s2 = inlined_call_operand.vmem [shape: f32[1,32], index: 2, kind: input, shape index: {}]
  %s3 = inlined_call_operand.vmem [shape: bf16[32,32], index: 3, kind: input, shape index: {}]
  %s4 = inlined_call_operand.vmem [shape: f32[4,32], index: 4, kind: output, shape index: {}]
  %s5 = sld [smem:[#allocation0]]
  $region26: #{owlv2_forward.14} parent=0
    _
  %s7 = ssub.s32 1, %s5
  %s8 = scalar_select 0, %s7, %s5
  // Predicated region
  $region2: #{owlv2_forward.14} parent=0 // pred_check
    _
  $region3: #{owlv2_forward.14} parent=0 // pred_check_branch
    %10 = sbr.rel (0) target = $region5
  $region4: #{owlv2_forward.14} parent=0 // pred_region
    _
  $region5: #{owlv2_forward.14} parent=0 // pred_fallthru
    _
  // Predicated region
  $region6: #{owlv2_forward.14} parent=0 // pred_check
    _
  $region7: #{owlv2_forward.14} parent=0 // pred_check_branch
    %12 = sbr.rel (0) target = $region9
  $region8: #{owlv2_forward.14} parent=0 // pred_region
    _
  $region9: #{owlv2_forward.14} parent=0 // pred_fallthru
    _
  // Predicated region
  $region10: #{owlv2_forward.14} parent=0 // pred_check
    _
  $region11: #{owlv2_forward.14} parent=0 // pred_check_branch
    %14 = sbr.rel (0) target = $region13
  $region12: #{owlv2_forward.14} parent=0 // pred_region
    _
  $region13: #{owlv2_forward.14} parent=0 // pred_fallthru
    _
  // Predicated region
  $region14: #{owlv2_forward.14} parent=0 // pred_check
    _
  $region15: #{owlv2_forward.14} parent=0 // pred_check_branch
    %16 = sbr.rel (0) target = $region17
  $region16: #{owlv2_forward.14} parent=0 // pred_region
    _
  $region17: #{owlv2_forward.14} parent=0 // pred_fallthru
    _
  %v18 = vld [vmem:[%s0] sm:$0xf]
  %v19 = vld [vmem:[%s1] sm:$0x1]
  %v20 = vld [vmem:[%s2] sm:$0x1]
  %vm21 = vcmask 257024
  %v22 = vsel %vm21, %v18, 0.0
  %23 = vadd.xlane.f32.xlu0 %v22
  %v24 = vpop.xlane.xlu0 %23
  %v25 = vrcp.pop 32.0
  %v26 = vmul.f32 %v24, %v25
  %v27 = vsub.f32 %v18, %v26
  %v28 = vmul.f32 %v27, %v27
  %v29 = vsel %vm21, %v28, 0.0
  %30 = vadd.xlane.f32.xlu0 %v29
  %v31 = vpop.xlane.xlu0 %30
  %v32 = vmul.f32 %v31, %v25
  %v33 = vadd.f32 %v32, 1e-05
  %v34 = vrsqrt.pop %v33
  %v35 = vmul.f32 %v27, %v34
  %v37 = vlaneseq
  %v38 = vshrl.u32 %v37, 7
  %v39 = vsub.s32 0, %v38
  %v40 = vrot.slane %v19, %v39
  %v42 = vmul.f32 %v35, %v40
  %v44 = vlaneseq
  %v45 = vshrl.u32 %v44, 7
  %v46 = vsub.s32 0, %v45
  %v47 = vrot.slane %v20, %v46
  %v49 = vadd.f32 %v42, %v47
  %v50 = vpack.c.bf16 %v49, %v49
  %v51 = vld [vmem:[%s3] sm:$0xf]
  %v52 = vld [vmem:[%s3 + $0x4] sm:$0xf]
  %v53 = vld [vmem:[%s3 + $0x8] sm:$0xf]
  %v54 = vld [vmem:[%s3 + $0xc] sm:$0xf]
  %v59 = vunpack.c.l.b16 %v51
  %v60 = vunpack.c.l.b16 %v52
  %v61 = vunpack.c.l.b16 %v53
  %v62 = vunpack.c.l.b16 %v54
  %v63 = vpack.c.b16 %v60, %v59
  %v64 = vpack.c.b16 %v62, %v61
  %vm67 = vcmask 261120
  %v69 = vsel %vm67, %v50, 0
  %71 = vmatprep.subr.bf16.mxu0 0
  %72 = vmatpush1.bf16.msra.mxu0 %v63
  %73 = vmatprep.subr.bf16.mxu0 0
  %74 = vmatpush1.bf16.msra.mxu0 %v64
  %75 = vmatprep.subr.bf16.mxu0 0
  %76 = vmatpush1.bf16.msra.mxu0 0
  %77 = vmatprep.subr.bf16.mxu0 0
  %78 = vmatpush1.bf16.msra.mxu0 0
  %79 = vmatprep.subr.bf16.mxu0 0
  %80 = vmatpush1.bf16.msra.mxu0 0
  %81 = vmatprep.subr.bf16.mxu0 0
  %82 = vmatpush1.bf16.msra.mxu0 0
  %83 = vmatprep.subr.bf16.mxu0 0
  %84 = vmatpush1.bf16.msra.mxu0 0
  %85 = vmatprep.subr.bf16.mxu0 0
  %86 = vmatpush1.bf16.msra.mxu0 0
  %87 = vmatprep.subr.bf16.mxu0 0
  %88 = vmatpush1.bf16.msra.mxu0 0
  %89 = vmatprep.subr.bf16.mxu0 0
  %90 = vmatpush1.bf16.msra.mxu0 0
  %91 = vmatprep.subr.bf16.mxu0 0
  %92 = vmatpush1.bf16.msra.mxu0 0
  %93 = vmatprep.subr.bf16.mxu0 0
  %94 = vmatpush1.bf16.msra.mxu0 0
  %95 = vmatprep.subr.bf16.mxu0 0
  %96 = vmatpush1.bf16.msra.mxu0 0
  %97 = vmatprep.subr.bf16.mxu0 0
  %98 = vmatpush1.bf16.msra.mxu0 0
  %99 = vmatprep.subr.bf16.mxu0 0
  %100 = vmatpush1.bf16.msra.mxu0 0
  %101 = vmatprep.subr.bf16.mxu0 0
  %102 = vmatpush1.bf16.msra.mxu0 0
  %103 = vmatprep.mubr.bf16.mxu0 0
  %104 = vmatmul.mubr.bf16.gmra.mrb[0].mxu0 %v69
  %v105 = vpop.f32.mrb[0].mxu0
  %v106 = vadd.f32 0.0, %v105
  %v107 = vpop.f32.mrb[0].mxu0
  %v108 = vpop.f32.mrb[0].mxu0
  %v109 = vpop.f32.mrb[0].mxu0
  %110 = vdwg.mxu0
  %111 = vst.msk [vmem:[%s4] sm:$0xf] %vm21, %v106
  // Predicated region
  $region18: #{owlv2_forward.14} parent=0 // pred_check
    _
  $region19: #{owlv2_forward.14} parent=0 // pred_check_branch
    %113 = sbr.rel (0) target = $region21
  $region20: #{owlv2_forward.14} parent=0 // pred_region
    _
  $region21: #{owlv2_forward.14} parent=0 // pred_fallthru
    _
  // Predicated region
  $region22: #{owlv2_forward.14} parent=0 // pred_check
    _
  $region23: #{owlv2_forward.14} parent=0 // pred_check_branch
    %115 = sbr.rel (0) target = $region25
  $region24: #{owlv2_forward.14} parent=0 // pred_region
    _
  $region25: #{owlv2_forward.14} parent=0 // pred_fallthru
    _

// kernel: owlv2_forward.15
$region0: #{owlv2_forward.15}
  #allocation0 [shape = 'u32[]', space=smem, size = 0x4, offset = 0x4, fixed_abs, tag = 'smem constant byte address 0x4 - core index']
  #allocation1 [shape = 'u32[144,128]{1,0:T(1,128)}', space=vmem, size = 0x12000, scoped, tag = 'internal scratch']
  %s0 = inlined_call_operand.vmem [shape: f32[2,16,32], index: 0, kind: input, shape index: {}]
  %s1 = inlined_call_operand.vmem [shape: bf16[32,98], index: 1, kind: input, shape index: {}]
  %s2 = inlined_call_operand.vmem [shape: f32[1,98], index: 2, kind: input, shape index: {}]
  %s3 = inlined_call_operand.vmem [shape: bf16[64,64], index: 3, kind: input, shape index: {}]
  %s4 = inlined_call_operand.vmem [shape: f32[1,64], index: 4, kind: input, shape index: {}]
  %s5 = inlined_call_operand.vmem [shape: bf16[64,5], index: 5, kind: input, shape index: {}]
  %s6 = inlined_call_operand.vmem [shape: f32[1,5], index: 6, kind: input, shape index: {}]
  %s7 = inlined_call_operand.vmem [shape: f32[16,4], index: 7, kind: input, shape index: {}]
  %s8 = inlined_call_operand.vmem [shape: f32[2,2,32], index: 8, kind: input, shape index: {}]
  %s9 = inlined_call_operand.vmem [shape: f32[2,1,2], index: 9, kind: input, shape index: {}]
  %s10 = inlined_call_operand.vmem [shape: f32[2,16,37], index: 10, kind: output, shape index: {0}]
  %s11 = inlined_call_operand.vmem [shape: f32[2,16,2], index: 11, kind: output, shape index: {1}]
  %12 = xla_tuple %s10, %s11
  %s13 = sld [smem:[#allocation0]]
  $region81: #{owlv2_forward.15} parent=0
    _
  %s15 = ssub.s32 1, %s13
  %s16 = scalar_select 0, %s15, %s13
  loop: start=0, step=1, limit=4
  $region2: #{owlv2_forward.15} parent=0 // loop_pre_header
    _
  $region3: #{owlv2_forward.15} parent=0 // loop_header
    %s18 = sphi 0, %s22
    %p19 = scmp.ge.s32.totalorder %s18, 4
    %s28 = sphi 0, %s30
    %s31 = sphi 0, %s28
    %s32 = sphi 0, %s31
    %s48 = sphi 0, %s32
    %s52 = sphi 0, %s52
    %s54 = sphi 0, %s52
    %s55 = sphi 0, %s54
    %s69 = sphi 0, %s55
    %s73 = sphi 0, %s73
    %s75 = sphi 0, %s73
    %s76 = sphi 0, %s75
    %s90 = sphi 0, %s76
    %s94 = sphi 0, %s94
    %s96 = sphi 0, %s94
    %s97 = sphi 0, %s96
    %s111 = sphi 0, %s97
    %s115 = sphi 0, %s115
    %s117 = sphi 0, %s115
    %s118 = sphi 0, %s117
    %s132 = sphi 0, %s118
    %s136 = sphi 0, %s136
    %s138 = sphi 0, %s136
    %s139 = sphi 0, %s138
    %s153 = sphi 0, %s139
    %s157 = sphi 0, %s157
    %s159 = sphi 0, %s157
    %s160 = sphi 0, %s159
    %s174 = sphi 0, %s160
    %s178 = sphi 0, %s178
    %s180 = sphi 0, %s178
    %s181 = sphi 0, %s180
    %s195 = sphi 0, %s181
    %s201 = sphi 0, %s203
    %s204 = sphi 0, %s201
    %s205 = sphi 0, %s204
    %s221 = sphi 0, %s205
    %s227 = sphi 0, %s229
    %s230 = sphi 0, %s227
    %s231 = sphi 0, %s230
    %s247 = sphi 0, %s231
    %s253 = sphi 0, %s255
    %s256 = sphi 0, %s253
    %s257 = sphi 0, %s256
    %s273 = sphi 0, %s257
    %s279 = sphi 0, %s281
    %s282 = sphi 0, %s279
    %s283 = sphi 0, %s282
    %s299 = sphi 0, %s283
  $region4: #{owlv2_forward.15} parent=0 // loop_header_branch
    %21 = sbr.rel (%p19) target = $region8
  $region5: #{owlv2_forward.15} parent=0 // loop_body
    %s23 = ssub.s32 %s18, 1
    %s24 = ssub.s32 %s18, 2
    %s25 = sadd.s32 %s18, 1
    %s26 = ssub.s32 %s18, %s25
    %p27 = scmp.eq.s32.totalorder %s26, 0
    %s29 = sadd.s32 %s28, 1
    %s30 = scalar_select %p27, %s28, %s29
    %p33 = pneg %p27
    %p34 = scmp.eq.s32.totalorder %s18, 1
    %p35 = por %p33, %p34
    %p36 = scmp.ne.s32.totalorder %s28, %s31
    %p37 = scmp.eq.s32.totalorder %s18, 0
    %p38 = por %p36, %p37
    %p39 = scmp.ne.s32.totalorder %s28, %s31
    %p40 = scmp.eq.s32.totalorder %s23, 1
    %p41 = por %p39, %p40
    %p42 = scmp.ne.s32.totalorder %s31, %s32
    %p43 = scmp.eq.s32.totalorder %s23, 0
    %p44 = por %p42, %p43
    %p45 = scmp.ne.s32.totalorder %s31, %s32
    %p46 = scmp.eq.s32.totalorder %s24, 1
    %p47 = por %p45, %p46
    %p49 = scmp.ne.s32.totalorder %s32, %s48
    %p50 = scmp.eq.s32.totalorder %s24, 0
    %p51 = por %p49, %p50
    %s53 = sadd.s32 %s52, 1
    %p56 = scmp.eq.s32.totalorder %s18, 1
    %p57 = scmp.ne.s32.totalorder %s52, %s54
    %p58 = scmp.eq.s32.totalorder %s18, 0
    %p59 = por %p57, %p58
    %p60 = scmp.ne.s32.totalorder %s52, %s54
    %p61 = scmp.eq.s32.totalorder %s23, 1
    %p62 = por %p60, %p61
    %p63 = scmp.ne.s32.totalorder %s54, %s55
    %p64 = scmp.eq.s32.totalorder %s23, 0
    %p65 = por %p63, %p64
    %p66 = scmp.ne.s32.totalorder %s54, %s55
    %p67 = scmp.eq.s32.totalorder %s24, 1
    %p68 = por %p66, %p67
    %p70 = scmp.ne.s32.totalorder %s55, %s69
    %p71 = scmp.eq.s32.totalorder %s24, 0
    %p72 = por %p70, %p71
    %s74 = sadd.s32 %s73, 1
    %p77 = scmp.eq.s32.totalorder %s18, 1
    %p78 = scmp.ne.s32.totalorder %s73, %s75
    %p79 = scmp.eq.s32.totalorder %s18, 0
    %p80 = por %p78, %p79
    %p81 = scmp.ne.s32.totalorder %s73, %s75
    %p82 = scmp.eq.s32.totalorder %s23, 1
    %p83 = por %p81, %p82
    %p84 = scmp.ne.s32.totalorder %s75, %s76
    %p85 = scmp.eq.s32.totalorder %s23, 0
    %p86 = por %p84, %p85
    %p87 = scmp.ne.s32.totalorder %s75, %s76
    %p88 = scmp.eq.s32.totalorder %s24, 1
    %p89 = por %p87, %p88
    %p91 = scmp.ne.s32.totalorder %s76, %s90
    %p92 = scmp.eq.s32.totalorder %s24, 0
    %p93 = por %p91, %p92
    %s95 = sadd.s32 %s94, 1
    %p98 = scmp.eq.s32.totalorder %s18, 1
    %p99 = scmp.ne.s32.totalorder %s94, %s96
    %p100 = scmp.eq.s32.totalorder %s18, 0
    %p101 = por %p99, %p100
    %p102 = scmp.ne.s32.totalorder %s94, %s96
    %p103 = scmp.eq.s32.totalorder %s23, 1
    %p104 = por %p102, %p103
    %p105 = scmp.ne.s32.totalorder %s96, %s97
    %p106 = scmp.eq.s32.totalorder %s23, 0
    %p107 = por %p105, %p106
    %p108 = scmp.ne.s32.totalorder %s96, %s97
    %p109 = scmp.eq.s32.totalorder %s24, 1
    %p110 = por %p108, %p109
    %p112 = scmp.ne.s32.totalorder %s97, %s111
    %p113 = scmp.eq.s32.totalorder %s24, 0
    %p114 = por %p112, %p113
    %s116 = sadd.s32 %s115, 1
    %p119 = scmp.eq.s32.totalorder %s18, 1
    %p120 = scmp.ne.s32.totalorder %s115, %s117
    %p121 = scmp.eq.s32.totalorder %s18, 0
    %p122 = por %p120, %p121
    %p123 = scmp.ne.s32.totalorder %s115, %s117
    %p124 = scmp.eq.s32.totalorder %s23, 1
    %p125 = por %p123, %p124
    %p126 = scmp.ne.s32.totalorder %s117, %s118
    %p127 = scmp.eq.s32.totalorder %s23, 0
    %p128 = por %p126, %p127
    %p129 = scmp.ne.s32.totalorder %s117, %s118
    %p130 = scmp.eq.s32.totalorder %s24, 1
    %p131 = por %p129, %p130
    %p133 = scmp.ne.s32.totalorder %s118, %s132
    %p134 = scmp.eq.s32.totalorder %s24, 0
    %p135 = por %p133, %p134
    %s137 = sadd.s32 %s136, 1
    %p140 = scmp.eq.s32.totalorder %s18, 1
    %p141 = scmp.ne.s32.totalorder %s136, %s138
    %p142 = scmp.eq.s32.totalorder %s18, 0
    %p143 = por %p141, %p142
    %p144 = scmp.ne.s32.totalorder %s136, %s138
    %p145 = scmp.eq.s32.totalorder %s23, 1
    %p146 = por %p144, %p145
    %p147 = scmp.ne.s32.totalorder %s138, %s139
    %p148 = scmp.eq.s32.totalorder %s23, 0
    %p149 = por %p147, %p148
    %p150 = scmp.ne.s32.totalorder %s138, %s139
    %p151 = scmp.eq.s32.totalorder %s24, 1
    %p152 = por %p150, %p151
    %p154 = scmp.ne.s32.totalorder %s139, %s153
    %p155 = scmp.eq.s32.totalorder %s24, 0
    %p156 = por %p154, %p155
    %s158 = sadd.s32 %s157, 1
    %p161 = scmp.eq.s32.totalorder %s18, 1
    %p162 = scmp.ne.s32.totalorder %s157, %s159
    %p163 = scmp.eq.s32.totalorder %s18, 0
    %p164 = por %p162, %p163
    %p165 = scmp.ne.s32.totalorder %s157, %s159
    %p166 = scmp.eq.s32.totalorder %s23, 1
    %p167 = por %p165, %p166
    %p168 = scmp.ne.s32.totalorder %s159, %s160
    %p169 = scmp.eq.s32.totalorder %s23, 0
    %p170 = por %p168, %p169
    %p171 = scmp.ne.s32.totalorder %s159, %s160
    %p172 = scmp.eq.s32.totalorder %s24, 1
    %p173 = por %p171, %p172
    %p175 = scmp.ne.s32.totalorder %s160, %s174
    %p176 = scmp.eq.s32.totalorder %s24, 0
    %p177 = por %p175, %p176
    %s179 = sadd.s32 %s178, 1
    %p182 = scmp.eq.s32.totalorder %s18, 1
    %p183 = scmp.ne.s32.totalorder %s178, %s180
    %p184 = scmp.eq.s32.totalorder %s18, 0
    %p185 = por %p183, %p184
    %p186 = scmp.ne.s32.totalorder %s178, %s180
    %p187 = scmp.eq.s32.totalorder %s23, 1
    %p188 = por %p186, %p187
    %p189 = scmp.ne.s32.totalorder %s180, %s181
    %p190 = scmp.eq.s32.totalorder %s23, 0
    %p191 = por %p189, %p190
    %p192 = scmp.ne.s32.totalorder %s180, %s181
    %p193 = scmp.eq.s32.totalorder %s24, 1
    %p194 = por %p192, %p193
    %p196 = scmp.ne.s32.totalorder %s181, %s195
    %p197 = scmp.eq.s32.totalorder %s24, 0
    %p198 = por %p196, %p197
    %s199 = ssub.s32 %s18, %s25
    %p200 = scmp.eq.s32.totalorder %s199, 0
    %s202 = sadd.s32 %s201, 1
    %s203 = scalar_select %p200, %s201, %s202
    %p206 = pneg %p200
    %p207 = scmp.eq.s32.totalorder %s18, 1
    %p208 = por %p206, %p207
    %p209 = scmp.ne.s32.totalorder %s201, %s204
    %p210 = scmp.eq.s32.totalorder %s18, 0
    %p211 = por %p209, %p210
    %p212 = scmp.ne.s32.totalorder %s201, %s204
    %p213 = scmp.eq.s32.totalorder %s23, 1
    %p214 = por %p212, %p213
    %p215 = scmp.ne.s32.totalorder %s204, %s205
    %p216 = scmp.eq.s32.totalorder %s23, 0
    %p217 = por %p215, %p216
    %p218 = scmp.ne.s32.totalorder %s204, %s205
    %p219 = scmp.eq.s32.totalorder %s24, 1
    %p220 = por %p218, %p219
    %p222 = scmp.ne.s32.totalorder %s205, %s221
    %p223 = scmp.eq.s32.totalorder %s24, 0
    %p224 = por %p222, %p223
    %s225 = ssub.s32 %s18, %s25
    %p226 = scmp.eq.s32.totalorder %s225, 0
    %s228 = sadd.s32 %s227, 1
    %s229 = scalar_select %p226, %s227, %s228
    %p232 = pneg %p226
    %p233 = scmp.eq.s32.totalorder %s18, 1
    %p234 = por %p232, %p233
    %p235 = scmp.ne.s32.totalorder %s227, %s230
    %p236 = scmp.eq.s32.totalorder %s18, 0
    %p237 = por %p235, %p236
    %p238 = scmp.ne.s32.totalorder %s227, %s230
    %p239 = scmp.eq.s32.totalorder %s23, 1
    %p240 = por %p238, %p239
    %p241 = scmp.ne.s32.totalorder %s230, %s231
    %p242 = scmp.eq.s32.totalorder %s23, 0
    %p243 = por %p241, %p242
    %p244 = scmp.ne.s32.totalorder %s230, %s231
    %p245 = scmp.eq.s32.totalorder %s24, 1
    %p246 = por %p244, %p245
    %p248 = scmp.ne.s32.totalorder %s231, %s247
    %p249 = scmp.eq.s32.totalorder %s24, 0
    %p250 = por %p248, %p249
    %s251 = ssub.s32 %s18, %s25
    %p252 = scmp.eq.s32.totalorder %s251, 0
    %s254 = sadd.s32 %s253, 1
    %s255 = scalar_select %p252, %s253, %s254
    %p258 = pneg %p252
    %p259 = scmp.eq.s32.totalorder %s18, 1
    %p260 = por %p258, %p259
    %p261 = scmp.ne.s32.totalorder %s253, %s256
    %p262 = scmp.eq.s32.totalorder %s18, 0
    %p263 = por %p261, %p262
    %p264 = scmp.ne.s32.totalorder %s253, %s256
    %p265 = scmp.eq.s32.totalorder %s23, 1
    %p266 = por %p264, %p265
    %p267 = scmp.ne.s32.totalorder %s256, %s257
    %p268 = scmp.eq.s32.totalorder %s23, 0
    %p269 = por %p267, %p268
    %p270 = scmp.ne.s32.totalorder %s256, %s257
    %p271 = scmp.eq.s32.totalorder %s24, 1
    %p272 = por %p270, %p271
    %p274 = scmp.ne.s32.totalorder %s257, %s273
    %p275 = scmp.eq.s32.totalorder %s24, 0
    %p276 = por %p274, %p275
    %s277 = ssub.s32 %s18, %s25
    %p278 = scmp.eq.s32.totalorder %s277, 0
    %s280 = sadd.s32 %s279, 1
    %s281 = scalar_select %p278, %s279, %s280
    %p284 = pneg %p278
    %p285 = scmp.eq.s32.totalorder %s18, 1
    %p286 = por %p284, %p285
    %p287 = scmp.ne.s32.totalorder %s279, %s282
    %p288 = scmp.eq.s32.totalorder %s18, 0
    %p289 = por %p287, %p288
    %p290 = scmp.ne.s32.totalorder %s279, %s282
    %p291 = scmp.eq.s32.totalorder %s23, 1
    %p292 = por %p290, %p291
    %p293 = scmp.ne.s32.totalorder %s282, %s283
    %p294 = scmp.eq.s32.totalorder %s23, 0
    %p295 = por %p293, %p294
    %p296 = scmp.ne.s32.totalorder %s282, %s283
    %p297 = scmp.eq.s32.totalorder %s24, 1
    %p298 = por %p296, %p297
    %p300 = scmp.ne.s32.totalorder %s283, %s299
    %p301 = scmp.eq.s32.totalorder %s24, 0
    %p302 = por %p300, %p301
    %p303 = scmp.le.s32.totalorder 1, %s18
    %p304 = scmp.lt.s32.totalorder %s18, 3
    %p305 = pnand %p303, %p304
    %p306 = pneg %p305
    // Predicated region
    $region9: #{owlv2_forward.15} parent=5 // pred_check
      _
    $region10: #{owlv2_forward.15} parent=5 // pred_check_branch
      %308 = sbr.rel (%p305) target = $region12
    $region11: #{owlv2_forward.15} parent=5 // pred_region
      %s309 = ssub.s32 %s18, 1
      // Predicated region
      $region13: #{owlv2_forward.15} parent=11 // pred_check
        %p310 = pneg %p65
      $region14: #{owlv2_forward.15} parent=11 // pred_check_branch
        %312 = sbr.rel (%p310) target = $region16
      $region15: #{owlv2_forward.15} parent=11 // pred_region
        _
      $region16: #{owlv2_forward.15} parent=11 // pred_fallthru
        _
      // Predicated region
      $region17: #{owlv2_forward.15} parent=11 // pred_check
        %p313 = pneg %p86
      $region18: #{owlv2_forward.15} parent=11 // pred_check_branch
        %315 = sbr.rel (%p313) target = $region20
      $region19: #{owlv2_forward.15} parent=11 // pred_region
        _
      $region20: #{owlv2_forward.15} parent=11 // pred_fallthru
        _
      // Predicated region
      $region21: #{owlv2_forward.15} parent=11 // pred_check
        %p316 = pneg %p107
      $region22: #{owlv2_forward.15} parent=11 // pred_check_branch
        %318 = sbr.rel (%p316) target = $region24
      $region23: #{owlv2_forward.15} parent=11 // pred_region
        _
      $region24: #{owlv2_forward.15} parent=11 // pred_fallthru
        _
      // Predicated region
      $region25: #{owlv2_forward.15} parent=11 // pred_check
        %p319 = pneg %p128
      $region26: #{owlv2_forward.15} parent=11 // pred_check_branch
        %321 = sbr.rel (%p319) target = $region28
      $region27: #{owlv2_forward.15} parent=11 // pred_region
        _
      $region28: #{owlv2_forward.15} parent=11 // pred_fallthru
        _
      // Predicated region
      $region29: #{owlv2_forward.15} parent=11 // pred_check
        %p322 = pneg %p149
      $region30: #{owlv2_forward.15} parent=11 // pred_check_branch
        %324 = sbr.rel (%p322) target = $region32
      $region31: #{owlv2_forward.15} parent=11 // pred_region
        _
      $region32: #{owlv2_forward.15} parent=11 // pred_fallthru
        _
      // Predicated region
      $region33: #{owlv2_forward.15} parent=11 // pred_check
        %p325 = pneg %p170
      $region34: #{owlv2_forward.15} parent=11 // pred_check_branch
        %327 = sbr.rel (%p325) target = $region36
      $region35: #{owlv2_forward.15} parent=11 // pred_region
        _
      $region36: #{owlv2_forward.15} parent=11 // pred_fallthru
        _
      // Predicated region
      $region37: #{owlv2_forward.15} parent=11 // pred_check
        %p328 = pneg %p191
      $region38: #{owlv2_forward.15} parent=11 // pred_check_branch
        %330 = sbr.rel (%p328) target = $region40
      $region39: #{owlv2_forward.15} parent=11 // pred_region
        _
      $region40: #{owlv2_forward.15} parent=11 // pred_fallthru
        _
    $region12: #{owlv2_forward.15} parent=5 // pred_fallthru
      _
    %p331 = scmp.lt.s32.totalorder %s18, 2
    // Predicated region
    $region41: #{owlv2_forward.15} parent=5 // pred_check
      %p332 = pneg %p331
    $region42: #{owlv2_forward.15} parent=5 // pred_check_branch
      %334 = sbr.rel (%p332) target = $region44
    $region43: #{owlv2_forward.15} parent=5 // pred_region
      // Predicated region
      $region45: #{owlv2_forward.15} parent=43 // pred_check
        %p335 = pneg %p38
      $region46: #{owlv2_forward.15} parent=43 // pred_check_branch
        %337 = sbr.rel (%p335) target = $region48
      $region47: #{owlv2_forward.15} parent=43 // pred_region
        %p338 = scmp.lt.s32.totalorder %s18, 1
        %s339 = scalar_select %p338, %s18, 1
        %s340 = smul.addr %s339, 2
        %s341 = smul.addr %s340, 8
        %s342 = scalar_lea.vmem %s0, %s341
      $region48: #{owlv2_forward.15} parent=43 // pred_fallthru
        _
      // Predicated region
      $region49: #{owlv2_forward.15} parent=43 // pred_check
        %p343 = pneg %p211
      $region50: #{owlv2_forward.15} parent=43 // pred_check_branch
        %345 = sbr.rel (%p343) target = $region52
      $region51: #{owlv2_forward.15} parent=43 // pred_region
        %p346 = scmp.lt.s32.totalorder %s18, 1
        %s347 = scalar_select %p346, %s18, 1
        %s348 = smul.addr %s347, 2
        %s349 = scalar_lea.vmem %s8, %s348
      $region52: #{owlv2_forward.15} parent=43 // pred_fallthru
        _
      // Predicated region
      $region53: #{owlv2_forward.15} parent=43 // pred_check
        %p350 = pneg %p237
      $region54: #{owlv2_forward.15} parent=43 // pred_check_branch
        %352 = sbr.rel (%p350) target = $region56
      $region55: #{owlv2_forward.15} parent=43 // pred_region
        %p353 = scmp.lt.s32.totalorder %s18, 1
        %s354 = scalar_select %p353, %s18, 1
        %s355 = scalar_lea.vmem %s9, %s354
      $region56: #{owlv2_forward.15} parent=43 // pred_fallthru
        _
    $region44: #{owlv2_forward.15} parent=5 // pred_fallthru
      _
    %p356 = scmp.le.s32.totalorder 1, %s18
    %p357 = scmp.lt.s32.totalorder %s18, 3
    %p358 = pnand %p356, %p357
    %p359 = pneg %p358
    // Predicated region
    $region57: #{owlv2_forward.15} parent=5 // pred_check
      _
    $region58: #{owlv2_forward.15} parent=5 // pred_check_branch
      %361 = sbr.rel (%p358) target = $region60
    $region59: #{owlv2_forward.15} parent=5 // pred_region
      %s362 = ssub.s32 %s18, 1
      %p363 = scmp.lt.s32.totalorder %s23, 1
      %s364 = scalar_select %p363, %s23, 1
      %s365 = smul.addr %s364, 2
      %s366 = smul.addr %s365, 8
      %s367 = scalar_lea.vmem %s0, %s366
      %p368 = pneg %p44
      %p369 = pneg %p41
      %p370 = pneg %p65
      %p371 = pneg %p62
      %p372 = pneg %p86
      %p373 = pneg %p83
      %p374 = pneg %p107
      %p375 = pneg %p104
      %p376 = pneg %p128
      %p377 = pneg %p125
      %p378 = pneg %p149
      %p379 = pneg %p146
      %p380 = pneg %p170
      %p381 = pneg %p167
      %p382 = pneg %p191
      %p383 = pneg %p188
      %p384 = scmp.lt.s32.totalorder %s23, 1
      %s385 = scalar_select %p384, %s23, 1
      %s386 = smul.addr %s385, 2
      %s387 = scalar_lea.vmem %s8, %s386
      %p388 = pneg %p217
      %p389 = pneg %p214
      %p390 = scmp.lt.s32.totalorder %s23, 1
      %s391 = scalar_select %p390, %s23, 1
      %s392 = scalar_lea.vmem %s9, %s391
      %p393 = pneg %p243
      %p394 = pneg %p240
      %p395 = pneg %p269
      %p396 = pneg %p266
      %p397 = scmp.lt.s32.totalorder %s23, 1
      %s398 = scalar_select %p397, %s23, 1
      %s399 = smul.addr %s398, 2
      %s400 = smul.addr %s399, 8
      %s401 = scalar_lea.vmem %s10, %s400
      %p402 = pneg %p295
      %p403 = pneg %p292
      %p404 = scmp.lt.s32.totalorder %s23, 1
      %s405 = scalar_select %p404, %s23, 1
      %s406 = smul.addr %s405, 2
      %s407 = smul.addr %s406, 8
      %s408 = scalar_lea.vmem %s11, %s407
      %p409 = scmp.lt.s32.totalorder %s23, 1
      %s410 = scalar_select %p409, %s23, 1
      %s411 = smul.addr %s410, 2
      %s412 = smul.addr %s411, 8
      %s413 = scalar_lea.vmem %s0, %s412
      %p414 = scmp.lt.s32.totalorder %s23, 1
      %s415 = scalar_select %p414, %s23, 1
      %s416 = smul.addr %s415, 2
      %s417 = scalar_lea.vmem %s8, %s416
      %p418 = scmp.lt.s32.totalorder %s23, 1
      %s419 = scalar_select %p418, %s23, 1
      %s420 = scalar_lea.vmem %s9, %s419
      %p421 = scmp.lt.s32.totalorder %s23, 1
      %s422 = scalar_select %p421, %s23, 1
      %s423 = smul.addr %s422, 2
      %s424 = smul.addr %s423, 8
      %s425 = scalar_lea.vmem %s10, %s424
      %p426 = scmp.lt.s32.totalorder %s23, 1
      %s427 = scalar_select %p426, %s23, 1
      %s428 = smul.addr %s427, 2
      %s429 = smul.addr %s428, 8
      %s430 = scalar_lea.vmem %s11, %s429
      %v432 = vld [vmem:[%s413] sm:$0xff]
      %v433 = vld [vmem:[%s413 + $0x8] sm:$0xff]
      %v434 = vpack.c.bf16 %v433, %v432
      %v435 = vld [vmem:[%s1] sm:$0xf]
      %v436 = vld [vmem:[%s1 + $0x4] sm:$0xf]
      %v437 = vld [vmem:[%s1 + $0x8] sm:$0xf]
      %v438 = vld [vmem:[%s1 + $0xc] sm:$0xf]
      %v439 = vld [vmem:[%s2] sm:$0x1]
      %v441 = vlaneseq
      %v442 = vshrl.u32 %v441, 7
      %v443 = vsub.s32 0, %v442
      %v444 = vrot.slane %v439, %v443
      %v450 = vunpack.c.l.b16 %v435
      %v451 = vunpack.c.l.b16 %v436
      %v452 = vunpack.c.l.b16 %v437
      %v453 = vunpack.c.l.b16 %v438
      %v454 = vpack.c.b16 %v451, %v450
      %v455 = vpack.c.b16 %v453, %v452
      %vm458 = vcmask 261120
      %v460 = vsel %vm458, %v434, 0
      %462 = vmatprep.subr.bf16.mxu0 0
      %463 = vmatpush1.bf16.msra.mxu0 %v454
      %464 = vmatprep.subr.bf16.mxu0 0
      %465 = vmatpush1.bf16.msra.mxu0 %v455
      %466 = vmatprep.subr.bf16.mxu0 0
      %467 = vmatpush1.bf16.msra.mxu0 0
      %468 = vmatprep.subr.bf16.mxu0 0
      %469 = vmatpush1.bf16.msra.mxu0 0
      %470 = vmatprep.subr.bf16.mxu0 0
      %471 = vmatpush1.bf16.msra.mxu0 0
      %472 = vmatprep.subr.bf16.mxu0 0
      %473 = vmatpush1.bf16.msra.mxu0 0
      %474 = vmatprep.subr.bf16.mxu0 0
      %475 = vmatpush1.bf16.msra.mxu0 0
      %476 = vmatprep.subr.bf16.mxu0 0
      %477 = vmatpush1.bf16.msra.mxu0 0
      %478 = vmatprep.subr.bf16.mxu0 0
      %479 = vmatpush1.bf16.msra.mxu0 0
      %480 = vmatprep.subr.bf16.mxu0 0
      %481 = vmatpush1.bf16.msra.mxu0 0
      %482 = vmatprep.subr.bf16.mxu0 0
      %483 = vmatpush1.bf16.msra.mxu0 0
      %484 = vmatprep.subr.bf16.mxu0 0
      %485 = vmatpush1.bf16.msra.mxu0 0
      %486 = vmatprep.subr.bf16.mxu0 0
      %487 = vmatpush1.bf16.msra.mxu0 0
      %488 = vmatprep.subr.bf16.mxu0 0
      %489 = vmatpush1.bf16.msra.mxu0 0
      %490 = vmatprep.subr.bf16.mxu0 0
      %491 = vmatpush1.bf16.msra.mxu0 0
      %492 = vmatprep.subr.bf16.mxu0 0
      %493 = vmatpush1.bf16.msra.mxu0 0
      %494 = vmatprep.mubr.bf16.mxu0 0
      %495 = vmatmul.mubr.bf16.gmra.mrb[0].mxu0 %v460
      %v496 = vpop.f32.mrb[0].mxu0
      %v497 = vadd.f32 %v444, %v496
      %v498 = vpop.f32.mrb[0].mxu0
      %v499 = vpop.f32.mrb[0].mxu0
      %v500 = vadd.f32 %v444, %v499
      %v501 = vpop.f32.mrb[0].mxu0
      %502 = vdwg.mxu0
      %v503 = vmul.f32 %v497, 0.5
      %v504 = vmul.f32 %v500, 0.5
      %v505 = vmul.f32 %v497, 0.044715
      %v506 = vmul.f32 %v500, 0.044715
      %v507 = vmul.f32 %v505, %v497
      %v508 = vmul.f32 %v506, %v500
      %v509 = vmul.f32 %v507, %v497
      %v510 = vmul.f32 %v508, %v500
      %v511 = vadd.f32 %v497, %v509
      %v512 = vadd.f32 %v500, %v510
      %v513 = vmul.f32 %v511, 0.7978846
      %v514 = vmul.f32 %v512, 0.7978846
      %v515 = vtanh.pop %v513
      %v516 = vtanh.pop %v514
      %v517 = vadd.f32 %v515, 1.0
      %v518 = vadd.f32 %v516, 1.0
      %v519 = vmul.f32 %v503, %v517
      %v520 = vmul.f32 %v504, %v518
      %v521 = vpack.c.bf16 %v520, %v519
      %v522 = vld [vmem:[%s3] sm:$0xf]
      %v523 = vld [vmem:[%s3 + $0x4] sm:$0xf]
      %v524 = vld [vmem:[%s3 + $0x8] sm:$0xf]
      %v525 = vld [vmem:[%s3 + $0xc] sm:$0xf]
      %v526 = vld [vmem:[%s3 + $0x10] sm:$0xf]
      %v527 = vld [vmem:[%s3 + $0x14] sm:$0xf]
      %v528 = vld [vmem:[%s3 + $0x18] sm:$0xf]
      %v529 = vld [vmem:[%s3 + $0x1c] sm:$0xf]
      %v530 = vld [vmem:[%s4] sm:$0x1]
      %v532 = vlaneseq
      %v533 = vshrl.u32 %v532, 7
      %v534 = vsub.s32 0, %v533
      %v535 = vrot.slane %v530, %v534
      %538 = vrot.lane.b32.xlu0 %v521, 94
      %v539 = vpop.permute.xlu0 %538
      %v548 = vunpack.c.l.b16 %v522
      %v549 = vunpack.c.l.b16 %v523
      %v550 = vunpack.c.l.b16 %v524
      %v551 = vunpack.c.l.b16 %v525
      %v552 = vunpack.c.l.b16 %v526
      %v553 = vunpack.c.l.b16 %v527
      %v554 = vunpack.c.l.b16 %v528
      %v555 = vunpack.c.l.b16 %v529
      %v556 = vpack.c.b16 %v549, %v548
      %v557 = vpack.c.b16 %v551, %v550
      %v558 = vpack.c.b16 %v553, %v552
      %v559 = vpack.c.b16 %v555, %v554
      %vm564 = vcmask 523264
      %v566 = vsel %vm564, %v539, 0
      %568 = vmatprep.subr.bf16.mxu0 0
      %569 = vmatpush1.bf16.msra.mxu0 %v556
      %570 = vmatprep.subr.bf16.mxu0 0
      %571 = vmatpush1.bf16.msra.mxu0 %v557
      %572 = vmatprep.subr.bf16.mxu0 0
      %573 = vmatpush1.bf16.msra.mxu0 %v558
      %574 = vmatprep.subr.bf16.mxu0 0
      %575 = vmatpush1.bf16.msra.mxu0 %v559
      %576 = vmatprep.subr.bf16.mxu0 0
      %577 = vmatpush1.bf16.msra.mxu0 0
      %578 = vmatprep.subr.bf16.mxu0 0
      %579 = vmatpush1.bf16.msra.mxu0 0
      %580 = vmatprep.subr.bf16.mxu0 0
      %581 = vmatpush1.bf16.msra.mxu0 0
      %582 = vmatprep.subr.bf16.mxu0 0
      %583 = vmatpush1.bf16.msra.mxu0 0
      %584 = vmatprep.subr.bf16.mxu0 0
      %585 = vmatpush1.bf16.msra.mxu0 0
      %586 = vmatprep.subr.bf16.mxu0 0
      %587 = vmatpush1.bf16.msra.mxu0 0
      %588 = vmatprep.subr.bf16.mxu0 0
      %589 = vmatpush1.bf16.msra.mxu0 0
      %590 = vmatprep.subr.bf16.mxu0 0
      %591 = vmatpush1.bf16.msra.mxu0 0
      %592 = vmatprep.subr.bf16.mxu0 0
      %593 = vmatpush1.bf16.msra.mxu0 0
      %594 = vmatprep.subr.bf16.mxu0 0
      %595 = vmatpush1.bf16.msra.mxu0 0
      %596 = vmatprep.subr.bf16.mxu0 0
      %597 = vmatpush1.bf16.msra.mxu0 0
      %598 = vmatprep.subr.bf16.mxu0 0
      %599 = vmatpush1.bf16.msra.mxu0 0
      %600 = vmatprep.mubr.bf16.mxu0 0
      %601 = vmatmul.mubr.bf16.gmra.mrb[0].mxu0 %v566
      %v602 = vpop.f32.mrb[0].mxu0
      %v603 = vadd.f32 %v535, %v602
      %v604 = vpop.f32.mrb[0].mxu0
      %v605 = vpop.f32.mrb[0].mxu0
      %v606 = vadd.f32 %v535, %v605
      %v607 = vpop.f32.mrb[0].mxu0
      %608 = vdwg.mxu0
      %v609 = vmul.f32 %v603, 0.5
      %v610 = vmul.f32 %v606, 0.5
      %v611 = vmul.f32 %v603, 0.044715
      %v612 = vmul.f32 %v606, 0.044715
      %v613 = vmul.f32 %v611, %v603
      %v614 = vmul.f32 %v612, %v606
      %v615 = vmul.f32 %v613, %v603
      %v616 = vmul.f32 %v614, %v606
      %v617 = vadd.f32 %v603, %v615
      %v618 = vadd.f32 %v606, %v616
      %v619 = vmul.f32 %v617, 0.7978846
      %v620 = vmul.f32 %v618, 0.7978846
      %v621 = vtanh.pop %v619
      %v622 = vtanh.pop %v620
      %v623 = vadd.f32 %v621, 1.0
      %v624 = vadd.f32 %v622, 1.0
      %v625 = vmul.f32 %v609, %v623
      %v626 = vmul.f32 %v610, %v624
      %v627 = vpack.c.bf16 %v626, %v625
      %v628 = vld [vmem:[%s5] sm:$0xf]
      %v629 = vld [vmem:[%s5 + $0x4] sm:$0xf]
      %v630 = vld [vmem:[%s5 + $0x8] sm:$0xf]
      %v631 = vld [vmem:[%s5 + $0xc] sm:$0xf]
      %v632 = vld [vmem:[%s5 + $0x10] sm:$0xf]
      %v633 = vld [vmem:[%s5 + $0x14] sm:$0xf]
      %v634 = vld [vmem:[%s5 + $0x18] sm:$0xf]
      %v635 = vld [vmem:[%s5 + $0x1c] sm:$0xf]
      %v636 = vld [vmem:[%s6] sm:$0x1]
      %v638 = vlaneseq
      %v639 = vshrl.u32 %v638, 7
      %v640 = vsub.s32 0, %v639
      %v641 = vrot.slane %v636, %v640
      %v651 = vunpack.c.l.b16 %v628
      %v652 = vunpack.c.l.b16 %v629
      %v653 = vunpack.c.l.b16 %v630
      %v654 = vunpack.c.l.b16 %v631
      %v655 = vunpack.c.l.b16 %v632
      %v656 = vunpack.c.l.b16 %v633
      %v657 = vunpack.c.l.b16 %v634
      %v658 = vunpack.c.l.b16 %v635
      %v659 = vpack.c.b16 %v652, %v651
      %v660 = vpack.c.b16 %v654, %v653
      %v661 = vpack.c.b16 %v656, %v655
      %v662 = vpack.c.b16 %v658, %v657
      %v668 = vsel %vm564, %v627, 0
      %670 = vmatprep.subr.bf16.mxu0 0
      %671 = vmatpush1.bf16.msra.mxu0 %v659
      %672 = vmatprep.subr.bf16.mxu0 0
      %673 = vmatpush1.bf16.msra.mxu0 %v660
      %674 = vmatprep.subr.bf16.mxu0 0
      %675 = vmatpush1.bf16.msra.mxu0 %v661
      %676 = vmatprep.subr.bf16.mxu0 0
      %677 = vmatpush1.bf16.msra.mxu0 %v662
      %678 = vmatprep.subr.bf16.mxu0 0
      %679 = vmatpush1.bf16.msra.mxu0 0
      %680 = vmatprep.subr.bf16.mxu0 0
      %681 = vmatpush1.bf16.msra.mxu0 0
      %682 = vmatprep.subr.bf16.mxu0 0
      %683 = vmatpush1.bf16.msra.mxu0 0
      %684 = vmatprep.subr.bf16.mxu0 0
      %685 = vmatpush1.bf16.msra.mxu0 0
      %686 = vmatprep.subr.bf16.mxu0 0
      %687 = vmatpush1.bf16.msra.mxu0 0
      %688 = vmatprep.subr.bf16.mxu0 0
      %689 = vmatpush1.bf16.msra.mxu0 0
      %690 = vmatprep.subr.bf16.mxu0 0
      %691 = vmatpush1.bf16.msra.mxu0 0
      %692 = vmatprep.subr.bf16.mxu0 0
      %693 = vmatpush1.bf16.msra.mxu0 0
      %694 = vmatprep.subr.bf16.mxu0 0
      %695 = vmatpush1.bf16.msra.mxu0 0
      %696 = vmatprep.subr.bf16.mxu0 0
      %697 = vmatpush1.bf16.msra.mxu0 0
      %698 = vmatprep.subr.bf16.mxu0 0
      %699 = vmatpush1.bf16.msra.mxu0 0
      %700 = vmatprep.subr.bf16.mxu0 0
      %701 = vmatpush1.bf16.msra.mxu0 0
      %702 = vmatprep.mubr.bf16.mxu0 0
      %703 = vmatmul.mubr.bf16.gmra.mrb[0].mxu0 %v668
      %v704 = vpop.f32.mrb[0].mxu0
      %v705 = vadd.f32 %v641, %v704
      %v706 = vpop.f32.mrb[0].mxu0
      %v707 = vpop.f32.mrb[0].mxu0
      %v708 = vadd.f32 %v641, %v707
      %v709 = vpop.f32.mrb[0].mxu0
      %710 = vdwg.mxu0
      %v711 = vld [vmem:[%s7] sm:$0xff]
      %v712 = vld [vmem:[%s7 + $0x8] sm:$0xff]
      %v713 = vadd.f32 %v705, %v711
      %v714 = vadd.f32 %v708, %v712
      %v715 = vsub.f32 0.0, %v713
      %v716 = vsub.f32 0.0, %v714
      %v717 = vmul.f32 %v715, 1.442695
      %v718 = vpow.pop %v717
      %v719 = vmul.f32 %v716, 1.442695
      %v720 = vpow.pop %v719
      %v721 = vadd.f32 %v718, 1.0
      %v722 = vadd.f32 %v720, 1.0
      %v723 = vrcp.pop %v721
      %v724 = vrcp.pop %v722
      %727 = vrot.lane.b32.xlu0 %v723, 32
      %v728 = vpop.permute.xlu0 %727
      %729 = vrot.lane.b32.xlu0 %v724, 32
      %v730 = vpop.permute.xlu0 %729
      %735 = vrot.lane.b32.xlu0 %v705, 32
      %v736 = vpop.permute.xlu0 %735
      %737 = vrot.lane.b32.xlu0 %v708, 32
      %v738 = vpop.permute.xlu0 %737
      %v741 = vsel %vm458, %v497, %v728
      %v742 = vsel %vm458, %v500, %v730
      %vm743 = vcmask 293888
      %v744 = vsel %vm743, %v741, %v736
      %v745 = vsel %vm743, %v742, %v738
      %vm746 = vcmask 302080
      %747 = vst.msk [vmem:[%s425] sm:$0xff] %vm746, %v744
      %748 = vst.msk [vmem:[%s425 + $0x8] sm:$0xff] %vm746, %v745
      %v749 = vmul.f32 %v497, %v497
      %v750 = vmul.f32 %v500, %v500
      %v751 = vsel %vm458, %v749, 0.0
      %752 = vadd.xlane.f32.xlu0 %v751
      %v753 = vpop.xlane.xlu0 %752
      %v754 = vsel %vm458, %v750, 0.0
      %755 = vadd.xlane.f32.xlu0 %v754
      %v756 = vpop.xlane.xlu0 %755
      %v757 = vrsqrt.pop %v753
      %v758 = vmul.f32 %v753, %v757
      %vm759 = vcmp.eq.f32.partialorder %v753, inf
      %v760 = vsel %vm759, %v753, %v758
      %vm761 = vcmp.eq.f32.partialorder %v753, 0.0
      %v762 = vand.u32 %v753, 2147483648
      %v763 = vsel %vm761, %v762, %v760
      %v764 = vrsqrt.pop %v756
      %v765 = vmul.f32 %v756, %v764
      %vm766 = vcmp.eq.f32.partialorder %v756, inf
      %v767 = vsel %vm766, %v756, %v765
      %vm768 = vcmp.eq.f32.partialorder %v756, 0.0
      %v769 = vand.u32 %v756, 2147483648
      %v770 = vsel %vm768, %v769, %v767
      %v771 = vadd.f32 %v763, 1e-06
      %v772 = vadd.f32 %v770, 1e-06
      %v773 = vrcp.pop %v771
      %v774 = vrcp.pop %v772
      %v775 = vmul.f32 %v497, %v773
      %v776 = vmul.f32 %v500, %v774
      %v777 = vld [vmem:[%s417] sm:$0x3]
      %v778 = vmul.f32 %v777, %v777
      %vm779 = vcmask 254976
      %v780 = vsel %vm779, %v778, 0.0
      %781 = vadd.xlane.f32.xlu0 %v780
      %v782 = vpop.xlane.xlu0 %781
      %v783 = vrsqrt.pop %v782
      %v784 = vmul.f32 %v782, %v783
      %vm785 = vcmp.eq.f32.partialorder %v782, inf
      %v786 = vsel %vm785, %v782, %v784
      %vm787 = vcmp.eq.f32.partialorder %v782, 0.0
      %v788 = vand.u32 %v782, 2147483648
      %v789 = vsel %vm787, %v788, %v786
      %v790 = vadd.f32 %v789, 1e-06
      %v791 = vrcp.pop %v790
      %v792 = vmul.f32 %v777, %v791
      %vm793 = vcmp.gt.f32.partialorder %v497, 0.0
      %vm794 = vcmp.gt.f32.partialorder %v500, 0.0
      %v795 = vmul.f32 %v497, 1.442695
      %v796 = vpow.pop %v795
      %v797 = vmul.f32 %v500, 1.442695
      %v798 = vpow.pop %v797
      %v799 = vsub.f32 %v796, 1.0
      %v800 = vsub.f32 %v798, 1.0
      %v801 = vsel %vm793, %v497, %v799
      %v802 = vsel %vm794, %v500, %v800
      %v803 = vadd.f32 %v801, 1.0
      %v804 = vadd.f32 %v802, 1.0
      %v805 = vpack.c.bf16 %v776, %v775
      %v806 = vpack.c.bf16 %v792, %v792
      %808 = vset.pattern.permute.xlu0 32
      %809 = vperm.xlu0 %808, %v497
      %v810 = vpop.permute.xlu0 %809
      %813 = vset.pattern.permute.xlu0 32
      %814 = vperm.xlu0 %813, %v500
      %v815 = vpop.permute.xlu0 %814
      %v818 = vsel %vm458, %v805, 0
      %v821 = vsel %vm458, %v806, 0
      %823 = vmatprep.subr.bf16.mxu0 0
      %824 = vmatpush1.bf16.xpose.msra.mxu0 %v821
      %825 = vmatprep.subr.bf16.mxu0 0
      %826 = vmatpush1.bf16.xpose.msra.mxu0 0
      %827 = vmatprep.subr.bf16.mxu0 0
      %828 = vmatpush1.bf16.xpose.msra.mxu0 0
      %829 = vmatprep.subr.bf16.mxu0 0
      %830 = vmatpush1.bf16.xpose.msra.mxu0 0
      %831 = vmatprep.subr.bf16.mxu0 0
      %832 = vmatpush1.bf16.xpose.msra.mxu0 0
      %833 = vmatprep.subr.bf16.mxu0 0
      %834 = vmatpush1.bf16.xpose.msra.mxu0 0
      %835 = vmatprep.subr.bf16.mxu0 0
      %836 = vmatpush1.bf16.xpose.msra.mxu0 0
      %837 = vmatprep.subr.bf16.mxu0 0
      %838 = vmatpush1.bf16.xpose.msra.mxu0 0
      %839 = vmatprep.subr.bf16.mxu0 0
      %840 = vmatpush1.bf16.xpose.msra.mxu0 0
      %841 = vmatprep.subr.bf16.mxu0 0
      %842 = vmatpush1.bf16.xpose.msra.mxu0 0
      %843 = vmatprep.subr.bf16.mxu0 0
      %844 = vmatpush1.bf16.xpose.msra.mxu0 0
      %845 = vmatprep.subr.bf16.mxu0 0
      %846 = vmatpush1.bf16.xpose.msra.mxu0 0
      %847 = vmatprep.subr.bf16.mxu0 0
      %848 = vmatpush1.bf16.xpose.msra.mxu0 0
      %849 = vmatprep.subr.bf16.mxu0 0
      %850 = vmatpush1.bf16.xpose.msra.mxu0 0
      %851 = vmatprep.subr.bf16.mxu0 0
      %852 = vmatpush1.bf16.xpose.msra.mxu0 0
      %853 = vmatprep.subr.bf16.mxu0 0
      %854 = vmatpush1.bf16.xpose.msra.mxu0 0
      %855 = vmatprep.mubr.bf16.mxu0 0
      %856 = vmatmul.mubr.bf16.gmra.mrb[0].mxu0 %v818
      %v857 = vpop.f32.mrb[0].mxu0
      %v858 = vadd.f32 %v810, %v857
      %v859 = vpop.f32.mrb[0].mxu0
      %v860 = vpop.f32.mrb[0].mxu0
      %v861 = vadd.f32 %v815, %v860
      %v862 = vpop.f32.mrb[0].mxu0
      %863 = vdwg.mxu0
      %865 = vset.pattern.permute.xlu0 33
      %866 = vperm.xlu0 %865, %v803
      %v867 = vpop.permute.xlu0 %866
      %870 = vset.pattern.permute.xlu0 33
      %871 = vperm.xlu0 %870, %v804
      %v872 = vpop.permute.xlu0 %871
      %v874 = vmul.f32 %v858, %v867
      %v875 = vmul.f32 %v861, %v872
      %v876 = vld [vmem:[%s420] sm:$0x1]
      %vm877 = vcmp.gt.f32.partialorder %v876, 0.0
      %v878 = vsel %vm877, 1, 0
      %v879 = vlaneseq
      %v880 = vshrl.u32 %v879, 7
      %v881 = vsub.s32 0, %v880
      %v882 = vrot.slane %v878, %v881
      %vm883 = vcmp.eq.s32.totalorder %v882, 1
      %v884 = vsel %vm883, %v874, -1e+09
      %v885 = vsel %vm883, %v875, -1e+09
      %vm886 = vcmask 15360
      %887 = vst.msk [vmem:[%s430] sm:$0xff] %vm886, %v884
      %888 = vst.msk [vmem:[%s430 + $0x8] sm:$0xff] %vm886, %v885
      %p889 = scmp.lt.s32.totalorder %s23, 1
      %s890 = scalar_select %p889, %s23, 1
      %s891 = smul.addr %s890, 2
      %s892 = smul.addr %s891, 8
      %s893 = scalar_lea.vmem %s10, %s892
      %p894 = scmp.lt.s32.totalorder %s23, 1
      %s895 = scalar_select %p894, %s23, 1
      %s896 = smul.addr %s895, 2
      %s897 = smul.addr %s896, 8
      %s898 = scalar_lea.vmem %s11, %s897
      // Predicated region
      $region61: #{owlv2_forward.15} parent=59 // pred_check
        %p899 = pneg %p266
      $region62: #{owlv2_forward.15} parent=59 // pred_check_branch
        %901 = sbr.rel (%p899) target = $region64
      $region63: #{owlv2_forward.15} parent=59 // pred_region
        _
      $region64: #{owlv2_forward.15} parent=59 // pred_fallthru
        _
      // Predicated region
      $region65: #{owlv2_forward.15} parent=59 // pred_check
        %p902 = pneg %p292
      $region66: #{owlv2_forward.15} parent=59 // pred_check_branch
        %904 = sbr.rel (%p902) target = $region68
      $region67: #{owlv2_forward.15} parent=59 // pred_region
        _
      $region68: #{owlv2_forward.15} parent=59 // pred_fallthru
        _
    $region60: #{owlv2_forward.15} parent=5 // pred_fallthru
      _
    %p905 = scmp.le.s32.totalorder 2, %s18
    // Predicated region
    $region69: #{owlv2_forward.15} parent=5 // pred_check
      %p906 = pneg %p905
    $region70: #{owlv2_forward.15} parent=5 // pred_check_branch
      %908 = sbr.rel (%p906) target = $region72
    $region71: #{owlv2_forward.15} parent=5 // pred_region
      %s909 = ssub.s32 %s18, 2
      // Predicated region
      $region73: #{owlv2_forward.15} parent=71 // pred_check
        %p910 = pneg %p272
      $region74: #{owlv2_forward.15} parent=71 // pred_check_branch
        %912 = sbr.rel (%p910) target = $region76
      $region75: #{owlv2_forward.15} parent=71 // pred_region
        %p913 = scmp.lt.s32.totalorder %s24, 1
        %s914 = scalar_select %p913, %s24, 1
        %s915 = smul.addr %s914, 2
        %s916 = smul.addr %s915, 8
        %s917 = scalar_lea.vmem %s10, %s916
      $region76: #{owlv2_forward.15} parent=71 // pred_fallthru
        _
      // Predicated region
      $region77: #{owlv2_forward.15} parent=71 // pred_check
        %p918 = pneg %p298
      $region78: #{owlv2_forward.15} parent=71 // pred_check_branch
        %920 = sbr.rel (%p918) target = $region80
      $region79: #{owlv2_forward.15} parent=71 // pred_region
        %p921 = scmp.lt.s32.totalorder %s24, 1
        %s922 = scalar_select %p921, %s24, 1
        %s923 = smul.addr %s922, 2
        %s924 = smul.addr %s923, 8
        %s925 = scalar_lea.vmem %s11, %s924
      $region80: #{owlv2_forward.15} parent=71 // pred_fallthru
        _
    $region72: #{owlv2_forward.15} parent=5 // pred_fallthru
      _
  $region6: #{owlv2_forward.15} parent=0 // loop_footer
    %s22 = sadd.s32 1, %s18
  $region7: #{owlv2_forward.15} parent=0 // loop_footer_branch
    %17 = sbr.rel target = $region3
  $region8: #{owlv2_forward.15} parent=0 // loop_exit
    _

// kernel: owlv2_forward.12
$region0: #{owlv2_forward.12}
  #allocation0 [shape = 'u32[]', space=smem, size = 0x4, offset = 0x4, fixed_abs, tag = 'smem constant byte address 0x4 - core index']
  #allocation1 [shape = 'u32[144,128]{1,0:T(1,128)}', space=vmem, size = 0x12000, scoped, tag = 'internal scratch']
  %s0 = inlined_call_operand.vmem [shape: f32[4,8,32], index: 0, kind: input, shape index: {}]
  %s1 = inlined_call_operand.vmem [shape: f32[4,8,8], index: 1, kind: input, shape index: {}]
  %s2 = inlined_call_operand.vmem [shape: f32[1,32], index: 2, kind: input, shape index: {}]
  %s3 = inlined_call_operand.vmem [shape: f32[1,32], index: 3, kind: input, shape index: {}]
  %s4 = inlined_call_operand.vmem [shape: bf16[32,96], index: 4, kind: input, shape index: {}]
  %s5 = inlined_call_operand.vmem [shape: f32[1,96], index: 5, kind: input, shape index: {}]
  %s6 = inlined_call_operand.vmem [shape: bf16[32,32], index: 6, kind: input, shape index: {}]
  %s7 = inlined_call_operand.vmem [shape: f32[1,32], index: 7, kind: input, shape index: {}]
  %s8 = inlined_call_operand.vmem [shape: f32[1,32], index: 8, kind: input, shape index: {}]
  %s9 = inlined_call_operand.vmem [shape: f32[1,32], index: 9, kind: input, shape index: {}]
  %s10 = inlined_call_operand.vmem [shape: bf16[32,64], index: 10, kind: input, shape index: {}]
  %s11 = inlined_call_operand.vmem [shape: f32[1,64], index: 11, kind: input, shape index: {}]
  %s12 = inlined_call_operand.vmem [shape: bf16[64,32], index: 12, kind: input, shape index: {}]
  %s13 = inlined_call_operand.vmem [shape: f32[1,32], index: 13, kind: input, shape index: {}]
  %s14 = inlined_call_operand.vmem [shape: f32[4,8,32], index: 14, kind: output, shape index: {}]
  %s15 = sld [smem:[#allocation0]]
  $region89: #{owlv2_forward.12} parent=0
    _
  %s17 = ssub.s32 1, %s15
  %s18 = scalar_select 0, %s17, %s15
  loop: start=0, step=1, limit=6
  $region2: #{owlv2_forward.12} parent=0 // loop_pre_header
    _
  $region3: #{owlv2_forward.12} parent=0 // loop_header
    %s20 = sphi 0, %s24
    %p21 = scmp.ge.s32.totalorder %s20, 6
    %s30 = sphi 0, %s32
    %s33 = sphi 0, %s30
    %s34 = sphi 0, %s33
    %s50 = sphi 0, %s34
    %s56 = sphi 0, %s58
    %s59 = sphi 0, %s56
    %s60 = sphi 0, %s59
    %s76 = sphi 0, %s60
    %s80 = sphi 0, %s80
    %s82 = sphi 0, %s80
    %s83 = sphi 0, %s82
    %s97 = sphi 0, %s83
    %s101 = sphi 0, %s101
    %s103 = sphi 0, %s101
    %s104 = sphi 0, %s103
    %s118 = sphi 0, %s104
    %s122 = sphi 0, %s122
    %s124 = sphi 0, %s122
    %s125 = sphi 0, %s124
    %s139 = sphi 0, %s125
    %s143 = sphi 0, %s143
    %s145 = sphi 0, %s143
    %s146 = sphi 0, %s145
    %s160 = sphi 0, %s146
    %s164 = sphi 0, %s164
    %s166 = sphi 0, %s164
    %s167 = sphi 0, %s166
    %s181 = sphi 0, %s167
    %s185 = sphi 0, %s185
    %s187 = sphi 0, %s185
    %s188 = sphi 0, %s187
    %s202 = sphi 0, %s188
    %s206 = sphi 0, %s206
    %s208 = sphi 0, %s206
    %s209 = sphi 0, %s208
    %s223 = sphi 0, %s209
    %s227 = sphi 0, %s227
    %s229 = sphi 0, %s227
    %s230 = sphi 0, %s229
    %s244 = sphi 0, %s230
    %s248 = sphi 0, %s248
    %s250 = sphi 0, %s248
    %s251 = sphi 0, %s250
    %s265 = sphi 0, %s251
    %s269 = sphi 0, %s269
    %s271 = sphi 0, %s269
    %s272 = sphi 0, %s271
    %s286 = sphi 0, %s272
    %s290 = sphi 0, %s290
    %s292 = sphi 0, %s290
    %s293 = sphi 0, %s292
    %s307 = sphi 0, %s293
    %s311 = sphi 0, %s311
    %s313 = sphi 0, %s311
    %s314 = sphi 0, %s313
    %s328 = sphi 0, %s314
    %s334 = sphi 0, %s336
    %s337 = sphi 0, %s334
    %s338 = sphi 0, %s337
    %s354 = sphi 0, %s338
  $region4: #{owlv2_forward.12} parent=0 // loop_header_branch
    %23 = sbr.rel (%p21) target = $region8
  $region5: #{owlv2_forward.12} parent=0 // loop_body
    %s25 = ssub.s32 %s20, 1
    %s26 = ssub.s32 %s20, 2
    %s27 = sadd.s32 %s20, 1
    %s28 = ssub.s32 %s20, %s27
    %p29 = scmp.eq.s32.totalorder %s28, 0
    %s31 = sadd.s32 %s30, 1
    %s32 = scalar_select %p29, %s30, %s31
    %p35 = pneg %p29
    %p36 = scmp.eq.s32.totalorder %s20, 3
    %p37 = por %p35, %p36
    %p38 = scmp.ne.s32.totalorder %s30, %s33
    %p39 = scmp.eq.s32.totalorder %s20, 0
    %p40 = por %p38, %p39
    %p41 = scmp.ne.s32.totalorder %s30, %s33
    %p42 = scmp.eq.s32.totalorder %s25, 3
    %p43 = por %p41, %p42
    %p44 = scmp.ne.s32.totalorder %s33, %s34
    %p45 = scmp.eq.s32.totalorder %s25, 0
    %p46 = por %p44, %p45
    %p47 = scmp.ne.s32.totalorder %s33, %s34
    %p48 = scmp.eq.s32.totalorder %s26, 3
    %p49 = por %p47, %p48
    %p51 = scmp.ne.s32.totalorder %s34, %s50
    %p52 = scmp.eq.s32.totalorder %s26, 0
    %p53 = por %p51, %p52
    %s54 = ssub.s32 %s20, %s27
    %p55 = scmp.eq.s32.totalorder %s54, 0
    %s57 = sadd.s32 %s56, 1
    %s58 = scalar_select %p55, %s56, %s57
    %p61 = pneg %p55
    %p62 = scmp.eq.s32.totalorder %s20, 3
    %p63 = por %p61, %p62
    %p64 = scmp.ne.s32.totalorder %s56, %s59
    %p65 = scmp.eq.s32.totalorder %s20, 0
    %p66 = por %p64, %p65
    %p67 = scmp.ne.s32.totalorder %s56, %s59
    %p68 = scmp.eq.s32.totalorder %s25, 3
    %p69 = por %p67, %p68
    %p70 = scmp.ne.s32.totalorder %s59, %s60
    %p71 = scmp.eq.s32.totalorder %s25, 0
    %p72 = por %p70, %p71
    %p73 = scmp.ne.s32.totalorder %s59, %s60
    %p74 = scmp.eq.s32.totalorder %s26, 3
    %p75 = por %p73, %p74
    %p77 = scmp.ne.s32.totalorder %s60, %s76
    %p78 = scmp.eq.s32.totalorder %s26, 0
    %p79 = por %p77, %p78
    %s81 = sadd.s32 %s80, 1
    %p84 = scmp.eq.s32.totalorder %s20, 3
    %p85 = scmp.ne.s32.totalorder %s80, %s82
    %p86 = scmp.eq.s32.totalorder %s20, 0
    %p87 = por %p85, %p86
    %p88 = scmp.ne.s32.totalorder %s80, %s82
    %p89 = scmp.eq.s32.totalorder %s25, 3
    %p90 = por %p88, %p89
    %p91 = scmp.ne.s32.totalorder %s82, %s83
    %p92 = scmp.eq.s32.totalorder %s25, 0
    %p93 = por %p91, %p92
    %p94 = scmp.ne.s32.totalorder %s82, %s83
    %p95 = scmp.eq.s32.totalorder %s26, 3
    %p96 = por %p94, %p95
    %p98 = scmp.ne.s32.totalorder %s83, %s97
    %p99 = scmp.eq.s32.totalorder %s26, 0
    %p100 = por %p98, %p99
    %s102 = sadd.s32 %s101, 1
    %p105 = scmp.eq.s32.totalorder %s20, 3
    %p106 = scmp.ne.s32.totalorder %s101, %s103
    %p107 = scmp.eq.s32.totalorder %s20, 0
    %p108 = por %p106, %p107
    %p109 = scmp.ne.s32.totalorder %s101, %s103
    %p110 = scmp.eq.s32.totalorder %s25, 3
    %p111 = por %p109, %p110
    %p112 = scmp.ne.s32.totalorder %s103, %s104
    %p113 = scmp.eq.s32.totalorder %s25, 0
    %p114 = por %p112, %p113
    %p115 = scmp.ne.s32.totalorder %s103, %s104
    %p116 = scmp.eq.s32.totalorder %s26, 3
    %p117 = por %p115, %p116
    %p119 = scmp.ne.s32.totalorder %s104, %s118
    %p120 = scmp.eq.s32.totalorder %s26, 0
    %p121 = por %p119, %p120
    %s123 = sadd.s32 %s122, 1
    %p126 = scmp.eq.s32.totalorder %s20, 3
    %p127 = scmp.ne.s32.totalorder %s122, %s124
    %p128 = scmp.eq.s32.totalorder %s20, 0
    %p129 = por %p127, %p128
    %p130 = scmp.ne.s32.totalorder %s122, %s124
    %p131 = scmp.eq.s32.totalorder %s25, 3
    %p132 = por %p130, %p131
    %p133 = scmp.ne.s32.totalorder %s124, %s125
    %p134 = scmp.eq.s32.totalorder %s25, 0
    %p135 = por %p133, %p134
    %p136 = scmp.ne.s32.totalorder %s124, %s125
    %p137 = scmp.eq.s32.totalorder %s26, 3
    %p138 = por %p136, %p137
    %p140 = scmp.ne.s32.totalorder %s125, %s139
    %p141 = scmp.eq.s32.totalorder %s26, 0
    %p142 = por %p140, %p141
    %s144 = sadd.s32 %s143, 1
    %p147 = scmp.eq.s32.totalorder %s20, 3
    %p148 = scmp.ne.s32.totalorder %s143, %s145
    %p149 = scmp.eq.s32.totalorder %s20, 0
    %p150 = por %p148, %p149
    %p151 = scmp.ne.s32.totalorder %s143, %s145
    %p152 = scmp.eq.s32.totalorder %s25, 3
    %p153 = por %p151, %p152
    %p154 = scmp.ne.s32.totalorder %s145, %s146
    %p155 = scmp.eq.s32.totalorder %s25, 0
    %p156 = por %p154, %p155
    %p157 = scmp.ne.s32.totalorder %s145, %s146
    %p158 = scmp.eq.s32.totalorder %s26, 3
    %p159 = por %p157, %p158
    %p161 = scmp.ne.s32.totalorder %s146, %s160
    %p162 = scmp.eq.s32.totalorder %s26, 0
    %p163 = por %p161, %p162
    %s165 = sadd.s32 %s164, 1
    %p168 = scmp.eq.s32.totalorder %s20, 3
    %p169 = scmp.ne.s32.totalorder %s164, %s166
    %p170 = scmp.eq.s32.totalorder %s20, 0
    %p171 = por %p169, %p170
    %p172 = scmp.ne.s32.totalorder %s164, %s166
    %p173 = scmp.eq.s32.totalorder %s25, 3
    %p174 = por %p172, %p173
    %p175 = scmp.ne.s32.totalorder %s166, %s167
    %p176 = scmp.eq.s32.totalorder %s25, 0
    %p177 = por %p175, %p176
    %p178 = scmp.ne.s32.totalorder %s166, %s167
    %p179 = scmp.eq.s32.totalorder %s26, 3
    %p180 = por %p178, %p179
    %p182 = scmp.ne.s32.totalorder %s167, %s181
    %p183 = scmp.eq.s32.totalorder %s26, 0
    %p184 = por %p182, %p183
    %s186 = sadd.s32 %s185, 1
    %p189 = scmp.eq.s32.totalorder %s20, 3
    %p190 = scmp.ne.s32.totalorder %s185, %s187
    %p191 = scmp.eq.s32.totalorder %s20, 0
    %p192 = por %p190, %p191
    %p193 = scmp.ne.s32.totalorder %s185, %s187
    %p194 = scmp.eq.s32.totalorder %s25, 3
    %p195 = por %p193, %p194
    %p196 = scmp.ne.s32.totalorder %s187, %s188
    %p197 = scmp.eq.s32.totalorder %s25, 0
    %p198 = por %p196, %p197
    %p199 = scmp.ne.s32.totalorder %s187, %s188
    %p200 = scmp.eq.s32.totalorder %s26, 3
    %p201 = por %p199, %p200
    %p203 = scmp.ne.s32.totalorder %s188, %s202
    %p204 = scmp.eq.s32.totalorder %s26, 0
    %p205 = por %p203, %p204
    %s207 = sadd.s32 %s206, 1
    %p210 = scmp.eq.s32.totalorder %s20, 3
    %p211 = scmp.ne.s32.totalorder %s206, %s208
    %p212 = scmp.eq.s32.totalorder %s20, 0
    %p213 = por %p211, %p212
    %p214 = scmp.ne.s32.totalorder %s206, %s208
    %p215 = scmp.eq.s32.totalorder %s25, 3
    %p216 = por %p214, %p215
    %p217 = scmp.ne.s32.totalorder %s208, %s209
    %p218 = scmp.eq.s32.totalorder %s25, 0
    %p219 = por %p217, %p218
    %p220 = scmp.ne.s32.totalorder %s208, %s209
    %p221 = scmp.eq.s32.totalorder %s26, 3
    %p222 = por %p220, %p221
    %p224 = scmp.ne.s32.totalorder %s209, %s223
    %p225 = scmp.eq.s32.totalorder %s26, 0
    %p226 = por %p224, %p225
    %s228 = sadd.s32 %s227, 1
    %p231 = scmp.eq.s32.totalorder %s20, 3
    %p232 = scmp.ne.s32.totalorder %s227, %s229
    %p233 = scmp.eq.s32.totalorder %s20, 0
    %p234 = por %p232, %p233
    %p235 = scmp.ne.s32.totalorder %s227, %s229
    %p236 = scmp.eq.s32.totalorder %s25, 3
    %p237 = por %p235, %p236
    %p238 = scmp.ne.s32.totalorder %s229, %s230
    %p239 = scmp.eq.s32.totalorder %s25, 0
    %p240 = por %p238, %p239
    %p241 = scmp.ne.s32.totalorder %s229, %s230
    %p242 = scmp.eq.s32.totalorder %s26, 3
    %p243 = por %p241, %p242
    %p245 = scmp.ne.s32.totalorder %s230, %s244
    %p246 = scmp.eq.s32.totalorder %s26, 0
    %p247 = por %p245, %p246
    %s249 = sadd.s32 %s248, 1
    %p252 = scmp.eq.s32.totalorder %s20, 3
    %p253 = scmp.ne.s32.totalorder %s248, %s250
    %p254 = scmp.eq.s32.totalorder %s20, 0
    %p255 = por %p253, %p254
    %p256 = scmp.ne.s32.totalorder %s248, %s250
    %p257 = scmp.eq.s32.totalorder %s25, 3
    %p258 = por %p256, %p257
    %p259 = scmp.ne.s32.totalorder %s250, %s251
    %p260 = scmp.eq.s32.totalorder %s25, 0
    %p261 = por %p259, %p260
    %p262 = scmp.ne.s32.totalorder %s250, %s251
    %p263 = scmp.eq.s32.totalorder %s26, 3
    %p264 = por %p262, %p263
    %p266 = scmp.ne.s32.totalorder %s251, %s265
    %p267 = scmp.eq.s32.totalorder %s26, 0
    %p268 = por %p266, %p267
    %s270 = sadd.s32 %s269, 1
    %p273 = scmp.eq.s32.totalorder %s20, 3
    %p274 = scmp.ne.s32.totalorder %s269, %s271
    %p275 = scmp.eq.s32.totalorder %s20, 0
    %p276 = por %p274, %p275
    %p277 = scmp.ne.s32.totalorder %s269, %s271
    %p278 = scmp.eq.s32.totalorder %s25, 3
    %p279 = por %p277, %p278
    %p280 = scmp.ne.s32.totalorder %s271, %s272
    %p281 = scmp.eq.s32.totalorder %s25, 0
    %p282 = por %p280, %p281
    %p283 = scmp.ne.s32.totalorder %s271, %s272
    %p284 = scmp.eq.s32.totalorder %s26, 3
    %p285 = por %p283, %p284
    %p287 = scmp.ne.s32.totalorder %s272, %s286
    %p288 = scmp.eq.s32.totalorder %s26, 0
    %p289 = por %p287, %p288
    %s291 = sadd.s32 %s290, 1
    %p294 = scmp.eq.s32.totalorder %s20, 3
    %p295 = scmp.ne.s32.totalorder %s290, %s292
    %p296 = scmp.eq.s32.totalorder %s20, 0
    %p297 = por %p295, %p296
    %p298 = scmp.ne.s32.totalorder %s290, %s292
    %p299 = scmp.eq.s32.totalorder %s25, 3
    %p300 = por %p298, %p299
    %p301 = scmp.ne.s32.totalorder %s292, %s293
    %p302 = scmp.eq.s32.totalorder %s25, 0
    %p303 = por %p301, %p302
    %p304 = scmp.ne.s32.totalorder %s292, %s293
    %p305 = scmp.eq.s32.totalorder %s26, 3
    %p306 = por %p304, %p305
    %p308 = scmp.ne.s32.totalorder %s293, %s307
    %p309 = scmp.eq.s32.totalorder %s26, 0
    %p310 = por %p308, %p309
    %s312 = sadd.s32 %s311, 1
    %p315 = scmp.eq.s32.totalorder %s20, 3
    %p316 = scmp.ne.s32.totalorder %s311, %s313
    %p317 = scmp.eq.s32.totalorder %s20, 0
    %p318 = por %p316, %p317
    %p319 = scmp.ne.s32.totalorder %s311, %s313
    %p320 = scmp.eq.s32.totalorder %s25, 3
    %p321 = por %p319, %p320
    %p322 = scmp.ne.s32.totalorder %s313, %s314
    %p323 = scmp.eq.s32.totalorder %s25, 0
    %p324 = por %p322, %p323
    %p325 = scmp.ne.s32.totalorder %s313, %s314
    %p326 = scmp.eq.s32.totalorder %s26, 3
    %p327 = por %p325, %p326
    %p329 = scmp.ne.s32.totalorder %s314, %s328
    %p330 = scmp.eq.s32.totalorder %s26, 0
    %p331 = por %p329, %p330
    %s332 = ssub.s32 %s20, %s27
    %p333 = scmp.eq.s32.totalorder %s332, 0
    %s335 = sadd.s32 %s334, 1
    %s336 = scalar_select %p333, %s334, %s335
    %p339 = pneg %p333
    %p340 = scmp.eq.s32.totalorder %s20, 3
    %p341 = por %p339, %p340
    %p342 = scmp.ne.s32.totalorder %s334, %s337
    %p343 = scmp.eq.s32.totalorder %s20, 0
    %p344 = por %p342, %p343
    %p345 = scmp.ne.s32.totalorder %s334, %s337
    %p346 = scmp.eq.s32.totalorder %s25, 3
    %p347 = por %p345, %p346
    %p348 = scmp.ne.s32.totalorder %s337, %s338
    %p349 = scmp.eq.s32.totalorder %s25, 0
    %p350 = por %p348, %p349
    %p351 = scmp.ne.s32.totalorder %s337, %s338
    %p352 = scmp.eq.s32.totalorder %s26, 3
    %p353 = por %p351, %p352
    %p355 = scmp.ne.s32.totalorder %s338, %s354
    %p356 = scmp.eq.s32.totalorder %s26, 0
    %p357 = por %p355, %p356
    %p358 = scmp.le.s32.totalorder 1, %s20
    %p359 = scmp.lt.s32.totalorder %s20, 5
    %p360 = pnand %p358, %p359
    %p361 = pneg %p360
    // Predicated region
    $region9: #{owlv2_forward.12} parent=5 // pred_check
      _
    $region10: #{owlv2_forward.12} parent=5 // pred_check_branch
      %363 = sbr.rel (%p360) target = $region12
    $region11: #{owlv2_forward.12} parent=5 // pred_region
      %s364 = ssub.s32 %s20, 1
      // Predicated region
      $region13: #{owlv2_forward.12} parent=11 // pred_check
        %p365 = pneg %p93
      $region14: #{owlv2_forward.12} parent=11 // pred_check_branch
        %367 = sbr.rel (%p365) target = $region16
      $region15: #{owlv2_forward.12} parent=11 // pred_region
        _
      $region16: #{owlv2_forward.12} parent=11 // pred_fallthru
        _
      // Predicated region
      $region17: #{owlv2_forward.12} parent=11 // pred_check
        %p368 = pneg %p114
      $region18: #{owlv2_forward.12} parent=11 // pred_check_branch
        %370 = sbr.rel (%p368) target = $region20
      $region19: #{owlv2_forward.12} parent=11 // pred_region
        _
      $region20: #{owlv2_forward.12} parent=11 // pred_fallthru
        _
      // Predicated region
      $region21: #{owlv2_forward.12} parent=11 // pred_check
        %p371 = pneg %p135
      $region22: #{owlv2_forward.12} parent=11 // pred_check_branch
        %373 = sbr.rel (%p371) target = $region24
      $region23: #{owlv2_forward.12} parent=11 // pred_region
        _
      $region24: #{owlv2_forward.12} parent=11 // pred_fallthru
        _
      // Predicated region
      $region25: #{owlv2_forward.12} parent=11 // pred_check
        %p374 = pneg %p156
      $region26: #{owlv2_forward.12} parent=11 // pred_check_branch
        %376 = sbr.rel (%p374) target = $region28
      $region27: #{owlv2_forward.12} parent=11 // pred_region
        _
      $region28: #{owlv2_forward.12} parent=11 // pred_fallthru
        _
      // Predicated region
      $region29: #{owlv2_forward.12} parent=11 // pred_check
        %p377 = pneg %p177
      $region30: #{owlv2_forward.12} parent=11 // pred_check_branch
        %379 = sbr.rel (%p377) target = $region32
      $region31: #{owlv2_forward.12} parent=11 // pred_region
        _
      $region32: #{owlv2_forward.12} parent=11 // pred_fallthru
        _
      // Predicated region
      $region33: #{owlv2_forward.12} parent=11 // pred_check
        %p380 = pneg %p198
      $region34: #{owlv2_forward.12} parent=11 // pred_check_branch
        %382 = sbr.rel (%p380) target = $region36
      $region35: #{owlv2_forward.12} parent=11 // pred_region
        _
      $region36: #{owlv2_forward.12} parent=11 // pred_fallthru
        _
      // Predicated region
      $region37: #{owlv2_forward.12} parent=11 // pred_check
        %p383 = pneg %p219
      $region38: #{owlv2_forward.12} parent=11 // pred_check_branch
        %385 = sbr.rel (%p383) target = $region40
      $region39: #{owlv2_forward.12} parent=11 // pred_region
        _
      $region40: #{owlv2_forward.12} parent=11 // pred_fallthru
        _
      // Predicated region
      $region41: #{owlv2_forward.12} parent=11 // pred_check
        %p386 = pneg %p240
      $region42: #{owlv2_forward.12} parent=11 // pred_check_branch
        %388 = sbr.rel (%p386) target = $region44
      $region43: #{owlv2_forward.12} parent=11 // pred_region
        _
      $region44: #{owlv2_forward.12} parent=11 // pred_fallthru
        _
      // Predicated region
      $region45: #{owlv2_forward.12} parent=11 // pred_check
        %p389 = pneg %p261
      $region46: #{owlv2_forward.12} parent=11 // pred_check_branch
        %391 = sbr.rel (%p389) target = $region48
      $region47: #{owlv2_forward.12} parent=11 // pred_region
        _
      $region48: #{owlv2_forward.12} parent=11 // pred_fallthru
        _
      // Predicated region
      $region49: #{owlv2_forward.12} parent=11 // pred_check
        %p392 = pneg %p282
      $region50: #{owlv2_forward.12} parent=11 // pred_check_branch
        %394 = sbr.rel (%p392) target = $region52
      $region51: #{owlv2_forward.12} parent=11 // pred_region
        _
      $region52: #{owlv2_forward.12} parent=11 // pred_fallthru
        _
      // Predicated region
      $region53: #{owlv2_forward.12} parent=11 // pred_check
        %p395 = pneg %p303
      $region54: #{owlv2_forward.12} parent=11 // pred_check_branch
        %397 = sbr.rel (%p395) target = $region56
      $region55: #{owlv2_forward.12} parent=11 // pred_region
        _
      $region56: #{owlv2_forward.12} parent=11 // pred_fallthru
        _
      // Predicated region
      $region57: #{owlv2_forward.12} parent=11 // pred_check
        %p398 = pneg %p324
      $region58: #{owlv2_forward.12} parent=11 // pred_check_branch
        %400 = sbr.rel (%p398) target = $region60
      $region59: #{owlv2_forward.12} parent=11 // pred_region
        _
      $region60: #{owlv2_forward.12} parent=11 // pred_fallthru
        _
    $region12: #{owlv2_forward.12} parent=5 // pred_fallthru
      _
    %p401 = scmp.lt.s32.totalorder %s20, 4
    // Predicated region
    $region61: #{owlv2_forward.12} parent=5 // pred_check
      %p402 = pneg %p401
    $region62: #{owlv2_forward.12} parent=5 // pred_check_branch
      %404 = sbr.rel (%p402) target = $region64
    $region63: #{owlv2_forward.12} parent=5 // pred_region
      // Predicated region
      $region65: #{owlv2_forward.12} parent=63 // pred_check
        %p405 = pneg %p40
      $region66: #{owlv2_forward.12} parent=63 // pred_check_branch
        %407 = sbr.rel (%p405) target = $region68
      $region67: #{owlv2_forward.12} parent=63 // pred_region
        %p408 = scmp.lt.s32.totalorder %s20, 3
        %s409 = scalar_select %p408, %s20, 3
        %s410 = smul.addr %s409, 8
        %s411 = scalar_lea.vmem %s0, %s410
      $region68: #{owlv2_forward.12} parent=63 // pred_fallthru
        _
      // Predicated region
      $region69: #{owlv2_forward.12} parent=63 // pred_check
        %p412 = pneg %p66
      $region70: #{owlv2_forward.12} parent=63 // pred_check_branch
        %414 = sbr.rel (%p412) target = $region72
      $region71: #{owlv2_forward.12} parent=63 // pred_region
        %p415 = scmp.lt.s32.totalorder %s20, 3
        %s416 = scalar_select %p415, %s20, 3
        %s417 = smul.addr %s416, 8
        %s418 = scalar_lea.vmem %s1, %s417
      $region72: #{owlv2_forward.12} parent=63 // pred_fallthru
        _
    $region64: #{owlv2_forward.12} parent=5 // pred_fallthru
      _
    %p419 = scmp.le.s32.totalorder 1, %s20
    %p420 = scmp.lt.s32.totalorder %s20, 5
    %p421 = pnand %p419, %p420
    %p422 = pneg %p421
    // Predicated region
    $region73: #{owlv2_forward.12} parent=5 // pred_check
      _
    $region74: #{owlv2_forward.12} parent=5 // pred_check_branch
      %424 = sbr.rel (%p421) target = $region76
    $region75: #{owlv2_forward.12} parent=5 // pred_region
      %s425 = ssub.s32 %s20, 1
      %p426 = scmp.lt.s32.totalorder %s25, 3
      %s427 = scalar_select %p426, %s25, 3
      %s428 = smul.addr %s427, 8
      %s429 = scalar_lea.vmem %s0, %s428
      %p430 = pneg %p46
      %p431 = pneg %p43
      %p432 = scmp.lt.s32.totalorder %s25, 3
      %s433 = scalar_select %p432, %s25, 3
      %s434 = smul.addr %s433, 8
      %s435 = scalar_lea.vmem %s1, %s434
      %p436 = pneg %p72
      %p437 = pneg %p69
      %p438 = pneg %p93
      %p439 = pneg %p90
      %p440 = pneg %p114
      %p441 = pneg %p111
      %p442 = pneg %p135
      %p443 = pneg %p132
      %p444 = pneg %p156
      %p445 = pneg %p153
      %p446 = pneg %p177
      %p447 = pneg %p174
      %p448 = pneg %p198
      %p449 = pneg %p195
      %p450 = pneg %p219
      %p451 = pneg %p216
      %p452 = pneg %p240
      %p453 = pneg %p237
      %p454 = pneg %p261
      %p455 = pneg %p258
      %p456 = pneg %p282
      %p457 = pneg %p279
      %p458 = pneg %p303
      %p459 = pneg %p300
      %p460 = pneg %p324
      %p461 = pneg %p321
      %p462 = pneg %p350
      %p463 = pneg %p347
      %p464 = scmp.lt.s32.totalorder %s25, 3
      %s465 = scalar_select %p464, %s25, 3
      %s466 = smul.addr %s465, 8
      %s467 = scalar_lea.vmem %s14, %s466
      %p468 = scmp.lt.s32.totalorder %s25, 3
      %s469 = scalar_select %p468, %s25, 3
      %s470 = smul.addr %s469, 8
      %s471 = scalar_lea.vmem %s0, %s470
      %p472 = scmp.lt.s32.totalorder %s25, 3
      %s473 = scalar_select %p472, %s25, 3
      %s474 = smul.addr %s473, 8
      %s475 = scalar_lea.vmem %s1, %s474
      %p476 = scmp.lt.s32.totalorder %s25, 3
      %s477 = scalar_select %p476, %s25, 3
      %s478 = smul.addr %s477, 8
      %s479 = scalar_lea.vmem %s14, %s478
      %v481 = vld [vmem:[%s471] sm:$0xff]
      %v482 = vld [vmem:[%s2] sm:$0x1]
      %v483 = vld [vmem:[%s3] sm:$0x1]
      %vm484 = vcmask 261120
      %v485 = vsel %vm484, %v481, 0.0
      %486 = vadd.xlane.f32.xlu0 %v485
      %v487 = vpop.xlane.xlu0 %486
      %v488 = vrcp.pop 32.0
      %v489 = vmul.f32 %v487, %v488
      %v490 = vsub.f32 %v481, %v489
      %v491 = vmul.f32 %v490, %v490
      %v492 = vsel %vm484, %v491, 0.0
      %493 = vadd.xlane.f32.xlu0 %v492
      %v494 = vpop.xlane.xlu0 %493
      %v495 = vmul.f32 %v494, %v488
      %v496 = vadd.f32 %v495, 1e-05
      %v497 = vrsqrt.pop %v496
      %v498 = vmul.f32 %v490, %v497
      %v500 = vlaneseq
      %v501 = vshrl.u32 %v500, 7
      %v502 = vsub.s32 0, %v501
      %v503 = vrot.slane %v482, %v502
      %v505 = vmul.f32 %v498, %v503
      %v507 = vlaneseq
      %v508 = vshrl.u32 %v507, 7
      %v509 = vsub.s32 0, %v508
      %v510 = vrot.slane %v483, %v509
      %v512 = vadd.f32 %v505, %v510
      %v513 = vpack.c.bf16 %v512, %v512
      %v514 = vld [vmem:[%s4] sm:$0xf]
      %v515 = vld [vmem:[%s4 + $0x4] sm:$0xf]
      %v516 = vld [vmem:[%s4 + $0x8] sm:$0xf]
      %v517 = vld [vmem:[%s4 + $0xc] sm:$0xf]
      %v518 = vld [vmem:[%s5] sm:$0x1]
      %v520 = vlaneseq
      %v521 = vshrl.u32 %v520, 7
      %v522 = vsub.s32 0, %v521
      %v523 = vrot.slane %v518, %v522
      %v529 = vunpack.c.l.b16 %v514
      %v530 = vunpack.c.l.b16 %v515
      %v531 = vunpack.c.l.b16 %v516
      %v532 = vunpack.c.l.b16 %v517
      %v533 = vpack.c.b16 %v530, %v529
      %v534 = vpack.c.b16 %v532, %v531
      %v538 = vsel %vm484, %v513, 0
      %540 = vmatprep.subr.bf16.mxu0 0
      %541 = vmatpush1.bf16.msra.mxu0 %v533
      %542 = vmatprep.subr.bf16.mxu0 0
      %543 = vmatpush1.bf16.msra.mxu0 %v534
      %544 = vmatprep.subr.bf16.mxu0 0
      %545 = vmatpush1.bf16.msra.mxu0 0
      %546 = vmatprep.subr.bf16.mxu0 0
      %547 = vmatpush1.bf16.msra.mxu0 0
      %548 = vmatprep.subr.bf16.mxu0 0
      %549 = vmatpush1.bf16.msra.mxu0 0
      %550 = vmatprep.subr.bf16.mxu0 0
      %551 = vmatpush1.bf16.msra.mxu0 0
      %552 = vmatprep.subr.bf16.mxu0 0
      %553 = vmatpush1.bf16.msra.mxu0 0
      %554 = vmatprep.subr.bf16.mxu0 0
      %555 = vmatpush1.bf16.msra.mxu0 0
      %556 = vmatprep.subr.bf16.mxu0 0
      %557 = vmatpush1.bf16.msra.mxu0 0
      %558 = vmatprep.subr.bf16.mxu0 0
      %559 = vmatpush1.bf16.msra.mxu0 0
      %560 = vmatprep.subr.bf16.mxu0 0
      %561 = vmatpush1.bf16.msra.mxu0 0
      %562 = vmatprep.subr.bf16.mxu0 0
      %563 = vmatpush1.bf16.msra.mxu0 0
      %564 = vmatprep.subr.bf16.mxu0 0
      %565 = vmatpush1.bf16.msra.mxu0 0
      %566 = vmatprep.subr.bf16.mxu0 0
      %567 = vmatpush1.bf16.msra.mxu0 0
      %568 = vmatprep.subr.bf16.mxu0 0
      %569 = vmatpush1.bf16.msra.mxu0 0
      %570 = vmatprep.subr.bf16.mxu0 0
      %571 = vmatpush1.bf16.msra.mxu0 0
      %572 = vmatprep.mubr.bf16.mxu0 0
      %573 = vmatmul.mubr.bf16.gmra.mrb[0].mxu0 %v538
      %v574 = vpop.f32.mrb[0].mxu0
      %v575 = vadd.f32 %v523, %v574
      %v576 = vpop.f32.mrb[0].mxu0
      %v577 = vpop.f32.mrb[0].mxu0
      %v578 = vpop.f32.mrb[0].mxu0
      %579 = vdwg.mxu0
      %v580 = vld [vmem:[%s475] sm:$0xff]
      %v581 = vld [vmem:[%s6] sm:$0xf]
      %v582 = vld [vmem:[%s6 + $0x4] sm:$0xf]
      %v583 = vld [vmem:[%s6 + $0x8] sm:$0xf]
      %v584 = vld [vmem:[%s6 + $0xc] sm:$0xf]
      %v585 = vpack.c.bf16 %v575, %v575
      %587 = vrot.lane.b32.xlu0 %v585, 96
      %v588 = vpop.permute.xlu0 %587
      %vm589 = vcmask 64512
      %v591 = vsel %vm589, %v585, 0
      %v594 = vsel %vm589, %v588, 0
      %596 = vmatprep.subr.bf16.mxu0 0
      %597 = vmatpush1.bf16.xpose.msra.mxu0 %v594
      %598 = vmatprep.subr.bf16.mxu0 0
      %599 = vmatpush1.bf16.xpose.msra.mxu0 0
      %600 = vmatprep.subr.bf16.mxu0 0
      %601 = vmatpush1.bf16.xpose.msra.mxu0 0
      %602 = vmatprep.subr.bf16.mxu0 0
      %603 = vmatpush1.bf16.xpose.msra.mxu0 0
      %604 = vmatprep.subr.bf16.mxu0 0
      %605 = vmatpush1.bf16.xpose.msra.mxu0 0
      %606 = vmatprep.subr.bf16.mxu0 0
      %607 = vmatpush1.bf16.xpose.msra.mxu0 0
      %608 = vmatprep.subr.bf16.mxu0 0
      %609 = vmatpush1.bf16.xpose.msra.mxu0 0
      %610 = vmatprep.subr.bf16.mxu0 0
      %611 = vmatpush1.bf16.xpose.msra.mxu0 0
      %612 = vmatprep.subr.bf16.mxu0 0
      %613 = vmatpush1.bf16.xpose.msra.mxu0 0
      %614 = vmatprep.subr.bf16.mxu0 0
      %615 = vmatpush1.bf16.xpose.msra.mxu0 0
      %616 = vmatprep.subr.bf16.mxu0 0
      %617 = vmatpush1.bf16.xpose.msra.mxu0 0
      %618 = vmatprep.subr.bf16.mxu0 0
      %619 = vmatpush1.bf16.xpose.msra.mxu0 0
      %620 = vmatprep.subr.bf16.mxu0 0
      %621 = vmatpush1.bf16.xpose.msra.mxu0 0
      %622 = vmatprep.subr.bf16.mxu0 0
      %623 = vmatpush1.bf16.xpose.msra.mxu0 0
      %624 = vmatprep.subr.bf16.mxu0 0
      %625 = vmatpush1.bf16.xpose.msra.mxu0 0
      %626 = vmatprep.subr.bf16.mxu0 0
      %627 = vmatpush1.bf16.xpose.msra.mxu0 0
      %628 = vmatprep.mubr.bf16.mxu0 0
      %629 = vmatmul.mubr.bf16.gmra.mrb[0].mxu0 %v591
      %v630 = vpop.f32.mrb[0].mxu0
      %v631 = vadd.f32 %v580, %v630
      %v632 = vpop.f32.mrb[0].mxu0
      %v633 = vpop.f32.mrb[0].mxu0
      %v634 = vpop.f32.mrb[0].mxu0
      %635 = vdwg.mxu0
      %v636 = vsel %vm589, %v631, -inf
      %637 = vmax.xlane.f32.xlu0 %v636
      %v638 = vpop.xlane.xlu0 %637
      %v639 = vsub.f32 %v631, %v638
      %v640 = vmul.f32 %v639, 1.442695
      %v641 = vpow.pop %v640
      %v642 = vsel %vm589, %v641, 0.0
      %643 = vadd.xlane.f32.xlu0 %v642
      %v644 = vpop.xlane.xlu0 %643
      %v645 = vrcp.pop %v644
      %v646 = vmul.f32 %v641, %v645
      %v647 = vpack.c.bf16 %v646, %v646
      %648 = vrot.lane.b32.xlu0 %v585, 64
      %v649 = vpop.permute.xlu0 %648
      %v651 = vsel %vm589, %v647, 0
      %vm653 = vcmask 1043456
      %v655 = vsel %vm653, %v649, 0
      %657 = vmatprep.subr.bf16.mxu0 0
      %658 = vmatpush1.bf16.msra.mxu0 %v655
      %659 = vmatprep.subr.bf16.mxu0 0
      %660 = vmatpush1.bf16.msra.mxu0 0
      %661 = vmatprep.subr.bf16.mxu0 0
      %662 = vmatpush1.bf16.msra.mxu0 0
      %663 = vmatprep.subr.bf16.mxu0 0
      %664 = vmatpush1.bf16.msra.mxu0 0
      %665 = vmatprep.subr.bf16.mxu0 0
      %666 = vmatpush1.bf16.msra.mxu0 0
      %667 = vmatprep.subr.bf16.mxu0 0
      %668 = vmatpush1.bf16.msra.mxu0 0
      %669 = vmatprep.subr.bf16.mxu0 0
      %670 = vmatpush1.bf16.msra.mxu0 0
      %671 = vmatprep.subr.bf16.mxu0 0
      %672 = vmatpush1.bf16.msra.mxu0 0
      %673 = vmatprep.subr.bf16.mxu0 0
      %674 = vmatpush1.bf16.msra.mxu0 0
      %675 = vmatprep.subr.bf16.mxu0 0
      %676 = vmatpush1.bf16.msra.mxu0 0
      %677 = vmatprep.subr.bf16.mxu0 0
      %678 = vmatpush1.bf16.msra.mxu0 0
      %679 = vmatprep.subr.bf16.mxu0 0
      %680 = vmatpush1.bf16.msra.mxu0 0
      %681 = vmatprep.subr.bf16.mxu0 0
      %682 = vmatpush1.bf16.msra.mxu0 0
      %683 = vmatprep.subr.bf16.mxu0 0
      %684 = vmatpush1.bf16.msra.mxu0 0
      %685 = vmatprep.subr.bf16.mxu0 0
      %686 = vmatpush1.bf16.msra.mxu0 0
      %687 = vmatprep.subr.bf16.mxu0 0
      %688 = vmatpush1.bf16.msra.mxu0 0
      %689 = vmatprep.mubr.bf16.mxu0 0
      %690 = vmatmul.mubr.bf16.gmra.mrb[0].mxu0 %v651
      %v691 = vpop.f32.mrb[0].mxu0
      %v692 = vadd.f32 0.0, %v691
      %v693 = vpop.f32.mrb[0].mxu0
      %v694 = vpop.f32.mrb[0].mxu0
      %v695 = vpop.f32.mrb[0].mxu0
      %696 = vdwg.mxu0
      %v697 = vpack.c.bf16 %v692, %v692
      %698 = vrot.lane.b32.xlu0 %v585, 120
      %v699 = vpop.permute.xlu0 %698
      %700 = vrot.lane.b32.xlu0 %v585, 88
      %v701 = vpop.permute.xlu0 %700
      %v703 = vsel %vm589, %v699, 0
      %v706 = vsel %vm589, %v701, 0
      %708 = vmatprep.subr.bf16.mxu0 0
      %709 = vmatpush1.bf16.xpose.msra.mxu0 %v706
      %710 = vmatprep.subr.bf16.mxu0 0
      %711 = vmatpush1.bf16.xpose.msra.mxu0 0
      %712 = vmatprep.subr.bf16.mxu0 0
      %713 = vmatpush1.bf16.xpose.msra.mxu0 0
      %714 = vmatprep.subr.bf16.mxu0 0
      %715 = vmatpush1.bf16.xpose.msra.mxu0 0
      %716 = vmatprep.subr.bf16.mxu0 0
      %717 = vmatpush1.bf16.xpose.msra.mxu0 0
      %718 = vmatprep.subr.bf16.mxu0 0
      %719 = vmatpush1.bf16.xpose.msra.mxu0 0
      %720 = vmatprep.subr.bf16.mxu0 0
      %721 = vmatpush1.bf16.xpose.msra.mxu0 0
      %722 = vmatprep.subr.bf16.mxu0 0
      %723 = vmatpush1.bf16.xpose.msra.mxu0 0
      %724 = vmatprep.subr.bf16.mxu0 0
      %725 = vmatpush1.bf16.xpose.msra.mxu0 0
      %726 = vmatprep.subr.bf16.mxu0 0
      %727 = vmatpush1.bf16.xpose.msra.mxu0 0
      %728 = vmatprep.subr.bf16.mxu0 0
      %729 = vmatpush1.bf16.xpose.msra.mxu0 0
      %730 = vmatprep.subr.bf16.mxu0 0
      %731 = vmatpush1.bf16.xpose.msra.mxu0 0
      %732 = vmatprep.subr.bf16.mxu0 0
      %733 = vmatpush1.bf16.xpose.msra.mxu0 0
      %734 = vmatprep.subr.bf16.mxu0 0
      %735 = vmatpush1.bf16.xpose.msra.mxu0 0
      %736 = vmatprep.subr.bf16.mxu0 0
      %737 = vmatpush1.bf16.xpose.msra.mxu0 0
      %738 = vmatprep.subr.bf16.mxu0 0
      %739 = vmatpush1.bf16.xpose.msra.mxu0 0
      %740 = vmatprep.mubr.bf16.mxu0 0
      %741 = vmatmul.mubr.bf16.gmra.mrb[0].mxu0 %v703
      %v742 = vpop.f32.mrb[0].mxu0
      %v743 = vadd.f32 %v580, %v742
      %v744 = vpop.f32.mrb[0].mxu0
      %v745 = vpop.f32.mrb[0].mxu0
      %v746 = vpop.f32.mrb[0].mxu0
      %747 = vdwg.mxu0
      %v748 = vsel %vm589, %v743, -inf
      %749 = vmax.xlane.f32.xlu0 %v748
      %v750 = vpop.xlane.xlu0 %749
      %v751 = vsub.f32 %v743, %v750
      %v752 = vmul.f32 %v751, 1.442695
      %v753 = vpow.pop %v752
      %v754 = vsel %vm589, %v753, 0.0
      %755 = vadd.xlane.f32.xlu0 %v754
      %v756 = vpop.xlane.xlu0 %755
      %v757 = vrcp.pop %v756
      %v758 = vmul.f32 %v753, %v757
      %v759 = vpack.c.bf16 %v758, %v758
      %760 = vrot.lane.b32.xlu0 %v585, 56
      %v761 = vpop.permute.xlu0 %760
      %v763 = vsel %vm589, %v759, 0
      %v766 = vsel %vm653, %v761, 0
      %768 = vmatprep.subr.bf16.mxu0 0
      %769 = vmatpush1.bf16.msra.mxu0 %v766
      %770 = vmatprep.subr.bf16.mxu0 0
      %771 = vmatpush1.bf16.msra.mxu0 0
      %772 = vmatprep.subr.bf16.mxu0 0
      %773 = vmatpush1.bf16.msra.mxu0 0
      %774 = vmatprep.subr.bf16.mxu0 0
      %775 = vmatpush1.bf16.msra.mxu0 0
      %776 = vmatprep.subr.bf16.mxu0 0
      %777 = vmatpush1.bf16.msra.mxu0 0
      %778 = vmatprep.subr.bf16.mxu0 0
      %779 = vmatpush1.bf16.msra.mxu0 0
      %780 = vmatprep.subr.bf16.mxu0 0
      %781 = vmatpush1.bf16.msra.mxu0 0
      %782 = vmatprep.subr.bf16.mxu0 0
      %783 = vmatpush1.bf16.msra.mxu0 0
      %784 = vmatprep.subr.bf16.mxu0 0
      %785 = vmatpush1.bf16.msra.mxu0 0
      %786 = vmatprep.subr.bf16.mxu0 0
      %787 = vmatpush1.bf16.msra.mxu0 0
      %788 = vmatprep.subr.bf16.mxu0 0
      %789 = vmatpush1.bf16.msra.mxu0 0
      %790 = vmatprep.subr.bf16.mxu0 0
      %791 = vmatpush1.bf16.msra.mxu0 0
      %792 = vmatprep.subr.bf16.mxu0 0
      %793 = vmatpush1.bf16.msra.mxu0 0
      %794 = vmatprep.subr.bf16.mxu0 0
      %795 = vmatpush1.bf16.msra.mxu0 0
      %796 = vmatprep.subr.bf16.mxu0 0
      %797 = vmatpush1.bf16.msra.mxu0 0
      %798 = vmatprep.subr.bf16.mxu0 0
      %799 = vmatpush1.bf16.msra.mxu0 0
      %800 = vmatprep.mubr.bf16.mxu0 0
      %801 = vmatmul.mubr.bf16.gmra.mrb[0].mxu0 %v763
      %v802 = vpop.f32.mrb[0].mxu0
      %v803 = vadd.f32 0.0, %v802
      %v804 = vpop.f32.mrb[0].mxu0
      %v805 = vpop.f32.mrb[0].mxu0
      %v806 = vpop.f32.mrb[0].mxu0
      %807 = vdwg.mxu0
      %v808 = vpack.c.bf16 %v803, %v803
      %v810 = vsel %vm589, %v808, 0
      %v813 = vsel %vm653, %v582, 0
      %815 = vmatprep.subr.bf16.mxu0 0
      %816 = vmatpush1.bf16.msra.mxu0 %v813
      %817 = vmatprep.subr.bf16.mxu0 0
      %818 = vmatpush1.bf16.msra.mxu0 0
      %819 = vmatprep.subr.bf16.mxu0 0
      %820 = vmatpush1.bf16.msra.mxu0 0
      %821 = vmatprep.subr.bf16.mxu0 0
      %822 = vmatpush1.bf16.msra.mxu0 0
      %823 = vmatprep.subr.bf16.mxu0 0
      %824 = vmatpush1.bf16.msra.mxu0 0
      %825 = vmatprep.subr.bf16.mxu0 0
      %826 = vmatpush1.bf16.msra.mxu0 0
      %827 = vmatprep.subr.bf16.mxu0 0
      %828 = vmatpush1.bf16.msra.mxu0 0
      %829 = vmatprep.subr.bf16.mxu0 0
      %830 = vmatpush1.bf16.msra.mxu0 0
      %831 = vmatprep.subr.bf16.mxu0 0
      %832 = vmatpush1.bf16.msra.mxu0 0
      %833 = vmatprep.subr.bf16.mxu0 0
      %834 = vmatpush1.bf16.msra.mxu0 0
      %835 = vmatprep.subr.bf16.mxu0 0
      %836 = vmatpush1.bf16.msra.mxu0 0
      %837 = vmatprep.subr.bf16.mxu0 0
      %838 = vmatpush1.bf16.msra.mxu0 0
      %839 = vmatprep.subr.bf16.mxu0 0
      %840 = vmatpush1.bf16.msra.mxu0 0
      %841 = vmatprep.subr.bf16.mxu0 0
      %842 = vmatpush1.bf16.msra.mxu0 0
      %843 = vmatprep.subr.bf16.mxu0 0
      %844 = vmatpush1.bf16.msra.mxu0 0
      %845 = vmatprep.subr.bf16.mxu0 0
      %846 = vmatpush1.bf16.msra.mxu0 0
      %847 = vmatprep.mubr.bf16.mxu0 0
      %848 = vmatmul.mubr.bf16.gmra.mrb[0].mxu0 %v810
      %v849 = vpop.f32.mrb[0].mxu0
      %v850 = vadd.f32 0.0, %v849
      %v851 = vpop.f32.mrb[0].mxu0
      %v852 = vpop.f32.mrb[0].mxu0
      %v853 = vpop.f32.mrb[0].mxu0
      %854 = vdwg.mxu0
      %v856 = vsel %vm589, %v697, 0
      %v859 = vsel %vm653, %v581, 0
      %861 = vmatprep.subr.bf16.mxu0 0
      %862 = vmatpush1.bf16.msra.mxu0 %v859
      %863 = vmatprep.subr.bf16.mxu0 0
      %864 = vmatpush1.bf16.msra.mxu0 0
      %865 = vmatprep.subr.bf16.mxu0 0
      %866 = vmatpush1.bf16.msra.mxu0 0
      %867 = vmatprep.subr.bf16.mxu0 0
      %868 = vmatpush1.bf16.msra.mxu0 0
      %869 = vmatprep.subr.bf16.mxu0 0
      %870 = vmatpush1.bf16.msra.mxu0 0
      %871 = vmatprep.subr.bf16.mxu0 0
      %872 = vmatpush1.bf16.msra.mxu0 0
      %873 = vmatprep.subr.bf16.mxu0 0
      %874 = vmatpush1.bf16.msra.mxu0 0
      %875 = vmatprep.subr.bf16.mxu0 0
      %876 = vmatpush1.bf16.msra.mxu0 0
      %877 = vmatprep.subr.bf16.mxu0 0
      %878 = vmatpush1.bf16.msra.mxu0 0
      %879 = vmatprep.subr.bf16.mxu0 0
      %880 = vmatpush1.bf16.msra.mxu0 0
      %881 = vmatprep.subr.bf16.mxu0 0
      %882 = vmatpush1.bf16.msra.mxu0 0
      %883 = vmatprep.subr.bf16.mxu0 0
      %884 = vmatpush1.bf16.msra.mxu0 0
      %885 = vmatprep.subr.bf16.mxu0 0
      %886 = vmatpush1.bf16.msra.mxu0 0
      %887 = vmatprep.subr.bf16.mxu0 0
      %888 = vmatpush1.bf16.msra.mxu0 0
      %889 = vmatprep.subr.bf16.mxu0 0
      %890 = vmatpush1.bf16.msra.mxu0 0
      %891 = vmatprep.subr.bf16.mxu0 0
      %892 = vmatpush1.bf16.msra.mxu0 0
      %893 = vmatprep.mubr.bf16.mxu0 0
      %894 = vmatmul.mubr.bf16.gmra.mrb[0].mxu0 %v856
      %v895 = vpop.f32.mrb[0].mxu0
      %v896 = vadd.f32 %v850, %v895
      %v897 = vpop.f32.mrb[0].mxu0
      %v898 = vpop.f32.mrb[0].mxu0
      %v899 = vpop.f32.mrb[0].mxu0
      %900 = vdwg.mxu0
      %901 = vrot.lane.b32.xlu0 %v585, 112
      %v902 = vpop.permute.xlu0 %901
      %903 = vrot.lane.b32.xlu0 %v585, 80
      %v904 = vpop.permute.xlu0 %903
      %v906 = vsel %vm589, %v902, 0
      %v909 = vsel %vm589, %v904, 0
      %911 = vmatprep.subr.bf16.mxu0 0
      %912 = vmatpush1.bf16.xpose.msra.mxu0 %v909
      %913 = vmatprep.subr.bf16.mxu0 0
      %914 = vmatpush1.bf16.xpose.msra.mxu0 0
      %915 = vmatprep.subr.bf16.mxu0 0
      %916 = vmatpush1.bf16.xpose.msra.mxu0 0
      %917 = vmatprep.subr.bf16.mxu0 0
      %918 = vmatpush1.bf16.xpose.msra.mxu0 0
      %919 = vmatprep.subr.bf16.mxu0 0
      %920 = vmatpush1.bf16.xpose.msra.mxu0 0
      %921 = vmatprep.subr.bf16.mxu0 0
      %922 = vmatpush1.bf16.xpose.msra.mxu0 0
      %923 = vmatprep.subr.bf16.mxu0 0
      %924 = vmatpush1.bf16.xpose.msra.mxu0 0
      %925 = vmatprep.subr.bf16.mxu0 0
      %926 = vmatpush1.bf16.xpose.msra.mxu0 0
      %927 = vmatprep.subr.bf16.mxu0 0
      %928 = vmatpush1.bf16.xpose.msra.mxu0 0
      %929 = vmatprep.subr.bf16.mxu0 0
      %930 = vmatpush1.bf16.xpose.msra.mxu0 0
      %931 = vmatprep.subr.bf16.mxu0 0
      %932 = vmatpush1.bf16.xpose.msra.mxu0 0
      %933 = vmatprep.subr.bf16.mxu0 0
      %934 = vmatpush1.bf16.xpose.msra.mxu0 0
      %935 = vmatprep.subr.bf16.mxu0 0
      %936 = vmatpush1.bf16.xpose.msra.mxu0 0
      %937 = vmatprep.subr.bf16.mxu0 0
      %938 = vmatpush1.bf16.xpose.msra.mxu0 0
      %939 = vmatprep.subr.bf16.mxu0 0
      %940 = vmatpush1.bf16.xpose.msra.mxu0 0
      %941 = vmatprep.subr.bf16.mxu0 0
      %942 = vmatpush1.bf16.xpose.msra.mxu0 0
      %943 = vmatprep.mubr.bf16.mxu0 0
      %944 = vmatmul.mubr.bf16.gmra.mrb[0].mxu0 %v906
      %v945 = vpop.f32.mrb[0].mxu0
      %v946 = vadd.f32 %v580, %v945
      %v947 = vpop.f32.mrb[0].mxu0
      %v948 = vpop.f32.mrb[0].mxu0
      %v949 = vpop.f32.mrb[0].mxu0
      %950 = vdwg.mxu0
      %v951 = vsel %vm589, %v946, -inf
      %952 = vmax.xlane.f32.xlu0 %v951
      %v953 = vpop.xlane.xlu0 %952
      %v954 = vsub.f32 %v946, %v953
      %v955 = vmul.f32 %v954, 1.442695
      %v956 = vpow.pop %v955
      %v957 = vsel %vm589, %v956, 0.0
      %958 = vadd.xlane.f32.xlu0 %v957
      %v959 = vpop.xlane.xlu0 %958
      %v960 = vrcp.pop %v959
      %v961 = vmul.f32 %v956, %v960
      %v962 = vpack.c.bf16 %v961, %v961
      %963 = vrot.lane.b32.xlu0 %v585, 48
      %v964 = vpop.permute.xlu0 %963
      %v966 = vsel %vm589, %v962, 0
      %v969 = vsel %vm653, %v964, 0
      %971 = vmatprep.subr.bf16.mxu0 0
      %972 = vmatpush1.bf16.msra.mxu0 %v969
      %973 = vmatprep.subr.bf16.mxu0 0
      %974 = vmatpush1.bf16.msra.mxu0 0
      %975 = vmatprep.subr.bf16.mxu0 0
      %976 = vmatpush1.bf16.msra.mxu0 0
      %977 = vmatprep.subr.bf16.mxu0 0
      %978 = vmatpush1.bf16.msra.mxu0 0
      %979 = vmatprep.subr.bf16.mxu0 0
      %980 = vmatpush1.bf16.msra.mxu0 0
      %981 = vmatprep.subr.bf16.mxu0 0
      %982 = vmatpush1.bf16.msra.mxu0 0
      %983 = vmatprep.subr.bf16.mxu0 0
      %984 = vmatpush1.bf16.msra.mxu0 0
      %985 = vmatprep.subr.bf16.mxu0 0
      %986 = vmatpush1.bf16.msra.mxu0 0
      %987 = vmatprep.subr.bf16.mxu0 0
      %988 = vmatpush1.bf16.msra.mxu0 0
      %989 = vmatprep.subr.bf16.mxu0 0
      %990 = vmatpush1.bf16.msra.mxu0 0
      %991 = vmatprep.subr.bf16.mxu0 0
      %992 = vmatpush1.bf16.msra.mxu0 0
      %993 = vmatprep.subr.bf16.mxu0 0
      %994 = vmatpush1.bf16.msra.mxu0 0
      %995 = vmatprep.subr.bf16.mxu0 0
      %996 = vmatpush1.bf16.msra.mxu0 0
      %997 = vmatprep.subr.bf16.mxu0 0
      %998 = vmatpush1.bf16.msra.mxu0 0
      %999 = vmatprep.subr.bf16.mxu0 0
      %1000 = vmatpush1.bf16.msra.mxu0 0
      %1001 = vmatprep.subr.bf16.mxu0 0
      %1002 = vmatpush1.bf16.msra.mxu0 0
      %1003 = vmatprep.mubr.bf16.mxu0 0
      %1004 = vmatmul.mubr.bf16.gmra.mrb[0].mxu0 %v966
      %v1005 = vpop.f32.mrb[0].mxu0
      %v1006 = vadd.f32 0.0, %v1005
      %v1007 = vpop.f32.mrb[0].mxu0
      %v1008 = vpop.f32.mrb[0].mxu0
      %v1009 = vpop.f32.mrb[0].mxu0
      %1010 = vdwg.mxu0
      %v1011 = vpack.c.bf16 %v1006, %v1006
      %v1013 = vsel %vm589, %v1011, 0
      %v1016 = vsel %vm653, %v583, 0
      %1018 = vmatprep.subr.bf16.mxu0 0
      %1019 = vmatpush1.bf16.msra.mxu0 %v1016
      %1020 = vmatprep.subr.bf16.mxu0 0
      %1021 = vmatpush1.bf16.msra.mxu0 0
      %1022 = vmatprep.subr.bf16.mxu0 0
      %1023 = vmatpush1.bf16.msra.mxu0 0
      %1024 = vmatprep.subr.bf16.mxu0 0
      %1025 = vmatpush1.bf16.msra.mxu0 0
      %1026 = vmatprep.subr.bf16.mxu0 0
      %1027 = vmatpush1.bf16.msra.mxu0 0
      %1028 = vmatprep.subr.bf16.mxu0 0
      %1029 = vmatpush1.bf16.msra.mxu0 0
      %1030 = vmatprep.subr.bf16.mxu0 0
      %1031 = vmatpush1.bf16.msra.mxu0 0
      %1032 = vmatprep.subr.bf16.mxu0 0
      %1033 = vmatpush1.bf16.msra.mxu0 0
      %1034 = vmatprep.subr.bf16.mxu0 0
      %1035 = vmatpush1.bf16.msra.mxu0 0
      %1036 = vmatprep.subr.bf16.mxu0 0
      %1037 = vmatpush1.bf16.msra.mxu0 0
      %1038 = vmatprep.subr.bf16.mxu0 0
      %1039 = vmatpush1.bf16.msra.mxu0 0
      %1040 = vmatprep.subr.bf16.mxu0 0
      %1041 = vmatpush1.bf16.msra.mxu0 0
      %1042 = vmatprep.subr.bf16.mxu0 0
      %1043 = vmatpush1.bf16.msra.mxu0 0
      %1044 = vmatprep.subr.bf16.mxu0 0
      %1045 = vmatpush1.bf16.msra.mxu0 0
      %1046 = vmatprep.subr.bf16.mxu0 0
      %1047 = vmatpush1.bf16.msra.mxu0 0
      %1048 = vmatprep.subr.bf16.mxu0 0
      %1049 = vmatpush1.bf16.msra.mxu0 0
      %1050 = vmatprep.mubr.bf16.mxu0 0
      %1051 = vmatmul.mubr.bf16.gmra.mrb[0].mxu0 %v1013
      %v1052 = vpop.f32.mrb[0].mxu0
      %v1053 = vadd.f32 0.0, %v1052
      %v1054 = vpop.f32.mrb[0].mxu0
      %v1055 = vpop.f32.mrb[0].mxu0
      %v1056 = vpop.f32.mrb[0].mxu0
      %1057 = vdwg.mxu0
      %v1058 = vadd.f32 %v896, %v1053
      %1059 = vrot.lane.b32.xlu0 %v585, 104
      %v1060 = vpop.permute.xlu0 %1059
      %1061 = vrot.lane.b32.xlu0 %v585, 72
      %v1062 = vpop.permute.xlu0 %1061
      %v1064 = vsel %vm589, %v1060, 0
      %v1067 = vsel %vm589, %v1062, 0
      %1069 = vmatprep.subr.bf16.mxu0 0
      %1070 = vmatpush1.bf16.xpose.msra.mxu0 %v1067
      %1071 = vmatprep.subr.bf16.mxu0 0
      %1072 = vmatpush1.bf16.xpose.msra.mxu0 0
      %1073 = vmatprep.subr.bf16.mxu0 0
      %1074 = vmatpush1.bf16.xpose.msra.mxu0 0
      %1075 = vmatprep.subr.bf16.mxu0 0
      %1076 = vmatpush1.bf16.xpose.msra.mxu0 0
      %1077 = vmatprep.subr.bf16.mxu0 0
      %1078 = vmatpush1.bf16.xpose.msra.mxu0 0
      %1079 = vmatprep.subr.bf16.mxu0 0
      %1080 = vmatpush1.bf16.xpose.msra.mxu0 0
      %1081 = vmatprep.subr.bf16.mxu0 0
      %1082 = vmatpush1.bf16.xpose.msra.mxu0 0
      %1083 = vmatprep.subr.bf16.mxu0 0
      %1084 = vmatpush1.bf16.xpose.msra.mxu0 0
      %1085 = vmatprep.subr.bf16.mxu0 0
      %1086 = vmatpush1.bf16.xpose.msra.mxu0 0
      %1087 = vmatprep.subr.bf16.mxu0 0
      %1088 = vmatpush1.bf16.xpose.msra.mxu0 0
      %1089 = vmatprep.subr.bf16.mxu0 0
      %1090 = vmatpush1.bf16.xpose.msra.mxu0 0
      %1091 = vmatprep.subr.bf16.mxu0 0
      %1092 = vmatpush1.bf16.xpose.msra.mxu0 0
      %1093 = vmatprep.subr.bf16.mxu0 0
      %1094 = vmatpush1.bf16.xpose.msra.mxu0 0
      %1095 = vmatprep.subr.bf16.mxu0 0
      %1096 = vmatpush1.bf16.xpose.msra.mxu0 0
      %1097 = vmatprep.subr.bf16.mxu0 0
      %1098 = vmatpush1.bf16.xpose.msra.mxu0 0
      %1099 = vmatprep.subr.bf16.mxu0 0
      %1100 = vmatpush1.bf16.xpose.msra.mxu0 0
      %1101 = vmatprep.mubr.bf16.mxu0 0
      %1102 = vmatmul.mubr.bf16.gmra.mrb[0].mxu0 %v1064
      %v1103 = vpop.f32.mrb[0].mxu0
      %v1104 = vadd.f32 %v580, %v1103
      %v1105 = vpop.f32.mrb[0].mxu0
      %v1106 = vpop.f32.mrb[0].mxu0
      %v1107 = vpop.f32.mrb[0].mxu0
      %1108 = vdwg.mxu0
      %v1109 = vsel %vm589, %v1104, -inf
      %1110 = vmax.xlane.f32.xlu0 %v1109
      %v1111 = vpop.xlane.xlu0 %1110
      %v1112 = vsub.f32 %v1104, %v1111
      %v1113 = vmul.f32 %v1112, 1.442695
      %v1114 = vpow.pop %v1113
      %v1115 = vsel %vm589, %v1114, 0.0
      %1116 = vadd.xlane.f32.xlu0 %v1115
      %v1117 = vpop.xlane.xlu0 %1116
      %v1118 = vrcp.pop %v1117
      %v1119 = vmul.f32 %v1114, %v1118
      %v1120 = vpack.c.bf16 %v1119, %v1119
      %1121 = vrot.lane.b32.xlu0 %v585, 40
      %v1122 = vpop.permute.xlu0 %1121
      %v1124 = vsel %vm589, %v1120, 0
      %v1127 = vsel %vm653, %v1122, 0
      %1129 = vmatprep.subr.bf16.mxu0 0
      %1130 = vmatpush1.bf16.msra.mxu0 %v1127
      %1131 = vmatprep.subr.bf16.mxu0 0
      %1132 = vmatpush1.bf16.msra.mxu0 0
      %1133 = vmatprep.subr.bf16.mxu0 0
      %1134 = vmatpush1.bf16.msra.mxu0 0
      %1135 = vmatprep.subr.bf16.mxu0 0
      %1136 = vmatpush1.bf16.msra.mxu0 0
      %1137 = vmatprep.subr.bf16.mxu0 0
      %1138 = vmatpush1.bf16.msra.mxu0 0
      %1139 = vmatprep.subr.bf16.mxu0 0
      %1140 = vmatpush1.bf16.msra.mxu0 0
      %1141 = vmatprep.subr.bf16.mxu0 0
      %1142 = vmatpush1.bf16.msra.mxu0 0
      %1143 = vmatprep.subr.bf16.mxu0 0
      %1144 = vmatpush1.bf16.msra.mxu0 0
      %1145 = vmatprep.subr.bf16.mxu0 0
      %1146 = vmatpush1.bf16.msra.mxu0 0
      %1147 = vmatprep.subr.bf16.mxu0 0
      %1148 = vmatpush1.bf16.msra.mxu0 0
      %1149 = vmatprep.subr.bf16.mxu0 0
      %1150 = vmatpush1.bf16.msra.mxu0 0
      %1151 = vmatprep.subr.bf16.mxu0 0
      %1152 = vmatpush1.bf16.msra.mxu0 0
      %1153 = vmatprep.subr.bf16.mxu0 0
      %1154 = vmatpush1.bf16.msra.mxu0 0
      %1155 = vmatprep.subr.bf16.mxu0 0
      %1156 = vmatpush1.bf16.msra.mxu0 0
      %1157 = vmatprep.subr.bf16.mxu0 0
      %1158 = vmatpush1.bf16.msra.mxu0 0
      %1159 = vmatprep.subr.bf16.mxu0 0
      %1160 = vmatpush1.bf16.msra.mxu0 0
      %1161 = vmatprep.mubr.bf16.mxu0 0
      %1162 = vmatmul.mubr.bf16.gmra.mrb[0].mxu0 %v1124
      %v1163 = vpop.f32.mrb[0].mxu0
      %v1164 = vadd.f32 0.0, %v1163
      %v1165 = vpop.f32.mrb[0].mxu0
      %v1166 = vpop.f32.mrb[0].mxu0
      %v1167 = vpop.f32.mrb[0].mxu0
      %1168 = vdwg.mxu0
      %v1169 = vpack.c.bf16 %v1164, %v1164
      %v1171 = vsel %vm589, %v1169, 0
      %v1174 = vsel %vm653, %v584, 0
      %1176 = vmatprep.subr.bf16.mxu0 0
      %1177 = vmatpush1.bf16.msra.mxu0 %v1174
      %1178 = vmatprep.subr.bf16.mxu0 0
      %1179 = vmatpush1.bf16.msra.mxu0 0
      %1180 = vmatprep.subr.bf16.mxu0 0
      %1181 = vmatpush1.bf16.msra.mxu0 0
      %1182 = vmatprep.subr.bf16.mxu0 0
      %1183 = vmatpush1.bf16.msra.mxu0 0
      %1184 = vmatprep.subr.bf16.mxu0 0
      %1185 = vmatpush1.bf16.msra.mxu0 0
      %1186 = vmatprep.subr.bf16.mxu0 0
      %1187 = vmatpush1.bf16.msra.mxu0 0
      %1188 = vmatprep.subr.bf16.mxu0 0
      %1189 = vmatpush1.bf16.msra.mxu0 0
      %1190 = vmatprep.subr.bf16.mxu0 0
      %1191 = vmatpush1.bf16.msra.mxu0 0
      %1192 = vmatprep.subr.bf16.mxu0 0
      %1193 = vmatpush1.bf16.msra.mxu0 0
      %1194 = vmatprep.subr.bf16.mxu0 0
      %1195 = vmatpush1.bf16.msra.mxu0 0
      %1196 = vmatprep.subr.bf16.mxu0 0
      %1197 = vmatpush1.bf16.msra.mxu0 0
      %1198 = vmatprep.subr.bf16.mxu0 0
      %1199 = vmatpush1.bf16.msra.mxu0 0
      %1200 = vmatprep.subr.bf16.mxu0 0
      %1201 = vmatpush1.bf16.msra.mxu0 0
      %1202 = vmatprep.subr.bf16.mxu0 0
      %1203 = vmatpush1.bf16.msra.mxu0 0
      %1204 = vmatprep.subr.bf16.mxu0 0
      %1205 = vmatpush1.bf16.msra.mxu0 0
      %1206 = vmatprep.subr.bf16.mxu0 0
      %1207 = vmatpush1.bf16.msra.mxu0 0
      %1208 = vmatprep.mubr.bf16.mxu0 0
      %1209 = vmatmul.mubr.bf16.gmra.mrb[0].mxu0 %v1171
      %v1210 = vpop.f32.mrb[0].mxu0
      %v1211 = vadd.f32 0.0, %v1210
      %v1212 = vpop.f32.mrb[0].mxu0
      %v1213 = vpop.f32.mrb[0].mxu0
      %v1214 = vpop.f32.mrb[0].mxu0
      %1215 = vdwg.mxu0
      %v1216 = vadd.f32 %v1058, %v1211
      %v1217 = vadd.f32 %v481, %v1216
      %v1218 = vld [vmem:[%s7] sm:$0x1]
      %v1220 = vlaneseq
      %v1221 = vshrl.u32 %v1220, 7
      %v1222 = vsub.s32 0, %v1221
      %v1223 = vrot.slane %v1218, %v1222
      %v1225 = vadd.f32 %v1217, %v1223
      %v1226 = vld [vmem:[%s8] sm:$0x1]
      %v1227 = vld [vmem:[%s9] sm:$0x1]
      %v1228 = vsel %vm484, %v1225, 0.0
      %1229 = vadd.xlane.f32.xlu0 %v1228
      %v1230 = vpop.xlane.xlu0 %1229
      %v1231 = vmul.f32 %v1230, %v488
      %v1232 = vsub.f32 %v1225, %v1231
      %v1233 = vmul.f32 %v1232, %v1232
      %v1234 = vsel %vm484, %v1233, 0.0
      %1235 = vadd.xlane.f32.xlu0 %v1234
      %v1236 = vpop.xlane.xlu0 %1235
      %v1237 = vmul.f32 %v1236, %v488
      %v1238 = vadd.f32 %v1237, 1e-05
      %v1239 = vrsqrt.pop %v1238
      %v1240 = vmul.f32 %v1232, %v1239
      %v1242 = vlaneseq
      %v1243 = vshrl.u32 %v1242, 7
      %v1244 = vsub.s32 0, %v1243
      %v1245 = vrot.slane %v1226, %v1244
      %v1247 = vmul.f32 %v1240, %v1245
      %v1249 = vlaneseq
      %v1250 = vshrl.u32 %v1249, 7
      %v1251 = vsub.s32 0, %v1250
      %v1252 = vrot.slane %v1227, %v1251
      %v1254 = vadd.f32 %v1247, %v1252
      %v1255 = vpack.c.bf16 %v1254, %v1254
      %v1256 = vld [vmem:[%s10] sm:$0xf]
      %v1257 = vld [vmem:[%s10 + $0x4] sm:$0xf]
      %v1258 = vld [vmem:[%s10 + $0x8] sm:$0xf]
      %v1259 = vld [vmem:[%s10 + $0xc] sm:$0xf]
      %v1260 = vld [vmem:[%s11] sm:$0x1]
      %v1262 = vlaneseq
      %v1263 = vshrl.u32 %v1262, 7
      %v1264 = vsub.s32 0, %v1263
      %v1265 = vrot.slane %v1260, %v1264
      %v1271 = vunpack.c.l.b16 %v1256
      %v1272 = vunpack.c.l.b16 %v1257
      %v1273 = vunpack.c.l.b16 %v1258
      %v1274 = vunpack.c.l.b16 %v1259
      %v1275 = vpack.c.b16 %v1272, %v1271
      %v1276 = vpack.c.b16 %v1274, %v1273
      %v1280 = vsel %vm484, %v1255, 0
      %1282 = vmatprep.subr.bf16.mxu0 0
      %1283 = vmatpush1.bf16.msra.mxu0 %v1275
      %1284 = vmatprep.subr.bf16.mxu0 0
      %1285 = vmatpush1.bf16.msra.mxu0 %v1276
      %1286 = vmatprep.subr.bf16.mxu0 0
      %1287 = vmatpush1.bf16.msra.mxu0 0
      %1288 = vmatprep.subr.bf16.mxu0 0
      %1289 = vmatpush1.bf16.msra.mxu0 0
      %1290 = vmatprep.subr.bf16.mxu0 0
      %1291 = vmatpush1.bf16.msra.mxu0 0
      %1292 = vmatprep.subr.bf16.mxu0 0
      %1293 = vmatpush1.bf16.msra.mxu0 0
      %1294 = vmatprep.subr.bf16.mxu0 0
      %1295 = vmatpush1.bf16.msra.mxu0 0
      %1296 = vmatprep.subr.bf16.mxu0 0
      %1297 = vmatpush1.bf16.msra.mxu0 0
      %1298 = vmatprep.subr.bf16.mxu0 0
      %1299 = vmatpush1.bf16.msra.mxu0 0
      %1300 = vmatprep.subr.bf16.mxu0 0
      %1301 = vmatpush1.bf16.msra.mxu0 0
      %1302 = vmatprep.subr.bf16.mxu0 0
      %1303 = vmatpush1.bf16.msra.mxu0 0
      %1304 = vmatprep.subr.bf16.mxu0 0
      %1305 = vmatpush1.bf16.msra.mxu0 0
      %1306 = vmatprep.subr.bf16.mxu0 0
      %1307 = vmatpush1.bf16.msra.mxu0 0
      %1308 = vmatprep.subr.bf16.mxu0 0
      %1309 = vmatpush1.bf16.msra.mxu0 0
      %1310 = vmatprep.subr.bf16.mxu0 0
      %1311 = vmatpush1.bf16.msra.mxu0 0
      %1312 = vmatprep.subr.bf16.mxu0 0
      %1313 = vmatpush1.bf16.msra.mxu0 0
      %1314 = vmatprep.mubr.bf16.mxu0 0
      %1315 = vmatmul.mubr.bf16.gmra.mrb[0].mxu0 %v1280
      %v1316 = vpop.f32.mrb[0].mxu0
      %v1317 = vadd.f32 %v1265, %v1316
      %v1318 = vpop.f32.mrb[0].mxu0
      %v1319 = vpop.f32.mrb[0].mxu0
      %v1320 = vpop.f32.mrb[0].mxu0
      %1321 = vdwg.mxu0
      %v1322 = vmul.f32 %v1317, 0.5
      %v1323 = vmul.f32 %v1317, 0.044715
      %v1324 = vmul.f32 %v1323, %v1317
      %v1325 = vmul.f32 %v1324, %v1317
      %v1326 = vadd.f32 %v1317, %v1325
      %v1327 = vmul.f32 %v1326, 0.7978846
      %v1328 = vtanh.pop %v1327
      %v1329 = vadd.f32 %v1328, 1.0
      %v1330 = vmul.f32 %v1322, %v1329
      %v1331 = vpack.c.bf16 %v1330, %v1330
      %v1332 = vld [vmem:[%s12] sm:$0xf]
      %v1333 = vld [vmem:[%s12 + $0x4] sm:$0xf]
      %v1334 = vld [vmem:[%s12 + $0x8] sm:$0xf]
      %v1335 = vld [vmem:[%s12 + $0xc] sm:$0xf]
      %v1336 = vld [vmem:[%s12 + $0x10] sm:$0xf]
      %v1337 = vld [vmem:[%s12 + $0x14] sm:$0xf]
      %v1338 = vld [vmem:[%s12 + $0x18] sm:$0xf]
      %v1339 = vld [vmem:[%s12 + $0x1c] sm:$0xf]
      %v1340 = vld [vmem:[%s13] sm:$0x1]
      %v1342 = vlaneseq
      %v1343 = vshrl.u32 %v1342, 7
      %v1344 = vsub.s32 0, %v1343
      %v1345 = vrot.slane %v1340, %v1344
      %v1355 = vunpack.c.l.b16 %v1332
      %v1356 = vunpack.c.l.b16 %v1333
      %v1357 = vunpack.c.l.b16 %v1334
      %v1358 = vunpack.c.l.b16 %v1335
      %v1359 = vunpack.c.l.b16 %v1336
      %v1360 = vunpack.c.l.b16 %v1337
      %v1361 = vunpack.c.l.b16 %v1338
      %v1362 = vunpack.c.l.b16 %v1339
      %v1363 = vpack.c.b16 %v1356, %v1355
      %v1364 = vpack.c.b16 %v1358, %v1357
      %v1365 = vpack.c.b16 %v1360, %v1359
      %v1366 = vpack.c.b16 %v1362, %v1361
      %vm1371 = vcmask 523264
      %v1373 = vsel %vm1371, %v1331, 0
      %1375 = vmatprep.subr.bf16.mxu0 0
      %1376 = vmatpush1.bf16.msra.mxu0 %v1363
      %1377 = vmatprep.subr.bf16.mxu0 0
      %1378 = vmatpush1.bf16.msra.mxu0 %v1364
      %1379 = vmatprep.subr.bf16.mxu0 0
      %1380 = vmatpush1.bf16.msra.mxu0 %v1365
      %1381 = vmatprep.subr.bf16.mxu0 0
      %1382 = vmatpush1.bf16.msra.mxu0 %v1366
      %1383 = vmatprep.subr.bf16.mxu0 0
      %1384 = vmatpush1.bf16.msra.mxu0 0
      %1385 = vmatprep.subr.bf16.mxu0 0
      %1386 = vmatpush1.bf16.msra.mxu0 0
      %1387 = vmatprep.subr.bf16.mxu0 0
      %1388 = vmatpush1.bf16.msra.mxu0 0
      %1389 = vmatprep.subr.bf16.mxu0 0
      %1390 = vmatpush1.bf16.msra.mxu0 0
      %1391 = vmatprep.subr.bf16.mxu0 0
      %1392 = vmatpush1.bf16.msra.mxu0 0
      %1393 = vmatprep.subr.bf16.mxu0 0
      %1394 = vmatpush1.bf16.msra.mxu0 0
      %1395 = vmatprep.subr.bf16.mxu0 0
      %1396 = vmatpush1.bf16.msra.mxu0 0
      %1397 = vmatprep.subr.bf16.mxu0 0
      %1398 = vmatpush1.bf16.msra.mxu0 0
      %1399 = vmatprep.subr.bf16.mxu0 0
      %1400 = vmatpush1.bf16.msra.mxu0 0
      %1401 = vmatprep.subr.bf16.mxu0 0
      %1402 = vmatpush1.bf16.msra.mxu0 0
      %1403 = vmatprep.subr.bf16.mxu0 0
      %1404 = vmatpush1.bf16.msra.mxu0 0
      %1405 = vmatprep.subr.bf16.mxu0 0
      %1406 = vmatpush1.bf16.msra.mxu0 0
      %1407 = vmatprep.mubr.bf16.mxu0 0
      %1408 = vmatmul.mubr.bf16.gmra.mrb[0].mxu0 %v1373
      %v1409 = vpop.f32.mrb[0].mxu0
      %v1410 = vadd.f32 %v1345, %v1409
      %v1411 = vpop.f32.mrb[0].mxu0
      %v1412 = vpop.f32.mrb[0].mxu0
      %v1413 = vpop.f32.mrb[0].mxu0
      %1414 = vdwg.mxu0
      %v1415 = vadd.f32 %v1225, %v1410
      %1416 = vst.msk [vmem:[%s479] sm:$0xff] %vm484, %v1415
      %p1417 = scmp.lt.s32.totalorder %s25, 3
      %s1418 = scalar_select %p1417, %s25, 3
      %s1419 = smul.addr %s1418, 8
      %s1420 = scalar_lea.vmem %s14, %s1419
      // Predicated region
      $region77: #{owlv2_forward.12} parent=75 // pred_check
        %p1421 = pneg %p347
      $region78: #{owlv2_forward.12} parent=75 // pred_check_branch
        %1423 = sbr.rel (%p1421) target = $region80
      $region79: #{owlv2_forward.12} parent=75 // pred_region
        _
      $region80: #{owlv2_forward.12} parent=75 // pred_fallthru
        _
    $region76: #{owlv2_forward.12} parent=5 // pred_fallthru
      _
    %p1424 = scmp.le.s32.totalorder 2, %s20
    // Predicated region
    $region81: #{owlv2_forward.12} parent=5 // pred_check
      %p1425 = pneg %p1424
    $region82: #{owlv2_forward.12} parent=5 // pred_check_branch
      %1427 = sbr.rel (%p1425) target = $region84
    $region83: #{owlv2_forward.12} parent=5 // pred_region
      %s1428 = ssub.s32 %s20, 2
      // Predicated region
      $region85: #{owlv2_forward.12} parent=83 // pred_check
        %p1429 = pneg %p353
      $region86: #{owlv2_forward.12} parent=83 // pred_check_branch
        %1431 = sbr.rel (%p1429) target = $region88
      $region87: #{owlv2_forward.12} parent=83 // pred_region
        %p1432 = scmp.lt.s32.totalorder %s26, 3
        %s1433 = scalar_select %p1432, %s26, 3
        %s1434 = smul.addr %s1433, 8
        %s1435 = scalar_lea.vmem %s14, %s1434
      $region88: #{owlv2_forward.12} parent=83 // pred_fallthru
        _
    $region84: #{owlv2_forward.12} parent=5 // pred_fallthru
      _
  $region6: #{owlv2_forward.12} parent=0 // loop_footer
    %s24 = sadd.s32 1, %s20
  $region7: #{owlv2_forward.12} parent=0 // loop_footer_branch
    %19 = sbr.rel target = $region3
  $region8: #{owlv2_forward.12} parent=0 // loop_exit
    _

</llo_original>
